<compile_context>
chip_gen: v6e
topology: v6e:2x2x1
jax: 0.10.0
libtpu: 0.0.40
codegen_flags: <defaults>
</compile_context>

<pallas_src>
import functools

import jax
import jax.numpy as jnp
from jax import lax
from jax.experimental import pallas as pl
from jax.experimental.pallas import tpu as pltpu

NEG_SLOPE = 0.01  # nn.LeakyReLU(0.01)

VMEM_SPEC = pl.BlockSpec(memory_space=pltpu.MemorySpace.VMEM)
CPARAMS = pltpu.CompilerParams(vmem_limit_bytes=32 * 1024 * 1024)


def _leaky(v):
    return jnp.where(v >= 0.0, v, NEG_SLOPE * v)


def _layer_dims(H, W):
    """(h, w, s) of each conv layer's input in the pitch-W flat layout."""
    dims = []
    h, w, s = H, W, 1
    for l in range(4):
        dims.append((h, w, s))
        if l < 3:                       # 2x2/2 max pool after layers 0..2
            h, w, s = (h - 2) // 2, (w - 2) // 2, 2 * s
    return dims


def _num_rows(h, w, s, P):
    """Flat rows needed to cover every valid 3x3-conv output position."""
    return (h - 3) * P + s * (w - 3) + 1


# ---------------------------------------------------------------------------
# Fused forward kernel: conv0..conv3 + pools + head, all in VMEM, whole batch
# lane-packed (activations are (rows, N*C); weights are block-diagonal).
# ---------------------------------------------------------------------------
def _fused_forward_kernel(p0_ref,
                          w0_ref, b0_ref, w1_ref, b1_ref,
                          w2_ref, b2_ref, w3_ref, b3_ref,
                          lw1_ref, lb1_ref, lw2_ref, lb2_ref,
                          o_ref,
                          a1_ref, a2_ref, a3_ref,
                          *, H, W):
    P = W                                             # row pitch of flat buffers
    (h0, w0d, s0), (h1, w1d, s1), (h2, w2d, s2), (h3, w3d, s3) = _layer_dims(H, W)

    # NOTE: a1/a2/a3 are NOT zero-initialized.  Pad rows (never written by the
    # pool compaction) only ever feed "garbage" conv/pool output rows and never
    # reach a valid output position or the avg-pool index set, because every
    # layer satisfies s*(w-1) < P (asserted in the wrapper).

    def conv(src_ref, h, w, s, w_ref, b_ref):
        """3x3 VALID conv + bias + LeakyReLU on a pitch-P flat bf16 buffer."""
        L = _num_rows(h, w, s, P)
        LE = L + 2 * P
        # 3 kw taps (row offsets 0, s, 2s) -> lanes (kw, sample, cin)
        e = jnp.concatenate(
            [src_ref[s * kw: s * kw + LE, :] for kw in range(3)], axis=1)
        # 3 kh taps at sublane-aligned offsets (multiples of P, P % 16 == 0)
        patch = jnp.concatenate(
            [e[kh * P: kh * P + L, :] for kh in range(3)], axis=1)  # (L, 9*N*Cin) bf16
        y = jnp.dot(patch, w_ref[...], preferred_element_type=jnp.float32)
        return _leaky(y + b_ref[...])                               # (L, N*Cout) f32

    def pool_into(y, h, w, s, dst_ref):
        """Fused 2x2/2 max pool (f32) + H row-block compaction into bf16 dst."""
        L = y.shape[0]
        hp, wp = (h - 2) // 2, (w - 2) // 2
        z = jnp.maximum(y[:L - s, :], y[s:, :])                     # horizontal pairs
        v = jnp.maximum(z[:L - s - P, :], z[P:, :])                 # vertical pairs
        vb = v.astype(dst_ref.dtype)                                # cast once -> bf16
        T = 2 * s * (wp - 1) + 1                                    # valid block width
        for p in range(hp):
            dst_ref[p * P: p * P + T, :] = vb[2 * p * P: 2 * p * P + T, :]

    # ---- layer 0: host-im2col patch (L0, N*27) bf16 -> conv + pool ----------
    y = _leaky(jnp.dot(p0_ref[...], w0_ref[...],
                       preferred_element_type=jnp.float32) + b0_ref[...])
    pool_into(y, h0, w0d, s0, a1_ref)
    # ---- layer 1: conv(32->32) + pool ----------------------------------------
    y = conv(a1_ref, h1, w1d, s1, w1_ref, b1_ref)
    pool_into(y, h1, w1d, s1, a2_ref)
    # ---- layer 2: conv(32->64) + pool ----------------------------------------
    y = conv(a2_ref, h2, w2d, s2, w2_ref, b2_ref)
    pool_into(y, h2, w2d, s2, a3_ref)
    # ---- layer 3: conv(64->64), no pool ---------------------------------------
    y = conv(a3_ref, h3, w3d, s3, w3_ref, b3_ref)

    # AdaptiveAvgPool2d((1,1)) over the (h3-2)x(w3-2) valid outputs, done with
    # shifted-slice adds instead of ho*wo single-row extracts.
    ho, wo = h3 - 2, w3d - 2
    Lr = (ho - 1) * P + 1
    t = y[0:Lr, :]
    for j in range(1, wo):
        t = t + y[s3 * j: s3 * j + Lr, :]
    feat = t[0:1, :]
    for i in range(1, ho):
        feat = feat + t[i * P: i * P + 1, :]
    feat = feat * (1.0 / (ho * wo))                                 # (1, N*64) f32

    # Head: Linear(64->10) + LeakyReLU + Linear(10->2), block-diagonal over N.
    hfc = _leaky(jnp.dot(feat, lw1_ref[...],
                         preferred_element_type=jnp.float32) + lb1_ref[...])
    o_ref[...] = jnp.dot(hfc, lw2_ref[...],
                         preferred_element_type=jnp.float32) + lb2_ref[...]


# ---------------------------------------------------------------------------
# Wrapper: NCHW -> flat NHWC rows, layer-0 im2col, block-diag weight packing,
# single grid-less pallas_call.
# ---------------------------------------------------------------------------
@jax.jit
def convnn_forward(x_nchw, params):
    N, Cin, H, W = x_nchw.shape
    P = W
    dims = _layer_dims(H, W)

    # Load-bearing invariants of the constant-pitch flat layout (see kernel).
    assert P % 16 == 0, "row pitch must be a multiple of 16 (bf16 sublane packing)"
    for (h, w, s) in dims:
        assert s * (w - 1) < P and h >= 3 and w >= 3, "pitch invariant violated"

    (h0, w0d, s0), (h1, _, _), (h2, _, _), (h3, _, _) = dims
    L0 = _num_rows(h0, w0d, s0, P)

    # NCHW -> flattened NHWC pixel rows, host-side im2col for conv0 only
    # (Cin=3 is too lane-narrow to be worth building in-kernel), lane-stacked
    # over the batch: lanes ordered (sample, tap, cin).
    # TODO(synk): if the input grows, tile patch0 with a grid BlockSpec instead
    # of a single full-array VMEM block (its size scales as 9*N*H*W).
    xf = jnp.transpose(x_nchw, (0, 2, 3, 1)).astype(jnp.float32).reshape(N, H * W, Cin)
    p0 = jnp.concatenate(
        [xf[:, kh * W + kw: kh * W + kw + L0, :]
         for kh in range(3) for kw in range(3)], axis=-1)            # (N, L0, 9*Cin)
    p0 = jnp.transpose(p0, (1, 0, 2)).reshape(L0, N * 9 * Cin).astype(jnp.bfloat16)

    eyeN = jnp.eye(N, dtype=jnp.float32)

    def conv_bd(w):      # (3,3,cin,cout) -> block-diag (9*N*cin, N*cout) bf16
        cin, cout = w.shape[2], w.shape[3]
        w9 = w.reshape(9, cin, cout)
        wbd = w9[:, None, :, None, :] * eyeN[None, :, None, :, None]
        return wbd.reshape(9 * N * cin, N * cout).astype(jnp.bfloat16)

    def conv0_bd(w):     # lane order of p0 is (sample, tap, cin)
        wr = w.reshape(9 * w.shape[2], w.shape[3])                    # (27, 32)
        wbd = eyeN[:, None, :, None] * wr[None, :, None, :]
        return wbd.reshape(N * wr.shape[0], N * wr.shape[1]).astype(jnp.bfloat16)

    def head_bd(w):      # (fin, fout) -> block-diag (N*fin, N*fout) f32
        fin, fout = w.shape
        wbd = eyeN[:, None, :, None] * w[None, :, None, :]
        return wbd.reshape(N * fin, N * fout).astype(jnp.float32)

    def bias_bd(b):      # (c,) -> (1, N*c) f32, lane order (sample, c)
        return jnp.tile(b.astype(jnp.float32), (N,)).reshape(1, -1)

    args = (p0,
            conv0_bd(params['w0']), bias_bd(params['b0']),
            conv_bd(params['w1']), bias_bd(params['b1']),
            conv_bd(params['w2']), bias_bd(params['b2']),
            conv_bd(params['w3']), bias_bd(params['b3']),
            head_bd(params['lw1']), bias_bd(params['lb1']),
            head_bd(params['lw2']), bias_bd(params['lb2']))

    n_cls = params['lw2'].shape[1]
    kern = functools.partial(_fused_forward_kernel, H=H, W=W)
    out = pl.pallas_call(
        kern,
        out_shape=jax.ShapeDtypeStruct((1, N * n_cls), jnp.float32),
        in_specs=[VMEM_SPEC] * len(args),
        out_specs=VMEM_SPEC,
        scratch_shapes=[
            pltpu.VMEM((h1 * P, N * params['w0'].shape[-1]), jnp.bfloat16),  # pooled act 0
            pltpu.VMEM((h2 * P, N * params['w1'].shape[-1]), jnp.bfloat16),  # pooled act 1
            pltpu.VMEM((h3 * P, N * params['w2'].shape[-1]), jnp.bfloat16),  # pooled act 2
        ],
        compiler_params=CPARAMS,
    )(*args)
    return out.reshape(N, n_cls)


# ---------------------------------------------------------------------------
# Parameters (deterministic synthetic init) and pure-JAX reference.
# ---------------------------------------------------------------------------
def init_params(key):
    ks = jax.random.split(key, 12)

    def conv_p(kw_, kb_, cin, cout):
        scale = (9 * cin) ** -0.5
        return (jax.random.normal(kw_, (3, 3, cin, cout), jnp.float32) * scale,
                jax.random.normal(kb_, (cout,), jnp.float32) * 0.1)

    w0, b0 = conv_p(ks[0], ks[1], 3, 32)
    w1, b1 = conv_p(ks[2], ks[3], 32, 32)
    w2, b2 = conv_p(ks[4], ks[5], 32, 64)
    w3, b3 = conv_p(ks[6], ks[7], 64, 64)
    lw1 = jax.random.normal(ks[8], (64, 10), jnp.float32) * (64 ** -0.5)
    lb1 = jax.random.normal(ks[9], (10,), jnp.float32) * 0.1
    lw2 = jax.random.normal(ks[10], (10, 2), jnp.float32) * (10 ** -0.5)
    lb2 = jax.random.normal(ks[11], (2,), jnp.float32) * 0.1
    return dict(w0=w0, b0=b0, w1=w1, b1=b1, w2=w2, b2=b2, w3=w3, b3=b3,
                lw1=lw1, lb1=lb1, lw2=lw2, lb2=lb2)


def ref_forward(x_nchw, p):
    x = jnp.transpose(x_nchw, (0, 2, 3, 1)).astype(jnp.float32)

    def conv(z, w, b):
        y = lax.conv_general_dilated(
            z, w, (1, 1), 'VALID',
            dimension_numbers=('NHWC', 'HWIO', 'NHWC'),
            precision=lax.Precision.HIGHEST)
        return _leaky(y + b)

    def mp(z):
        return lax.reduce_window(z, -jnp.inf, lax.max,
                                 (1, 2, 2, 1), (1, 2, 2, 1), 'VALID')

    y = mp(conv(x, p['w0'], p['b0']))
    y = mp(conv(y, p['w1'], p['b1']))
    y = mp(conv(y, p['w2'], p['b2']))
    y = conv(y, p['w3'], p['b3'])
    pooled = jnp.mean(y, axis=(1, 2))
    h = _leaky(pooled @ p['lw1'] + p['lb1'])
    return h @ p['lw2'] + p['lb2']


if __name__ == "__main__":
    key = jax.random.PRNGKey(0)
    kx, kp = jax.random.split(key)
    params = init_params(kp)
    # NCHW input like the PyTorch module: batch=2, channels=3, spatial=48
    x = jax.random.normal(kx, (2, 3, 48, 48), jnp.float32)

    out = jax.block_until_ready(convnn_forward(x, params))
    assert out.shape == (2, 2), out.shape

    ref = jax.block_until_ready(ref_forward(x, params))
    if not jnp.allclose(out, ref, atol=3e-2, rtol=3e-2):
        raise AssertionError(f"kernel/reference mismatch:\n{out}\nvs\n{ref}")

    print("KERNEL_OK")
</pallas_src>

<mosaic_0001>
module attributes {stable_mosaic.version = 11 : i64} {
  func.func @_fused_forward_kernel(%arg0: memref<2206x54xbf16, #tpu.memory_space<vmem>>, %arg1: memref<54x64xbf16, #tpu.memory_space<vmem>>, %arg2: memref<1x64xf32, #tpu.memory_space<vmem>>, %arg3: memref<576x64xbf16, #tpu.memory_space<vmem>>, %arg4: memref<1x64xf32, #tpu.memory_space<vmem>>, %arg5: memref<576x128xbf16, #tpu.memory_space<vmem>>, %arg6: memref<1x128xf32, #tpu.memory_space<vmem>>, %arg7: memref<1152x128xbf16, #tpu.memory_space<vmem>>, %arg8: memref<1x128xf32, #tpu.memory_space<vmem>>, %arg9: memref<128x20xf32, #tpu.memory_space<vmem>>, %arg10: memref<1x20xf32, #tpu.memory_space<vmem>>, %arg11: memref<20x4xf32, #tpu.memory_space<vmem>>, %arg12: memref<1x4xf32, #tpu.memory_space<vmem>>, %arg13: memref<1x4xf32, #tpu.memory_space<vmem>>, %arg14: memref<1104x64xbf16, #tpu.memory_space<vmem>>, %arg15: memref<480x64xbf16, #tpu.memory_space<vmem>>, %arg16: memref<192x128xbf16, #tpu.memory_space<vmem>>) attributes {dimension_semantics = [], scalar_prefetch = 0 : i64, scratch_operands = 3 : i64, tpu.core_type = #tpu.core_type<tc>} {
    %c0 = arith.constant 0 : index
    %c0_0 = arith.constant 0 : index
    %0 = vector.load %arg0[%c0, %c0_0] : memref<2206x54xbf16, #tpu.memory_space<vmem>>, vector<2206x54xbf16>
    %c0_1 = arith.constant 0 : index
    %c0_2 = arith.constant 0 : index
    %1 = vector.load %arg1[%c0_1, %c0_2] : memref<54x64xbf16, #tpu.memory_space<vmem>>, vector<54x64xbf16>
    %cst = arith.constant dense<0.000000e+00> : vector<2206x64xf32>
    %2 = tpu.matmul %0, %1, %cst {dimension_numbers = #tpu.dot_dimension_numbers<[1], [0], [0], [1], [0, 0, 1, 1], [], []>} : vector<2206x54xbf16>, vector<54x64xbf16>, vector<2206x64xf32> -> vector<2206x64xf32>
    %c0_3 = arith.constant 0 : index
    %c0_4 = arith.constant 0 : index
    %3 = vector.load %arg2[%c0_3, %c0_4] : memref<1x64xf32, #tpu.memory_space<vmem>>, vector<1x64xf32>
    %4 = vector.broadcast %3 : vector<1x64xf32> to vector<2206x64xf32>
    %5 = arith.addf %2, %4 : vector<2206x64xf32>
    %cst_5 = arith.constant 0.000000e+00 : f32
    %6 = vector.broadcast %cst_5 : f32 to vector<2206x64xf32>
    %7 = arith.cmpf oge, %5, %6 : vector<2206x64xf32>
    %cst_6 = arith.constant 0.00999999977 : f32
    %8 = vector.broadcast %cst_6 : f32 to vector<2206x64xf32>
    %9 = arith.mulf %8, %5 : vector<2206x64xf32>
    %10 = arith.select %7, %5, %9 : vector<2206x64xi1>, vector<2206x64xf32>
    %11 = vector.extract_strided_slice %10 {offsets = [0, 0], sizes = [2205, 64], strides = [1, 1]} : vector<2206x64xf32> to vector<2205x64xf32>
    %12 = vector.extract_strided_slice %10 {offsets = [1, 0], sizes = [2205, 64], strides = [1, 1]} : vector<2206x64xf32> to vector<2205x64xf32>
    %13 = arith.maximumf %11, %12 : vector<2205x64xf32>
    %14 = vector.extract_strided_slice %13 {offsets = [0, 0], sizes = [2157, 64], strides = [1, 1]} : vector<2205x64xf32> to vector<2157x64xf32>
    %15 = vector.extract_strided_slice %13 {offsets = [48, 0], sizes = [2157, 64], strides = [1, 1]} : vector<2205x64xf32> to vector<2157x64xf32>
    %16 = arith.maximumf %14, %15 : vector<2157x64xf32>
    %17 = arith.truncf %16 : vector<2157x64xf32> to vector<2157x64xbf16>
    %18 = vector.extract_strided_slice %17 {offsets = [0, 0], sizes = [45, 64], strides = [1, 1]} : vector<2157x64xbf16> to vector<45x64xbf16>
    %c0_7 = arith.constant 0 : index
    %c0_8 = arith.constant 0 : index
    %19 = vector.load %arg14[%c0_7, %c0_8] : memref<1104x64xbf16, #tpu.memory_space<vmem>>, vector<45x64xbf16>
    tpu.vector_store %arg14[%c0_7, %c0_8], %18 {strides = array<i32>} : memref<1104x64xbf16, #tpu.memory_space<vmem>>, vector<45x64xbf16>,
    %20 = vector.extract_strided_slice %17 {offsets = [96, 0], sizes = [45, 64], strides = [1, 1]} : vector<2157x64xbf16> to vector<45x64xbf16>
    %c48 = arith.constant 48 : index
    %c0_9 = arith.constant 0 : index
    %21 = vector.load %arg14[%c48, %c0_9] : memref<1104x64xbf16, #tpu.memory_space<vmem>>, vector<45x64xbf16>
    tpu.vector_store %arg14[%c48, %c0_9], %20 {strides = array<i32>} : memref<1104x64xbf16, #tpu.memory_space<vmem>>, vector<45x64xbf16>,
    %22 = vector.extract_strided_slice %17 {offsets = [192, 0], sizes = [45, 64], strides = [1, 1]} : vector<2157x64xbf16> to vector<45x64xbf16>
    %c96 = arith.constant 96 : index
    %c0_10 = arith.constant 0 : index
    %23 = vector.load %arg14[%c96, %c0_10] : memref<1104x64xbf16, #tpu.memory_space<vmem>>, vector<45x64xbf16>
    tpu.vector_store %arg14[%c96, %c0_10], %22 {strides = array<i32>} : memref<1104x64xbf16, #tpu.memory_space<vmem>>, vector<45x64xbf16>,
    %24 = vector.extract_strided_slice %17 {offsets = [288, 0], sizes = [45, 64], strides = [1, 1]} : vector<2157x64xbf16> to vector<45x64xbf16>
    %c144 = arith.constant 144 : index
    %c0_11 = arith.constant 0 : index
    %25 = vector.load %arg14[%c144, %c0_11] : memref<1104x64xbf16, #tpu.memory_space<vmem>>, vector<45x64xbf16>
    tpu.vector_store %arg14[%c144, %c0_11], %24 {strides = array<i32>} : memref<1104x64xbf16, #tpu.memory_space<vmem>>, vector<45x64xbf16>,
    %26 = vector.extract_strided_slice %17 {offsets = [384, 0], sizes = [45, 64], strides = [1, 1]} : vector<2157x64xbf16> to vector<45x64xbf16>
    %c192 = arith.constant 192 : index
    %c0_12 = arith.constant 0 : index
    %27 = vector.load %arg14[%c192, %c0_12] : memref<1104x64xbf16, #tpu.memory_space<vmem>>, vector<45x64xbf16>
    tpu.vector_store %arg14[%c192, %c0_12], %26 {strides = array<i32>} : memref<1104x64xbf16, #tpu.memory_space<vmem>>, vector<45x64xbf16>,
    %28 = vector.extract_strided_slice %17 {offsets = [480, 0], sizes = [45, 64], strides = [1, 1]} : vector<2157x64xbf16> to vector<45x64xbf16>
    %c240 = arith.constant 240 : index
    %c0_13 = arith.constant 0 : index
    %29 = vector.load %arg14[%c240, %c0_13] : memref<1104x64xbf16, #tpu.memory_space<vmem>>, vector<45x64xbf16>
    tpu.vector_store %arg14[%c240, %c0_13], %28 {strides = array<i32>} : memref<1104x64xbf16, #tpu.memory_space<vmem>>, vector<45x64xbf16>,
    %30 = vector.extract_strided_slice %17 {offsets = [576, 0], sizes = [45, 64], strides = [1, 1]} : vector<2157x64xbf16> to vector<45x64xbf16>
    %c288 = arith.constant 288 : index
    %c0_14 = arith.constant 0 : index
    %31 = vector.load %arg14[%c288, %c0_14] : memref<1104x64xbf16, #tpu.memory_space<vmem>>, vector<45x64xbf16>
    tpu.vector_store %arg14[%c288, %c0_14], %30 {strides = array<i32>} : memref<1104x64xbf16, #tpu.memory_space<vmem>>, vector<45x64xbf16>,
    %32 = vector.extract_strided_slice %17 {offsets = [672, 0], sizes = [45, 64], strides = [1, 1]} : vector<2157x64xbf16> to vector<45x64xbf16>
    %c336 = arith.constant 336 : index
    %c0_15 = arith.constant 0 : index
    %33 = vector.load %arg14[%c336, %c0_15] : memref<1104x64xbf16, #tpu.memory_space<vmem>>, vector<45x64xbf16>
    tpu.vector_store %arg14[%c336, %c0_15], %32 {strides = array<i32>} : memref<1104x64xbf16, #tpu.memory_space<vmem>>, vector<45x64xbf16>,
    %34 = vector.extract_strided_slice %17 {offsets = [768, 0], sizes = [45, 64], strides = [1, 1]} : vector<2157x64xbf16> to vector<45x64xbf16>
    %c384 = arith.constant 384 : index
    %c0_16 = arith.constant 0 : index
    %35 = vector.load %arg14[%c384, %c0_16] : memref<1104x64xbf16, #tpu.memory_space<vmem>>, vector<45x64xbf16>
    tpu.vector_store %arg14[%c384, %c0_16], %34 {strides = array<i32>} : memref<1104x64xbf16, #tpu.memory_space<vmem>>, vector<45x64xbf16>,
    %36 = vector.extract_strided_slice %17 {offsets = [864, 0], sizes = [45, 64], strides = [1, 1]} : vector<2157x64xbf16> to vector<45x64xbf16>
    %c432 = arith.constant 432 : index
    %c0_17 = arith.constant 0 : index
    %37 = vector.load %arg14[%c432, %c0_17] : memref<1104x64xbf16, #tpu.memory_space<vmem>>, vector<45x64xbf16>
    tpu.vector_store %arg14[%c432, %c0_17], %36 {strides = array<i32>} : memref<1104x64xbf16, #tpu.memory_space<vmem>>, vector<45x64xbf16>,
    %38 = vector.extract_strided_slice %17 {offsets = [960, 0], sizes = [45, 64], strides = [1, 1]} : vector<2157x64xbf16> to vector<45x64xbf16>
    %c480 = arith.constant 480 : index
    %c0_18 = arith.constant 0 : index
    %39 = vector.load %arg14[%c480, %c0_18] : memref<1104x64xbf16, #tpu.memory_space<vmem>>, vector<45x64xbf16>
    tpu.vector_store %arg14[%c480, %c0_18], %38 {strides = array<i32>} : memref<1104x64xbf16, #tpu.memory_space<vmem>>, vector<45x64xbf16>,
    %40 = vector.extract_strided_slice %17 {offsets = [1056, 0], sizes = [45, 64], strides = [1, 1]} : vector<2157x64xbf16> to vector<45x64xbf16>
    %c528 = arith.constant 528 : index
    %c0_19 = arith.constant 0 : index
    %41 = vector.load %arg14[%c528, %c0_19] : memref<1104x64xbf16, #tpu.memory_space<vmem>>, vector<45x64xbf16>
    tpu.vector_store %arg14[%c528, %c0_19], %40 {strides = array<i32>} : memref<1104x64xbf16, #tpu.memory_space<vmem>>, vector<45x64xbf16>,
    %42 = vector.extract_strided_slice %17 {offsets = [1152, 0], sizes = [45, 64], strides = [1, 1]} : vector<2157x64xbf16> to vector<45x64xbf16>
    %c576 = arith.constant 576 : index
    %c0_20 = arith.constant 0 : index
    %43 = vector.load %arg14[%c576, %c0_20] : memref<1104x64xbf16, #tpu.memory_space<vmem>>, vector<45x64xbf16>
    tpu.vector_store %arg14[%c576, %c0_20], %42 {strides = array<i32>} : memref<1104x64xbf16, #tpu.memory_space<vmem>>, vector<45x64xbf16>,
    %44 = vector.extract_strided_slice %17 {offsets = [1248, 0], sizes = [45, 64], strides = [1, 1]} : vector<2157x64xbf16> to vector<45x64xbf16>
    %c624 = arith.constant 624 : index
    %c0_21 = arith.constant 0 : index
    %45 = vector.load %arg14[%c624, %c0_21] : memref<1104x64xbf16, #tpu.memory_space<vmem>>, vector<45x64xbf16>
    tpu.vector_store %arg14[%c624, %c0_21], %44 {strides = array<i32>} : memref<1104x64xbf16, #tpu.memory_space<vmem>>, vector<45x64xbf16>,
    %46 = vector.extract_strided_slice %17 {offsets = [1344, 0], sizes = [45, 64], strides = [1, 1]} : vector<2157x64xbf16> to vector<45x64xbf16>
    %c672 = arith.constant 672 : index
    %c0_22 = arith.constant 0 : index
    %47 = vector.load %arg14[%c672, %c0_22] : memref<1104x64xbf16, #tpu.memory_space<vmem>>, vector<45x64xbf16>
    tpu.vector_store %arg14[%c672, %c0_22], %46 {strides = array<i32>} : memref<1104x64xbf16, #tpu.memory_space<vmem>>, vector<45x64xbf16>,
    %48 = vector.extract_strided_slice %17 {offsets = [1440, 0], sizes = [45, 64], strides = [1, 1]} : vector<2157x64xbf16> to vector<45x64xbf16>
    %c720 = arith.constant 720 : index
    %c0_23 = arith.constant 0 : index
    %49 = vector.load %arg14[%c720, %c0_23] : memref<1104x64xbf16, #tpu.memory_space<vmem>>, vector<45x64xbf16>
    tpu.vector_store %arg14[%c720, %c0_23], %48 {strides = array<i32>} : memref<1104x64xbf16, #tpu.memory_space<vmem>>, vector<45x64xbf16>,
    %50 = vector.extract_strided_slice %17 {offsets = [1536, 0], sizes = [45, 64], strides = [1, 1]} : vector<2157x64xbf16> to vector<45x64xbf16>
    %c768 = arith.constant 768 : index
    %c0_24 = arith.constant 0 : index
    %51 = vector.load %arg14[%c768, %c0_24] : memref<1104x64xbf16, #tpu.memory_space<vmem>>, vector<45x64xbf16>
    tpu.vector_store %arg14[%c768, %c0_24], %50 {strides = array<i32>} : memref<1104x64xbf16, #tpu.memory_space<vmem>>, vector<45x64xbf16>,
    %52 = vector.extract_strided_slice %17 {offsets = [1632, 0], sizes = [45, 64], strides = [1, 1]} : vector<2157x64xbf16> to vector<45x64xbf16>
    %c816 = arith.constant 816 : index
    %c0_25 = arith.constant 0 : index
    %53 = vector.load %arg14[%c816, %c0_25] : memref<1104x64xbf16, #tpu.memory_space<vmem>>, vector<45x64xbf16>
    tpu.vector_store %arg14[%c816, %c0_25], %52 {strides = array<i32>} : memref<1104x64xbf16, #tpu.memory_space<vmem>>, vector<45x64xbf16>,
    %54 = vector.extract_strided_slice %17 {offsets = [1728, 0], sizes = [45, 64], strides = [1, 1]} : vector<2157x64xbf16> to vector<45x64xbf16>
    %c864 = arith.constant 864 : index
    %c0_26 = arith.constant 0 : index
    %55 = vector.load %arg14[%c864, %c0_26] : memref<1104x64xbf16, #tpu.memory_space<vmem>>, vector<45x64xbf16>
    tpu.vector_store %arg14[%c864, %c0_26], %54 {strides = array<i32>} : memref<1104x64xbf16, #tpu.memory_space<vmem>>, vector<45x64xbf16>,
    %56 = vector.extract_strided_slice %17 {offsets = [1824, 0], sizes = [45, 64], strides = [1, 1]} : vector<2157x64xbf16> to vector<45x64xbf16>
    %c912 = arith.constant 912 : index
    %c0_27 = arith.constant 0 : index
    %57 = vector.load %arg14[%c912, %c0_27] : memref<1104x64xbf16, #tpu.memory_space<vmem>>, vector<45x64xbf16>
    tpu.vector_store %arg14[%c912, %c0_27], %56 {strides = array<i32>} : memref<1104x64xbf16, #tpu.memory_space<vmem>>, vector<45x64xbf16>,
    %58 = vector.extract_strided_slice %17 {offsets = [1920, 0], sizes = [45, 64], strides = [1, 1]} : vector<2157x64xbf16> to vector<45x64xbf16>
    %c960 = arith.constant 960 : index
    %c0_28 = arith.constant 0 : index
    %59 = vector.load %arg14[%c960, %c0_28] : memref<1104x64xbf16, #tpu.memory_space<vmem>>, vector<45x64xbf16>
    tpu.vector_store %arg14[%c960, %c0_28], %58 {strides = array<i32>} : memref<1104x64xbf16, #tpu.memory_space<vmem>>, vector<45x64xbf16>,
    %60 = vector.extract_strided_slice %17 {offsets = [2016, 0], sizes = [45, 64], strides = [1, 1]} : vector<2157x64xbf16> to vector<45x64xbf16>
    %c1008 = arith.constant 1008 : index
    %c0_29 = arith.constant 0 : index
    %61 = vector.load %arg14[%c1008, %c0_29] : memref<1104x64xbf16, #tpu.memory_space<vmem>>, vector<45x64xbf16>
    tpu.vector_store %arg14[%c1008, %c0_29], %60 {strides = array<i32>} : memref<1104x64xbf16, #tpu.memory_space<vmem>>, vector<45x64xbf16>,
    %62 = vector.extract_strided_slice %17 {offsets = [2112, 0], sizes = [45, 64], strides = [1, 1]} : vector<2157x64xbf16> to vector<45x64xbf16>
    %c1056 = arith.constant 1056 : index
    %c0_30 = arith.constant 0 : index
    %63 = vector.load %arg14[%c1056, %c0_30] : memref<1104x64xbf16, #tpu.memory_space<vmem>>, vector<45x64xbf16>
    tpu.vector_store %arg14[%c1056, %c0_30], %62 {strides = array<i32>} : memref<1104x64xbf16, #tpu.memory_space<vmem>>, vector<45x64xbf16>,
    %c0_31 = arith.constant 0 : index
    %c0_32 = arith.constant 0 : index
    %64 = vector.load %arg14[%c0_31, %c0_32] : memref<1104x64xbf16, #tpu.memory_space<vmem>>, vector<1097x64xbf16>
    %c2 = arith.constant 2 : index
    %c0_33 = arith.constant 0 : index
    %65 = vector.load %arg14[%c2, %c0_33] : memref<1104x64xbf16, #tpu.memory_space<vmem>>, vector<1097x64xbf16>
    %c4 = arith.constant 4 : index
    %c0_34 = arith.constant 0 : index
    %66 = vector.load %arg14[%c4, %c0_34] : memref<1104x64xbf16, #tpu.memory_space<vmem>>, vector<1097x64xbf16>
    %67 = tpu.concatenate %64, %65, %66 in 1 : vector<1097x64xbf16>, vector<1097x64xbf16>, vector<1097x64xbf16> -> vector<1097x192xbf16>
    %68 = vector.extract_strided_slice %67 {offsets = [0, 0], sizes = [1001, 192], strides = [1, 1]} : vector<1097x192xbf16> to vector<1001x192xbf16>
    %69 = vector.extract_strided_slice %67 {offsets = [48, 0], sizes = [1001, 192], strides = [1, 1]} : vector<1097x192xbf16> to vector<1001x192xbf16>
    %70 = vector.extract_strided_slice %67 {offsets = [96, 0], sizes = [1001, 192], strides = [1, 1]} : vector<1097x192xbf16> to vector<1001x192xbf16>
    %71 = tpu.concatenate %68, %69, %70 in 1 : vector<1001x192xbf16>, vector<1001x192xbf16>, vector<1001x192xbf16> -> vector<1001x576xbf16>
    %c0_35 = arith.constant 0 : index
    %c0_36 = arith.constant 0 : index
    %72 = vector.load %arg3[%c0_35, %c0_36] : memref<576x64xbf16, #tpu.memory_space<vmem>>, vector<576x64xbf16>
    %cst_37 = arith.constant dense<0.000000e+00> : vector<1001x64xf32>
    %73 = tpu.matmul %71, %72, %cst_37 {dimension_numbers = #tpu.dot_dimension_numbers<[1], [0], [0], [1], [0, 0, 1, 1], [], []>} : vector<1001x576xbf16>, vector<576x64xbf16>, vector<1001x64xf32> -> vector<1001x64xf32>
    %c0_38 = arith.constant 0 : index
    %c0_39 = arith.constant 0 : index
    %74 = vector.load %arg4[%c0_38, %c0_39] : memref<1x64xf32, #tpu.memory_space<vmem>>, vector<1x64xf32>
    %75 = vector.broadcast %74 : vector<1x64xf32> to vector<1001x64xf32>
    %76 = arith.addf %73, %75 : vector<1001x64xf32>
    %cst_40 = arith.constant 0.000000e+00 : f32
    %77 = vector.broadcast %cst_40 : f32 to vector<1001x64xf32>
    %78 = arith.cmpf oge, %76, %77 : vector<1001x64xf32>
    %cst_41 = arith.constant 0.00999999977 : f32
    %79 = vector.broadcast %cst_41 : f32 to vector<1001x64xf32>
    %80 = arith.mulf %79, %76 : vector<1001x64xf32>
    %81 = arith.select %78, %76, %80 : vector<1001x64xi1>, vector<1001x64xf32>
    %82 = vector.extract_strided_slice %81 {offsets = [0, 0], sizes = [999, 64], strides = [1, 1]} : vector<1001x64xf32> to vector<999x64xf32>
    %83 = vector.extract_strided_slice %81 {offsets = [2, 0], sizes = [999, 64], strides = [1, 1]} : vector<1001x64xf32> to vector<999x64xf32>
    %84 = arith.maximumf %82, %83 : vector<999x64xf32>
    %85 = vector.extract_strided_slice %84 {offsets = [0, 0], sizes = [951, 64], strides = [1, 1]} : vector<999x64xf32> to vector<951x64xf32>
    %86 = vector.extract_strided_slice %84 {offsets = [48, 0], sizes = [951, 64], strides = [1, 1]} : vector<999x64xf32> to vector<951x64xf32>
    %87 = arith.maximumf %85, %86 : vector<951x64xf32>
    %88 = arith.truncf %87 : vector<951x64xf32> to vector<951x64xbf16>
    %89 = vector.extract_strided_slice %88 {offsets = [0, 0], sizes = [37, 64], strides = [1, 1]} : vector<951x64xbf16> to vector<37x64xbf16>
    %c0_42 = arith.constant 0 : index
    %c0_43 = arith.constant 0 : index
    %90 = vector.load %arg15[%c0_42, %c0_43] : memref<480x64xbf16, #tpu.memory_space<vmem>>, vector<37x64xbf16>
    tpu.vector_store %arg15[%c0_42, %c0_43], %89 {strides = array<i32>} : memref<480x64xbf16, #tpu.memory_space<vmem>>, vector<37x64xbf16>,
    %91 = vector.extract_strided_slice %88 {offsets = [96, 0], sizes = [37, 64], strides = [1, 1]} : vector<951x64xbf16> to vector<37x64xbf16>
    %c48_44 = arith.constant 48 : index
    %c0_45 = arith.constant 0 : index
    %92 = vector.load %arg15[%c48_44, %c0_45] : memref<480x64xbf16, #tpu.memory_space<vmem>>, vector<37x64xbf16>
    tpu.vector_store %arg15[%c48_44, %c0_45], %91 {strides = array<i32>} : memref<480x64xbf16, #tpu.memory_space<vmem>>, vector<37x64xbf16>,
    %93 = vector.extract_strided_slice %88 {offsets = [192, 0], sizes = [37, 64], strides = [1, 1]} : vector<951x64xbf16> to vector<37x64xbf16>
    %c96_46 = arith.constant 96 : index
    %c0_47 = arith.constant 0 : index
    %94 = vector.load %arg15[%c96_46, %c0_47] : memref<480x64xbf16, #tpu.memory_space<vmem>>, vector<37x64xbf16>
    tpu.vector_store %arg15[%c96_46, %c0_47], %93 {strides = array<i32>} : memref<480x64xbf16, #tpu.memory_space<vmem>>, vector<37x64xbf16>,
    %95 = vector.extract_strided_slice %88 {offsets = [288, 0], sizes = [37, 64], strides = [1, 1]} : vector<951x64xbf16> to vector<37x64xbf16>
    %c144_48 = arith.constant 144 : index
    %c0_49 = arith.constant 0 : index
    %96 = vector.load %arg15[%c144_48, %c0_49] : memref<480x64xbf16, #tpu.memory_space<vmem>>, vector<37x64xbf16>
    tpu.vector_store %arg15[%c144_48, %c0_49], %95 {strides = array<i32>} : memref<480x64xbf16, #tpu.memory_space<vmem>>, vector<37x64xbf16>,
    %97 = vector.extract_strided_slice %88 {offsets = [384, 0], sizes = [37, 64], strides = [1, 1]} : vector<951x64xbf16> to vector<37x64xbf16>
    %c192_50 = arith.constant 192 : index
    %c0_51 = arith.constant 0 : index
    %98 = vector.load %arg15[%c192_50, %c0_51] : memref<480x64xbf16, #tpu.memory_space<vmem>>, vector<37x64xbf16>
    tpu.vector_store %arg15[%c192_50, %c0_51], %97 {strides = array<i32>} : memref<480x64xbf16, #tpu.memory_space<vmem>>, vector<37x64xbf16>,
    %99 = vector.extract_strided_slice %88 {offsets = [480, 0], sizes = [37, 64], strides = [1, 1]} : vector<951x64xbf16> to vector<37x64xbf16>
    %c240_52 = arith.constant 240 : index
    %c0_53 = arith.constant 0 : index
    %100 = vector.load %arg15[%c240_52, %c0_53] : memref<480x64xbf16, #tpu.memory_space<vmem>>, vector<37x64xbf16>
    tpu.vector_store %arg15[%c240_52, %c0_53], %99 {strides = array<i32>} : memref<480x64xbf16, #tpu.memory_space<vmem>>, vector<37x64xbf16>,
    %101 = vector.extract_strided_slice %88 {offsets = [576, 0], sizes = [37, 64], strides = [1, 1]} : vector<951x64xbf16> to vector<37x64xbf16>
    %c288_54 = arith.constant 288 : index
    %c0_55 = arith.constant 0 : index
    %102 = vector.load %arg15[%c288_54, %c0_55] : memref<480x64xbf16, #tpu.memory_space<vmem>>, vector<37x64xbf16>
    tpu.vector_store %arg15[%c288_54, %c0_55], %101 {strides = array<i32>} : memref<480x64xbf16, #tpu.memory_space<vmem>>, vector<37x64xbf16>,
    %103 = vector.extract_strided_slice %88 {offsets = [672, 0], sizes = [37, 64], strides = [1, 1]} : vector<951x64xbf16> to vector<37x64xbf16>
    %c336_56 = arith.constant 336 : index
    %c0_57 = arith.constant 0 : index
    %104 = vector.load %arg15[%c336_56, %c0_57] : memref<480x64xbf16, #tpu.memory_space<vmem>>, vector<37x64xbf16>
    tpu.vector_store %arg15[%c336_56, %c0_57], %103 {strides = array<i32>} : memref<480x64xbf16, #tpu.memory_space<vmem>>, vector<37x64xbf16>,
    %105 = vector.extract_strided_slice %88 {offsets = [768, 0], sizes = [37, 64], strides = [1, 1]} : vector<951x64xbf16> to vector<37x64xbf16>
    %c384_58 = arith.constant 384 : index
    %c0_59 = arith.constant 0 : index
    %106 = vector.load %arg15[%c384_58, %c0_59] : memref<480x64xbf16, #tpu.memory_space<vmem>>, vector<37x64xbf16>
    tpu.vector_store %arg15[%c384_58, %c0_59], %105 {strides = array<i32>} : memref<480x64xbf16, #tpu.memory_space<vmem>>, vector<37x64xbf16>,
    %107 = vector.extract_strided_slice %88 {offsets = [864, 0], sizes = [37, 64], strides = [1, 1]} : vector<951x64xbf16> to vector<37x64xbf16>
    %c432_60 = arith.constant 432 : index
    %c0_61 = arith.constant 0 : index
    %108 = vector.load %arg15[%c432_60, %c0_61] : memref<480x64xbf16, #tpu.memory_space<vmem>>, vector<37x64xbf16>
    tpu.vector_store %arg15[%c432_60, %c0_61], %107 {strides = array<i32>} : memref<480x64xbf16, #tpu.memory_space<vmem>>, vector<37x64xbf16>,
    %c0_62 = arith.constant 0 : index
    %c0_63 = arith.constant 0 : index
    %109 = vector.load %arg15[%c0_62, %c0_63] : memref<480x64xbf16, #tpu.memory_space<vmem>>, vector<461x64xbf16>
    %c4_64 = arith.constant 4 : index
    %c0_65 = arith.constant 0 : index
    %110 = vector.load %arg15[%c4_64, %c0_65] : memref<480x64xbf16, #tpu.memory_space<vmem>>, vector<461x64xbf16>
    %c8 = arith.constant 8 : index
    %c0_66 = arith.constant 0 : index
    %111 = vector.load %arg15[%c8, %c0_66] : memref<480x64xbf16, #tpu.memory_space<vmem>>, vector<461x64xbf16>
    %112 = tpu.concatenate %109, %110, %111 in 1 : vector<461x64xbf16>, vector<461x64xbf16>, vector<461x64xbf16> -> vector<461x192xbf16>
    %113 = vector.extract_strided_slice %112 {offsets = [0, 0], sizes = [365, 192], strides = [1, 1]} : vector<461x192xbf16> to vector<365x192xbf16>
    %114 = vector.extract_strided_slice %112 {offsets = [48, 0], sizes = [365, 192], strides = [1, 1]} : vector<461x192xbf16> to vector<365x192xbf16>
    %115 = vector.extract_strided_slice %112 {offsets = [96, 0], sizes = [365, 192], strides = [1, 1]} : vector<461x192xbf16> to vector<365x192xbf16>
    %116 = tpu.concatenate %113, %114, %115 in 1 : vector<365x192xbf16>, vector<365x192xbf16>, vector<365x192xbf16> -> vector<365x576xbf16>
    %c0_67 = arith.constant 0 : index
    %c0_68 = arith.constant 0 : index
    %117 = vector.load %arg5[%c0_67, %c0_68] : memref<576x128xbf16, #tpu.memory_space<vmem>>, vector<576x128xbf16>
    %cst_69 = arith.constant dense<0.000000e+00> : vector<365x128xf32>
    %118 = tpu.matmul %116, %117, %cst_69 {dimension_numbers = #tpu.dot_dimension_numbers<[1], [0], [0], [1], [0, 0, 1, 1], [], []>} : vector<365x576xbf16>, vector<576x128xbf16>, vector<365x128xf32> -> vector<365x128xf32>
    %c0_70 = arith.constant 0 : index
    %c0_71 = arith.constant 0 : index
    %119 = vector.load %arg6[%c0_70, %c0_71] : memref<1x128xf32, #tpu.memory_space<vmem>>, vector<1x128xf32>
    %120 = vector.broadcast %119 : vector<1x128xf32> to vector<365x128xf32>
    %121 = arith.addf %118, %120 : vector<365x128xf32>
    %cst_72 = arith.constant 0.000000e+00 : f32
    %122 = vector.broadcast %cst_72 : f32 to vector<365x128xf32>
    %123 = arith.cmpf oge, %121, %122 : vector<365x128xf32>
    %cst_73 = arith.constant 0.00999999977 : f32
    %124 = vector.broadcast %cst_73 : f32 to vector<365x128xf32>
    %125 = arith.mulf %124, %121 : vector<365x128xf32>
    %126 = arith.select %123, %121, %125 : vector<365x128xi1>, vector<365x128xf32>
    %127 = vector.extract_strided_slice %126 {offsets = [0, 0], sizes = [361, 128], strides = [1, 1]} : vector<365x128xf32> to vector<361x128xf32>
    %128 = vector.extract_strided_slice %126 {offsets = [4, 0], sizes = [361, 128], strides = [1, 1]} : vector<365x128xf32> to vector<361x128xf32>
    %129 = arith.maximumf %127, %128 : vector<361x128xf32>
    %130 = vector.extract_strided_slice %129 {offsets = [0, 0], sizes = [313, 128], strides = [1, 1]} : vector<361x128xf32> to vector<313x128xf32>
    %131 = vector.extract_strided_slice %129 {offsets = [48, 0], sizes = [313, 128], strides = [1, 1]} : vector<361x128xf32> to vector<313x128xf32>
    %132 = arith.maximumf %130, %131 : vector<313x128xf32>
    %133 = arith.truncf %132 : vector<313x128xf32> to vector<313x128xbf16>
    %134 = vector.extract_strided_slice %133 {offsets = [0, 0], sizes = [25, 128], strides = [1, 1]} : vector<313x128xbf16> to vector<25x128xbf16>
    %c0_74 = arith.constant 0 : index
    %c0_75 = arith.constant 0 : index
    %135 = vector.load %arg16[%c0_74, %c0_75] : memref<192x128xbf16, #tpu.memory_space<vmem>>, vector<25x128xbf16>
    tpu.vector_store %arg16[%c0_74, %c0_75], %134 {strides = array<i32>} : memref<192x128xbf16, #tpu.memory_space<vmem>>, vector<25x128xbf16>,
    %136 = vector.extract_strided_slice %133 {offsets = [96, 0], sizes = [25, 128], strides = [1, 1]} : vector<313x128xbf16> to vector<25x128xbf16>
    %c48_76 = arith.constant 48 : index
    %c0_77 = arith.constant 0 : index
    %137 = vector.load %arg16[%c48_76, %c0_77] : memref<192x128xbf16, #tpu.memory_space<vmem>>, vector<25x128xbf16>
    tpu.vector_store %arg16[%c48_76, %c0_77], %136 {strides = array<i32>} : memref<192x128xbf16, #tpu.memory_space<vmem>>, vector<25x128xbf16>,
    %138 = vector.extract_strided_slice %133 {offsets = [192, 0], sizes = [25, 128], strides = [1, 1]} : vector<313x128xbf16> to vector<25x128xbf16>
    %c96_78 = arith.constant 96 : index
    %c0_79 = arith.constant 0 : index
    %139 = vector.load %arg16[%c96_78, %c0_79] : memref<192x128xbf16, #tpu.memory_space<vmem>>, vector<25x128xbf16>
    tpu.vector_store %arg16[%c96_78, %c0_79], %138 {strides = array<i32>} : memref<192x128xbf16, #tpu.memory_space<vmem>>, vector<25x128xbf16>,
    %140 = vector.extract_strided_slice %133 {offsets = [288, 0], sizes = [25, 128], strides = [1, 1]} : vector<313x128xbf16> to vector<25x128xbf16>
    %c144_80 = arith.constant 144 : index
    %c0_81 = arith.constant 0 : index
    %141 = vector.load %arg16[%c144_80, %c0_81] : memref<192x128xbf16, #tpu.memory_space<vmem>>, vector<25x128xbf16>
    tpu.vector_store %arg16[%c144_80, %c0_81], %140 {strides = array<i32>} : memref<192x128xbf16, #tpu.memory_space<vmem>>, vector<25x128xbf16>,
    %c0_82 = arith.constant 0 : index
    %c0_83 = arith.constant 0 : index
    %142 = vector.load %arg16[%c0_82, %c0_83] : memref<192x128xbf16, #tpu.memory_space<vmem>>, vector<153x128xbf16>
    %c8_84 = arith.constant 8 : index
    %c0_85 = arith.constant 0 : index
    %143 = vector.load %arg16[%c8_84, %c0_85] : memref<192x128xbf16, #tpu.memory_space<vmem>>, vector<153x128xbf16>
    %c16 = arith.constant 16 : index
    %c0_86 = arith.constant 0 : index
    %144 = vector.load %arg16[%c16, %c0_86] : memref<192x128xbf16, #tpu.memory_space<vmem>>, vector<153x128xbf16>
    %145 = tpu.concatenate %142, %143, %144 in 1 : vector<153x128xbf16>, vector<153x128xbf16>, vector<153x128xbf16> -> vector<153x384xbf16>
    %146 = vector.extract_strided_slice %145 {offsets = [0, 0], sizes = [57, 384], strides = [1, 1]} : vector<153x384xbf16> to vector<57x384xbf16>
    %147 = vector.extract_strided_slice %145 {offsets = [48, 0], sizes = [57, 384], strides = [1, 1]} : vector<153x384xbf16> to vector<57x384xbf16>
    %148 = vector.extract_strided_slice %145 {offsets = [96, 0], sizes = [57, 384], strides = [1, 1]} : vector<153x384xbf16> to vector<57x384xbf16>
    %149 = tpu.concatenate %146, %147, %148 in 1 : vector<57x384xbf16>, vector<57x384xbf16>, vector<57x384xbf16> -> vector<57x1152xbf16>
    %c0_87 = arith.constant 0 : index
    %c0_88 = arith.constant 0 : index
    %150 = vector.load %arg7[%c0_87, %c0_88] : memref<1152x128xbf16, #tpu.memory_space<vmem>>, vector<1152x128xbf16>
    %cst_89 = arith.constant dense<0.000000e+00> : vector<57x128xf32>
    %151 = tpu.matmul %149, %150, %cst_89 {dimension_numbers = #tpu.dot_dimension_numbers<[1], [0], [0], [1], [0, 0, 1, 1], [], []>} : vector<57x1152xbf16>, vector<1152x128xbf16>, vector<57x128xf32> -> vector<57x128xf32>
    %c0_90 = arith.constant 0 : index
    %c0_91 = arith.constant 0 : index
    %152 = vector.load %arg8[%c0_90, %c0_91] : memref<1x128xf32, #tpu.memory_space<vmem>>, vector<1x128xf32>
    %153 = vector.broadcast %152 : vector<1x128xf32> to vector<57x128xf32>
    %154 = arith.addf %151, %153 : vector<57x128xf32>
    %cst_92 = arith.constant 0.000000e+00 : f32
    %155 = vector.broadcast %cst_92 : f32 to vector<57x128xf32>
    %156 = arith.cmpf oge, %154, %155 : vector<57x128xf32>
    %cst_93 = arith.constant 0.00999999977 : f32
    %157 = vector.broadcast %cst_93 : f32 to vector<57x128xf32>
    %158 = arith.mulf %157, %154 : vector<57x128xf32>
    %159 = arith.select %156, %154, %158 : vector<57x128xi1>, vector<57x128xf32>
    %160 = vector.extract_strided_slice %159 {offsets = [0, 0], sizes = [49, 128], strides = [1, 1]} : vector<57x128xf32> to vector<49x128xf32>
    %161 = vector.extract_strided_slice %159 {offsets = [8, 0], sizes = [49, 128], strides = [1, 1]} : vector<57x128xf32> to vector<49x128xf32>
    %162 = arith.addf %160, %161 : vector<49x128xf32>
    %163 = vector.extract_strided_slice %162 {offsets = [0, 0], sizes = [1, 128], strides = [1, 1]} : vector<49x128xf32> to vector<1x128xf32>
    %164 = vector.extract_strided_slice %162 {offsets = [48, 0], sizes = [1, 128], strides = [1, 1]} : vector<49x128xf32> to vector<1x128xf32>
    %165 = arith.addf %163, %164 : vector<1x128xf32>
    %cst_94 = arith.constant 2.500000e-01 : f32
    %166 = vector.broadcast %cst_94 : f32 to vector<1x128xf32>
    %167 = arith.mulf %165, %166 : vector<1x128xf32>
    %c0_95 = arith.constant 0 : index
    %c0_96 = arith.constant 0 : index
    %168 = vector.load %arg9[%c0_95, %c0_96] : memref<128x20xf32, #tpu.memory_space<vmem>>, vector<128x20xf32>
    %cst_97 = arith.constant dense<0.000000e+00> : vector<1x20xf32>
    %169 = tpu.matmul %167, %168, %cst_97 {dimension_numbers = #tpu.dot_dimension_numbers<[1], [0], [0], [1], [0, 0, 1, 1], [], []>} : vector<1x128xf32>, vector<128x20xf32>, vector<1x20xf32> -> vector<1x20xf32>
    %c0_98 = arith.constant 0 : index
    %c0_99 = arith.constant 0 : index
    %170 = vector.load %arg10[%c0_98, %c0_99] : memref<1x20xf32, #tpu.memory_space<vmem>>, vector<1x20xf32>
    %171 = arith.addf %169, %170 : vector<1x20xf32>
    %cst_100 = arith.constant 0.000000e+00 : f32
    %172 = vector.broadcast %cst_100 : f32 to vector<1x20xf32>
    %173 = arith.cmpf oge, %171, %172 : vector<1x20xf32>
    %cst_101 = arith.constant 0.00999999977 : f32
    %174 = vector.broadcast %cst_101 : f32 to vector<1x20xf32>
    %175 = arith.mulf %174, %171 : vector<1x20xf32>
    %176 = arith.select %173, %171, %175 : vector<1x20xi1>, vector<1x20xf32>
    %c0_102 = arith.constant 0 : index
    %c0_103 = arith.constant 0 : index
    %177 = vector.load %arg11[%c0_102, %c0_103] : memref<20x4xf32, #tpu.memory_space<vmem>>, vector<20x4xf32>
    %cst_104 = arith.constant dense<0.000000e+00> : vector<1x4xf32>
    %178 = tpu.matmul %176, %177, %cst_104 {dimension_numbers = #tpu.dot_dimension_numbers<[1], [0], [0], [1], [0, 0, 1, 1], [], []>} : vector<1x20xf32>, vector<20x4xf32>, vector<1x4xf32> -> vector<1x4xf32>
    %c0_105 = arith.constant 0 : index
    %c0_106 = arith.constant 0 : index
    %179 = vector.load %arg12[%c0_105, %c0_106] : memref<1x4xf32, #tpu.memory_space<vmem>>, vector<1x4xf32>
    %180 = arith.addf %178, %179 : vector<1x4xf32>
    %c0_107 = arith.constant 0 : index
    %c0_108 = arith.constant 0 : index
    %181 = vector.load %arg13[%c0_107, %c0_108] : memref<1x4xf32, #tpu.memory_space<vmem>>, vector<1x4xf32>
    tpu.vector_store %arg13[%c0_107, %c0_108], %180 {strides = array<i32>} : memref<1x4xf32, #tpu.memory_space<vmem>>, vector<1x4xf32>,
    return
  }
}

</mosaic_0001>

<llo_original>
// kernel: mul.46
$region0: #{mul.46}
  %s0 = inlined_call_operand.vmem [shape: f32[3,3,3,32], index: 0, kind: input, shape index: {}]
  %s1 = inlined_call_operand.vmem [shape: f32[27,32], index: 1, kind: output, shape index: {}]
  $region1: #{mul.46} parent=0
    #allocation0 [shape = 'u8[36864]{0}', space=vmem, size = 0x9000, scoped, tag = 'scoped mem for input reshape']
    %s3 = sshll.u32 1, 4
    %s4 = ssub.s32 %s3, 1
    %s5 = smul.addr 4, 8
    %s6 = scalar_lea.vmem %s0, %s5
    %v7 = vld [vmem:[%s6] sm:%s4]
    %s8 = scalar_lea.vmem [#allocation0], 64
    %9 = vst [vmem:[%s8] sm:%s4] %v7
    %s10 = smul.addr 4, 7
    %s11 = scalar_lea.vmem %s0, %s10
    %v12 = vld [vmem:[%s11] sm:%s4]
    %s13 = scalar_lea.vmem [#allocation0], 56
    %14 = vst [vmem:[%s13] sm:%s4] %v12
    %s15 = smul.addr 4, 6
    %s16 = scalar_lea.vmem %s0, %s15
    %v17 = vld [vmem:[%s16] sm:%s4]
    %s18 = scalar_lea.vmem [#allocation0], 48
    %19 = vst [vmem:[%s18] sm:%s4] %v17
    %s20 = smul.addr 4, 5
    %s21 = scalar_lea.vmem %s0, %s20
    %v22 = vld [vmem:[%s21] sm:%s4]
    %s23 = scalar_lea.vmem [#allocation0], 40
    %24 = vst [vmem:[%s23] sm:%s4] %v22
    %s25 = smul.addr 4, 4
    %s26 = scalar_lea.vmem %s0, %s25
    %v27 = vld [vmem:[%s26] sm:%s4]
    %s28 = scalar_lea.vmem [#allocation0], 32
    %29 = vst [vmem:[%s28] sm:%s4] %v27
    %s30 = smul.addr 4, 3
    %s31 = scalar_lea.vmem %s0, %s30
    %v32 = vld [vmem:[%s31] sm:%s4]
    %s33 = scalar_lea.vmem [#allocation0], 24
    %34 = vst [vmem:[%s33] sm:%s4] %v32
    %s35 = smul.addr 4, 2
    %s36 = scalar_lea.vmem %s0, %s35
    %v37 = vld [vmem:[%s36] sm:%s4]
    %s38 = scalar_lea.vmem [#allocation0], 16
    %39 = vst [vmem:[%s38] sm:%s4] %v37
    %s40 = scalar_lea.vmem %s0, 4
    %v41 = vld [vmem:[%s40] sm:%s4]
    %s42 = scalar_lea.vmem [#allocation0], 8
    %43 = vst [vmem:[%s42] sm:%s4] %v41
    %v44 = vld [vmem:[%s0] sm:%s4]
    %45 = vst [vmem:[#allocation0] sm:%s4] %v44
    %v46 = vld [vmem:[#allocation0] sm:$0x7]
    %vm47 = vcmask 261120
    %48 = vst.msk [vmem:[%s1] sm:$0x7] %vm47, %v46
    %s49 = scalar_lea.vmem [#allocation0], 8
    %v50 = vld [vmem:[%s49] sm:$0x7]
    %vm51 = vcmask 261120
    %s52 = scalar_lea.vmem %s1, 3
    %53 = vst.msk [vmem:[%s52] sm:$0x7] %vm51, %v50
    %s54 = scalar_lea.vmem [#allocation0], 16
    %v55 = vld [vmem:[%s54] sm:$0x7]
    %vm56 = vcmask 261120
    %s57 = scalar_lea.vmem %s1, 6
    %58 = vst.msk [vmem:[%s57] sm:$0x7] %vm56, %v55
    %s59 = scalar_lea.vmem [#allocation0], 24
    %v60 = vld [vmem:[%s59] sm:$0x7]
    %vm61 = vcmask 261120
    %s62 = scalar_lea.vmem %s1, 9
    %63 = vst.msk [vmem:[%s62] sm:$0x7] %vm61, %v60
    %s64 = scalar_lea.vmem [#allocation0], 32
    %v65 = vld [vmem:[%s64] sm:$0x7]
    %vm66 = vcmask 261120
    %s67 = scalar_lea.vmem %s1, 12
    %68 = vst.msk [vmem:[%s67] sm:$0x7] %vm66, %v65
    %s69 = scalar_lea.vmem [#allocation0], 40
    %v70 = vld [vmem:[%s69] sm:$0x7]
    %vm71 = vcmask 261120
    %s72 = scalar_lea.vmem %s1, 15
    %73 = vst.msk [vmem:[%s72] sm:$0x7] %vm71, %v70
    %s74 = scalar_lea.vmem [#allocation0], 48
    %v75 = vld [vmem:[%s74] sm:$0x7]
    %vm76 = vcmask 261120
    %s77 = scalar_lea.vmem %s1, 18
    %78 = vst.msk [vmem:[%s77] sm:$0x7] %vm76, %v75
    %s79 = scalar_lea.vmem [#allocation0], 56
    %v80 = vld [vmem:[%s79] sm:$0x7]
    %vm81 = vcmask 261120
    %s82 = scalar_lea.vmem %s1, 21
    %83 = vst.msk [vmem:[%s82] sm:$0x7] %vm81, %v80
    %s84 = scalar_lea.vmem [#allocation0], 64
    %v85 = vld [vmem:[%s84] sm:$0x7]
    %vm86 = vcmask 261120
    %s87 = scalar_lea.vmem %s1, 24
    %88 = vst.msk [vmem:[%s87] sm:$0x7] %vm86, %v85

// kernel: tile.33
$region0: #{tile.33}
  #allocation0 [shape = 's32[1]{0}', space=sflag, size = 0x4, scoped, tag = 'scoped memory for tile.33']
  %s0 = inlined_call_operand.vmem [shape: f32[32], index: 0, kind: input, shape index: {}]
  %s1 = inlined_call_operand.vmem [shape: f32[2,32], index: 1, kind: output, shape index: {}]
  // Predicated region
  $region2: #{tile.33} parent=0 // pred_check
    _
  $region3: #{tile.33} parent=0 // pred_check_branch
    %3 = sbr.rel (0) target = $region5
  $region4: #{tile.33} parent=0 // pred_region
    _
  $region5: #{tile.33} parent=0 // pred_fallthru
    _
  %v4 = vld [vmem:[%s0] ss:$0 sm:$0xff]
  %5 = vst [vmem:[%s1] sm:$0x3] %v4

// kernel: tile.34
$region0: #{tile.34}
  %s0 = inlined_call_operand.vmem [shape: f32[2,32], index: 0, kind: input, shape index: {}]
  %s1 = inlined_call_operand.vmem [shape: f32[1,64], index: 1, kind: output, shape index: {}]
  $region1: #{tile.34} parent=0
    #allocation0 [shape = 'u8[4096]{0}', space=vmem, size = 0x1000, scoped, tag = 'scoped mem for output reshape']
    #allocation1 [shape = 'u8[4096]{0}', space=vmem, size = 0x1000, scoped, tag = 'scoped mem for input reshape']
    %s3 = sshll.u32 1, 2
    %s4 = ssub.s32 %s3, 1
    %v5 = vld [vmem:[%s0] sm:%s4]
    %6 = vst [vmem:[#allocation1] sm:%s4] %v5
    %v7 = vld [vmem:[#allocation1] sm:$0x1]
    %vm8 = vcmask 261120
    %9 = vst.msk [vmem:[#allocation0] sm:$0x1] %vm8, %v7
    %s10 = scalar_lea.vmem [#allocation1], 1
    %v11 = vld [vmem:[%s10] sm:$0x1]
    %12 = vrot.lane.b32.xlu0 %v11, 32
    %v13 = vpop.permute.xlu0 %12
    %vm14 = vcmask 523520
    %15 = vst.msk [vmem:[#allocation0] sm:$0x1] %vm14, %v13
    %s17 = sshll.u32 1, 1
    %s18 = ssub.s32 %s17, 1
    %v20 = vld [vmem:[#allocation0] sm:%s18]
    %s21 = sshll.u32 1, 1
    %s22 = ssub.s32 %s21, 1
    %23 = vst [vmem:[%s1] sm:%s22] %v20

// kernel: tile.43
$region0: #{tile.43}
  #allocation0 [shape = 's32[1]{0}', space=sflag, size = 0x4, scoped, tag = 'scoped memory for tile.43']
  %s0 = inlined_call_operand.vmem [shape: f32[64], index: 0, kind: input, shape index: {}]
  %s1 = inlined_call_operand.vmem [shape: f32[2,64], index: 1, kind: output, shape index: {}]
  // Predicated region
  $region2: #{tile.43} parent=0 // pred_check
    _
  $region3: #{tile.43} parent=0 // pred_check_branch
    %3 = sbr.rel (0) target = $region5
  $region4: #{tile.43} parent=0 // pred_region
    _
  $region5: #{tile.43} parent=0 // pred_fallthru
    _
  %v4 = vld [vmem:[%s0] ss:$0 sm:$0xff]
  %5 = vst [vmem:[%s1] sm:$0x3] %v4

// kernel: tile.44
$region0: #{tile.44}
  %s0 = inlined_call_operand.vmem [shape: f32[2,64], index: 0, kind: input, shape index: {}]
  %s1 = inlined_call_operand.vmem [shape: f32[1,128], index: 1, kind: output, shape index: {}]
  $region1: #{tile.44} parent=0
    #allocation0 [shape = 'u8[4096]{0}', space=vmem, size = 0x1000, scoped, tag = 'scoped mem for output reshape']
    #allocation1 [shape = 'u8[4096]{0}', space=vmem, size = 0x1000, scoped, tag = 'scoped mem for input reshape']
    %s3 = sshll.u32 1, 2
    %s4 = ssub.s32 %s3, 1
    %v5 = vld [vmem:[%s0] sm:%s4]
    %6 = vst [vmem:[#allocation1] sm:%s4] %v5
    %v7 = vld [vmem:[#allocation1] sm:$0x1]
    %vm8 = vcmask 523264
    %9 = vst.msk [vmem:[#allocation0] sm:$0x1] %vm8, %v7
    %s10 = scalar_lea.vmem [#allocation1], 1
    %v11 = vld [vmem:[%s10] sm:$0x1]
    %12 = vrot.lane.b32.xlu0 %v11, 64
    %v13 = vpop.permute.xlu0 %12
    %vm14 = vcmask 1048064
    %15 = vst.msk [vmem:[#allocation0] sm:$0x1] %vm14, %v13
    %s17 = sshll.u32 1, 1
    %s18 = ssub.s32 %s17, 1
    %v20 = vld [vmem:[#allocation0] sm:%s18]
    %s21 = sshll.u32 1, 1
    %s22 = ssub.s32 %s21, 1
    %23 = vst [vmem:[%s1] sm:%s22] %v20

// kernel: tile.53
$region0: #{tile.53}
  #allocation0 [shape = 's32[1]{0}', space=sflag, size = 0x4, scoped, tag = 'scoped memory for tile.53']
  %s0 = inlined_call_operand.vmem [shape: f32[10], index: 0, kind: input, shape index: {}]
  %s1 = inlined_call_operand.vmem [shape: f32[2,10], index: 1, kind: output, shape index: {}]
  // Predicated region
  $region2: #{tile.53} parent=0 // pred_check
    _
  $region3: #{tile.53} parent=0 // pred_check_branch
    %3 = sbr.rel (0) target = $region5
  $region4: #{tile.53} parent=0 // pred_region
    _
  $region5: #{tile.53} parent=0 // pred_fallthru
    _
  %v4 = vld [vmem:[%s0] ss:$0 sm:$0xff]
  %5 = vst [vmem:[%s1] sm:$0x3] %v4

// kernel: tile.54
$region0: #{tile.54}
  %s0 = inlined_call_operand.vmem [shape: f32[2,10], index: 0, kind: input, shape index: {}]
  %s1 = inlined_call_operand.vmem [shape: f32[1,20], index: 1, kind: output, shape index: {}]
  $region1: #{tile.54} parent=0
    #allocation0 [shape = 'u8[4096]{0}', space=vmem, size = 0x1000, scoped, tag = 'scoped mem for output reshape']
    #allocation1 [shape = 'u8[4096]{0}', space=vmem, size = 0x1000, scoped, tag = 'scoped mem for input reshape']
    %s3 = sshll.u32 1, 2
    %s4 = ssub.s32 %s3, 1
    %v5 = vld [vmem:[%s0] sm:%s4]
    %6 = vst [vmem:[#allocation1] sm:%s4] %v5
    %v7 = vld [vmem:[#allocation1] sm:$0x1]
    %vm8 = vcmask 80896
    %9 = vst.msk [vmem:[#allocation0] sm:$0x1] %vm8, %v7
    %s10 = scalar_lea.vmem [#allocation1], 1
    %v11 = vld [vmem:[%s10] sm:$0x1]
    %12 = vrot.lane.b32.xlu0 %v11, 10
    %v13 = vpop.permute.xlu0 %12
    %vm14 = vcmask 162896
    %15 = vst.msk [vmem:[#allocation0] sm:$0x1] %vm14, %v13
    %s17 = sshll.u32 1, 1
    %s18 = ssub.s32 %s17, 1
    %v20 = vld [vmem:[#allocation0] sm:%s18]
    %s21 = sshll.u32 1, 1
    %s22 = ssub.s32 %s21, 1
    %23 = vst [vmem:[%s1] sm:%s22] %v20

// kernel: tile.58
$region0: #{tile.58}
  #allocation0 [shape = 's32[1]{0}', space=sflag, size = 0x4, scoped, tag = 'scoped memory for tile.58']
  %s0 = inlined_call_operand.vmem [shape: f32[2], index: 0, kind: input, shape index: {}]
  %s1 = inlined_call_operand.vmem [shape: f32[2,2], index: 1, kind: output, shape index: {}]
  // Predicated region
  $region2: #{tile.58} parent=0 // pred_check
    _
  $region3: #{tile.58} parent=0 // pred_check_branch
    %3 = sbr.rel (0) target = $region5
  $region4: #{tile.58} parent=0 // pred_region
    _
  $region5: #{tile.58} parent=0 // pred_fallthru
    _
  %v4 = vld [vmem:[%s0] ss:$0 sm:$0xff]
  %5 = vst [vmem:[%s1] sm:$0x3] %v4

// kernel: tile.59
$region0: #{tile.59}
  %s0 = inlined_call_operand.vmem [shape: f32[2,2], index: 0, kind: input, shape index: {}]
  %s1 = inlined_call_operand.vmem [shape: f32[1,4], index: 1, kind: output, shape index: {}]
  $region1: #{tile.59} parent=0
    #allocation0 [shape = 'u8[4096]{0}', space=vmem, size = 0x1000, scoped, tag = 'scoped mem for output reshape']
    #allocation1 [shape = 'u8[4096]{0}', space=vmem, size = 0x1000, scoped, tag = 'scoped mem for input reshape']
    %s3 = sshll.u32 1, 2
    %s4 = ssub.s32 %s3, 1
    %v5 = vld [vmem:[%s0] sm:%s4]
    %6 = vst [vmem:[#allocation1] sm:%s4] %v5
    %v7 = vld [vmem:[#allocation1] sm:$0x1]
    %vm8 = vcmask 15360
    %9 = vst.msk [vmem:[#allocation0] sm:$0x1] %vm8, %v7
    %s10 = scalar_lea.vmem [#allocation1], 1
    %v11 = vld [vmem:[%s10] sm:$0x1]
    %12 = vrot.lane.b32.xlu0 %v11, 2
    %v13 = vpop.permute.xlu0 %12
    %vm14 = vcmask 31760
    %15 = vst.msk [vmem:[#allocation0] sm:$0x1] %vm14, %v13
    %s17 = sshll.u32 1, 1
    %s18 = ssub.s32 %s17, 1
    %v20 = vld [vmem:[#allocation0] sm:%s18]
    %s21 = sshll.u32 1, 1
    %s22 = ssub.s32 %s21, 1
    %23 = vst [vmem:[%s1] sm:%s22] %v20

// kernel: convnn_forward.1
$region0: #{convnn_forward.1}
  #allocation0 [shape = 'u32[]', space=smem, size = 0x4, offset = 0x4, fixed_abs, tag = 'smem constant byte address 0x4 - core index']
  #allocation1 [shape = 'u32[144,128]{1,0:T(1,128)}', space=vmem, size = 0x12000, scoped, tag = 'internal scratch']
  #allocation2 [shape = 'bf16[1104,64]{1,0:T(8,128)(2,1)}', space=vmem, size = 0x45000, scoped, tag = 'scratch operand']
  #allocation3 [shape = 'bf16[480,64]{1,0:T(8,128)(2,1)}', space=vmem, size = 0x1e000, scoped, tag = 'scratch operand']
  #allocation4 [shape = 'bf16[192,128]{1,0:T(8,128)(2,1)}', space=vmem, size = 0xc000, scoped, tag = 'scratch operand']
  %s0 = inlined_call_operand.vmem [shape: bf16[2206,54], index: 0, kind: input, shape index: {}]
  %s1 = inlined_call_operand.vmem [shape: bf16[54,64], index: 1, kind: input, shape index: {}]
  %s2 = inlined_call_operand.vmem [shape: f32[1,64], index: 2, kind: input, shape index: {}]
  %s3 = inlined_call_operand.vmem [shape: bf16[576,64], index: 3, kind: input, shape index: {}]
  %s4 = inlined_call_operand.vmem [shape: f32[1,64], index: 4, kind: input, shape index: {}]
  %s5 = inlined_call_operand.vmem [shape: bf16[576,128], index: 5, kind: input, shape index: {}]
  %s6 = inlined_call_operand.vmem [shape: f32[1,128], index: 6, kind: input, shape index: {}]
  %s7 = inlined_call_operand.vmem [shape: bf16[1152,128], index: 7, kind: input, shape index: {}]
  %s8 = inlined_call_operand.vmem [shape: f32[1,128], index: 8, kind: input, shape index: {}]
  %s9 = inlined_call_operand.vmem [shape: f32[128,20], index: 9, kind: input, shape index: {}]
  %s10 = inlined_call_operand.vmem [shape: f32[1,20], index: 10, kind: input, shape index: {}]
  %s11 = inlined_call_operand.vmem [shape: f32[20,4], index: 11, kind: input, shape index: {}]
  %s12 = inlined_call_operand.vmem [shape: f32[1,4], index: 12, kind: input, shape index: {}]
  %s13 = inlined_call_operand.vmem [shape: f32[1,4], index: 13, kind: output, shape index: {}]
  %s14 = sld [smem:[#allocation0]]
  $region62: #{convnn_forward.1} parent=0
    _
  %s16 = ssub.s32 1, %s14
  %s17 = scalar_select 0, %s16, %s14
  // Predicated region
  $region2: #{convnn_forward.1} parent=0 // pred_check
    _
  $region3: #{convnn_forward.1} parent=0 // pred_check_branch
    %19 = sbr.rel (0) target = $region5
  $region4: #{convnn_forward.1} parent=0 // pred_region
    _
  $region5: #{convnn_forward.1} parent=0 // pred_fallthru
    _
  // Predicated region
  $region6: #{convnn_forward.1} parent=0 // pred_check
    _
  $region7: #{convnn_forward.1} parent=0 // pred_check_branch
    %21 = sbr.rel (0) target = $region9
  $region8: #{convnn_forward.1} parent=0 // pred_region
    _
  $region9: #{convnn_forward.1} parent=0 // pred_fallthru
    _
  // Predicated region
  $region10: #{convnn_forward.1} parent=0 // pred_check
    _
  $region11: #{convnn_forward.1} parent=0 // pred_check_branch
    %23 = sbr.rel (0) target = $region13
  $region12: #{convnn_forward.1} parent=0 // pred_region
    _
  $region13: #{convnn_forward.1} parent=0 // pred_fallthru
    _
  // Predicated region
  $region14: #{convnn_forward.1} parent=0 // pred_check
    _
  $region15: #{convnn_forward.1} parent=0 // pred_check_branch
    %25 = sbr.rel (0) target = $region17
  $region16: #{convnn_forward.1} parent=0 // pred_region
    _
  $region17: #{convnn_forward.1} parent=0 // pred_fallthru
    _
  // Predicated region
  $region18: #{convnn_forward.1} parent=0 // pred_check
    _
  $region19: #{convnn_forward.1} parent=0 // pred_check_branch
    %27 = sbr.rel (0) target = $region21
  $region20: #{convnn_forward.1} parent=0 // pred_region
    _
  $region21: #{convnn_forward.1} parent=0 // pred_fallthru
    _
  // Predicated region
  $region22: #{convnn_forward.1} parent=0 // pred_check
    _
  $region23: #{convnn_forward.1} parent=0 // pred_check_branch
    %29 = sbr.rel (0) target = $region25
  $region24: #{convnn_forward.1} parent=0 // pred_region
    _
  $region25: #{convnn_forward.1} parent=0 // pred_fallthru
    _
  // Predicated region
  $region26: #{convnn_forward.1} parent=0 // pred_check
    _
  $region27: #{convnn_forward.1} parent=0 // pred_check_branch
    %31 = sbr.rel (0) target = $region29
  $region28: #{convnn_forward.1} parent=0 // pred_region
    _
  $region29: #{convnn_forward.1} parent=0 // pred_fallthru
    _
  // Predicated region
  $region30: #{convnn_forward.1} parent=0 // pred_check
    _
  $region31: #{convnn_forward.1} parent=0 // pred_check_branch
    %33 = sbr.rel (0) target = $region33
  $region32: #{convnn_forward.1} parent=0 // pred_region
    _
  $region33: #{convnn_forward.1} parent=0 // pred_fallthru
    _
  // Predicated region
  $region34: #{convnn_forward.1} parent=0 // pred_check
    _
  $region35: #{convnn_forward.1} parent=0 // pred_check_branch
    %35 = sbr.rel (0) target = $region37
  $region36: #{convnn_forward.1} parent=0 // pred_region
    _
  $region37: #{convnn_forward.1} parent=0 // pred_fallthru
    _
  // Predicated region
  $region38: #{convnn_forward.1} parent=0 // pred_check
    _
  $region39: #{convnn_forward.1} parent=0 // pred_check_branch
    %37 = sbr.rel (0) target = $region41
  $region40: #{convnn_forward.1} parent=0 // pred_region
    _
  $region41: #{convnn_forward.1} parent=0 // pred_fallthru
    _
  // Predicated region
  $region42: #{convnn_forward.1} parent=0 // pred_check
    _
  $region43: #{convnn_forward.1} parent=0 // pred_check_branch
    %39 = sbr.rel (0) target = $region45
  $region44: #{convnn_forward.1} parent=0 // pred_region
    _
  $region45: #{convnn_forward.1} parent=0 // pred_fallthru
    _
  // Predicated region
  $region46: #{convnn_forward.1} parent=0 // pred_check
    _
  $region47: #{convnn_forward.1} parent=0 // pred_check_branch
    %41 = sbr.rel (0) target = $region49
  $region48: #{convnn_forward.1} parent=0 // pred_region
    _
  $region49: #{convnn_forward.1} parent=0 // pred_fallthru
    _
  // Predicated region
  $region50: #{convnn_forward.1} parent=0 // pred_check
    _
  $region51: #{convnn_forward.1} parent=0 // pred_check_branch
    %43 = sbr.rel (0) target = $region53
  $region52: #{convnn_forward.1} parent=0 // pred_region
    _
  $region53: #{convnn_forward.1} parent=0 // pred_fallthru
    _
  %v45 = vld [vmem:[%s0] sm:$0xf]
  %v46 = vld [vmem:[%s0 + $0x4] sm:$0xf]
  %v47 = vld [vmem:[%s0 + $0x8] sm:$0xf]
  %v48 = vld [vmem:[%s0 + $0xc] sm:$0xf]
  %v49 = vld [vmem:[%s0 + $0x10] sm:$0xf]
  %v50 = vld [vmem:[%s0 + $0x14] sm:$0xf]
  %v51 = vld [vmem:[%s0 + $0x18] sm:$0xf]
  %v52 = vld [vmem:[%s0 + $0x1c] sm:$0xf]
  %v53 = vld [vmem:[%s0 + $0x20] sm:$0xf]
  %v54 = vld [vmem:[%s0 + $0x24] sm:$0xf]
  %v55 = vld [vmem:[%s0 + $0x28] sm:$0xf]
  %v56 = vld [vmem:[%s0 + $0x2c] sm:$0xf]
  %v57 = vld [vmem:[%s0 + $0x30] sm:$0xf]
  %v58 = vld [vmem:[%s0 + $0x34] sm:$0xf]
  %v59 = vld [vmem:[%s0 + $0x38] sm:$0xf]
  %v60 = vld [vmem:[%s0 + $0x3c] sm:$0xf]
  %v61 = vld [vmem:[%s0 + $0x40] sm:$0xf]
  %v62 = vld [vmem:[%s0 + $0x44] sm:$0xf]
  %v63 = vld [vmem:[%s0 + $0x48] sm:$0xf]
  %v64 = vld [vmem:[%s0 + $0x4c] sm:$0xf]
  %v65 = vld [vmem:[%s0 + $0x50] sm:$0xf]
  %v66 = vld [vmem:[%s0 + $0x54] sm:$0xf]
  %v67 = vld [vmem:[%s0 + $0x58] sm:$0xf]
  %v68 = vld [vmem:[%s0 + $0x5c] sm:$0xf]
  %v69 = vld [vmem:[%s0 + $0x60] sm:$0xf]
  %v70 = vld [vmem:[%s0 + $0x64] sm:$0xf]
  %v71 = vld [vmem:[%s0 + $0x68] sm:$0xf]
  %v72 = vld [vmem:[%s0 + $0x6c] sm:$0xf]
  %v73 = vld [vmem:[%s0 + $0x70] sm:$0xf]
  %v74 = vld [vmem:[%s0 + $0x74] sm:$0xf]
  %v75 = vld [vmem:[%s0 + $0x78] sm:$0xf]
  %v76 = vld [vmem:[%s0 + $0x7c] sm:$0xf]
  %v77 = vld [vmem:[%s0 + $0x80] sm:$0xf]
  %v78 = vld [vmem:[%s0 + $0x84] sm:$0xf]
  %v79 = vld [vmem:[%s0 + $0x88] sm:$0xf]
  %v80 = vld [vmem:[%s0 + $0x8c] sm:$0xf]
  %v81 = vld [vmem:[%s0 + $0x90] sm:$0xf]
  %v82 = vld [vmem:[%s0 + $0x94] sm:$0xf]
  %v83 = vld [vmem:[%s0 + $0x98] sm:$0xf]
  %v84 = vld [vmem:[%s0 + $0x9c] sm:$0xf]
  %v85 = vld [vmem:[%s0 + $0xa0] sm:$0xf]
  %v86 = vld [vmem:[%s0 + $0xa4] sm:$0xf]
  %v87 = vld [vmem:[%s0 + $0xa8] sm:$0xf]
  %v88 = vld [vmem:[%s0 + $0xac] sm:$0xf]
  %v89 = vld [vmem:[%s0 + $0xb0] sm:$0xf]
  %v90 = vld [vmem:[%s0 + $0xb4] sm:$0xf]
  %v91 = vld [vmem:[%s0 + $0xb8] sm:$0xf]
  %v92 = vld [vmem:[%s0 + $0xbc] sm:$0xf]
  %v93 = vld [vmem:[%s0 + $0xc0] sm:$0xf]
  %v94 = vld [vmem:[%s0 + $0xc4] sm:$0xf]
  %v95 = vld [vmem:[%s0 + $0xc8] sm:$0xf]
  %v96 = vld [vmem:[%s0 + $0xcc] sm:$0xf]
  %v97 = vld [vmem:[%s0 + $0xd0] sm:$0xf]
  %v98 = vld [vmem:[%s0 + $0xd4] sm:$0xf]
  %v99 = vld [vmem:[%s0 + $0xd8] sm:$0xf]
  %v100 = vld [vmem:[%s0 + $0xdc] sm:$0xf]
  %v101 = vld [vmem:[%s0 + $0xe0] sm:$0xf]
  %v102 = vld [vmem:[%s0 + $0xe4] sm:$0xf]
  %v103 = vld [vmem:[%s0 + $0xe8] sm:$0xf]
  %v104 = vld [vmem:[%s0 + $0xec] sm:$0xf]
  %v105 = vld [vmem:[%s0 + $0xf0] sm:$0xf]
  %v106 = vld [vmem:[%s0 + $0xf4] sm:$0xf]
  %v107 = vld [vmem:[%s0 + $0xf8] sm:$0xf]
  %v108 = vld [vmem:[%s0 + $0xfc] sm:$0xf]
  %v109 = vld [vmem:[%s0 + $0x100] sm:$0xf]
  %v110 = vld [vmem:[%s0 + $0x104] sm:$0xf]
  %v111 = vld [vmem:[%s0 + $0x108] sm:$0xf]
  %v112 = vld [vmem:[%s0 + $0x10c] sm:$0xf]
  %v113 = vld [vmem:[%s0 + $0x110] sm:$0xf]
  %v114 = vld [vmem:[%s0 + $0x114] sm:$0xf]
  %v115 = vld [vmem:[%s0 + $0x118] sm:$0xf]
  %v116 = vld [vmem:[%s0 + $0x11c] sm:$0xf]
  %v117 = vld [vmem:[%s0 + $0x120] sm:$0xf]
  %v118 = vld [vmem:[%s0 + $0x124] sm:$0xf]
  %v119 = vld [vmem:[%s0 + $0x128] sm:$0xf]
  %v120 = vld [vmem:[%s0 + $0x12c] sm:$0xf]
  %v121 = vld [vmem:[%s0 + $0x130] sm:$0xf]
  %v122 = vld [vmem:[%s0 + $0x134] sm:$0xf]
  %v123 = vld [vmem:[%s0 + $0x138] sm:$0xf]
  %v124 = vld [vmem:[%s0 + $0x13c] sm:$0xf]
  %v125 = vld [vmem:[%s0 + $0x140] sm:$0xf]
  %v126 = vld [vmem:[%s0 + $0x144] sm:$0xf]
  %v127 = vld [vmem:[%s0 + $0x148] sm:$0xf]
  %v128 = vld [vmem:[%s0 + $0x14c] sm:$0xf]
  %v129 = vld [vmem:[%s0 + $0x150] sm:$0xf]
  %v130 = vld [vmem:[%s0 + $0x154] sm:$0xf]
  %v131 = vld [vmem:[%s0 + $0x158] sm:$0xf]
  %v132 = vld [vmem:[%s0 + $0x15c] sm:$0xf]
  %v133 = vld [vmem:[%s0 + $0x160] sm:$0xf]
  %v134 = vld [vmem:[%s0 + $0x164] sm:$0xf]
  %v135 = vld [vmem:[%s0 + $0x168] sm:$0xf]
  %v136 = vld [vmem:[%s0 + $0x16c] sm:$0xf]
  %v137 = vld [vmem:[%s0 + $0x170] sm:$0xf]
  %v138 = vld [vmem:[%s0 + $0x174] sm:$0xf]
  %v139 = vld [vmem:[%s0 + $0x178] sm:$0xf]
  %v140 = vld [vmem:[%s0 + $0x17c] sm:$0xf]
  %v141 = vld [vmem:[%s0 + $0x180] sm:$0xf]
  %v142 = vld [vmem:[%s0 + $0x184] sm:$0xf]
  %v143 = vld [vmem:[%s0 + $0x188] sm:$0xf]
  %v144 = vld [vmem:[%s0 + $0x18c] sm:$0xf]
  %v145 = vld [vmem:[%s0 + $0x190] sm:$0xf]
  %v146 = vld [vmem:[%s0 + $0x194] sm:$0xf]
  %v147 = vld [vmem:[%s0 + $0x198] sm:$0xf]
  %v148 = vld [vmem:[%s0 + $0x19c] sm:$0xf]
  %v149 = vld [vmem:[%s0 + $0x1a0] sm:$0xf]
  %v150 = vld [vmem:[%s0 + $0x1a4] sm:$0xf]
  %v151 = vld [vmem:[%s0 + $0x1a8] sm:$0xf]
  %v152 = vld [vmem:[%s0 + $0x1ac] sm:$0xf]
  %v153 = vld [vmem:[%s0 + $0x1b0] sm:$0xf]
  %v154 = vld [vmem:[%s0 + $0x1b4] sm:$0xf]
  %v155 = vld [vmem:[%s0 + $0x1b8] sm:$0xf]
  %v156 = vld [vmem:[%s0 + $0x1bc] sm:$0xf]
  %v157 = vld [vmem:[%s0 + $0x1c0] sm:$0xf]
  %v158 = vld [vmem:[%s0 + $0x1c4] sm:$0xf]
  %v159 = vld [vmem:[%s0 + $0x1c8] sm:$0xf]
  %v160 = vld [vmem:[%s0 + $0x1cc] sm:$0xf]
  %v161 = vld [vmem:[%s0 + $0x1d0] sm:$0xf]
  %v162 = vld [vmem:[%s0 + $0x1d4] sm:$0xf]
  %v163 = vld [vmem:[%s0 + $0x1d8] sm:$0xf]
  %v164 = vld [vmem:[%s0 + $0x1dc] sm:$0xf]
  %v165 = vld [vmem:[%s0 + $0x1e0] sm:$0xf]
  %v166 = vld [vmem:[%s0 + $0x1e4] sm:$0xf]
  %v167 = vld [vmem:[%s0 + $0x1e8] sm:$0xf]
  %v168 = vld [vmem:[%s0 + $0x1ec] sm:$0xf]
  %v169 = vld [vmem:[%s0 + $0x1f0] sm:$0xf]
  %v170 = vld [vmem:[%s0 + $0x1f4] sm:$0xf]
  %v171 = vld [vmem:[%s0 + $0x1f8] sm:$0xf]
  %v172 = vld [vmem:[%s0 + $0x1fc] sm:$0xf]
  %v173 = vld [vmem:[%s0 + $0x200] sm:$0xf]
  %v174 = vld [vmem:[%s0 + $0x204] sm:$0xf]
  %v175 = vld [vmem:[%s0 + $0x208] sm:$0xf]
  %v176 = vld [vmem:[%s0 + $0x20c] sm:$0xf]
  %v177 = vld [vmem:[%s0 + $0x210] sm:$0xf]
  %v178 = vld [vmem:[%s0 + $0x214] sm:$0xf]
  %v179 = vld [vmem:[%s0 + $0x218] sm:$0xf]
  %v180 = vld [vmem:[%s0 + $0x21c] sm:$0xf]
  %v181 = vld [vmem:[%s0 + $0x220] sm:$0xf]
  %v182 = vld [vmem:[%s0 + $0x224] sm:$0xf]
  %v183 = vld [vmem:[%s0 + $0x228] sm:$0xf]
  %v184 = vld [vmem:[%s0 + $0x22c] sm:$0xf]
  %v185 = vld [vmem:[%s0 + $0x230] sm:$0xf]
  %v186 = vld [vmem:[%s0 + $0x234] sm:$0xf]
  %v187 = vld [vmem:[%s0 + $0x238] sm:$0xf]
  %v188 = vld [vmem:[%s0 + $0x23c] sm:$0xf]
  %v189 = vld [vmem:[%s0 + $0x240] sm:$0xf]
  %v190 = vld [vmem:[%s0 + $0x244] sm:$0xf]
  %v191 = vld [vmem:[%s0 + $0x248] sm:$0xf]
  %v192 = vld [vmem:[%s0 + $0x24c] sm:$0xf]
  %v193 = vld [vmem:[%s0 + $0x250] sm:$0xf]
  %v194 = vld [vmem:[%s0 + $0x254] sm:$0xf]
  %v195 = vld [vmem:[%s0 + $0x258] sm:$0xf]
  %v196 = vld [vmem:[%s0 + $0x25c] sm:$0xf]
  %v197 = vld [vmem:[%s0 + $0x260] sm:$0xf]
  %v198 = vld [vmem:[%s0 + $0x264] sm:$0xf]
  %v199 = vld [vmem:[%s0 + $0x268] sm:$0xf]
  %v200 = vld [vmem:[%s0 + $0x26c] sm:$0xf]
  %v201 = vld [vmem:[%s0 + $0x270] sm:$0xf]
  %v202 = vld [vmem:[%s0 + $0x274] sm:$0xf]
  %v203 = vld [vmem:[%s0 + $0x278] sm:$0xf]
  %v204 = vld [vmem:[%s0 + $0x27c] sm:$0xf]
  %v205 = vld [vmem:[%s0 + $0x280] sm:$0xf]
  %v206 = vld [vmem:[%s0 + $0x284] sm:$0xf]
  %v207 = vld [vmem:[%s0 + $0x288] sm:$0xf]
  %v208 = vld [vmem:[%s0 + $0x28c] sm:$0xf]
  %v209 = vld [vmem:[%s0 + $0x290] sm:$0xf]
  %v210 = vld [vmem:[%s0 + $0x294] sm:$0xf]
  %v211 = vld [vmem:[%s0 + $0x298] sm:$0xf]
  %v212 = vld [vmem:[%s0 + $0x29c] sm:$0xf]
  %v213 = vld [vmem:[%s0 + $0x2a0] sm:$0xf]
  %v214 = vld [vmem:[%s0 + $0x2a4] sm:$0xf]
  %v215 = vld [vmem:[%s0 + $0x2a8] sm:$0xf]
  %v216 = vld [vmem:[%s0 + $0x2ac] sm:$0xf]
  %v217 = vld [vmem:[%s0 + $0x2b0] sm:$0xf]
  %v218 = vld [vmem:[%s0 + $0x2b4] sm:$0xf]
  %v219 = vld [vmem:[%s0 + $0x2b8] sm:$0xf]
  %v220 = vld [vmem:[%s0 + $0x2bc] sm:$0xf]
  %v221 = vld [vmem:[%s0 + $0x2c0] sm:$0xf]
  %v222 = vld [vmem:[%s0 + $0x2c4] sm:$0xf]
  %v223 = vld [vmem:[%s0 + $0x2c8] sm:$0xf]
  %v224 = vld [vmem:[%s0 + $0x2cc] sm:$0xf]
  %v225 = vld [vmem:[%s0 + $0x2d0] sm:$0xf]
  %v226 = vld [vmem:[%s0 + $0x2d4] sm:$0xf]
  %v227 = vld [vmem:[%s0 + $0x2d8] sm:$0xf]
  %v228 = vld [vmem:[%s0 + $0x2dc] sm:$0xf]
  %v229 = vld [vmem:[%s0 + $0x2e0] sm:$0xf]
  %v230 = vld [vmem:[%s0 + $0x2e4] sm:$0xf]
  %v231 = vld [vmem:[%s0 + $0x2e8] sm:$0xf]
  %v232 = vld [vmem:[%s0 + $0x2ec] sm:$0xf]
  %v233 = vld [vmem:[%s0 + $0x2f0] sm:$0xf]
  %v234 = vld [vmem:[%s0 + $0x2f4] sm:$0xf]
  %v235 = vld [vmem:[%s0 + $0x2f8] sm:$0xf]
  %v236 = vld [vmem:[%s0 + $0x2fc] sm:$0xf]
  %v237 = vld [vmem:[%s0 + $0x300] sm:$0xf]
  %v238 = vld [vmem:[%s0 + $0x304] sm:$0xf]
  %v239 = vld [vmem:[%s0 + $0x308] sm:$0xf]
  %v240 = vld [vmem:[%s0 + $0x30c] sm:$0xf]
  %v241 = vld [vmem:[%s0 + $0x310] sm:$0xf]
  %v242 = vld [vmem:[%s0 + $0x314] sm:$0xf]
  %v243 = vld [vmem:[%s0 + $0x318] sm:$0xf]
  %v244 = vld [vmem:[%s0 + $0x31c] sm:$0xf]
  %v245 = vld [vmem:[%s0 + $0x320] sm:$0xf]
  %v246 = vld [vmem:[%s0 + $0x324] sm:$0xf]
  %v247 = vld [vmem:[%s0 + $0x328] sm:$0xf]
  %v248 = vld [vmem:[%s0 + $0x32c] sm:$0xf]
  %v249 = vld [vmem:[%s0 + $0x330] sm:$0xf]
  %v250 = vld [vmem:[%s0 + $0x334] sm:$0xf]
  %v251 = vld [vmem:[%s0 + $0x338] sm:$0xf]
  %v252 = vld [vmem:[%s0 + $0x33c] sm:$0xf]
  %v253 = vld [vmem:[%s0 + $0x340] sm:$0xf]
  %v254 = vld [vmem:[%s0 + $0x344] sm:$0xf]
  %v255 = vld [vmem:[%s0 + $0x348] sm:$0xf]
  %v256 = vld [vmem:[%s0 + $0x34c] sm:$0xf]
  %v257 = vld [vmem:[%s0 + $0x350] sm:$0xf]
  %v258 = vld [vmem:[%s0 + $0x354] sm:$0xf]
  %v259 = vld [vmem:[%s0 + $0x358] sm:$0xf]
  %v260 = vld [vmem:[%s0 + $0x35c] sm:$0xf]
  %v261 = vld [vmem:[%s0 + $0x360] sm:$0xf]
  %v262 = vld [vmem:[%s0 + $0x364] sm:$0xf]
  %v263 = vld [vmem:[%s0 + $0x368] sm:$0xf]
  %v264 = vld [vmem:[%s0 + $0x36c] sm:$0xf]
  %v265 = vld [vmem:[%s0 + $0x370] sm:$0xf]
  %v266 = vld [vmem:[%s0 + $0x374] sm:$0xf]
  %v267 = vld [vmem:[%s0 + $0x378] sm:$0xf]
  %v268 = vld [vmem:[%s0 + $0x37c] sm:$0xf]
  %v269 = vld [vmem:[%s0 + $0x380] sm:$0xf]
  %v270 = vld [vmem:[%s0 + $0x384] sm:$0xf]
  %v271 = vld [vmem:[%s0 + $0x388] sm:$0xf]
  %v272 = vld [vmem:[%s0 + $0x38c] sm:$0xf]
  %v273 = vld [vmem:[%s0 + $0x390] sm:$0xf]
  %v274 = vld [vmem:[%s0 + $0x394] sm:$0xf]
  %v275 = vld [vmem:[%s0 + $0x398] sm:$0xf]
  %v276 = vld [vmem:[%s0 + $0x39c] sm:$0xf]
  %v277 = vld [vmem:[%s0 + $0x3a0] sm:$0xf]
  %v278 = vld [vmem:[%s0 + $0x3a4] sm:$0xf]
  %v279 = vld [vmem:[%s0 + $0x3a8] sm:$0xf]
  %v280 = vld [vmem:[%s0 + $0x3ac] sm:$0xf]
  %v281 = vld [vmem:[%s0 + $0x3b0] sm:$0xf]
  %v282 = vld [vmem:[%s0 + $0x3b4] sm:$0xf]
  %v283 = vld [vmem:[%s0 + $0x3b8] sm:$0xf]
  %v284 = vld [vmem:[%s0 + $0x3bc] sm:$0xf]
  %v285 = vld [vmem:[%s0 + $0x3c0] sm:$0xf]
  %v286 = vld [vmem:[%s0 + $0x3c4] sm:$0xf]
  %v287 = vld [vmem:[%s0 + $0x3c8] sm:$0xf]
  %v288 = vld [vmem:[%s0 + $0x3cc] sm:$0xf]
  %v289 = vld [vmem:[%s0 + $0x3d0] sm:$0xf]
  %v290 = vld [vmem:[%s0 + $0x3d4] sm:$0xf]
  %v291 = vld [vmem:[%s0 + $0x3d8] sm:$0xf]
  %v292 = vld [vmem:[%s0 + $0x3dc] sm:$0xf]
  %v293 = vld [vmem:[%s0 + $0x3e0] sm:$0xf]
  %v294 = vld [vmem:[%s0 + $0x3e4] sm:$0xf]
  %v295 = vld [vmem:[%s0 + $0x3e8] sm:$0xf]
  %v296 = vld [vmem:[%s0 + $0x3ec] sm:$0xf]
  %v297 = vld [vmem:[%s0 + $0x3f0] sm:$0xf]
  %v298 = vld [vmem:[%s0 + $0x3f4] sm:$0xf]
  %v299 = vld [vmem:[%s0 + $0x3f8] sm:$0xf]
  %v300 = vld [vmem:[%s0 + $0x3fc] sm:$0xf]
  %v301 = vld [vmem:[%s0 + $0x400] sm:$0xf]
  %v302 = vld [vmem:[%s0 + $0x404] sm:$0xf]
  %v303 = vld [vmem:[%s0 + $0x408] sm:$0xf]
  %v304 = vld [vmem:[%s0 + $0x40c] sm:$0xf]
  %v305 = vld [vmem:[%s0 + $0x410] sm:$0xf]
  %v306 = vld [vmem:[%s0 + $0x414] sm:$0xf]
  %v307 = vld [vmem:[%s0 + $0x418] sm:$0xf]
  %v308 = vld [vmem:[%s0 + $0x41c] sm:$0xf]
  %v309 = vld [vmem:[%s0 + $0x420] sm:$0xf]
  %v310 = vld [vmem:[%s0 + $0x424] sm:$0xf]
  %v311 = vld [vmem:[%s0 + $0x428] sm:$0xf]
  %v312 = vld [vmem:[%s0 + $0x42c] sm:$0xf]
  %v313 = vld [vmem:[%s0 + $0x430] sm:$0xf]
  %v314 = vld [vmem:[%s0 + $0x434] sm:$0xf]
  %v315 = vld [vmem:[%s0 + $0x438] sm:$0xf]
  %v316 = vld [vmem:[%s0 + $0x43c] sm:$0xf]
  %v317 = vld [vmem:[%s0 + $0x440] sm:$0xf]
  %v318 = vld [vmem:[%s0 + $0x444] sm:$0xf]
  %v319 = vld [vmem:[%s0 + $0x448] sm:$0xf]
  %v320 = vld [vmem:[%s0 + $0x44c] sm:$0x7]
  %v321 = vld [vmem:[%s1] sm:$0xf]
  %v322 = vld [vmem:[%s1 + $0x4] sm:$0xf]
  %v323 = vld [vmem:[%s1 + $0x8] sm:$0xf]
  %v324 = vld [vmem:[%s1 + $0xc] sm:$0xf]
  %v325 = vld [vmem:[%s1 + $0x10] sm:$0xf]
  %v326 = vld [vmem:[%s1 + $0x14] sm:$0xf]
  %v327 = vld [vmem:[%s1 + $0x18] sm:$0x7]
  %v328 = vld [vmem:[%s2] sm:$0x1]
  %v330 = vlaneseq
  %v331 = vshrl.u32 %v330, 7
  %v332 = vsub.s32 0, %v331
  %v333 = vrot.slane %v328, %v332
  %v611 = vunpack.c.l.b16 %v45
  %v612 = vunpack.c.l.b16 %v46
  %v613 = vunpack.c.l.b16 %v47
  %v614 = vunpack.c.l.b16 %v48
  %v615 = vunpack.c.l.b16 %v49
  %v616 = vunpack.c.l.b16 %v50
  %v617 = vunpack.c.l.b16 %v51
  %v618 = vunpack.c.l.b16 %v52
  %v619 = vunpack.c.l.b16 %v53
  %v620 = vunpack.c.l.b16 %v54
  %v621 = vunpack.c.l.b16 %v55
  %v622 = vunpack.c.l.b16 %v56
  %v623 = vunpack.c.l.b16 %v57
  %v624 = vunpack.c.l.b16 %v58
  %v625 = vunpack.c.l.b16 %v59
  %v626 = vunpack.c.l.b16 %v60
  %v627 = vunpack.c.l.b16 %v61
  %v628 = vunpack.c.l.b16 %v62
  %v629 = vunpack.c.l.b16 %v63
  %v630 = vunpack.c.l.b16 %v64
  %v631 = vunpack.c.l.b16 %v65
  %v632 = vunpack.c.l.b16 %v66
  %v633 = vunpack.c.l.b16 %v67
  %v634 = vunpack.c.l.b16 %v68
  %v635 = vunpack.c.l.b16 %v69
  %v636 = vunpack.c.l.b16 %v70
  %v637 = vunpack.c.l.b16 %v71
  %v638 = vunpack.c.l.b16 %v72
  %v639 = vunpack.c.l.b16 %v73
  %v640 = vunpack.c.l.b16 %v74
  %v641 = vunpack.c.l.b16 %v75
  %v642 = vunpack.c.l.b16 %v76
  %v643 = vunpack.c.l.b16 %v77
  %v644 = vunpack.c.l.b16 %v78
  %v645 = vunpack.c.l.b16 %v79
  %v646 = vunpack.c.l.b16 %v80
  %v647 = vunpack.c.l.b16 %v81
  %v648 = vunpack.c.l.b16 %v82
  %v649 = vunpack.c.l.b16 %v83
  %v650 = vunpack.c.l.b16 %v84
  %v651 = vunpack.c.l.b16 %v85
  %v652 = vunpack.c.l.b16 %v86
  %v653 = vunpack.c.l.b16 %v87
  %v654 = vunpack.c.l.b16 %v88
  %v655 = vunpack.c.l.b16 %v89
  %v656 = vunpack.c.l.b16 %v90
  %v657 = vunpack.c.l.b16 %v91
  %v658 = vunpack.c.l.b16 %v92
  %v659 = vunpack.c.l.b16 %v93
  %v660 = vunpack.c.l.b16 %v94
  %v661 = vunpack.c.l.b16 %v95
  %v662 = vunpack.c.l.b16 %v96
  %v663 = vunpack.c.l.b16 %v97
  %v664 = vunpack.c.l.b16 %v98
  %v665 = vunpack.c.l.b16 %v99
  %v666 = vunpack.c.l.b16 %v100
  %v667 = vunpack.c.l.b16 %v101
  %v668 = vunpack.c.l.b16 %v102
  %v669 = vunpack.c.l.b16 %v103
  %v670 = vunpack.c.l.b16 %v104
  %v671 = vunpack.c.l.b16 %v105
  %v672 = vunpack.c.l.b16 %v106
  %v673 = vunpack.c.l.b16 %v107
  %v674 = vunpack.c.l.b16 %v108
  %v675 = vunpack.c.l.b16 %v109
  %v676 = vunpack.c.l.b16 %v110
  %v677 = vunpack.c.l.b16 %v111
  %v678 = vunpack.c.l.b16 %v112
  %v679 = vunpack.c.l.b16 %v113
  %v680 = vunpack.c.l.b16 %v114
  %v681 = vunpack.c.l.b16 %v115
  %v682 = vunpack.c.l.b16 %v116
  %v683 = vunpack.c.l.b16 %v117
  %v684 = vunpack.c.l.b16 %v118
  %v685 = vunpack.c.l.b16 %v119
  %v686 = vunpack.c.l.b16 %v120
  %v687 = vunpack.c.l.b16 %v121
  %v688 = vunpack.c.l.b16 %v122
  %v689 = vunpack.c.l.b16 %v123
  %v690 = vunpack.c.l.b16 %v124
  %v691 = vunpack.c.l.b16 %v125
  %v692 = vunpack.c.l.b16 %v126
  %v693 = vunpack.c.l.b16 %v127
  %v694 = vunpack.c.l.b16 %v128
  %v695 = vunpack.c.l.b16 %v129
  %v696 = vunpack.c.l.b16 %v130
  %v697 = vunpack.c.l.b16 %v131
  %v698 = vunpack.c.l.b16 %v132
  %v699 = vunpack.c.l.b16 %v133
  %v700 = vunpack.c.l.b16 %v134
  %v701 = vunpack.c.l.b16 %v135
  %v702 = vunpack.c.l.b16 %v136
  %v703 = vunpack.c.l.b16 %v137
  %v704 = vunpack.c.l.b16 %v138
  %v705 = vunpack.c.l.b16 %v139
  %v706 = vunpack.c.l.b16 %v140
  %v707 = vunpack.c.l.b16 %v141
  %v708 = vunpack.c.l.b16 %v142
  %v709 = vunpack.c.l.b16 %v143
  %v710 = vunpack.c.l.b16 %v144
  %v711 = vunpack.c.l.b16 %v145
  %v712 = vunpack.c.l.b16 %v146
  %v713 = vunpack.c.l.b16 %v147
  %v714 = vunpack.c.l.b16 %v148
  %v715 = vunpack.c.l.b16 %v149
  %v716 = vunpack.c.l.b16 %v150
  %v717 = vunpack.c.l.b16 %v151
  %v718 = vunpack.c.l.b16 %v152
  %v719 = vunpack.c.l.b16 %v153
  %v720 = vunpack.c.l.b16 %v154
  %v721 = vunpack.c.l.b16 %v155
  %v722 = vunpack.c.l.b16 %v156
  %v723 = vunpack.c.l.b16 %v157
  %v724 = vunpack.c.l.b16 %v158
  %v725 = vunpack.c.l.b16 %v159
  %v726 = vunpack.c.l.b16 %v160
  %v727 = vunpack.c.l.b16 %v161
  %v728 = vunpack.c.l.b16 %v162
  %v729 = vunpack.c.l.b16 %v163
  %v730 = vunpack.c.l.b16 %v164
  %v731 = vunpack.c.l.b16 %v165
  %v732 = vunpack.c.l.b16 %v166
  %v733 = vunpack.c.l.b16 %v167
  %v734 = vunpack.c.l.b16 %v168
  %v735 = vunpack.c.l.b16 %v169
  %v736 = vunpack.c.l.b16 %v170
  %v737 = vunpack.c.l.b16 %v171
  %v738 = vunpack.c.l.b16 %v172
  %v739 = vunpack.c.l.b16 %v173
  %v740 = vunpack.c.l.b16 %v174
  %v741 = vunpack.c.l.b16 %v175
  %v742 = vunpack.c.l.b16 %v176
  %v743 = vunpack.c.l.b16 %v177
  %v744 = vunpack.c.l.b16 %v178
  %v745 = vunpack.c.l.b16 %v179
  %v746 = vunpack.c.l.b16 %v180
  %v747 = vunpack.c.l.b16 %v181
  %v748 = vunpack.c.l.b16 %v182
  %v749 = vunpack.c.l.b16 %v183
  %v750 = vunpack.c.l.b16 %v184
  %v751 = vunpack.c.l.b16 %v185
  %v752 = vunpack.c.l.b16 %v186
  %v753 = vunpack.c.l.b16 %v187
  %v754 = vunpack.c.l.b16 %v188
  %v755 = vunpack.c.l.b16 %v189
  %v756 = vunpack.c.l.b16 %v190
  %v757 = vunpack.c.l.b16 %v191
  %v758 = vunpack.c.l.b16 %v192
  %v759 = vunpack.c.l.b16 %v193
  %v760 = vunpack.c.l.b16 %v194
  %v761 = vunpack.c.l.b16 %v195
  %v762 = vunpack.c.l.b16 %v196
  %v763 = vunpack.c.l.b16 %v197
  %v764 = vunpack.c.l.b16 %v198
  %v765 = vunpack.c.l.b16 %v199
  %v766 = vunpack.c.l.b16 %v200
  %v767 = vunpack.c.l.b16 %v201
  %v768 = vunpack.c.l.b16 %v202
  %v769 = vunpack.c.l.b16 %v203
  %v770 = vunpack.c.l.b16 %v204
  %v771 = vunpack.c.l.b16 %v205
  %v772 = vunpack.c.l.b16 %v206
  %v773 = vunpack.c.l.b16 %v207
  %v774 = vunpack.c.l.b16 %v208
  %v775 = vunpack.c.l.b16 %v209
  %v776 = vunpack.c.l.b16 %v210
  %v777 = vunpack.c.l.b16 %v211
  %v778 = vunpack.c.l.b16 %v212
  %v779 = vunpack.c.l.b16 %v213
  %v780 = vunpack.c.l.b16 %v214
  %v781 = vunpack.c.l.b16 %v215
  %v782 = vunpack.c.l.b16 %v216
  %v783 = vunpack.c.l.b16 %v217
  %v784 = vunpack.c.l.b16 %v218
  %v785 = vunpack.c.l.b16 %v219
  %v786 = vunpack.c.l.b16 %v220
  %v787 = vunpack.c.l.b16 %v221
  %v788 = vunpack.c.l.b16 %v222
  %v789 = vunpack.c.l.b16 %v223
  %v790 = vunpack.c.l.b16 %v224
  %v791 = vunpack.c.l.b16 %v225
  %v792 = vunpack.c.l.b16 %v226
  %v793 = vunpack.c.l.b16 %v227
  %v794 = vunpack.c.l.b16 %v228
  %v795 = vunpack.c.l.b16 %v229
  %v796 = vunpack.c.l.b16 %v230
  %v797 = vunpack.c.l.b16 %v231
  %v798 = vunpack.c.l.b16 %v232
  %v799 = vunpack.c.l.b16 %v233
  %v800 = vunpack.c.l.b16 %v234
  %v801 = vunpack.c.l.b16 %v235
  %v802 = vunpack.c.l.b16 %v236
  %v803 = vunpack.c.l.b16 %v237
  %v804 = vunpack.c.l.b16 %v238
  %v805 = vunpack.c.l.b16 %v239
  %v806 = vunpack.c.l.b16 %v240
  %v807 = vunpack.c.l.b16 %v241
  %v808 = vunpack.c.l.b16 %v242
  %v809 = vunpack.c.l.b16 %v243
  %v810 = vunpack.c.l.b16 %v244
  %v811 = vunpack.c.l.b16 %v245
  %v812 = vunpack.c.l.b16 %v246
  %v813 = vunpack.c.l.b16 %v247
  %v814 = vunpack.c.l.b16 %v248
  %v815 = vunpack.c.l.b16 %v249
  %v816 = vunpack.c.l.b16 %v250
  %v817 = vunpack.c.l.b16 %v251
  %v818 = vunpack.c.l.b16 %v252
  %v819 = vunpack.c.l.b16 %v253
  %v820 = vunpack.c.l.b16 %v254
  %v821 = vunpack.c.l.b16 %v255
  %v822 = vunpack.c.l.b16 %v256
  %v823 = vunpack.c.l.b16 %v257
  %v824 = vunpack.c.l.b16 %v258
  %v825 = vunpack.c.l.b16 %v259
  %v826 = vunpack.c.l.b16 %v260
  %v827 = vunpack.c.l.b16 %v261
  %v828 = vunpack.c.l.b16 %v262
  %v829 = vunpack.c.l.b16 %v263
  %v830 = vunpack.c.l.b16 %v264
  %v831 = vunpack.c.l.b16 %v265
  %v832 = vunpack.c.l.b16 %v266
  %v833 = vunpack.c.l.b16 %v267
  %v834 = vunpack.c.l.b16 %v268
  %v835 = vunpack.c.l.b16 %v269
  %v836 = vunpack.c.l.b16 %v270
  %v837 = vunpack.c.l.b16 %v271
  %v838 = vunpack.c.l.b16 %v272
  %v839 = vunpack.c.l.b16 %v273
  %v840 = vunpack.c.l.b16 %v274
  %v841 = vunpack.c.l.b16 %v275
  %v842 = vunpack.c.l.b16 %v276
  %v843 = vunpack.c.l.b16 %v277
  %v844 = vunpack.c.l.b16 %v278
  %v845 = vunpack.c.l.b16 %v279
  %v846 = vunpack.c.l.b16 %v280
  %v847 = vunpack.c.l.b16 %v281
  %v848 = vunpack.c.l.b16 %v282
  %v849 = vunpack.c.l.b16 %v283
  %v850 = vunpack.c.l.b16 %v284
  %v851 = vunpack.c.l.b16 %v285
  %v852 = vunpack.c.l.b16 %v286
  %v853 = vunpack.c.l.b16 %v287
  %v854 = vunpack.c.l.b16 %v288
  %v855 = vunpack.c.l.b16 %v289
  %v856 = vunpack.c.l.b16 %v290
  %v857 = vunpack.c.l.b16 %v291
  %v858 = vunpack.c.l.b16 %v292
  %v859 = vunpack.c.l.b16 %v293
  %v860 = vunpack.c.l.b16 %v294
  %v861 = vunpack.c.l.b16 %v295
  %v862 = vunpack.c.l.b16 %v296
  %v863 = vunpack.c.l.b16 %v297
  %v864 = vunpack.c.l.b16 %v298
  %v865 = vunpack.c.l.b16 %v299
  %v866 = vunpack.c.l.b16 %v300
  %v867 = vunpack.c.l.b16 %v301
  %v868 = vunpack.c.l.b16 %v302
  %v869 = vunpack.c.l.b16 %v303
  %v870 = vunpack.c.l.b16 %v304
  %v871 = vunpack.c.l.b16 %v305
  %v872 = vunpack.c.l.b16 %v306
  %v873 = vunpack.c.l.b16 %v307
  %v874 = vunpack.c.l.b16 %v308
  %v875 = vunpack.c.l.b16 %v309
  %v876 = vunpack.c.l.b16 %v310
  %v877 = vunpack.c.l.b16 %v311
  %v878 = vunpack.c.l.b16 %v312
  %v879 = vunpack.c.l.b16 %v313
  %v880 = vunpack.c.l.b16 %v314
  %v881 = vunpack.c.l.b16 %v315
  %v882 = vunpack.c.l.b16 %v316
  %v883 = vunpack.c.l.b16 %v317
  %v884 = vunpack.c.l.b16 %v318
  %v885 = vunpack.c.l.b16 %v319
  %v886 = vunpack.c.l.b16 %v320
  %v887 = vpack.c.b16 %v612, %v611
  %v888 = vpack.c.b16 %v614, %v613
  %v889 = vpack.c.b16 %v616, %v615
  %v890 = vpack.c.b16 %v618, %v617
  %v891 = vpack.c.b16 %v620, %v619
  %v892 = vpack.c.b16 %v622, %v621
  %v893 = vpack.c.b16 %v624, %v623
  %v894 = vpack.c.b16 %v626, %v625
  %v895 = vpack.c.b16 %v628, %v627
  %v896 = vpack.c.b16 %v630, %v629
  %v897 = vpack.c.b16 %v632, %v631
  %v898 = vpack.c.b16 %v634, %v633
  %v899 = vpack.c.b16 %v636, %v635
  %v900 = vpack.c.b16 %v638, %v637
  %v901 = vpack.c.b16 %v640, %v639
  %v902 = vpack.c.b16 %v642, %v641
  %v903 = vpack.c.b16 %v644, %v643
  %v904 = vpack.c.b16 %v646, %v645
  %v905 = vpack.c.b16 %v648, %v647
  %v906 = vpack.c.b16 %v650, %v649
  %v907 = vpack.c.b16 %v652, %v651
  %v908 = vpack.c.b16 %v654, %v653
  %v909 = vpack.c.b16 %v656, %v655
  %v910 = vpack.c.b16 %v658, %v657
  %v911 = vpack.c.b16 %v660, %v659
  %v912 = vpack.c.b16 %v662, %v661
  %v913 = vpack.c.b16 %v664, %v663
  %v914 = vpack.c.b16 %v666, %v665
  %v915 = vpack.c.b16 %v668, %v667
  %v916 = vpack.c.b16 %v670, %v669
  %v917 = vpack.c.b16 %v672, %v671
  %v918 = vpack.c.b16 %v674, %v673
  %v919 = vpack.c.b16 %v676, %v675
  %v920 = vpack.c.b16 %v678, %v677
  %v921 = vpack.c.b16 %v680, %v679
  %v922 = vpack.c.b16 %v682, %v681
  %v923 = vpack.c.b16 %v684, %v683
  %v924 = vpack.c.b16 %v686, %v685
  %v925 = vpack.c.b16 %v688, %v687
  %v926 = vpack.c.b16 %v690, %v689
  %v927 = vpack.c.b16 %v692, %v691
  %v928 = vpack.c.b16 %v694, %v693
  %v929 = vpack.c.b16 %v696, %v695
  %v930 = vpack.c.b16 %v698, %v697
  %v931 = vpack.c.b16 %v700, %v699
  %v932 = vpack.c.b16 %v702, %v701
  %v933 = vpack.c.b16 %v704, %v703
  %v934 = vpack.c.b16 %v706, %v705
  %v935 = vpack.c.b16 %v708, %v707
  %v936 = vpack.c.b16 %v710, %v709
  %v937 = vpack.c.b16 %v712, %v711
  %v938 = vpack.c.b16 %v714, %v713
  %v939 = vpack.c.b16 %v716, %v715
  %v940 = vpack.c.b16 %v718, %v717
  %v941 = vpack.c.b16 %v720, %v719
  %v942 = vpack.c.b16 %v722, %v721
  %v943 = vpack.c.b16 %v724, %v723
  %v944 = vpack.c.b16 %v726, %v725
  %v945 = vpack.c.b16 %v728, %v727
  %v946 = vpack.c.b16 %v730, %v729
  %v947 = vpack.c.b16 %v732, %v731
  %v948 = vpack.c.b16 %v734, %v733
  %v949 = vpack.c.b16 %v736, %v735
  %v950 = vpack.c.b16 %v738, %v737
  %v951 = vpack.c.b16 %v740, %v739
  %v952 = vpack.c.b16 %v742, %v741
  %v953 = vpack.c.b16 %v744, %v743
  %v954 = vpack.c.b16 %v746, %v745
  %v955 = vpack.c.b16 %v748, %v747
  %v956 = vpack.c.b16 %v750, %v749
  %v957 = vpack.c.b16 %v752, %v751
  %v958 = vpack.c.b16 %v754, %v753
  %v959 = vpack.c.b16 %v756, %v755
  %v960 = vpack.c.b16 %v758, %v757
  %v961 = vpack.c.b16 %v760, %v759
  %v962 = vpack.c.b16 %v762, %v761
  %v963 = vpack.c.b16 %v764, %v763
  %v964 = vpack.c.b16 %v766, %v765
  %v965 = vpack.c.b16 %v768, %v767
  %v966 = vpack.c.b16 %v770, %v769
  %v967 = vpack.c.b16 %v772, %v771
  %v968 = vpack.c.b16 %v774, %v773
  %v969 = vpack.c.b16 %v776, %v775
  %v970 = vpack.c.b16 %v778, %v777
  %v971 = vpack.c.b16 %v780, %v779
  %v972 = vpack.c.b16 %v782, %v781
  %v973 = vpack.c.b16 %v784, %v783
  %v974 = vpack.c.b16 %v786, %v785
  %v975 = vpack.c.b16 %v788, %v787
  %v976 = vpack.c.b16 %v790, %v789
  %v977 = vpack.c.b16 %v792, %v791
  %v978 = vpack.c.b16 %v794, %v793
  %v979 = vpack.c.b16 %v796, %v795
  %v980 = vpack.c.b16 %v798, %v797
  %v981 = vpack.c.b16 %v800, %v799
  %v982 = vpack.c.b16 %v802, %v801
  %v983 = vpack.c.b16 %v804, %v803
  %v984 = vpack.c.b16 %v806, %v805
  %v985 = vpack.c.b16 %v808, %v807
  %v986 = vpack.c.b16 %v810, %v809
  %v987 = vpack.c.b16 %v812, %v811
  %v988 = vpack.c.b16 %v814, %v813
  %v989 = vpack.c.b16 %v816, %v815
  %v990 = vpack.c.b16 %v818, %v817
  %v991 = vpack.c.b16 %v820, %v819
  %v992 = vpack.c.b16 %v822, %v821
  %v993 = vpack.c.b16 %v824, %v823
  %v994 = vpack.c.b16 %v826, %v825
  %v995 = vpack.c.b16 %v828, %v827
  %v996 = vpack.c.b16 %v830, %v829
  %v997 = vpack.c.b16 %v832, %v831
  %v998 = vpack.c.b16 %v834, %v833
  %v999 = vpack.c.b16 %v836, %v835
  %v1000 = vpack.c.b16 %v838, %v837
  %v1001 = vpack.c.b16 %v840, %v839
  %v1002 = vpack.c.b16 %v842, %v841
  %v1003 = vpack.c.b16 %v844, %v843
  %v1004 = vpack.c.b16 %v846, %v845
  %v1005 = vpack.c.b16 %v848, %v847
  %v1006 = vpack.c.b16 %v850, %v849
  %v1007 = vpack.c.b16 %v852, %v851
  %v1008 = vpack.c.b16 %v854, %v853
  %v1009 = vpack.c.b16 %v856, %v855
  %v1010 = vpack.c.b16 %v858, %v857
  %v1011 = vpack.c.b16 %v860, %v859
  %v1012 = vpack.c.b16 %v862, %v861
  %v1013 = vpack.c.b16 %v864, %v863
  %v1014 = vpack.c.b16 %v866, %v865
  %v1015 = vpack.c.b16 %v868, %v867
  %v1016 = vpack.c.b16 %v870, %v869
  %v1017 = vpack.c.b16 %v872, %v871
  %v1018 = vpack.c.b16 %v874, %v873
  %v1019 = vpack.c.b16 %v876, %v875
  %v1020 = vpack.c.b16 %v878, %v877
  %v1021 = vpack.c.b16 %v880, %v879
  %v1022 = vpack.c.b16 %v882, %v881
  %v1023 = vpack.c.b16 %v884, %v883
  %v1024 = vpack.c.b16 %v886, %v885
  %v1032 = vunpack.c.l.b16 %v321
  %v1033 = vunpack.c.l.b16 %v322
  %v1034 = vunpack.c.l.b16 %v323
  %v1035 = vunpack.c.l.b16 %v324
  %v1036 = vunpack.c.l.b16 %v325
  %v1037 = vunpack.c.l.b16 %v326
  %v1038 = vunpack.c.l.b16 %v327
  %v1039 = vpack.c.b16 %v1033, %v1032
  %v1040 = vpack.c.b16 %v1035, %v1034
  %v1041 = vpack.c.b16 %v1037, %v1036
  %v1042 = vpack.c.b16 %v1038, %v1038
  %vm1046 = vcmask 441344
  %v1048 = vsel %vm1046, %v887, 0
  %v1051 = vsel %vm1046, %v888, 0
  %v1054 = vsel %vm1046, %v889, 0
  %v1057 = vsel %vm1046, %v890, 0
  %v1060 = vsel %vm1046, %v891, 0
  %v1063 = vsel %vm1046, %v892, 0
  %v1066 = vsel %vm1046, %v893, 0
  %v1069 = vsel %vm1046, %v894, 0
  %v1072 = vsel %vm1046, %v895, 0
  %v1075 = vsel %vm1046, %v896, 0
  %v1078 = vsel %vm1046, %v897, 0
  %v1081 = vsel %vm1046, %v898, 0
  %v1084 = vsel %vm1046, %v899, 0
  %v1087 = vsel %vm1046, %v900, 0
  %v1090 = vsel %vm1046, %v901, 0
  %v1093 = vsel %vm1046, %v902, 0
  %v1096 = vsel %vm1046, %v903, 0
  %v1099 = vsel %vm1046, %v904, 0
  %v1102 = vsel %vm1046, %v905, 0
  %v1105 = vsel %vm1046, %v906, 0
  %v1108 = vsel %vm1046, %v907, 0
  %v1111 = vsel %vm1046, %v908, 0
  %v1114 = vsel %vm1046, %v909, 0
  %v1117 = vsel %vm1046, %v910, 0
  %v1120 = vsel %vm1046, %v911, 0
  %v1123 = vsel %vm1046, %v912, 0
  %v1126 = vsel %vm1046, %v913, 0
  %v1129 = vsel %vm1046, %v914, 0
  %v1132 = vsel %vm1046, %v915, 0
  %v1135 = vsel %vm1046, %v916, 0
  %v1138 = vsel %vm1046, %v917, 0
  %v1141 = vsel %vm1046, %v918, 0
  %v1144 = vsel %vm1046, %v919, 0
  %v1147 = vsel %vm1046, %v920, 0
  %v1150 = vsel %vm1046, %v921, 0
  %v1153 = vsel %vm1046, %v922, 0
  %v1156 = vsel %vm1046, %v923, 0
  %v1159 = vsel %vm1046, %v924, 0
  %v1162 = vsel %vm1046, %v925, 0
  %v1165 = vsel %vm1046, %v926, 0
  %v1168 = vsel %vm1046, %v927, 0
  %v1171 = vsel %vm1046, %v928, 0
  %v1174 = vsel %vm1046, %v929, 0
  %v1177 = vsel %vm1046, %v930, 0
  %v1180 = vsel %vm1046, %v931, 0
  %v1183 = vsel %vm1046, %v932, 0
  %v1186 = vsel %vm1046, %v933, 0
  %v1189 = vsel %vm1046, %v934, 0
  %v1192 = vsel %vm1046, %v935, 0
  %v1195 = vsel %vm1046, %v936, 0
  %v1198 = vsel %vm1046, %v937, 0
  %v1201 = vsel %vm1046, %v938, 0
  %v1204 = vsel %vm1046, %v939, 0
  %v1207 = vsel %vm1046, %v940, 0
  %v1210 = vsel %vm1046, %v941, 0
  %v1213 = vsel %vm1046, %v942, 0
  %v1216 = vsel %vm1046, %v943, 0
  %v1219 = vsel %vm1046, %v944, 0
  %v1222 = vsel %vm1046, %v945, 0
  %v1225 = vsel %vm1046, %v946, 0
  %v1228 = vsel %vm1046, %v947, 0
  %v1231 = vsel %vm1046, %v948, 0
  %v1234 = vsel %vm1046, %v949, 0
  %v1237 = vsel %vm1046, %v950, 0
  %v1240 = vsel %vm1046, %v951, 0
  %v1243 = vsel %vm1046, %v952, 0
  %v1246 = vsel %vm1046, %v953, 0
  %v1249 = vsel %vm1046, %v954, 0
  %v1252 = vsel %vm1046, %v955, 0
  %v1255 = vsel %vm1046, %v956, 0
  %v1258 = vsel %vm1046, %v957, 0
  %v1261 = vsel %vm1046, %v958, 0
  %v1264 = vsel %vm1046, %v959, 0
  %v1267 = vsel %vm1046, %v960, 0
  %v1270 = vsel %vm1046, %v961, 0
  %v1273 = vsel %vm1046, %v962, 0
  %v1276 = vsel %vm1046, %v963, 0
  %v1279 = vsel %vm1046, %v964, 0
  %v1282 = vsel %vm1046, %v965, 0
  %v1285 = vsel %vm1046, %v966, 0
  %v1288 = vsel %vm1046, %v967, 0
  %v1291 = vsel %vm1046, %v968, 0
  %v1294 = vsel %vm1046, %v969, 0
  %v1297 = vsel %vm1046, %v970, 0
  %v1300 = vsel %vm1046, %v971, 0
  %v1303 = vsel %vm1046, %v972, 0
  %v1306 = vsel %vm1046, %v973, 0
  %v1309 = vsel %vm1046, %v974, 0
  %v1312 = vsel %vm1046, %v975, 0
  %v1315 = vsel %vm1046, %v976, 0
  %v1318 = vsel %vm1046, %v977, 0
  %v1321 = vsel %vm1046, %v978, 0
  %v1324 = vsel %vm1046, %v979, 0
  %v1327 = vsel %vm1046, %v980, 0
  %v1330 = vsel %vm1046, %v981, 0
  %v1333 = vsel %vm1046, %v982, 0
  %v1336 = vsel %vm1046, %v983, 0
  %v1339 = vsel %vm1046, %v984, 0
  %v1342 = vsel %vm1046, %v985, 0
  %v1345 = vsel %vm1046, %v986, 0
  %v1348 = vsel %vm1046, %v987, 0
  %v1351 = vsel %vm1046, %v988, 0
  %v1354 = vsel %vm1046, %v989, 0
  %v1357 = vsel %vm1046, %v990, 0
  %v1360 = vsel %vm1046, %v991, 0
  %v1363 = vsel %vm1046, %v992, 0
  %v1366 = vsel %vm1046, %v993, 0
  %v1369 = vsel %vm1046, %v994, 0
  %v1372 = vsel %vm1046, %v995, 0
  %v1375 = vsel %vm1046, %v996, 0
  %v1378 = vsel %vm1046, %v997, 0
  %v1381 = vsel %vm1046, %v998, 0
  %v1384 = vsel %vm1046, %v999, 0
  %v1387 = vsel %vm1046, %v1000, 0
  %v1390 = vsel %vm1046, %v1001, 0
  %v1393 = vsel %vm1046, %v1002, 0
  %v1396 = vsel %vm1046, %v1003, 0
  %v1399 = vsel %vm1046, %v1004, 0
  %v1402 = vsel %vm1046, %v1005, 0
  %v1405 = vsel %vm1046, %v1006, 0
  %v1408 = vsel %vm1046, %v1007, 0
  %v1411 = vsel %vm1046, %v1008, 0
  %v1414 = vsel %vm1046, %v1009, 0
  %v1417 = vsel %vm1046, %v1010, 0
  %v1420 = vsel %vm1046, %v1011, 0
  %v1423 = vsel %vm1046, %v1012, 0
  %v1426 = vsel %vm1046, %v1013, 0
  %v1429 = vsel %vm1046, %v1014, 0
  %v1432 = vsel %vm1046, %v1015, 0
  %v1435 = vsel %vm1046, %v1016, 0
  %v1438 = vsel %vm1046, %v1017, 0
  %v1441 = vsel %vm1046, %v1018, 0
  %v1444 = vsel %vm1046, %v1019, 0
  %v1447 = vsel %vm1046, %v1020, 0
  %v1450 = vsel %vm1046, %v1021, 0
  %v1453 = vsel %vm1046, %v1022, 0
  %v1456 = vsel %vm1046, %v1023, 0
  %v1459 = vsel %vm1046, %v1024, 0
  %vm1461 = vcmask 1042432
  %v1463 = vsel %vm1461, %v1042, 0
  %1465 = vmatprep.subr.bf16.mxu0 0
  %1466 = vmatpush1.bf16.msra.mxu0 0
  %1467 = vmatprep.subr.bf16.mxu0 0
  %1468 = vmatpush1.bf16.msra.mxu0 0
  %1469 = vmatprep.subr.bf16.mxu0 0
  %1470 = vmatpush1.bf16.msra.mxu0 0
  %1471 = vmatprep.subr.bf16.mxu0 0
  %1472 = vmatpush1.bf16.msra.mxu0 0
  %1473 = vmatprep.subr.bf16.mxu0 0
  %1474 = vmatpush1.bf16.msra.mxu0 %v1463
  %1475 = vmatprep.subr.bf16.mxu0 0
  %1476 = vmatpush1.bf16.msra.mxu0 %v1041
  %1477 = vmatprep.subr.bf16.mxu0 0
  %1478 = vmatpush1.bf16.msra.mxu0 %v1040
  %1479 = vmatprep.subr.bf16.mxu0 0
  %1480 = vmatpush1.bf16.msra.mxu0 %v1039
  %1481 = vmatprep.subr.bf16.mxu0 0
  %1482 = vmatpush2.bf16.msra.mxu0 0
  %1483 = vmatprep.subr.bf16.mxu0 0
  %1484 = vmatpush2.bf16.msra.mxu0 0
  %1485 = vmatprep.subr.bf16.mxu0 0
  %1486 = vmatpush2.bf16.msra.mxu0 0
  %1487 = vmatprep.subr.bf16.mxu0 0
  %1488 = vmatpush2.bf16.msra.mxu0 0
  %1489 = vmatprep.subr.bf16.mxu0 0
  %1490 = vmatpush2.bf16.msra.mxu0 0
  %1491 = vmatprep.subr.bf16.mxu0 0
  %1492 = vmatpush2.bf16.msra.mxu0 0
  %1493 = vmatprep.subr.bf16.mxu0 0
  %1494 = vmatpush2.bf16.msra.mxu0 0
  %1495 = vmatprep.subr.bf16.mxu0 0
  %1496 = vmatpush2.bf16.msra.mxu0 0
  %1497 = vmatprep.mubr.bf16.mxu0 0
  %1498 = vmatmul.mubr.bf16.gmra.mxu0 %v1048
  %v1499 = vpop.f32.mrf.mxu0
  %v1500 = vadd.f32 %v333, %v1499
  %v1501 = vpop.f32.mrf.mxu0
  %v1502 = vpop.f32.mrf.mxu0
  %v1503 = vadd.f32 %v333, %v1502
  %v1504 = vpop.f32.mrf.mxu0
  %1505 = vmatprep.mubr.bf16.mxu0 0
  %1506 = vmatmul.mubr.bf16.gmra.mxu0 %v1051
  %v1507 = vpop.f32.mrf.mxu0
  %v1508 = vadd.f32 %v333, %v1507
  %v1509 = vpop.f32.mrf.mxu0
  %v1510 = vpop.f32.mrf.mxu0
  %v1511 = vadd.f32 %v333, %v1510
  %v1512 = vpop.f32.mrf.mxu0
  %1513 = vmatprep.mubr.bf16.mxu0 0
  %1514 = vmatmul.mubr.bf16.gmra.mxu0 %v1054
  %v1515 = vpop.f32.mrf.mxu0
  %v1516 = vadd.f32 %v333, %v1515
  %v1517 = vpop.f32.mrf.mxu0
  %v1518 = vpop.f32.mrf.mxu0
  %v1519 = vadd.f32 %v333, %v1518
  %v1520 = vpop.f32.mrf.mxu0
  %1521 = vmatprep.mubr.bf16.mxu0 0
  %1522 = vmatmul.mubr.bf16.gmra.mxu0 %v1057
  %v1523 = vpop.f32.mrf.mxu0
  %v1524 = vadd.f32 %v333, %v1523
  %v1525 = vpop.f32.mrf.mxu0
  %v1526 = vpop.f32.mrf.mxu0
  %v1527 = vadd.f32 %v333, %v1526
  %v1528 = vpop.f32.mrf.mxu0
  %1529 = vmatprep.mubr.bf16.mxu0 0
  %1530 = vmatmul.mubr.bf16.gmra.mxu0 %v1060
  %v1531 = vpop.f32.mrf.mxu0
  %v1532 = vadd.f32 %v333, %v1531
  %v1533 = vpop.f32.mrf.mxu0
  %v1534 = vpop.f32.mrf.mxu0
  %v1535 = vadd.f32 %v333, %v1534
  %v1536 = vpop.f32.mrf.mxu0
  %1537 = vmatprep.mubr.bf16.mxu0 0
  %1538 = vmatmul.mubr.bf16.gmra.mxu0 %v1063
  %v1539 = vpop.f32.mrf.mxu0
  %v1540 = vadd.f32 %v333, %v1539
  %v1541 = vpop.f32.mrf.mxu0
  %v1542 = vpop.f32.mrf.mxu0
  %v1543 = vadd.f32 %v333, %v1542
  %v1544 = vpop.f32.mrf.mxu0
  %1545 = vmatprep.mubr.bf16.mxu0 0
  %1546 = vmatmul.mubr.bf16.gmra.mxu0 %v1066
  %v1547 = vpop.f32.mrf.mxu0
  %v1548 = vadd.f32 %v333, %v1547
  %v1549 = vpop.f32.mrf.mxu0
  %v1550 = vpop.f32.mrf.mxu0
  %v1551 = vadd.f32 %v333, %v1550
  %v1552 = vpop.f32.mrf.mxu0
  %1553 = vmatprep.mubr.bf16.mxu0 0
  %1554 = vmatmul.mubr.bf16.gmra.mxu0 %v1069
  %v1555 = vpop.f32.mrf.mxu0
  %v1556 = vadd.f32 %v333, %v1555
  %v1557 = vpop.f32.mrf.mxu0
  %v1558 = vpop.f32.mrf.mxu0
  %v1559 = vadd.f32 %v333, %v1558
  %v1560 = vpop.f32.mrf.mxu0
  %1561 = vmatprep.mubr.bf16.mxu0 0
  %1562 = vmatmul.mubr.bf16.gmra.mxu0 %v1072
  %v1563 = vpop.f32.mrf.mxu0
  %v1564 = vadd.f32 %v333, %v1563
  %v1565 = vpop.f32.mrf.mxu0
  %v1566 = vpop.f32.mrf.mxu0
  %v1567 = vadd.f32 %v333, %v1566
  %v1568 = vpop.f32.mrf.mxu0
  %1569 = vmatprep.mubr.bf16.mxu0 0
  %1570 = vmatmul.mubr.bf16.gmra.mxu0 %v1075
  %v1571 = vpop.f32.mrf.mxu0
  %v1572 = vadd.f32 %v333, %v1571
  %v1573 = vpop.f32.mrf.mxu0
  %v1574 = vpop.f32.mrf.mxu0
  %v1575 = vadd.f32 %v333, %v1574
  %v1576 = vpop.f32.mrf.mxu0
  %1577 = vmatprep.mubr.bf16.mxu0 0
  %1578 = vmatmul.mubr.bf16.gmra.mxu0 %v1078
  %v1579 = vpop.f32.mrf.mxu0
  %v1580 = vadd.f32 %v333, %v1579
  %v1581 = vpop.f32.mrf.mxu0
  %v1582 = vpop.f32.mrf.mxu0
  %v1583 = vadd.f32 %v333, %v1582
  %v1584 = vpop.f32.mrf.mxu0
  %1585 = vmatprep.mubr.bf16.mxu0 0
  %1586 = vmatmul.mubr.bf16.gmra.mxu0 %v1081
  %v1587 = vpop.f32.mrf.mxu0
  %v1588 = vadd.f32 %v333, %v1587
  %v1589 = vpop.f32.mrf.mxu0
  %v1590 = vpop.f32.mrf.mxu0
  %v1591 = vadd.f32 %v333, %v1590
  %v1592 = vpop.f32.mrf.mxu0
  %1593 = vmatprep.mubr.bf16.mxu0 0
  %1594 = vmatmul.mubr.bf16.gmra.mxu0 %v1084
  %v1595 = vpop.f32.mrf.mxu0
  %v1596 = vadd.f32 %v333, %v1595
  %v1597 = vpop.f32.mrf.mxu0
  %v1598 = vpop.f32.mrf.mxu0
  %v1599 = vadd.f32 %v333, %v1598
  %v1600 = vpop.f32.mrf.mxu0
  %1601 = vmatprep.mubr.bf16.mxu0 0
  %1602 = vmatmul.mubr.bf16.gmra.mxu0 %v1087
  %v1603 = vpop.f32.mrf.mxu0
  %v1604 = vadd.f32 %v333, %v1603
  %v1605 = vpop.f32.mrf.mxu0
  %v1606 = vpop.f32.mrf.mxu0
  %v1607 = vadd.f32 %v333, %v1606
  %v1608 = vpop.f32.mrf.mxu0
  %1609 = vmatprep.mubr.bf16.mxu0 0
  %1610 = vmatmul.mubr.bf16.gmra.mxu0 %v1090
  %v1611 = vpop.f32.mrf.mxu0
  %v1612 = vadd.f32 %v333, %v1611
  %v1613 = vpop.f32.mrf.mxu0
  %v1614 = vpop.f32.mrf.mxu0
  %v1615 = vadd.f32 %v333, %v1614
  %v1616 = vpop.f32.mrf.mxu0
  %1617 = vmatprep.mubr.bf16.mxu0 0
  %1618 = vmatmul.mubr.bf16.gmra.mxu0 %v1093
  %v1619 = vpop.f32.mrf.mxu0
  %v1620 = vadd.f32 %v333, %v1619
  %v1621 = vpop.f32.mrf.mxu0
  %v1622 = vpop.f32.mrf.mxu0
  %v1623 = vadd.f32 %v333, %v1622
  %v1624 = vpop.f32.mrf.mxu0
  %1625 = vmatprep.mubr.bf16.mxu0 0
  %1626 = vmatmul.mubr.bf16.gmra.mxu0 %v1096
  %v1627 = vpop.f32.mrf.mxu0
  %v1628 = vadd.f32 %v333, %v1627
  %v1629 = vpop.f32.mrf.mxu0
  %v1630 = vpop.f32.mrf.mxu0
  %v1631 = vadd.f32 %v333, %v1630
  %v1632 = vpop.f32.mrf.mxu0
  %1633 = vmatprep.mubr.bf16.mxu0 0
  %1634 = vmatmul.mubr.bf16.gmra.mxu0 %v1099
  %v1635 = vpop.f32.mrf.mxu0
  %v1636 = vadd.f32 %v333, %v1635
  %v1637 = vpop.f32.mrf.mxu0
  %v1638 = vpop.f32.mrf.mxu0
  %v1639 = vadd.f32 %v333, %v1638
  %v1640 = vpop.f32.mrf.mxu0
  %1641 = vmatprep.mubr.bf16.mxu0 0
  %1642 = vmatmul.mubr.bf16.gmra.mxu0 %v1102
  %v1643 = vpop.f32.mrf.mxu0
  %v1644 = vadd.f32 %v333, %v1643
  %v1645 = vpop.f32.mrf.mxu0
  %v1646 = vpop.f32.mrf.mxu0
  %v1647 = vadd.f32 %v333, %v1646
  %v1648 = vpop.f32.mrf.mxu0
  %1649 = vmatprep.mubr.bf16.mxu0 0
  %1650 = vmatmul.mubr.bf16.gmra.mxu0 %v1105
  %v1651 = vpop.f32.mrf.mxu0
  %v1652 = vadd.f32 %v333, %v1651
  %v1653 = vpop.f32.mrf.mxu0
  %v1654 = vpop.f32.mrf.mxu0
  %v1655 = vadd.f32 %v333, %v1654
  %v1656 = vpop.f32.mrf.mxu0
  %1657 = vmatprep.mubr.bf16.mxu0 0
  %1658 = vmatmul.mubr.bf16.gmra.mxu0 %v1108
  %v1659 = vpop.f32.mrf.mxu0
  %v1660 = vadd.f32 %v333, %v1659
  %v1661 = vpop.f32.mrf.mxu0
  %v1662 = vpop.f32.mrf.mxu0
  %v1663 = vadd.f32 %v333, %v1662
  %v1664 = vpop.f32.mrf.mxu0
  %1665 = vmatprep.mubr.bf16.mxu0 0
  %1666 = vmatmul.mubr.bf16.gmra.mxu0 %v1111
  %v1667 = vpop.f32.mrf.mxu0
  %v1668 = vadd.f32 %v333, %v1667
  %v1669 = vpop.f32.mrf.mxu0
  %v1670 = vpop.f32.mrf.mxu0
  %v1671 = vadd.f32 %v333, %v1670
  %v1672 = vpop.f32.mrf.mxu0
  %1673 = vmatprep.mubr.bf16.mxu0 0
  %1674 = vmatmul.mubr.bf16.gmra.mxu0 %v1114
  %v1675 = vpop.f32.mrf.mxu0
  %v1676 = vadd.f32 %v333, %v1675
  %v1677 = vpop.f32.mrf.mxu0
  %v1678 = vpop.f32.mrf.mxu0
  %v1679 = vadd.f32 %v333, %v1678
  %v1680 = vpop.f32.mrf.mxu0
  %1681 = vmatprep.mubr.bf16.mxu0 0
  %1682 = vmatmul.mubr.bf16.gmra.mxu0 %v1117
  %v1683 = vpop.f32.mrf.mxu0
  %v1684 = vadd.f32 %v333, %v1683
  %v1685 = vpop.f32.mrf.mxu0
  %v1686 = vpop.f32.mrf.mxu0
  %v1687 = vadd.f32 %v333, %v1686
  %v1688 = vpop.f32.mrf.mxu0
  %1689 = vmatprep.mubr.bf16.mxu0 0
  %1690 = vmatmul.mubr.bf16.gmra.mxu0 %v1120
  %v1691 = vpop.f32.mrf.mxu0
  %v1692 = vadd.f32 %v333, %v1691
  %v1693 = vpop.f32.mrf.mxu0
  %v1694 = vpop.f32.mrf.mxu0
  %v1695 = vadd.f32 %v333, %v1694
  %v1696 = vpop.f32.mrf.mxu0
  %1697 = vmatprep.mubr.bf16.mxu0 0
  %1698 = vmatmul.mubr.bf16.gmra.mxu0 %v1123
  %v1699 = vpop.f32.mrf.mxu0
  %v1700 = vadd.f32 %v333, %v1699
  %v1701 = vpop.f32.mrf.mxu0
  %v1702 = vpop.f32.mrf.mxu0
  %v1703 = vadd.f32 %v333, %v1702
  %v1704 = vpop.f32.mrf.mxu0
  %1705 = vmatprep.mubr.bf16.mxu0 0
  %1706 = vmatmul.mubr.bf16.gmra.mxu0 %v1126
  %v1707 = vpop.f32.mrf.mxu0
  %v1708 = vadd.f32 %v333, %v1707
  %v1709 = vpop.f32.mrf.mxu0
  %v1710 = vpop.f32.mrf.mxu0
  %v1711 = vadd.f32 %v333, %v1710
  %v1712 = vpop.f32.mrf.mxu0
  %1713 = vmatprep.mubr.bf16.mxu0 0
  %1714 = vmatmul.mubr.bf16.gmra.mxu0 %v1129
  %v1715 = vpop.f32.mrf.mxu0
  %v1716 = vadd.f32 %v333, %v1715
  %v1717 = vpop.f32.mrf.mxu0
  %v1718 = vpop.f32.mrf.mxu0
  %v1719 = vadd.f32 %v333, %v1718
  %v1720 = vpop.f32.mrf.mxu0
  %1721 = vmatprep.mubr.bf16.mxu0 0
  %1722 = vmatmul.mubr.bf16.gmra.mxu0 %v1132
  %v1723 = vpop.f32.mrf.mxu0
  %v1724 = vadd.f32 %v333, %v1723
  %v1725 = vpop.f32.mrf.mxu0
  %v1726 = vpop.f32.mrf.mxu0
  %v1727 = vadd.f32 %v333, %v1726
  %v1728 = vpop.f32.mrf.mxu0
  %1729 = vmatprep.mubr.bf16.mxu0 0
  %1730 = vmatmul.mubr.bf16.gmra.mxu0 %v1135
  %v1731 = vpop.f32.mrf.mxu0
  %v1732 = vadd.f32 %v333, %v1731
  %v1733 = vpop.f32.mrf.mxu0
  %v1734 = vpop.f32.mrf.mxu0
  %v1735 = vadd.f32 %v333, %v1734
  %v1736 = vpop.f32.mrf.mxu0
  %1737 = vmatprep.mubr.bf16.mxu0 0
  %1738 = vmatmul.mubr.bf16.gmra.mxu0 %v1138
  %v1739 = vpop.f32.mrf.mxu0
  %v1740 = vadd.f32 %v333, %v1739
  %v1741 = vpop.f32.mrf.mxu0
  %v1742 = vpop.f32.mrf.mxu0
  %v1743 = vadd.f32 %v333, %v1742
  %v1744 = vpop.f32.mrf.mxu0
  %1745 = vmatprep.mubr.bf16.mxu0 0
  %1746 = vmatmul.mubr.bf16.gmra.mxu0 %v1141
  %v1747 = vpop.f32.mrf.mxu0
  %v1748 = vadd.f32 %v333, %v1747
  %v1749 = vpop.f32.mrf.mxu0
  %v1750 = vpop.f32.mrf.mxu0
  %v1751 = vadd.f32 %v333, %v1750
  %v1752 = vpop.f32.mrf.mxu0
  %1753 = vmatprep.mubr.bf16.mxu0 0
  %1754 = vmatmul.mubr.bf16.gmra.mxu0 %v1144
  %v1755 = vpop.f32.mrf.mxu0
  %v1756 = vadd.f32 %v333, %v1755
  %v1757 = vpop.f32.mrf.mxu0
  %v1758 = vpop.f32.mrf.mxu0
  %v1759 = vadd.f32 %v333, %v1758
  %v1760 = vpop.f32.mrf.mxu0
  %1761 = vmatprep.mubr.bf16.mxu0 0
  %1762 = vmatmul.mubr.bf16.gmra.mxu0 %v1147
  %v1763 = vpop.f32.mrf.mxu0
  %v1764 = vadd.f32 %v333, %v1763
  %v1765 = vpop.f32.mrf.mxu0
  %v1766 = vpop.f32.mrf.mxu0
  %v1767 = vadd.f32 %v333, %v1766
  %v1768 = vpop.f32.mrf.mxu0
  %1769 = vmatprep.mubr.bf16.mxu0 0
  %1770 = vmatmul.mubr.bf16.gmra.mxu0 %v1150
  %v1771 = vpop.f32.mrf.mxu0
  %v1772 = vadd.f32 %v333, %v1771
  %v1773 = vpop.f32.mrf.mxu0
  %v1774 = vpop.f32.mrf.mxu0
  %v1775 = vadd.f32 %v333, %v1774
  %v1776 = vpop.f32.mrf.mxu0
  %1777 = vmatprep.mubr.bf16.mxu0 0
  %1778 = vmatmul.mubr.bf16.gmra.mxu0 %v1153
  %v1779 = vpop.f32.mrf.mxu0
  %v1780 = vadd.f32 %v333, %v1779
  %v1781 = vpop.f32.mrf.mxu0
  %v1782 = vpop.f32.mrf.mxu0
  %v1783 = vadd.f32 %v333, %v1782
  %v1784 = vpop.f32.mrf.mxu0
  %1785 = vmatprep.mubr.bf16.mxu0 0
  %1786 = vmatmul.mubr.bf16.gmra.mxu0 %v1156
  %v1787 = vpop.f32.mrf.mxu0
  %v1788 = vadd.f32 %v333, %v1787
  %v1789 = vpop.f32.mrf.mxu0
  %v1790 = vpop.f32.mrf.mxu0
  %v1791 = vadd.f32 %v333, %v1790
  %v1792 = vpop.f32.mrf.mxu0
  %1793 = vmatprep.mubr.bf16.mxu0 0
  %1794 = vmatmul.mubr.bf16.gmra.mxu0 %v1159
  %v1795 = vpop.f32.mrf.mxu0
  %v1796 = vadd.f32 %v333, %v1795
  %v1797 = vpop.f32.mrf.mxu0
  %v1798 = vpop.f32.mrf.mxu0
  %v1799 = vadd.f32 %v333, %v1798
  %v1800 = vpop.f32.mrf.mxu0
  %1801 = vmatprep.mubr.bf16.mxu0 0
  %1802 = vmatmul.mubr.bf16.gmra.mxu0 %v1162
  %v1803 = vpop.f32.mrf.mxu0
  %v1804 = vadd.f32 %v333, %v1803
  %v1805 = vpop.f32.mrf.mxu0
  %v1806 = vpop.f32.mrf.mxu0
  %v1807 = vadd.f32 %v333, %v1806
  %v1808 = vpop.f32.mrf.mxu0
  %1809 = vmatprep.mubr.bf16.mxu0 0
  %1810 = vmatmul.mubr.bf16.gmra.mxu0 %v1165
  %v1811 = vpop.f32.mrf.mxu0
  %v1812 = vadd.f32 %v333, %v1811
  %v1813 = vpop.f32.mrf.mxu0
  %v1814 = vpop.f32.mrf.mxu0
  %v1815 = vadd.f32 %v333, %v1814
  %v1816 = vpop.f32.mrf.mxu0
  %1817 = vmatprep.mubr.bf16.mxu0 0
  %1818 = vmatmul.mubr.bf16.gmra.mxu0 %v1168
  %v1819 = vpop.f32.mrf.mxu0
  %v1820 = vadd.f32 %v333, %v1819
  %v1821 = vpop.f32.mrf.mxu0
  %v1822 = vpop.f32.mrf.mxu0
  %v1823 = vadd.f32 %v333, %v1822
  %v1824 = vpop.f32.mrf.mxu0
  %1825 = vmatprep.mubr.bf16.mxu0 0
  %1826 = vmatmul.mubr.bf16.gmra.mxu0 %v1171
  %v1827 = vpop.f32.mrf.mxu0
  %v1828 = vadd.f32 %v333, %v1827
  %v1829 = vpop.f32.mrf.mxu0
  %v1830 = vpop.f32.mrf.mxu0
  %v1831 = vadd.f32 %v333, %v1830
  %v1832 = vpop.f32.mrf.mxu0
  %1833 = vmatprep.mubr.bf16.mxu0 0
  %1834 = vmatmul.mubr.bf16.gmra.mxu0 %v1174
  %v1835 = vpop.f32.mrf.mxu0
  %v1836 = vadd.f32 %v333, %v1835
  %v1837 = vpop.f32.mrf.mxu0
  %v1838 = vpop.f32.mrf.mxu0
  %v1839 = vadd.f32 %v333, %v1838
  %v1840 = vpop.f32.mrf.mxu0
  %1841 = vmatprep.mubr.bf16.mxu0 0
  %1842 = vmatmul.mubr.bf16.gmra.mxu0 %v1177
  %v1843 = vpop.f32.mrf.mxu0
  %v1844 = vadd.f32 %v333, %v1843
  %v1845 = vpop.f32.mrf.mxu0
  %v1846 = vpop.f32.mrf.mxu0
  %v1847 = vadd.f32 %v333, %v1846
  %v1848 = vpop.f32.mrf.mxu0
  %1849 = vmatprep.mubr.bf16.mxu0 0
  %1850 = vmatmul.mubr.bf16.gmra.mxu0 %v1180
  %v1851 = vpop.f32.mrf.mxu0
  %v1852 = vadd.f32 %v333, %v1851
  %v1853 = vpop.f32.mrf.mxu0
  %v1854 = vpop.f32.mrf.mxu0
  %v1855 = vadd.f32 %v333, %v1854
  %v1856 = vpop.f32.mrf.mxu0
  %1857 = vmatprep.mubr.bf16.mxu0 0
  %1858 = vmatmul.mubr.bf16.gmra.mxu0 %v1183
  %v1859 = vpop.f32.mrf.mxu0
  %v1860 = vadd.f32 %v333, %v1859
  %v1861 = vpop.f32.mrf.mxu0
  %v1862 = vpop.f32.mrf.mxu0
  %v1863 = vadd.f32 %v333, %v1862
  %v1864 = vpop.f32.mrf.mxu0
  %1865 = vmatprep.mubr.bf16.mxu0 0
  %1866 = vmatmul.mubr.bf16.gmra.mxu0 %v1186
  %v1867 = vpop.f32.mrf.mxu0
  %v1868 = vadd.f32 %v333, %v1867
  %v1869 = vpop.f32.mrf.mxu0
  %v1870 = vpop.f32.mrf.mxu0
  %v1871 = vadd.f32 %v333, %v1870
  %v1872 = vpop.f32.mrf.mxu0
  %1873 = vmatprep.mubr.bf16.mxu0 0
  %1874 = vmatmul.mubr.bf16.gmra.mxu0 %v1189
  %v1875 = vpop.f32.mrf.mxu0
  %v1876 = vadd.f32 %v333, %v1875
  %v1877 = vpop.f32.mrf.mxu0
  %v1878 = vpop.f32.mrf.mxu0
  %v1879 = vadd.f32 %v333, %v1878
  %v1880 = vpop.f32.mrf.mxu0
  %1881 = vmatprep.mubr.bf16.mxu0 0
  %1882 = vmatmul.mubr.bf16.gmra.mxu0 %v1192
  %v1883 = vpop.f32.mrf.mxu0
  %v1884 = vadd.f32 %v333, %v1883
  %v1885 = vpop.f32.mrf.mxu0
  %v1886 = vpop.f32.mrf.mxu0
  %v1887 = vadd.f32 %v333, %v1886
  %v1888 = vpop.f32.mrf.mxu0
  %1889 = vmatprep.mubr.bf16.mxu0 0
  %1890 = vmatmul.mubr.bf16.gmra.mxu0 %v1195
  %v1891 = vpop.f32.mrf.mxu0
  %v1892 = vadd.f32 %v333, %v1891
  %v1893 = vpop.f32.mrf.mxu0
  %v1894 = vpop.f32.mrf.mxu0
  %v1895 = vadd.f32 %v333, %v1894
  %v1896 = vpop.f32.mrf.mxu0
  %1897 = vmatprep.mubr.bf16.mxu0 0
  %1898 = vmatmul.mubr.bf16.gmra.mxu0 %v1198
  %v1899 = vpop.f32.mrf.mxu0
  %v1900 = vadd.f32 %v333, %v1899
  %v1901 = vpop.f32.mrf.mxu0
  %v1902 = vpop.f32.mrf.mxu0
  %v1903 = vadd.f32 %v333, %v1902
  %v1904 = vpop.f32.mrf.mxu0
  %1905 = vmatprep.mubr.bf16.mxu0 0
  %1906 = vmatmul.mubr.bf16.gmra.mxu0 %v1201
  %v1907 = vpop.f32.mrf.mxu0
  %v1908 = vadd.f32 %v333, %v1907
  %v1909 = vpop.f32.mrf.mxu0
  %v1910 = vpop.f32.mrf.mxu0
  %v1911 = vadd.f32 %v333, %v1910
  %v1912 = vpop.f32.mrf.mxu0
  %1913 = vmatprep.mubr.bf16.mxu0 0
  %1914 = vmatmul.mubr.bf16.gmra.mxu0 %v1204
  %v1915 = vpop.f32.mrf.mxu0
  %v1916 = vadd.f32 %v333, %v1915
  %v1917 = vpop.f32.mrf.mxu0
  %v1918 = vpop.f32.mrf.mxu0
  %v1919 = vadd.f32 %v333, %v1918
  %v1920 = vpop.f32.mrf.mxu0
  %1921 = vmatprep.mubr.bf16.mxu0 0
  %1922 = vmatmul.mubr.bf16.gmra.mxu0 %v1207
  %v1923 = vpop.f32.mrf.mxu0
  %v1924 = vadd.f32 %v333, %v1923
  %v1925 = vpop.f32.mrf.mxu0
  %v1926 = vpop.f32.mrf.mxu0
  %v1927 = vadd.f32 %v333, %v1926
  %v1928 = vpop.f32.mrf.mxu0
  %1929 = vmatprep.mubr.bf16.mxu0 0
  %1930 = vmatmul.mubr.bf16.gmra.mxu0 %v1210
  %v1931 = vpop.f32.mrf.mxu0
  %v1932 = vadd.f32 %v333, %v1931
  %v1933 = vpop.f32.mrf.mxu0
  %v1934 = vpop.f32.mrf.mxu0
  %v1935 = vadd.f32 %v333, %v1934
  %v1936 = vpop.f32.mrf.mxu0
  %1937 = vmatprep.mubr.bf16.mxu0 0
  %1938 = vmatmul.mubr.bf16.gmra.mxu0 %v1213
  %v1939 = vpop.f32.mrf.mxu0
  %v1940 = vadd.f32 %v333, %v1939
  %v1941 = vpop.f32.mrf.mxu0
  %v1942 = vpop.f32.mrf.mxu0
  %v1943 = vadd.f32 %v333, %v1942
  %v1944 = vpop.f32.mrf.mxu0
  %1945 = vmatprep.mubr.bf16.mxu0 0
  %1946 = vmatmul.mubr.bf16.gmra.mxu0 %v1216
  %v1947 = vpop.f32.mrf.mxu0
  %v1948 = vadd.f32 %v333, %v1947
  %v1949 = vpop.f32.mrf.mxu0
  %v1950 = vpop.f32.mrf.mxu0
  %v1951 = vadd.f32 %v333, %v1950
  %v1952 = vpop.f32.mrf.mxu0
  %1953 = vmatprep.mubr.bf16.mxu0 0
  %1954 = vmatmul.mubr.bf16.gmra.mxu0 %v1219
  %v1955 = vpop.f32.mrf.mxu0
  %v1956 = vadd.f32 %v333, %v1955
  %v1957 = vpop.f32.mrf.mxu0
  %v1958 = vpop.f32.mrf.mxu0
  %v1959 = vadd.f32 %v333, %v1958
  %v1960 = vpop.f32.mrf.mxu0
  %1961 = vmatprep.mubr.bf16.mxu0 0
  %1962 = vmatmul.mubr.bf16.gmra.mxu0 %v1222
  %v1963 = vpop.f32.mrf.mxu0
  %v1964 = vadd.f32 %v333, %v1963
  %v1965 = vpop.f32.mrf.mxu0
  %v1966 = vpop.f32.mrf.mxu0
  %v1967 = vadd.f32 %v333, %v1966
  %v1968 = vpop.f32.mrf.mxu0
  %1969 = vmatprep.mubr.bf16.mxu0 0
  %1970 = vmatmul.mubr.bf16.gmra.mxu0 %v1225
  %v1971 = vpop.f32.mrf.mxu0
  %v1972 = vadd.f32 %v333, %v1971
  %v1973 = vpop.f32.mrf.mxu0
  %v1974 = vpop.f32.mrf.mxu0
  %v1975 = vadd.f32 %v333, %v1974
  %v1976 = vpop.f32.mrf.mxu0
  %1977 = vmatprep.mubr.bf16.mxu0 0
  %1978 = vmatmul.mubr.bf16.gmra.mxu0 %v1228
  %v1979 = vpop.f32.mrf.mxu0
  %v1980 = vadd.f32 %v333, %v1979
  %v1981 = vpop.f32.mrf.mxu0
  %v1982 = vpop.f32.mrf.mxu0
  %v1983 = vadd.f32 %v333, %v1982
  %v1984 = vpop.f32.mrf.mxu0
  %1985 = vmatprep.mubr.bf16.mxu0 0
  %1986 = vmatmul.mubr.bf16.gmra.mxu0 %v1231
  %v1987 = vpop.f32.mrf.mxu0
  %v1988 = vadd.f32 %v333, %v1987
  %v1989 = vpop.f32.mrf.mxu0
  %v1990 = vpop.f32.mrf.mxu0
  %v1991 = vadd.f32 %v333, %v1990
  %v1992 = vpop.f32.mrf.mxu0
  %1993 = vmatprep.mubr.bf16.mxu0 0
  %1994 = vmatmul.mubr.bf16.gmra.mxu0 %v1234
  %v1995 = vpop.f32.mrf.mxu0
  %v1996 = vadd.f32 %v333, %v1995
  %v1997 = vpop.f32.mrf.mxu0
  %v1998 = vpop.f32.mrf.mxu0
  %v1999 = vadd.f32 %v333, %v1998
  %v2000 = vpop.f32.mrf.mxu0
  %2001 = vmatprep.mubr.bf16.mxu0 0
  %2002 = vmatmul.mubr.bf16.gmra.mxu0 %v1237
  %v2003 = vpop.f32.mrf.mxu0
  %v2004 = vadd.f32 %v333, %v2003
  %v2005 = vpop.f32.mrf.mxu0
  %v2006 = vpop.f32.mrf.mxu0
  %v2007 = vadd.f32 %v333, %v2006
  %v2008 = vpop.f32.mrf.mxu0
  %2009 = vmatprep.mubr.bf16.mxu0 0
  %2010 = vmatmul.mubr.bf16.gmra.mxu0 %v1240
  %v2011 = vpop.f32.mrf.mxu0
  %v2012 = vadd.f32 %v333, %v2011
  %v2013 = vpop.f32.mrf.mxu0
  %v2014 = vpop.f32.mrf.mxu0
  %v2015 = vadd.f32 %v333, %v2014
  %v2016 = vpop.f32.mrf.mxu0
  %2017 = vmatprep.mubr.bf16.mxu0 0
  %2018 = vmatmul.mubr.bf16.gmra.mxu0 %v1243
  %v2019 = vpop.f32.mrf.mxu0
  %v2020 = vadd.f32 %v333, %v2019
  %v2021 = vpop.f32.mrf.mxu0
  %v2022 = vpop.f32.mrf.mxu0
  %v2023 = vadd.f32 %v333, %v2022
  %v2024 = vpop.f32.mrf.mxu0
  %2025 = vmatprep.mubr.bf16.mxu0 0
  %2026 = vmatmul.mubr.bf16.gmra.mxu0 %v1246
  %v2027 = vpop.f32.mrf.mxu0
  %v2028 = vadd.f32 %v333, %v2027
  %v2029 = vpop.f32.mrf.mxu0
  %v2030 = vpop.f32.mrf.mxu0
  %v2031 = vadd.f32 %v333, %v2030
  %v2032 = vpop.f32.mrf.mxu0
  %2033 = vmatprep.mubr.bf16.mxu0 0
  %2034 = vmatmul.mubr.bf16.gmra.mxu0 %v1249
  %v2035 = vpop.f32.mrf.mxu0
  %v2036 = vadd.f32 %v333, %v2035
  %v2037 = vpop.f32.mrf.mxu0
  %v2038 = vpop.f32.mrf.mxu0
  %v2039 = vadd.f32 %v333, %v2038
  %v2040 = vpop.f32.mrf.mxu0
  %2041 = vmatprep.mubr.bf16.mxu0 0
  %2042 = vmatmul.mubr.bf16.gmra.mxu0 %v1252
  %v2043 = vpop.f32.mrf.mxu0
  %v2044 = vadd.f32 %v333, %v2043
  %v2045 = vpop.f32.mrf.mxu0
  %v2046 = vpop.f32.mrf.mxu0
  %v2047 = vadd.f32 %v333, %v2046
  %v2048 = vpop.f32.mrf.mxu0
  %2049 = vmatprep.mubr.bf16.mxu0 0
  %2050 = vmatmul.mubr.bf16.gmra.mxu0 %v1255
  %v2051 = vpop.f32.mrf.mxu0
  %v2052 = vadd.f32 %v333, %v2051
  %v2053 = vpop.f32.mrf.mxu0
  %v2054 = vpop.f32.mrf.mxu0
  %v2055 = vadd.f32 %v333, %v2054
  %v2056 = vpop.f32.mrf.mxu0
  %2057 = vmatprep.mubr.bf16.mxu0 0
  %2058 = vmatmul.mubr.bf16.gmra.mxu0 %v1258
  %v2059 = vpop.f32.mrf.mxu0
  %v2060 = vadd.f32 %v333, %v2059
  %v2061 = vpop.f32.mrf.mxu0
  %v2062 = vpop.f32.mrf.mxu0
  %v2063 = vadd.f32 %v333, %v2062
  %v2064 = vpop.f32.mrf.mxu0
  %2065 = vmatprep.mubr.bf16.mxu0 0
  %2066 = vmatmul.mubr.bf16.gmra.mxu0 %v1261
  %v2067 = vpop.f32.mrf.mxu0
  %v2068 = vadd.f32 %v333, %v2067
  %v2069 = vpop.f32.mrf.mxu0
  %v2070 = vpop.f32.mrf.mxu0
  %v2071 = vadd.f32 %v333, %v2070
  %v2072 = vpop.f32.mrf.mxu0
  %2073 = vmatprep.mubr.bf16.mxu0 0
  %2074 = vmatmul.mubr.bf16.gmra.mxu0 %v1264
  %v2075 = vpop.f32.mrf.mxu0
  %v2076 = vadd.f32 %v333, %v2075
  %v2077 = vpop.f32.mrf.mxu0
  %v2078 = vpop.f32.mrf.mxu0
  %v2079 = vadd.f32 %v333, %v2078
  %v2080 = vpop.f32.mrf.mxu0
  %2081 = vmatprep.mubr.bf16.mxu0 0
  %2082 = vmatmul.mubr.bf16.gmra.mxu0 %v1267
  %v2083 = vpop.f32.mrf.mxu0
  %v2084 = vadd.f32 %v333, %v2083
  %v2085 = vpop.f32.mrf.mxu0
  %v2086 = vpop.f32.mrf.mxu0
  %v2087 = vadd.f32 %v333, %v2086
  %v2088 = vpop.f32.mrf.mxu0
  %2089 = vmatprep.mubr.bf16.mxu0 0
  %2090 = vmatmul.mubr.bf16.gmra.mxu0 %v1270
  %v2091 = vpop.f32.mrf.mxu0
  %v2092 = vadd.f32 %v333, %v2091
  %v2093 = vpop.f32.mrf.mxu0
  %v2094 = vpop.f32.mrf.mxu0
  %v2095 = vadd.f32 %v333, %v2094
  %v2096 = vpop.f32.mrf.mxu0
  %2097 = vmatprep.mubr.bf16.mxu0 0
  %2098 = vmatmul.mubr.bf16.gmra.mxu0 %v1273
  %v2099 = vpop.f32.mrf.mxu0
  %v2100 = vadd.f32 %v333, %v2099
  %v2101 = vpop.f32.mrf.mxu0
  %v2102 = vpop.f32.mrf.mxu0
  %v2103 = vadd.f32 %v333, %v2102
  %v2104 = vpop.f32.mrf.mxu0
  %2105 = vmatprep.mubr.bf16.mxu0 0
  %2106 = vmatmul.mubr.bf16.gmra.mxu0 %v1276
  %v2107 = vpop.f32.mrf.mxu0
  %v2108 = vadd.f32 %v333, %v2107
  %v2109 = vpop.f32.mrf.mxu0
  %v2110 = vpop.f32.mrf.mxu0
  %v2111 = vadd.f32 %v333, %v2110
  %v2112 = vpop.f32.mrf.mxu0
  %2113 = vmatprep.mubr.bf16.mxu0 0
  %2114 = vmatmul.mubr.bf16.gmra.mxu0 %v1279
  %v2115 = vpop.f32.mrf.mxu0
  %v2116 = vadd.f32 %v333, %v2115
  %v2117 = vpop.f32.mrf.mxu0
  %v2118 = vpop.f32.mrf.mxu0
  %v2119 = vadd.f32 %v333, %v2118
  %v2120 = vpop.f32.mrf.mxu0
  %2121 = vmatprep.mubr.bf16.mxu0 0
  %2122 = vmatmul.mubr.bf16.gmra.mxu0 %v1282
  %v2123 = vpop.f32.mrf.mxu0
  %v2124 = vadd.f32 %v333, %v2123
  %v2125 = vpop.f32.mrf.mxu0
  %v2126 = vpop.f32.mrf.mxu0
  %v2127 = vadd.f32 %v333, %v2126
  %v2128 = vpop.f32.mrf.mxu0
  %2129 = vmatprep.mubr.bf16.mxu0 0
  %2130 = vmatmul.mubr.bf16.gmra.mxu0 %v1285
  %v2131 = vpop.f32.mrf.mxu0
  %v2132 = vadd.f32 %v333, %v2131
  %v2133 = vpop.f32.mrf.mxu0
  %v2134 = vpop.f32.mrf.mxu0
  %v2135 = vadd.f32 %v333, %v2134
  %v2136 = vpop.f32.mrf.mxu0
  %2137 = vmatprep.mubr.bf16.mxu0 0
  %2138 = vmatmul.mubr.bf16.gmra.mxu0 %v1288
  %v2139 = vpop.f32.mrf.mxu0
  %v2140 = vadd.f32 %v333, %v2139
  %v2141 = vpop.f32.mrf.mxu0
  %v2142 = vpop.f32.mrf.mxu0
  %v2143 = vadd.f32 %v333, %v2142
  %v2144 = vpop.f32.mrf.mxu0
  %2145 = vmatprep.mubr.bf16.mxu0 0
  %2146 = vmatmul.mubr.bf16.gmra.mxu0 %v1291
  %v2147 = vpop.f32.mrf.mxu0
  %v2148 = vadd.f32 %v333, %v2147
  %v2149 = vpop.f32.mrf.mxu0
  %v2150 = vpop.f32.mrf.mxu0
  %v2151 = vadd.f32 %v333, %v2150
  %v2152 = vpop.f32.mrf.mxu0
  %2153 = vmatprep.mubr.bf16.mxu0 0
  %2154 = vmatmul.mubr.bf16.gmra.mxu0 %v1294
  %v2155 = vpop.f32.mrf.mxu0
  %v2156 = vadd.f32 %v333, %v2155
  %v2157 = vpop.f32.mrf.mxu0
  %v2158 = vpop.f32.mrf.mxu0
  %v2159 = vadd.f32 %v333, %v2158
  %v2160 = vpop.f32.mrf.mxu0
  %2161 = vmatprep.mubr.bf16.mxu0 0
  %2162 = vmatmul.mubr.bf16.gmra.mxu0 %v1297
  %v2163 = vpop.f32.mrf.mxu0
  %v2164 = vadd.f32 %v333, %v2163
  %v2165 = vpop.f32.mrf.mxu0
  %v2166 = vpop.f32.mrf.mxu0
  %v2167 = vadd.f32 %v333, %v2166
  %v2168 = vpop.f32.mrf.mxu0
  %2169 = vmatprep.mubr.bf16.mxu0 0
  %2170 = vmatmul.mubr.bf16.gmra.mxu0 %v1300
  %v2171 = vpop.f32.mrf.mxu0
  %v2172 = vadd.f32 %v333, %v2171
  %v2173 = vpop.f32.mrf.mxu0
  %v2174 = vpop.f32.mrf.mxu0
  %v2175 = vadd.f32 %v333, %v2174
  %v2176 = vpop.f32.mrf.mxu0
  %2177 = vmatprep.mubr.bf16.mxu0 0
  %2178 = vmatmul.mubr.bf16.gmra.mxu0 %v1303
  %v2179 = vpop.f32.mrf.mxu0
  %v2180 = vadd.f32 %v333, %v2179
  %v2181 = vpop.f32.mrf.mxu0
  %v2182 = vpop.f32.mrf.mxu0
  %v2183 = vadd.f32 %v333, %v2182
  %v2184 = vpop.f32.mrf.mxu0
  %2185 = vmatprep.mubr.bf16.mxu0 0
  %2186 = vmatmul.mubr.bf16.gmra.mxu0 %v1306
  %v2187 = vpop.f32.mrf.mxu0
  %v2188 = vadd.f32 %v333, %v2187
  %v2189 = vpop.f32.mrf.mxu0
  %v2190 = vpop.f32.mrf.mxu0
  %v2191 = vadd.f32 %v333, %v2190
  %v2192 = vpop.f32.mrf.mxu0
  %2193 = vmatprep.mubr.bf16.mxu0 0
  %2194 = vmatmul.mubr.bf16.gmra.mxu0 %v1309
  %v2195 = vpop.f32.mrf.mxu0
  %v2196 = vadd.f32 %v333, %v2195
  %v2197 = vpop.f32.mrf.mxu0
  %v2198 = vpop.f32.mrf.mxu0
  %v2199 = vadd.f32 %v333, %v2198
  %v2200 = vpop.f32.mrf.mxu0
  %2201 = vmatprep.mubr.bf16.mxu0 0
  %2202 = vmatmul.mubr.bf16.gmra.mxu0 %v1312
  %v2203 = vpop.f32.mrf.mxu0
  %v2204 = vadd.f32 %v333, %v2203
  %v2205 = vpop.f32.mrf.mxu0
  %v2206 = vpop.f32.mrf.mxu0
  %v2207 = vadd.f32 %v333, %v2206
  %v2208 = vpop.f32.mrf.mxu0
  %2209 = vmatprep.mubr.bf16.mxu0 0
  %2210 = vmatmul.mubr.bf16.gmra.mxu0 %v1315
  %v2211 = vpop.f32.mrf.mxu0
  %v2212 = vadd.f32 %v333, %v2211
  %v2213 = vpop.f32.mrf.mxu0
  %v2214 = vpop.f32.mrf.mxu0
  %v2215 = vadd.f32 %v333, %v2214
  %v2216 = vpop.f32.mrf.mxu0
  %2217 = vmatprep.mubr.bf16.mxu0 0
  %2218 = vmatmul.mubr.bf16.gmra.mxu0 %v1318
  %v2219 = vpop.f32.mrf.mxu0
  %v2220 = vadd.f32 %v333, %v2219
  %v2221 = vpop.f32.mrf.mxu0
  %v2222 = vpop.f32.mrf.mxu0
  %v2223 = vadd.f32 %v333, %v2222
  %v2224 = vpop.f32.mrf.mxu0
  %2225 = vmatprep.mubr.bf16.mxu0 0
  %2226 = vmatmul.mubr.bf16.gmra.mxu0 %v1321
  %v2227 = vpop.f32.mrf.mxu0
  %v2228 = vadd.f32 %v333, %v2227
  %v2229 = vpop.f32.mrf.mxu0
  %v2230 = vpop.f32.mrf.mxu0
  %v2231 = vadd.f32 %v333, %v2230
  %v2232 = vpop.f32.mrf.mxu0
  %2233 = vmatprep.mubr.bf16.mxu0 0
  %2234 = vmatmul.mubr.bf16.gmra.mxu0 %v1324
  %v2235 = vpop.f32.mrf.mxu0
  %v2236 = vadd.f32 %v333, %v2235
  %v2237 = vpop.f32.mrf.mxu0
  %v2238 = vpop.f32.mrf.mxu0
  %v2239 = vadd.f32 %v333, %v2238
  %v2240 = vpop.f32.mrf.mxu0
  %2241 = vmatprep.mubr.bf16.mxu0 0
  %2242 = vmatmul.mubr.bf16.gmra.mxu0 %v1327
  %v2243 = vpop.f32.mrf.mxu0
  %v2244 = vadd.f32 %v333, %v2243
  %v2245 = vpop.f32.mrf.mxu0
  %v2246 = vpop.f32.mrf.mxu0
  %v2247 = vadd.f32 %v333, %v2246
  %v2248 = vpop.f32.mrf.mxu0
  %2249 = vmatprep.mubr.bf16.mxu0 0
  %2250 = vmatmul.mubr.bf16.gmra.mxu0 %v1330
  %v2251 = vpop.f32.mrf.mxu0
  %v2252 = vadd.f32 %v333, %v2251
  %v2253 = vpop.f32.mrf.mxu0
  %v2254 = vpop.f32.mrf.mxu0
  %v2255 = vadd.f32 %v333, %v2254
  %v2256 = vpop.f32.mrf.mxu0
  %2257 = vmatprep.mubr.bf16.mxu0 0
  %2258 = vmatmul.mubr.bf16.gmra.mxu0 %v1333
  %v2259 = vpop.f32.mrf.mxu0
  %v2260 = vadd.f32 %v333, %v2259
  %v2261 = vpop.f32.mrf.mxu0
  %v2262 = vpop.f32.mrf.mxu0
  %v2263 = vadd.f32 %v333, %v2262
  %v2264 = vpop.f32.mrf.mxu0
  %2265 = vmatprep.mubr.bf16.mxu0 0
  %2266 = vmatmul.mubr.bf16.gmra.mxu0 %v1336
  %v2267 = vpop.f32.mrf.mxu0
  %v2268 = vadd.f32 %v333, %v2267
  %v2269 = vpop.f32.mrf.mxu0
  %v2270 = vpop.f32.mrf.mxu0
  %v2271 = vadd.f32 %v333, %v2270
  %v2272 = vpop.f32.mrf.mxu0
  %2273 = vmatprep.mubr.bf16.mxu0 0
  %2274 = vmatmul.mubr.bf16.gmra.mxu0 %v1339
  %v2275 = vpop.f32.mrf.mxu0
  %v2276 = vadd.f32 %v333, %v2275
  %v2277 = vpop.f32.mrf.mxu0
  %v2278 = vpop.f32.mrf.mxu0
  %v2279 = vadd.f32 %v333, %v2278
  %v2280 = vpop.f32.mrf.mxu0
  %2281 = vmatprep.mubr.bf16.mxu0 0
  %2282 = vmatmul.mubr.bf16.gmra.mxu0 %v1342
  %v2283 = vpop.f32.mrf.mxu0
  %v2284 = vadd.f32 %v333, %v2283
  %v2285 = vpop.f32.mrf.mxu0
  %v2286 = vpop.f32.mrf.mxu0
  %v2287 = vadd.f32 %v333, %v2286
  %v2288 = vpop.f32.mrf.mxu0
  %2289 = vmatprep.mubr.bf16.mxu0 0
  %2290 = vmatmul.mubr.bf16.gmra.mxu0 %v1345
  %v2291 = vpop.f32.mrf.mxu0
  %v2292 = vadd.f32 %v333, %v2291
  %v2293 = vpop.f32.mrf.mxu0
  %v2294 = vpop.f32.mrf.mxu0
  %v2295 = vadd.f32 %v333, %v2294
  %v2296 = vpop.f32.mrf.mxu0
  %2297 = vmatprep.mubr.bf16.mxu0 0
  %2298 = vmatmul.mubr.bf16.gmra.mxu0 %v1348
  %v2299 = vpop.f32.mrf.mxu0
  %v2300 = vadd.f32 %v333, %v2299
  %v2301 = vpop.f32.mrf.mxu0
  %v2302 = vpop.f32.mrf.mxu0
  %v2303 = vadd.f32 %v333, %v2302
  %v2304 = vpop.f32.mrf.mxu0
  %2305 = vmatprep.mubr.bf16.mxu0 0
  %2306 = vmatmul.mubr.bf16.gmra.mxu0 %v1351
  %v2307 = vpop.f32.mrf.mxu0
  %v2308 = vadd.f32 %v333, %v2307
  %v2309 = vpop.f32.mrf.mxu0
  %v2310 = vpop.f32.mrf.mxu0
  %v2311 = vadd.f32 %v333, %v2310
  %v2312 = vpop.f32.mrf.mxu0
  %2313 = vmatprep.mubr.bf16.mxu0 0
  %2314 = vmatmul.mubr.bf16.gmra.mxu0 %v1354
  %v2315 = vpop.f32.mrf.mxu0
  %v2316 = vadd.f32 %v333, %v2315
  %v2317 = vpop.f32.mrf.mxu0
  %v2318 = vpop.f32.mrf.mxu0
  %v2319 = vadd.f32 %v333, %v2318
  %v2320 = vpop.f32.mrf.mxu0
  %2321 = vmatprep.mubr.bf16.mxu0 0
  %2322 = vmatmul.mubr.bf16.gmra.mxu0 %v1357
  %v2323 = vpop.f32.mrf.mxu0
  %v2324 = vadd.f32 %v333, %v2323
  %v2325 = vpop.f32.mrf.mxu0
  %v2326 = vpop.f32.mrf.mxu0
  %v2327 = vadd.f32 %v333, %v2326
  %v2328 = vpop.f32.mrf.mxu0
  %2329 = vmatprep.mubr.bf16.mxu0 0
  %2330 = vmatmul.mubr.bf16.gmra.mxu0 %v1360
  %v2331 = vpop.f32.mrf.mxu0
  %v2332 = vadd.f32 %v333, %v2331
  %v2333 = vpop.f32.mrf.mxu0
  %v2334 = vpop.f32.mrf.mxu0
  %v2335 = vadd.f32 %v333, %v2334
  %v2336 = vpop.f32.mrf.mxu0
  %2337 = vmatprep.mubr.bf16.mxu0 0
  %2338 = vmatmul.mubr.bf16.gmra.mxu0 %v1363
  %v2339 = vpop.f32.mrf.mxu0
  %v2340 = vadd.f32 %v333, %v2339
  %v2341 = vpop.f32.mrf.mxu0
  %v2342 = vpop.f32.mrf.mxu0
  %v2343 = vadd.f32 %v333, %v2342
  %v2344 = vpop.f32.mrf.mxu0
  %2345 = vmatprep.mubr.bf16.mxu0 0
  %2346 = vmatmul.mubr.bf16.gmra.mxu0 %v1366
  %v2347 = vpop.f32.mrf.mxu0
  %v2348 = vadd.f32 %v333, %v2347
  %v2349 = vpop.f32.mrf.mxu0
  %v2350 = vpop.f32.mrf.mxu0
  %v2351 = vadd.f32 %v333, %v2350
  %v2352 = vpop.f32.mrf.mxu0
  %2353 = vmatprep.mubr.bf16.mxu0 0
  %2354 = vmatmul.mubr.bf16.gmra.mxu0 %v1369
  %v2355 = vpop.f32.mrf.mxu0
  %v2356 = vadd.f32 %v333, %v2355
  %v2357 = vpop.f32.mrf.mxu0
  %v2358 = vpop.f32.mrf.mxu0
  %v2359 = vadd.f32 %v333, %v2358
  %v2360 = vpop.f32.mrf.mxu0
  %2361 = vmatprep.mubr.bf16.mxu0 0
  %2362 = vmatmul.mubr.bf16.gmra.mxu0 %v1372
  %v2363 = vpop.f32.mrf.mxu0
  %v2364 = vadd.f32 %v333, %v2363
  %v2365 = vpop.f32.mrf.mxu0
  %v2366 = vpop.f32.mrf.mxu0
  %v2367 = vadd.f32 %v333, %v2366
  %v2368 = vpop.f32.mrf.mxu0
  %2369 = vmatprep.mubr.bf16.mxu0 0
  %2370 = vmatmul.mubr.bf16.gmra.mxu0 %v1375
  %v2371 = vpop.f32.mrf.mxu0
  %v2372 = vadd.f32 %v333, %v2371
  %v2373 = vpop.f32.mrf.mxu0
  %v2374 = vpop.f32.mrf.mxu0
  %v2375 = vadd.f32 %v333, %v2374
  %v2376 = vpop.f32.mrf.mxu0
  %2377 = vmatprep.mubr.bf16.mxu0 0
  %2378 = vmatmul.mubr.bf16.gmra.mxu0 %v1378
  %v2379 = vpop.f32.mrf.mxu0
  %v2380 = vadd.f32 %v333, %v2379
  %v2381 = vpop.f32.mrf.mxu0
  %v2382 = vpop.f32.mrf.mxu0
  %v2383 = vadd.f32 %v333, %v2382
  %v2384 = vpop.f32.mrf.mxu0
  %2385 = vmatprep.mubr.bf16.mxu0 0
  %2386 = vmatmul.mubr.bf16.gmra.mxu0 %v1381
  %v2387 = vpop.f32.mrf.mxu0
  %v2388 = vadd.f32 %v333, %v2387
  %v2389 = vpop.f32.mrf.mxu0
  %v2390 = vpop.f32.mrf.mxu0
  %v2391 = vadd.f32 %v333, %v2390
  %v2392 = vpop.f32.mrf.mxu0
  %2393 = vmatprep.mubr.bf16.mxu0 0
  %2394 = vmatmul.mubr.bf16.gmra.mxu0 %v1384
  %v2395 = vpop.f32.mrf.mxu0
  %v2396 = vadd.f32 %v333, %v2395
  %v2397 = vpop.f32.mrf.mxu0
  %v2398 = vpop.f32.mrf.mxu0
  %v2399 = vadd.f32 %v333, %v2398
  %v2400 = vpop.f32.mrf.mxu0
  %2401 = vmatprep.mubr.bf16.mxu0 0
  %2402 = vmatmul.mubr.bf16.gmra.mxu0 %v1387
  %v2403 = vpop.f32.mrf.mxu0
  %v2404 = vadd.f32 %v333, %v2403
  %v2405 = vpop.f32.mrf.mxu0
  %v2406 = vpop.f32.mrf.mxu0
  %v2407 = vadd.f32 %v333, %v2406
  %v2408 = vpop.f32.mrf.mxu0
  %2409 = vmatprep.mubr.bf16.mxu0 0
  %2410 = vmatmul.mubr.bf16.gmra.mxu0 %v1390
  %v2411 = vpop.f32.mrf.mxu0
  %v2412 = vadd.f32 %v333, %v2411
  %v2413 = vpop.f32.mrf.mxu0
  %v2414 = vpop.f32.mrf.mxu0
  %v2415 = vadd.f32 %v333, %v2414
  %v2416 = vpop.f32.mrf.mxu0
  %2417 = vmatprep.mubr.bf16.mxu0 0
  %2418 = vmatmul.mubr.bf16.gmra.mxu0 %v1393
  %v2419 = vpop.f32.mrf.mxu0
  %v2420 = vadd.f32 %v333, %v2419
  %v2421 = vpop.f32.mrf.mxu0
  %v2422 = vpop.f32.mrf.mxu0
  %v2423 = vadd.f32 %v333, %v2422
  %v2424 = vpop.f32.mrf.mxu0
  %2425 = vmatprep.mubr.bf16.mxu0 0
  %2426 = vmatmul.mubr.bf16.gmra.mxu0 %v1396
  %v2427 = vpop.f32.mrf.mxu0
  %v2428 = vadd.f32 %v333, %v2427
  %v2429 = vpop.f32.mrf.mxu0
  %v2430 = vpop.f32.mrf.mxu0
  %v2431 = vadd.f32 %v333, %v2430
  %v2432 = vpop.f32.mrf.mxu0
  %2433 = vmatprep.mubr.bf16.mxu0 0
  %2434 = vmatmul.mubr.bf16.gmra.mxu0 %v1399
  %v2435 = vpop.f32.mrf.mxu0
  %v2436 = vadd.f32 %v333, %v2435
  %v2437 = vpop.f32.mrf.mxu0
  %v2438 = vpop.f32.mrf.mxu0
  %v2439 = vadd.f32 %v333, %v2438
  %v2440 = vpop.f32.mrf.mxu0
  %2441 = vmatprep.mubr.bf16.mxu0 0
  %2442 = vmatmul.mubr.bf16.gmra.mxu0 %v1402
  %v2443 = vpop.f32.mrf.mxu0
  %v2444 = vadd.f32 %v333, %v2443
  %v2445 = vpop.f32.mrf.mxu0
  %v2446 = vpop.f32.mrf.mxu0
  %v2447 = vadd.f32 %v333, %v2446
  %v2448 = vpop.f32.mrf.mxu0
  %2449 = vmatprep.mubr.bf16.mxu0 0
  %2450 = vmatmul.mubr.bf16.gmra.mxu0 %v1405
  %v2451 = vpop.f32.mrf.mxu0
  %v2452 = vadd.f32 %v333, %v2451
  %v2453 = vpop.f32.mrf.mxu0
  %v2454 = vpop.f32.mrf.mxu0
  %v2455 = vadd.f32 %v333, %v2454
  %v2456 = vpop.f32.mrf.mxu0
  %2457 = vmatprep.mubr.bf16.mxu0 0
  %2458 = vmatmul.mubr.bf16.gmra.mxu0 %v1408
  %v2459 = vpop.f32.mrf.mxu0
  %v2460 = vadd.f32 %v333, %v2459
  %v2461 = vpop.f32.mrf.mxu0
  %v2462 = vpop.f32.mrf.mxu0
  %v2463 = vadd.f32 %v333, %v2462
  %v2464 = vpop.f32.mrf.mxu0
  %2465 = vmatprep.mubr.bf16.mxu0 0
  %2466 = vmatmul.mubr.bf16.gmra.mxu0 %v1411
  %v2467 = vpop.f32.mrf.mxu0
  %v2468 = vadd.f32 %v333, %v2467
  %v2469 = vpop.f32.mrf.mxu0
  %v2470 = vpop.f32.mrf.mxu0
  %v2471 = vadd.f32 %v333, %v2470
  %v2472 = vpop.f32.mrf.mxu0
  %2473 = vmatprep.mubr.bf16.mxu0 0
  %2474 = vmatmul.mubr.bf16.gmra.mxu0 %v1414
  %v2475 = vpop.f32.mrf.mxu0
  %v2476 = vadd.f32 %v333, %v2475
  %v2477 = vpop.f32.mrf.mxu0
  %v2478 = vpop.f32.mrf.mxu0
  %v2479 = vadd.f32 %v333, %v2478
  %v2480 = vpop.f32.mrf.mxu0
  %2481 = vmatprep.mubr.bf16.mxu0 0
  %2482 = vmatmul.mubr.bf16.gmra.mxu0 %v1417
  %v2483 = vpop.f32.mrf.mxu0
  %v2484 = vadd.f32 %v333, %v2483
  %v2485 = vpop.f32.mrf.mxu0
  %v2486 = vpop.f32.mrf.mxu0
  %v2487 = vadd.f32 %v333, %v2486
  %v2488 = vpop.f32.mrf.mxu0
  %2489 = vmatprep.mubr.bf16.mxu0 0
  %2490 = vmatmul.mubr.bf16.gmra.mxu0 %v1420
  %v2491 = vpop.f32.mrf.mxu0
  %v2492 = vadd.f32 %v333, %v2491
  %v2493 = vpop.f32.mrf.mxu0
  %v2494 = vpop.f32.mrf.mxu0
  %v2495 = vadd.f32 %v333, %v2494
  %v2496 = vpop.f32.mrf.mxu0
  %2497 = vmatprep.mubr.bf16.mxu0 0
  %2498 = vmatmul.mubr.bf16.gmra.mxu0 %v1423
  %v2499 = vpop.f32.mrf.mxu0
  %v2500 = vadd.f32 %v333, %v2499
  %v2501 = vpop.f32.mrf.mxu0
  %v2502 = vpop.f32.mrf.mxu0
  %v2503 = vadd.f32 %v333, %v2502
  %v2504 = vpop.f32.mrf.mxu0
  %2505 = vmatprep.mubr.bf16.mxu0 0
  %2506 = vmatmul.mubr.bf16.gmra.mxu0 %v1426
  %v2507 = vpop.f32.mrf.mxu0
  %v2508 = vadd.f32 %v333, %v2507
  %v2509 = vpop.f32.mrf.mxu0
  %v2510 = vpop.f32.mrf.mxu0
  %v2511 = vadd.f32 %v333, %v2510
  %v2512 = vpop.f32.mrf.mxu0
  %2513 = vmatprep.mubr.bf16.mxu0 0
  %2514 = vmatmul.mubr.bf16.gmra.mxu0 %v1429
  %v2515 = vpop.f32.mrf.mxu0
  %v2516 = vadd.f32 %v333, %v2515
  %v2517 = vpop.f32.mrf.mxu0
  %v2518 = vpop.f32.mrf.mxu0
  %v2519 = vadd.f32 %v333, %v2518
  %v2520 = vpop.f32.mrf.mxu0
  %2521 = vmatprep.mubr.bf16.mxu0 0
  %2522 = vmatmul.mubr.bf16.gmra.mxu0 %v1432
  %v2523 = vpop.f32.mrf.mxu0
  %v2524 = vadd.f32 %v333, %v2523
  %v2525 = vpop.f32.mrf.mxu0
  %v2526 = vpop.f32.mrf.mxu0
  %v2527 = vadd.f32 %v333, %v2526
  %v2528 = vpop.f32.mrf.mxu0
  %2529 = vmatprep.mubr.bf16.mxu0 0
  %2530 = vmatmul.mubr.bf16.gmra.mxu0 %v1435
  %v2531 = vpop.f32.mrf.mxu0
  %v2532 = vadd.f32 %v333, %v2531
  %v2533 = vpop.f32.mrf.mxu0
  %v2534 = vpop.f32.mrf.mxu0
  %v2535 = vadd.f32 %v333, %v2534
  %v2536 = vpop.f32.mrf.mxu0
  %2537 = vmatprep.mubr.bf16.mxu0 0
  %2538 = vmatmul.mubr.bf16.gmra.mxu0 %v1438
  %v2539 = vpop.f32.mrf.mxu0
  %v2540 = vadd.f32 %v333, %v2539
  %v2541 = vpop.f32.mrf.mxu0
  %v2542 = vpop.f32.mrf.mxu0
  %v2543 = vadd.f32 %v333, %v2542
  %v2544 = vpop.f32.mrf.mxu0
  %2545 = vmatprep.mubr.bf16.mxu0 0
  %2546 = vmatmul.mubr.bf16.gmra.mxu0 %v1441
  %v2547 = vpop.f32.mrf.mxu0
  %v2548 = vadd.f32 %v333, %v2547
  %v2549 = vpop.f32.mrf.mxu0
  %v2550 = vpop.f32.mrf.mxu0
  %v2551 = vadd.f32 %v333, %v2550
  %v2552 = vpop.f32.mrf.mxu0
  %2553 = vmatprep.mubr.bf16.mxu0 0
  %2554 = vmatmul.mubr.bf16.gmra.mxu0 %v1444
  %v2555 = vpop.f32.mrf.mxu0
  %v2556 = vadd.f32 %v333, %v2555
  %v2557 = vpop.f32.mrf.mxu0
  %v2558 = vpop.f32.mrf.mxu0
  %v2559 = vadd.f32 %v333, %v2558
  %v2560 = vpop.f32.mrf.mxu0
  %2561 = vmatprep.mubr.bf16.mxu0 0
  %2562 = vmatmul.mubr.bf16.gmra.mxu0 %v1447
  %v2563 = vpop.f32.mrf.mxu0
  %v2564 = vadd.f32 %v333, %v2563
  %v2565 = vpop.f32.mrf.mxu0
  %v2566 = vpop.f32.mrf.mxu0
  %v2567 = vadd.f32 %v333, %v2566
  %v2568 = vpop.f32.mrf.mxu0
  %2569 = vmatprep.mubr.bf16.mxu0 0
  %2570 = vmatmul.mubr.bf16.gmra.mxu0 %v1450
  %v2571 = vpop.f32.mrf.mxu0
  %v2572 = vadd.f32 %v333, %v2571
  %v2573 = vpop.f32.mrf.mxu0
  %v2574 = vpop.f32.mrf.mxu0
  %v2575 = vadd.f32 %v333, %v2574
  %v2576 = vpop.f32.mrf.mxu0
  %2577 = vmatprep.mubr.bf16.mxu0 0
  %2578 = vmatmul.mubr.bf16.gmra.mxu0 %v1453
  %v2579 = vpop.f32.mrf.mxu0
  %v2580 = vadd.f32 %v333, %v2579
  %v2581 = vpop.f32.mrf.mxu0
  %v2582 = vpop.f32.mrf.mxu0
  %v2583 = vadd.f32 %v333, %v2582
  %v2584 = vpop.f32.mrf.mxu0
  %2585 = vmatprep.mubr.bf16.mxu0 0
  %2586 = vmatmul.mubr.bf16.gmra.mxu0 %v1456
  %v2587 = vpop.f32.mrf.mxu0
  %v2588 = vadd.f32 %v333, %v2587
  %v2589 = vpop.f32.mrf.mxu0
  %v2590 = vpop.f32.mrf.mxu0
  %v2591 = vadd.f32 %v333, %v2590
  %v2592 = vpop.f32.mrf.mxu0
  %2593 = vmatprep.mubr.bf16.mxu0 0
  %2594 = vmatmul.mubr.bf16.gmra.mxu0 %v1459
  %v2595 = vpop.f32.mrf.mxu0
  %v2596 = vadd.f32 %v333, %v2595
  %v2597 = vpop.f32.mrf.mxu0
  %v2598 = vpop.f32.mrf.mxu0
  %v2599 = vadd.f32 %v333, %v2598
  %v2600 = vpop.f32.mrf.mxu0
  %2601 = vdwg.mxu0
  %vm2602 = vcmp.ge.f32.partialorder %v1500, 0.0
  %vm2603 = vcmp.ge.f32.partialorder %v1503, 0.0
  %vm2604 = vcmp.ge.f32.partialorder %v1508, 0.0
  %vm2605 = vcmp.ge.f32.partialorder %v1511, 0.0
  %vm2606 = vcmp.ge.f32.partialorder %v1516, 0.0
  %vm2607 = vcmp.ge.f32.partialorder %v1519, 0.0
  %vm2608 = vcmp.ge.f32.partialorder %v1524, 0.0
  %vm2609 = vcmp.ge.f32.partialorder %v1527, 0.0
  %vm2610 = vcmp.ge.f32.partialorder %v1532, 0.0
  %vm2611 = vcmp.ge.f32.partialorder %v1535, 0.0
  %vm2612 = vcmp.ge.f32.partialorder %v1540, 0.0
  %vm2613 = vcmp.ge.f32.partialorder %v1543, 0.0
  %vm2614 = vcmp.ge.f32.partialorder %v1548, 0.0
  %vm2615 = vcmp.ge.f32.partialorder %v1551, 0.0
  %vm2616 = vcmp.ge.f32.partialorder %v1556, 0.0
  %vm2617 = vcmp.ge.f32.partialorder %v1559, 0.0
  %vm2618 = vcmp.ge.f32.partialorder %v1564, 0.0
  %vm2619 = vcmp.ge.f32.partialorder %v1567, 0.0
  %vm2620 = vcmp.ge.f32.partialorder %v1572, 0.0
  %vm2621 = vcmp.ge.f32.partialorder %v1575, 0.0
  %vm2622 = vcmp.ge.f32.partialorder %v1580, 0.0
  %vm2623 = vcmp.ge.f32.partialorder %v1583, 0.0
  %vm2624 = vcmp.ge.f32.partialorder %v1588, 0.0
  %vm2625 = vcmp.ge.f32.partialorder %v1591, 0.0
  %vm2626 = vcmp.ge.f32.partialorder %v1596, 0.0
  %vm2627 = vcmp.ge.f32.partialorder %v1599, 0.0
  %vm2628 = vcmp.ge.f32.partialorder %v1604, 0.0
  %vm2629 = vcmp.ge.f32.partialorder %v1607, 0.0
  %vm2630 = vcmp.ge.f32.partialorder %v1612, 0.0
  %vm2631 = vcmp.ge.f32.partialorder %v1615, 0.0
  %vm2632 = vcmp.ge.f32.partialorder %v1620, 0.0
  %vm2633 = vcmp.ge.f32.partialorder %v1623, 0.0
  %vm2634 = vcmp.ge.f32.partialorder %v1628, 0.0
  %vm2635 = vcmp.ge.f32.partialorder %v1631, 0.0
  %vm2636 = vcmp.ge.f32.partialorder %v1636, 0.0
  %vm2637 = vcmp.ge.f32.partialorder %v1639, 0.0
  %vm2638 = vcmp.ge.f32.partialorder %v1644, 0.0
  %vm2639 = vcmp.ge.f32.partialorder %v1647, 0.0
  %vm2640 = vcmp.ge.f32.partialorder %v1652, 0.0
  %vm2641 = vcmp.ge.f32.partialorder %v1655, 0.0
  %vm2642 = vcmp.ge.f32.partialorder %v1660, 0.0
  %vm2643 = vcmp.ge.f32.partialorder %v1663, 0.0
  %vm2644 = vcmp.ge.f32.partialorder %v1668, 0.0
  %vm2645 = vcmp.ge.f32.partialorder %v1671, 0.0
  %vm2646 = vcmp.ge.f32.partialorder %v1676, 0.0
  %vm2647 = vcmp.ge.f32.partialorder %v1679, 0.0
  %vm2648 = vcmp.ge.f32.partialorder %v1684, 0.0
  %vm2649 = vcmp.ge.f32.partialorder %v1687, 0.0
  %vm2650 = vcmp.ge.f32.partialorder %v1692, 0.0
  %vm2651 = vcmp.ge.f32.partialorder %v1695, 0.0
  %vm2652 = vcmp.ge.f32.partialorder %v1700, 0.0
  %vm2653 = vcmp.ge.f32.partialorder %v1703, 0.0
  %vm2654 = vcmp.ge.f32.partialorder %v1708, 0.0
  %vm2655 = vcmp.ge.f32.partialorder %v1711, 0.0
  %vm2656 = vcmp.ge.f32.partialorder %v1716, 0.0
  %vm2657 = vcmp.ge.f32.partialorder %v1719, 0.0
  %vm2658 = vcmp.ge.f32.partialorder %v1724, 0.0
  %vm2659 = vcmp.ge.f32.partialorder %v1727, 0.0
  %vm2660 = vcmp.ge.f32.partialorder %v1732, 0.0
  %vm2661 = vcmp.ge.f32.partialorder %v1735, 0.0
  %vm2662 = vcmp.ge.f32.partialorder %v1740, 0.0
  %vm2663 = vcmp.ge.f32.partialorder %v1743, 0.0
  %vm2664 = vcmp.ge.f32.partialorder %v1748, 0.0
  %vm2665 = vcmp.ge.f32.partialorder %v1751, 0.0
  %vm2666 = vcmp.ge.f32.partialorder %v1756, 0.0
  %vm2667 = vcmp.ge.f32.partialorder %v1759, 0.0
  %vm2668 = vcmp.ge.f32.partialorder %v1764, 0.0
  %vm2669 = vcmp.ge.f32.partialorder %v1767, 0.0
  %vm2670 = vcmp.ge.f32.partialorder %v1772, 0.0
  %vm2671 = vcmp.ge.f32.partialorder %v1775, 0.0
  %vm2672 = vcmp.ge.f32.partialorder %v1780, 0.0
  %vm2673 = vcmp.ge.f32.partialorder %v1783, 0.0
  %vm2674 = vcmp.ge.f32.partialorder %v1788, 0.0
  %vm2675 = vcmp.ge.f32.partialorder %v1791, 0.0
  %vm2676 = vcmp.ge.f32.partialorder %v1796, 0.0
  %vm2677 = vcmp.ge.f32.partialorder %v1799, 0.0
  %vm2678 = vcmp.ge.f32.partialorder %v1804, 0.0
  %vm2679 = vcmp.ge.f32.partialorder %v1807, 0.0
  %vm2680 = vcmp.ge.f32.partialorder %v1812, 0.0
  %vm2681 = vcmp.ge.f32.partialorder %v1815, 0.0
  %vm2682 = vcmp.ge.f32.partialorder %v1820, 0.0
  %vm2683 = vcmp.ge.f32.partialorder %v1823, 0.0
  %vm2684 = vcmp.ge.f32.partialorder %v1828, 0.0
  %vm2685 = vcmp.ge.f32.partialorder %v1831, 0.0
  %vm2686 = vcmp.ge.f32.partialorder %v1836, 0.0
  %vm2687 = vcmp.ge.f32.partialorder %v1839, 0.0
  %vm2688 = vcmp.ge.f32.partialorder %v1844, 0.0
  %vm2689 = vcmp.ge.f32.partialorder %v1847, 0.0
  %vm2690 = vcmp.ge.f32.partialorder %v1852, 0.0
  %vm2691 = vcmp.ge.f32.partialorder %v1855, 0.0
  %vm2692 = vcmp.ge.f32.partialorder %v1860, 0.0
  %vm2693 = vcmp.ge.f32.partialorder %v1863, 0.0
  %vm2694 = vcmp.ge.f32.partialorder %v1868, 0.0
  %vm2695 = vcmp.ge.f32.partialorder %v1871, 0.0
  %vm2696 = vcmp.ge.f32.partialorder %v1876, 0.0
  %vm2697 = vcmp.ge.f32.partialorder %v1879, 0.0
  %vm2698 = vcmp.ge.f32.partialorder %v1884, 0.0
  %vm2699 = vcmp.ge.f32.partialorder %v1887, 0.0
  %vm2700 = vcmp.ge.f32.partialorder %v1892, 0.0
  %vm2701 = vcmp.ge.f32.partialorder %v1895, 0.0
  %vm2702 = vcmp.ge.f32.partialorder %v1900, 0.0
  %vm2703 = vcmp.ge.f32.partialorder %v1903, 0.0
  %vm2704 = vcmp.ge.f32.partialorder %v1908, 0.0
  %vm2705 = vcmp.ge.f32.partialorder %v1911, 0.0
  %vm2706 = vcmp.ge.f32.partialorder %v1916, 0.0
  %vm2707 = vcmp.ge.f32.partialorder %v1919, 0.0
  %vm2708 = vcmp.ge.f32.partialorder %v1924, 0.0
  %vm2709 = vcmp.ge.f32.partialorder %v1927, 0.0
  %vm2710 = vcmp.ge.f32.partialorder %v1932, 0.0
  %vm2711 = vcmp.ge.f32.partialorder %v1935, 0.0
  %vm2712 = vcmp.ge.f32.partialorder %v1940, 0.0
  %vm2713 = vcmp.ge.f32.partialorder %v1943, 0.0
  %vm2714 = vcmp.ge.f32.partialorder %v1948, 0.0
  %vm2715 = vcmp.ge.f32.partialorder %v1951, 0.0
  %vm2716 = vcmp.ge.f32.partialorder %v1956, 0.0
  %vm2717 = vcmp.ge.f32.partialorder %v1959, 0.0
  %vm2718 = vcmp.ge.f32.partialorder %v1964, 0.0
  %vm2719 = vcmp.ge.f32.partialorder %v1967, 0.0
  %vm2720 = vcmp.ge.f32.partialorder %v1972, 0.0
  %vm2721 = vcmp.ge.f32.partialorder %v1975, 0.0
  %vm2722 = vcmp.ge.f32.partialorder %v1980, 0.0
  %vm2723 = vcmp.ge.f32.partialorder %v1983, 0.0
  %vm2724 = vcmp.ge.f32.partialorder %v1988, 0.0
  %vm2725 = vcmp.ge.f32.partialorder %v1991, 0.0
  %vm2726 = vcmp.ge.f32.partialorder %v1996, 0.0
  %vm2727 = vcmp.ge.f32.partialorder %v1999, 0.0
  %vm2728 = vcmp.ge.f32.partialorder %v2004, 0.0
  %vm2729 = vcmp.ge.f32.partialorder %v2007, 0.0
  %vm2730 = vcmp.ge.f32.partialorder %v2012, 0.0
  %vm2731 = vcmp.ge.f32.partialorder %v2015, 0.0
  %vm2732 = vcmp.ge.f32.partialorder %v2020, 0.0
  %vm2733 = vcmp.ge.f32.partialorder %v2023, 0.0
  %vm2734 = vcmp.ge.f32.partialorder %v2028, 0.0
  %vm2735 = vcmp.ge.f32.partialorder %v2031, 0.0
  %vm2736 = vcmp.ge.f32.partialorder %v2036, 0.0
  %vm2737 = vcmp.ge.f32.partialorder %v2039, 0.0
  %vm2738 = vcmp.ge.f32.partialorder %v2044, 0.0
  %vm2739 = vcmp.ge.f32.partialorder %v2047, 0.0
  %vm2740 = vcmp.ge.f32.partialorder %v2052, 0.0
  %vm2741 = vcmp.ge.f32.partialorder %v2055, 0.0
  %vm2742 = vcmp.ge.f32.partialorder %v2060, 0.0
  %vm2743 = vcmp.ge.f32.partialorder %v2063, 0.0
  %vm2744 = vcmp.ge.f32.partialorder %v2068, 0.0
  %vm2745 = vcmp.ge.f32.partialorder %v2071, 0.0
  %vm2746 = vcmp.ge.f32.partialorder %v2076, 0.0
  %vm2747 = vcmp.ge.f32.partialorder %v2079, 0.0
  %vm2748 = vcmp.ge.f32.partialorder %v2084, 0.0
  %vm2749 = vcmp.ge.f32.partialorder %v2087, 0.0
  %vm2750 = vcmp.ge.f32.partialorder %v2092, 0.0
  %vm2751 = vcmp.ge.f32.partialorder %v2095, 0.0
  %vm2752 = vcmp.ge.f32.partialorder %v2100, 0.0
  %vm2753 = vcmp.ge.f32.partialorder %v2103, 0.0
  %vm2754 = vcmp.ge.f32.partialorder %v2108, 0.0
  %vm2755 = vcmp.ge.f32.partialorder %v2111, 0.0
  %vm2756 = vcmp.ge.f32.partialorder %v2116, 0.0
  %vm2757 = vcmp.ge.f32.partialorder %v2119, 0.0
  %vm2758 = vcmp.ge.f32.partialorder %v2124, 0.0
  %vm2759 = vcmp.ge.f32.partialorder %v2127, 0.0
  %vm2760 = vcmp.ge.f32.partialorder %v2132, 0.0
  %vm2761 = vcmp.ge.f32.partialorder %v2135, 0.0
  %vm2762 = vcmp.ge.f32.partialorder %v2140, 0.0
  %vm2763 = vcmp.ge.f32.partialorder %v2143, 0.0
  %vm2764 = vcmp.ge.f32.partialorder %v2148, 0.0
  %vm2765 = vcmp.ge.f32.partialorder %v2151, 0.0
  %vm2766 = vcmp.ge.f32.partialorder %v2156, 0.0
  %vm2767 = vcmp.ge.f32.partialorder %v2159, 0.0
  %vm2768 = vcmp.ge.f32.partialorder %v2164, 0.0
  %vm2769 = vcmp.ge.f32.partialorder %v2167, 0.0
  %vm2770 = vcmp.ge.f32.partialorder %v2172, 0.0
  %vm2771 = vcmp.ge.f32.partialorder %v2175, 0.0
  %vm2772 = vcmp.ge.f32.partialorder %v2180, 0.0
  %vm2773 = vcmp.ge.f32.partialorder %v2183, 0.0
  %vm2774 = vcmp.ge.f32.partialorder %v2188, 0.0
  %vm2775 = vcmp.ge.f32.partialorder %v2191, 0.0
  %vm2776 = vcmp.ge.f32.partialorder %v2196, 0.0
  %vm2777 = vcmp.ge.f32.partialorder %v2199, 0.0
  %vm2778 = vcmp.ge.f32.partialorder %v2204, 0.0
  %vm2779 = vcmp.ge.f32.partialorder %v2207, 0.0
  %vm2780 = vcmp.ge.f32.partialorder %v2212, 0.0
  %vm2781 = vcmp.ge.f32.partialorder %v2215, 0.0
  %vm2782 = vcmp.ge.f32.partialorder %v2220, 0.0
  %vm2783 = vcmp.ge.f32.partialorder %v2223, 0.0
  %vm2784 = vcmp.ge.f32.partialorder %v2228, 0.0
  %vm2785 = vcmp.ge.f32.partialorder %v2231, 0.0
  %vm2786 = vcmp.ge.f32.partialorder %v2236, 0.0
  %vm2787 = vcmp.ge.f32.partialorder %v2239, 0.0
  %vm2788 = vcmp.ge.f32.partialorder %v2244, 0.0
  %vm2789 = vcmp.ge.f32.partialorder %v2247, 0.0
  %vm2790 = vcmp.ge.f32.partialorder %v2252, 0.0
  %vm2791 = vcmp.ge.f32.partialorder %v2255, 0.0
  %vm2792 = vcmp.ge.f32.partialorder %v2260, 0.0
  %vm2793 = vcmp.ge.f32.partialorder %v2263, 0.0
  %vm2794 = vcmp.ge.f32.partialorder %v2268, 0.0
  %vm2795 = vcmp.ge.f32.partialorder %v2271, 0.0
  %vm2796 = vcmp.ge.f32.partialorder %v2276, 0.0
  %vm2797 = vcmp.ge.f32.partialorder %v2279, 0.0
  %vm2798 = vcmp.ge.f32.partialorder %v2284, 0.0
  %vm2799 = vcmp.ge.f32.partialorder %v2287, 0.0
  %vm2800 = vcmp.ge.f32.partialorder %v2292, 0.0
  %vm2801 = vcmp.ge.f32.partialorder %v2295, 0.0
  %vm2802 = vcmp.ge.f32.partialorder %v2300, 0.0
  %vm2803 = vcmp.ge.f32.partialorder %v2303, 0.0
  %vm2804 = vcmp.ge.f32.partialorder %v2308, 0.0
  %vm2805 = vcmp.ge.f32.partialorder %v2311, 0.0
  %vm2806 = vcmp.ge.f32.partialorder %v2316, 0.0
  %vm2807 = vcmp.ge.f32.partialorder %v2319, 0.0
  %vm2808 = vcmp.ge.f32.partialorder %v2324, 0.0
  %vm2809 = vcmp.ge.f32.partialorder %v2327, 0.0
  %vm2810 = vcmp.ge.f32.partialorder %v2332, 0.0
  %vm2811 = vcmp.ge.f32.partialorder %v2335, 0.0
  %vm2812 = vcmp.ge.f32.partialorder %v2340, 0.0
  %vm2813 = vcmp.ge.f32.partialorder %v2343, 0.0
  %vm2814 = vcmp.ge.f32.partialorder %v2348, 0.0
  %vm2815 = vcmp.ge.f32.partialorder %v2351, 0.0
  %vm2816 = vcmp.ge.f32.partialorder %v2356, 0.0
  %vm2817 = vcmp.ge.f32.partialorder %v2359, 0.0
  %vm2818 = vcmp.ge.f32.partialorder %v2364, 0.0
  %vm2819 = vcmp.ge.f32.partialorder %v2367, 0.0
  %vm2820 = vcmp.ge.f32.partialorder %v2372, 0.0
  %vm2821 = vcmp.ge.f32.partialorder %v2375, 0.0
  %vm2822 = vcmp.ge.f32.partialorder %v2380, 0.0
  %vm2823 = vcmp.ge.f32.partialorder %v2383, 0.0
  %vm2824 = vcmp.ge.f32.partialorder %v2388, 0.0
  %vm2825 = vcmp.ge.f32.partialorder %v2391, 0.0
  %vm2826 = vcmp.ge.f32.partialorder %v2396, 0.0
  %vm2827 = vcmp.ge.f32.partialorder %v2399, 0.0
  %vm2828 = vcmp.ge.f32.partialorder %v2404, 0.0
  %vm2829 = vcmp.ge.f32.partialorder %v2407, 0.0
  %vm2830 = vcmp.ge.f32.partialorder %v2412, 0.0
  %vm2831 = vcmp.ge.f32.partialorder %v2415, 0.0
  %vm2832 = vcmp.ge.f32.partialorder %v2420, 0.0
  %vm2833 = vcmp.ge.f32.partialorder %v2423, 0.0
  %vm2834 = vcmp.ge.f32.partialorder %v2428, 0.0
  %vm2835 = vcmp.ge.f32.partialorder %v2431, 0.0
  %vm2836 = vcmp.ge.f32.partialorder %v2436, 0.0
  %vm2837 = vcmp.ge.f32.partialorder %v2439, 0.0
  %vm2838 = vcmp.ge.f32.partialorder %v2444, 0.0
  %vm2839 = vcmp.ge.f32.partialorder %v2447, 0.0
  %vm2840 = vcmp.ge.f32.partialorder %v2452, 0.0
  %vm2841 = vcmp.ge.f32.partialorder %v2455, 0.0
  %vm2842 = vcmp.ge.f32.partialorder %v2460, 0.0
  %vm2843 = vcmp.ge.f32.partialorder %v2463, 0.0
  %vm2844 = vcmp.ge.f32.partialorder %v2468, 0.0
  %vm2845 = vcmp.ge.f32.partialorder %v2471, 0.0
  %vm2846 = vcmp.ge.f32.partialorder %v2476, 0.0
  %vm2847 = vcmp.ge.f32.partialorder %v2479, 0.0
  %vm2848 = vcmp.ge.f32.partialorder %v2484, 0.0
  %vm2849 = vcmp.ge.f32.partialorder %v2487, 0.0
  %vm2850 = vcmp.ge.f32.partialorder %v2492, 0.0
  %vm2851 = vcmp.ge.f32.partialorder %v2495, 0.0
  %vm2852 = vcmp.ge.f32.partialorder %v2500, 0.0
  %vm2853 = vcmp.ge.f32.partialorder %v2503, 0.0
  %vm2854 = vcmp.ge.f32.partialorder %v2508, 0.0
  %vm2855 = vcmp.ge.f32.partialorder %v2511, 0.0
  %vm2856 = vcmp.ge.f32.partialorder %v2516, 0.0
  %vm2857 = vcmp.ge.f32.partialorder %v2519, 0.0
  %vm2858 = vcmp.ge.f32.partialorder %v2524, 0.0
  %vm2859 = vcmp.ge.f32.partialorder %v2527, 0.0
  %vm2860 = vcmp.ge.f32.partialorder %v2532, 0.0
  %vm2861 = vcmp.ge.f32.partialorder %v2535, 0.0
  %vm2862 = vcmp.ge.f32.partialorder %v2540, 0.0
  %vm2863 = vcmp.ge.f32.partialorder %v2543, 0.0
  %vm2864 = vcmp.ge.f32.partialorder %v2548, 0.0
  %vm2865 = vcmp.ge.f32.partialorder %v2551, 0.0
  %vm2866 = vcmp.ge.f32.partialorder %v2556, 0.0
  %vm2867 = vcmp.ge.f32.partialorder %v2559, 0.0
  %vm2868 = vcmp.ge.f32.partialorder %v2564, 0.0
  %vm2869 = vcmp.ge.f32.partialorder %v2567, 0.0
  %vm2870 = vcmp.ge.f32.partialorder %v2572, 0.0
  %vm2871 = vcmp.ge.f32.partialorder %v2575, 0.0
  %vm2872 = vcmp.ge.f32.partialorder %v2580, 0.0
  %vm2873 = vcmp.ge.f32.partialorder %v2583, 0.0
  %vm2874 = vcmp.ge.f32.partialorder %v2588, 0.0
  %vm2875 = vcmp.ge.f32.partialorder %v2591, 0.0
  %vm2876 = vcmp.ge.f32.partialorder %v2596, 0.0
  %vm2877 = vcmp.ge.f32.partialorder %v2599, 0.0
  %v2878 = vmul.f32 %v1500, 0.01
  %v2879 = vmul.f32 %v1503, 0.01
  %v2880 = vmul.f32 %v1508, 0.01
  %v2881 = vmul.f32 %v1511, 0.01
  %v2882 = vmul.f32 %v1516, 0.01
  %v2883 = vmul.f32 %v1519, 0.01
  %v2884 = vmul.f32 %v1524, 0.01
  %v2885 = vmul.f32 %v1527, 0.01
  %v2886 = vmul.f32 %v1532, 0.01
  %v2887 = vmul.f32 %v1535, 0.01
  %v2888 = vmul.f32 %v1540, 0.01
  %v2889 = vmul.f32 %v1543, 0.01
  %v2890 = vmul.f32 %v1548, 0.01
  %v2891 = vmul.f32 %v1551, 0.01
  %v2892 = vmul.f32 %v1556, 0.01
  %v2893 = vmul.f32 %v1559, 0.01
  %v2894 = vmul.f32 %v1564, 0.01
  %v2895 = vmul.f32 %v1567, 0.01
  %v2896 = vmul.f32 %v1572, 0.01
  %v2897 = vmul.f32 %v1575, 0.01
  %v2898 = vmul.f32 %v1580, 0.01
  %v2899 = vmul.f32 %v1583, 0.01
  %v2900 = vmul.f32 %v1588, 0.01
  %v2901 = vmul.f32 %v1591, 0.01
  %v2902 = vmul.f32 %v1596, 0.01
  %v2903 = vmul.f32 %v1599, 0.01
  %v2904 = vmul.f32 %v1604, 0.01
  %v2905 = vmul.f32 %v1607, 0.01
  %v2906 = vmul.f32 %v1612, 0.01
  %v2907 = vmul.f32 %v1615, 0.01
  %v2908 = vmul.f32 %v1620, 0.01
  %v2909 = vmul.f32 %v1623, 0.01
  %v2910 = vmul.f32 %v1628, 0.01
  %v2911 = vmul.f32 %v1631, 0.01
  %v2912 = vmul.f32 %v1636, 0.01
  %v2913 = vmul.f32 %v1639, 0.01
  %v2914 = vmul.f32 %v1644, 0.01
  %v2915 = vmul.f32 %v1647, 0.01
  %v2916 = vmul.f32 %v1652, 0.01
  %v2917 = vmul.f32 %v1655, 0.01
  %v2918 = vmul.f32 %v1660, 0.01
  %v2919 = vmul.f32 %v1663, 0.01
  %v2920 = vmul.f32 %v1668, 0.01
  %v2921 = vmul.f32 %v1671, 0.01
  %v2922 = vmul.f32 %v1676, 0.01
  %v2923 = vmul.f32 %v1679, 0.01
  %v2924 = vmul.f32 %v1684, 0.01
  %v2925 = vmul.f32 %v1687, 0.01
  %v2926 = vmul.f32 %v1692, 0.01
  %v2927 = vmul.f32 %v1695, 0.01
  %v2928 = vmul.f32 %v1700, 0.01
  %v2929 = vmul.f32 %v1703, 0.01
  %v2930 = vmul.f32 %v1708, 0.01
  %v2931 = vmul.f32 %v1711, 0.01
  %v2932 = vmul.f32 %v1716, 0.01
  %v2933 = vmul.f32 %v1719, 0.01
  %v2934 = vmul.f32 %v1724, 0.01
  %v2935 = vmul.f32 %v1727, 0.01
  %v2936 = vmul.f32 %v1732, 0.01
  %v2937 = vmul.f32 %v1735, 0.01
  %v2938 = vmul.f32 %v1740, 0.01
  %v2939 = vmul.f32 %v1743, 0.01
  %v2940 = vmul.f32 %v1748, 0.01
  %v2941 = vmul.f32 %v1751, 0.01
  %v2942 = vmul.f32 %v1756, 0.01
  %v2943 = vmul.f32 %v1759, 0.01
  %v2944 = vmul.f32 %v1764, 0.01
  %v2945 = vmul.f32 %v1767, 0.01
  %v2946 = vmul.f32 %v1772, 0.01
  %v2947 = vmul.f32 %v1775, 0.01
  %v2948 = vmul.f32 %v1780, 0.01
  %v2949 = vmul.f32 %v1783, 0.01
  %v2950 = vmul.f32 %v1788, 0.01
  %v2951 = vmul.f32 %v1791, 0.01
  %v2952 = vmul.f32 %v1796, 0.01
  %v2953 = vmul.f32 %v1799, 0.01
  %v2954 = vmul.f32 %v1804, 0.01
  %v2955 = vmul.f32 %v1807, 0.01
  %v2956 = vmul.f32 %v1812, 0.01
  %v2957 = vmul.f32 %v1815, 0.01
  %v2958 = vmul.f32 %v1820, 0.01
  %v2959 = vmul.f32 %v1823, 0.01
  %v2960 = vmul.f32 %v1828, 0.01
  %v2961 = vmul.f32 %v1831, 0.01
  %v2962 = vmul.f32 %v1836, 0.01
  %v2963 = vmul.f32 %v1839, 0.01
  %v2964 = vmul.f32 %v1844, 0.01
  %v2965 = vmul.f32 %v1847, 0.01
  %v2966 = vmul.f32 %v1852, 0.01
  %v2967 = vmul.f32 %v1855, 0.01
  %v2968 = vmul.f32 %v1860, 0.01
  %v2969 = vmul.f32 %v1863, 0.01
  %v2970 = vmul.f32 %v1868, 0.01
  %v2971 = vmul.f32 %v1871, 0.01
  %v2972 = vmul.f32 %v1876, 0.01
  %v2973 = vmul.f32 %v1879, 0.01
  %v2974 = vmul.f32 %v1884, 0.01
  %v2975 = vmul.f32 %v1887, 0.01
  %v2976 = vmul.f32 %v1892, 0.01
  %v2977 = vmul.f32 %v1895, 0.01
  %v2978 = vmul.f32 %v1900, 0.01
  %v2979 = vmul.f32 %v1903, 0.01
  %v2980 = vmul.f32 %v1908, 0.01
  %v2981 = vmul.f32 %v1911, 0.01
  %v2982 = vmul.f32 %v1916, 0.01
  %v2983 = vmul.f32 %v1919, 0.01
  %v2984 = vmul.f32 %v1924, 0.01
  %v2985 = vmul.f32 %v1927, 0.01
  %v2986 = vmul.f32 %v1932, 0.01
  %v2987 = vmul.f32 %v1935, 0.01
  %v2988 = vmul.f32 %v1940, 0.01
  %v2989 = vmul.f32 %v1943, 0.01
  %v2990 = vmul.f32 %v1948, 0.01
  %v2991 = vmul.f32 %v1951, 0.01
  %v2992 = vmul.f32 %v1956, 0.01
  %v2993 = vmul.f32 %v1959, 0.01
  %v2994 = vmul.f32 %v1964, 0.01
  %v2995 = vmul.f32 %v1967, 0.01
  %v2996 = vmul.f32 %v1972, 0.01
  %v2997 = vmul.f32 %v1975, 0.01
  %v2998 = vmul.f32 %v1980, 0.01
  %v2999 = vmul.f32 %v1983, 0.01
  %v3000 = vmul.f32 %v1988, 0.01
  %v3001 = vmul.f32 %v1991, 0.01
  %v3002 = vmul.f32 %v1996, 0.01
  %v3003 = vmul.f32 %v1999, 0.01
  %v3004 = vmul.f32 %v2004, 0.01
  %v3005 = vmul.f32 %v2007, 0.01
  %v3006 = vmul.f32 %v2012, 0.01
  %v3007 = vmul.f32 %v2015, 0.01
  %v3008 = vmul.f32 %v2020, 0.01
  %v3009 = vmul.f32 %v2023, 0.01
  %v3010 = vmul.f32 %v2028, 0.01
  %v3011 = vmul.f32 %v2031, 0.01
  %v3012 = vmul.f32 %v2036, 0.01
  %v3013 = vmul.f32 %v2039, 0.01
  %v3014 = vmul.f32 %v2044, 0.01
  %v3015 = vmul.f32 %v2047, 0.01
  %v3016 = vmul.f32 %v2052, 0.01
  %v3017 = vmul.f32 %v2055, 0.01
  %v3018 = vmul.f32 %v2060, 0.01
  %v3019 = vmul.f32 %v2063, 0.01
  %v3020 = vmul.f32 %v2068, 0.01
  %v3021 = vmul.f32 %v2071, 0.01
  %v3022 = vmul.f32 %v2076, 0.01
  %v3023 = vmul.f32 %v2079, 0.01
  %v3024 = vmul.f32 %v2084, 0.01
  %v3025 = vmul.f32 %v2087, 0.01
  %v3026 = vmul.f32 %v2092, 0.01
  %v3027 = vmul.f32 %v2095, 0.01
  %v3028 = vmul.f32 %v2100, 0.01
  %v3029 = vmul.f32 %v2103, 0.01
  %v3030 = vmul.f32 %v2108, 0.01
  %v3031 = vmul.f32 %v2111, 0.01
  %v3032 = vmul.f32 %v2116, 0.01
  %v3033 = vmul.f32 %v2119, 0.01
  %v3034 = vmul.f32 %v2124, 0.01
  %v3035 = vmul.f32 %v2127, 0.01
  %v3036 = vmul.f32 %v2132, 0.01
  %v3037 = vmul.f32 %v2135, 0.01
  %v3038 = vmul.f32 %v2140, 0.01
  %v3039 = vmul.f32 %v2143, 0.01
  %v3040 = vmul.f32 %v2148, 0.01
  %v3041 = vmul.f32 %v2151, 0.01
  %v3042 = vmul.f32 %v2156, 0.01
  %v3043 = vmul.f32 %v2159, 0.01
  %v3044 = vmul.f32 %v2164, 0.01
  %v3045 = vmul.f32 %v2167, 0.01
  %v3046 = vmul.f32 %v2172, 0.01
  %v3047 = vmul.f32 %v2175, 0.01
  %v3048 = vmul.f32 %v2180, 0.01
  %v3049 = vmul.f32 %v2183, 0.01
  %v3050 = vmul.f32 %v2188, 0.01
  %v3051 = vmul.f32 %v2191, 0.01
  %v3052 = vmul.f32 %v2196, 0.01
  %v3053 = vmul.f32 %v2199, 0.01
  %v3054 = vmul.f32 %v2204, 0.01
  %v3055 = vmul.f32 %v2207, 0.01
  %v3056 = vmul.f32 %v2212, 0.01
  %v3057 = vmul.f32 %v2215, 0.01
  %v3058 = vmul.f32 %v2220, 0.01
  %v3059 = vmul.f32 %v2223, 0.01
  %v3060 = vmul.f32 %v2228, 0.01
  %v3061 = vmul.f32 %v2231, 0.01
  %v3062 = vmul.f32 %v2236, 0.01
  %v3063 = vmul.f32 %v2239, 0.01
  %v3064 = vmul.f32 %v2244, 0.01
  %v3065 = vmul.f32 %v2247, 0.01
  %v3066 = vmul.f32 %v2252, 0.01
  %v3067 = vmul.f32 %v2255, 0.01
  %v3068 = vmul.f32 %v2260, 0.01
  %v3069 = vmul.f32 %v2263, 0.01
  %v3070 = vmul.f32 %v2268, 0.01
  %v3071 = vmul.f32 %v2271, 0.01
  %v3072 = vmul.f32 %v2276, 0.01
  %v3073 = vmul.f32 %v2279, 0.01
  %v3074 = vmul.f32 %v2284, 0.01
  %v3075 = vmul.f32 %v2287, 0.01
  %v3076 = vmul.f32 %v2292, 0.01
  %v3077 = vmul.f32 %v2295, 0.01
  %v3078 = vmul.f32 %v2300, 0.01
  %v3079 = vmul.f32 %v2303, 0.01
  %v3080 = vmul.f32 %v2308, 0.01
  %v3081 = vmul.f32 %v2311, 0.01
  %v3082 = vmul.f32 %v2316, 0.01
  %v3083 = vmul.f32 %v2319, 0.01
  %v3084 = vmul.f32 %v2324, 0.01
  %v3085 = vmul.f32 %v2327, 0.01
  %v3086 = vmul.f32 %v2332, 0.01
  %v3087 = vmul.f32 %v2335, 0.01
  %v3088 = vmul.f32 %v2340, 0.01
  %v3089 = vmul.f32 %v2343, 0.01
  %v3090 = vmul.f32 %v2348, 0.01
  %v3091 = vmul.f32 %v2351, 0.01
  %v3092 = vmul.f32 %v2356, 0.01
  %v3093 = vmul.f32 %v2359, 0.01
  %v3094 = vmul.f32 %v2364, 0.01
  %v3095 = vmul.f32 %v2367, 0.01
  %v3096 = vmul.f32 %v2372, 0.01
  %v3097 = vmul.f32 %v2375, 0.01
  %v3098 = vmul.f32 %v2380, 0.01
  %v3099 = vmul.f32 %v2383, 0.01
  %v3100 = vmul.f32 %v2388, 0.01
  %v3101 = vmul.f32 %v2391, 0.01
  %v3102 = vmul.f32 %v2396, 0.01
  %v3103 = vmul.f32 %v2399, 0.01
  %v3104 = vmul.f32 %v2404, 0.01
  %v3105 = vmul.f32 %v2407, 0.01
  %v3106 = vmul.f32 %v2412, 0.01
  %v3107 = vmul.f32 %v2415, 0.01
  %v3108 = vmul.f32 %v2420, 0.01
  %v3109 = vmul.f32 %v2423, 0.01
  %v3110 = vmul.f32 %v2428, 0.01
  %v3111 = vmul.f32 %v2431, 0.01
  %v3112 = vmul.f32 %v2436, 0.01
  %v3113 = vmul.f32 %v2439, 0.01
  %v3114 = vmul.f32 %v2444, 0.01
  %v3115 = vmul.f32 %v2447, 0.01
  %v3116 = vmul.f32 %v2452, 0.01
  %v3117 = vmul.f32 %v2455, 0.01
  %v3118 = vmul.f32 %v2460, 0.01
  %v3119 = vmul.f32 %v2463, 0.01
  %v3120 = vmul.f32 %v2468, 0.01
  %v3121 = vmul.f32 %v2471, 0.01
  %v3122 = vmul.f32 %v2476, 0.01
  %v3123 = vmul.f32 %v2479, 0.01
  %v3124 = vmul.f32 %v2484, 0.01
  %v3125 = vmul.f32 %v2487, 0.01
  %v3126 = vmul.f32 %v2492, 0.01
  %v3127 = vmul.f32 %v2495, 0.01
  %v3128 = vmul.f32 %v2500, 0.01
  %v3129 = vmul.f32 %v2503, 0.01
  %v3130 = vmul.f32 %v2508, 0.01
  %v3131 = vmul.f32 %v2511, 0.01
  %v3132 = vmul.f32 %v2516, 0.01
  %v3133 = vmul.f32 %v2519, 0.01
  %v3134 = vmul.f32 %v2524, 0.01
  %v3135 = vmul.f32 %v2527, 0.01
  %v3136 = vmul.f32 %v2532, 0.01
  %v3137 = vmul.f32 %v2535, 0.01
  %v3138 = vmul.f32 %v2540, 0.01
  %v3139 = vmul.f32 %v2543, 0.01
  %v3140 = vmul.f32 %v2548, 0.01
  %v3141 = vmul.f32 %v2551, 0.01
  %v3142 = vmul.f32 %v2556, 0.01
  %v3143 = vmul.f32 %v2559, 0.01
  %v3144 = vmul.f32 %v2564, 0.01
  %v3145 = vmul.f32 %v2567, 0.01
  %v3146 = vmul.f32 %v2572, 0.01
  %v3147 = vmul.f32 %v2575, 0.01
  %v3148 = vmul.f32 %v2580, 0.01
  %v3149 = vmul.f32 %v2583, 0.01
  %v3150 = vmul.f32 %v2588, 0.01
  %v3151 = vmul.f32 %v2591, 0.01
  %v3152 = vmul.f32 %v2596, 0.01
  %v3153 = vmul.f32 %v2599, 0.01
  %v3154 = vsel %vm2602, %v1500, %v2878
  %v3155 = vsel %vm2603, %v1503, %v2879
  %v3156 = vsel %vm2604, %v1508, %v2880
  %v3157 = vsel %vm2605, %v1511, %v2881
  %v3158 = vsel %vm2606, %v1516, %v2882
  %v3159 = vsel %vm2607, %v1519, %v2883
  %v3160 = vsel %vm2608, %v1524, %v2884
  %v3161 = vsel %vm2609, %v1527, %v2885
  %v3162 = vsel %vm2610, %v1532, %v2886
  %v3163 = vsel %vm2611, %v1535, %v2887
  %v3164 = vsel %vm2612, %v1540, %v2888
  %v3165 = vsel %vm2613, %v1543, %v2889
  %v3166 = vsel %vm2614, %v1548, %v2890
  %v3167 = vsel %vm2615, %v1551, %v2891
  %v3168 = vsel %vm2616, %v1556, %v2892
  %v3169 = vsel %vm2617, %v1559, %v2893
  %v3170 = vsel %vm2618, %v1564, %v2894
  %v3171 = vsel %vm2619, %v1567, %v2895
  %v3172 = vsel %vm2620, %v1572, %v2896
  %v3173 = vsel %vm2621, %v1575, %v2897
  %v3174 = vsel %vm2622, %v1580, %v2898
  %v3175 = vsel %vm2623, %v1583, %v2899
  %v3176 = vsel %vm2624, %v1588, %v2900
  %v3177 = vsel %vm2625, %v1591, %v2901
  %v3178 = vsel %vm2626, %v1596, %v2902
  %v3179 = vsel %vm2627, %v1599, %v2903
  %v3180 = vsel %vm2628, %v1604, %v2904
  %v3181 = vsel %vm2629, %v1607, %v2905
  %v3182 = vsel %vm2630, %v1612, %v2906
  %v3183 = vsel %vm2631, %v1615, %v2907
  %v3184 = vsel %vm2632, %v1620, %v2908
  %v3185 = vsel %vm2633, %v1623, %v2909
  %v3186 = vsel %vm2634, %v1628, %v2910
  %v3187 = vsel %vm2635, %v1631, %v2911
  %v3188 = vsel %vm2636, %v1636, %v2912
  %v3189 = vsel %vm2637, %v1639, %v2913
  %v3190 = vsel %vm2638, %v1644, %v2914
  %v3191 = vsel %vm2639, %v1647, %v2915
  %v3192 = vsel %vm2640, %v1652, %v2916
  %v3193 = vsel %vm2641, %v1655, %v2917
  %v3194 = vsel %vm2642, %v1660, %v2918
  %v3195 = vsel %vm2643, %v1663, %v2919
  %v3196 = vsel %vm2644, %v1668, %v2920
  %v3197 = vsel %vm2645, %v1671, %v2921
  %v3198 = vsel %vm2646, %v1676, %v2922
  %v3199 = vsel %vm2647, %v1679, %v2923
  %v3200 = vsel %vm2648, %v1684, %v2924
  %v3201 = vsel %vm2649, %v1687, %v2925
  %v3202 = vsel %vm2650, %v1692, %v2926
  %v3203 = vsel %vm2651, %v1695, %v2927
  %v3204 = vsel %vm2652, %v1700, %v2928
  %v3205 = vsel %vm2653, %v1703, %v2929
  %v3206 = vsel %vm2654, %v1708, %v2930
  %v3207 = vsel %vm2655, %v1711, %v2931
  %v3208 = vsel %vm2656, %v1716, %v2932
  %v3209 = vsel %vm2657, %v1719, %v2933
  %v3210 = vsel %vm2658, %v1724, %v2934
  %v3211 = vsel %vm2659, %v1727, %v2935
  %v3212 = vsel %vm2660, %v1732, %v2936
  %v3213 = vsel %vm2661, %v1735, %v2937
  %v3214 = vsel %vm2662, %v1740, %v2938
  %v3215 = vsel %vm2663, %v1743, %v2939
  %v3216 = vsel %vm2664, %v1748, %v2940
  %v3217 = vsel %vm2665, %v1751, %v2941
  %v3218 = vsel %vm2666, %v1756, %v2942
  %v3219 = vsel %vm2667, %v1759, %v2943
  %v3220 = vsel %vm2668, %v1764, %v2944
  %v3221 = vsel %vm2669, %v1767, %v2945
  %v3222 = vsel %vm2670, %v1772, %v2946
  %v3223 = vsel %vm2671, %v1775, %v2947
  %v3224 = vsel %vm2672, %v1780, %v2948
  %v3225 = vsel %vm2673, %v1783, %v2949
  %v3226 = vsel %vm2674, %v1788, %v2950
  %v3227 = vsel %vm2675, %v1791, %v2951
  %v3228 = vsel %vm2676, %v1796, %v2952
  %v3229 = vsel %vm2677, %v1799, %v2953
  %v3230 = vsel %vm2678, %v1804, %v2954
  %v3231 = vsel %vm2679, %v1807, %v2955
  %v3232 = vsel %vm2680, %v1812, %v2956
  %v3233 = vsel %vm2681, %v1815, %v2957
  %v3234 = vsel %vm2682, %v1820, %v2958
  %v3235 = vsel %vm2683, %v1823, %v2959
  %v3236 = vsel %vm2684, %v1828, %v2960
  %v3237 = vsel %vm2685, %v1831, %v2961
  %v3238 = vsel %vm2686, %v1836, %v2962
  %v3239 = vsel %vm2687, %v1839, %v2963
  %v3240 = vsel %vm2688, %v1844, %v2964
  %v3241 = vsel %vm2689, %v1847, %v2965
  %v3242 = vsel %vm2690, %v1852, %v2966
  %v3243 = vsel %vm2691, %v1855, %v2967
  %v3244 = vsel %vm2692, %v1860, %v2968
  %v3245 = vsel %vm2693, %v1863, %v2969
  %v3246 = vsel %vm2694, %v1868, %v2970
  %v3247 = vsel %vm2695, %v1871, %v2971
  %v3248 = vsel %vm2696, %v1876, %v2972
  %v3249 = vsel %vm2697, %v1879, %v2973
  %v3250 = vsel %vm2698, %v1884, %v2974
  %v3251 = vsel %vm2699, %v1887, %v2975
  %v3252 = vsel %vm2700, %v1892, %v2976
  %v3253 = vsel %vm2701, %v1895, %v2977
  %v3254 = vsel %vm2702, %v1900, %v2978
  %v3255 = vsel %vm2703, %v1903, %v2979
  %v3256 = vsel %vm2704, %v1908, %v2980
  %v3257 = vsel %vm2705, %v1911, %v2981
  %v3258 = vsel %vm2706, %v1916, %v2982
  %v3259 = vsel %vm2707, %v1919, %v2983
  %v3260 = vsel %vm2708, %v1924, %v2984
  %v3261 = vsel %vm2709, %v1927, %v2985
  %v3262 = vsel %vm2710, %v1932, %v2986
  %v3263 = vsel %vm2711, %v1935, %v2987
  %v3264 = vsel %vm2712, %v1940, %v2988
  %v3265 = vsel %vm2713, %v1943, %v2989
  %v3266 = vsel %vm2714, %v1948, %v2990
  %v3267 = vsel %vm2715, %v1951, %v2991
  %v3268 = vsel %vm2716, %v1956, %v2992
  %v3269 = vsel %vm2717, %v1959, %v2993
  %v3270 = vsel %vm2718, %v1964, %v2994
  %v3271 = vsel %vm2719, %v1967, %v2995
  %v3272 = vsel %vm2720, %v1972, %v2996
  %v3273 = vsel %vm2721, %v1975, %v2997
  %v3274 = vsel %vm2722, %v1980, %v2998
  %v3275 = vsel %vm2723, %v1983, %v2999
  %v3276 = vsel %vm2724, %v1988, %v3000
  %v3277 = vsel %vm2725, %v1991, %v3001
  %v3278 = vsel %vm2726, %v1996, %v3002
  %v3279 = vsel %vm2727, %v1999, %v3003
  %v3280 = vsel %vm2728, %v2004, %v3004
  %v3281 = vsel %vm2729, %v2007, %v3005
  %v3282 = vsel %vm2730, %v2012, %v3006
  %v3283 = vsel %vm2731, %v2015, %v3007
  %v3284 = vsel %vm2732, %v2020, %v3008
  %v3285 = vsel %vm2733, %v2023, %v3009
  %v3286 = vsel %vm2734, %v2028, %v3010
  %v3287 = vsel %vm2735, %v2031, %v3011
  %v3288 = vsel %vm2736, %v2036, %v3012
  %v3289 = vsel %vm2737, %v2039, %v3013
  %v3290 = vsel %vm2738, %v2044, %v3014
  %v3291 = vsel %vm2739, %v2047, %v3015
  %v3292 = vsel %vm2740, %v2052, %v3016
  %v3293 = vsel %vm2741, %v2055, %v3017
  %v3294 = vsel %vm2742, %v2060, %v3018
  %v3295 = vsel %vm2743, %v2063, %v3019
  %v3296 = vsel %vm2744, %v2068, %v3020
  %v3297 = vsel %vm2745, %v2071, %v3021
  %v3298 = vsel %vm2746, %v2076, %v3022
  %v3299 = vsel %vm2747, %v2079, %v3023
  %v3300 = vsel %vm2748, %v2084, %v3024
  %v3301 = vsel %vm2749, %v2087, %v3025
  %v3302 = vsel %vm2750, %v2092, %v3026
  %v3303 = vsel %vm2751, %v2095, %v3027
  %v3304 = vsel %vm2752, %v2100, %v3028
  %v3305 = vsel %vm2753, %v2103, %v3029
  %v3306 = vsel %vm2754, %v2108, %v3030
  %v3307 = vsel %vm2755, %v2111, %v3031
  %v3308 = vsel %vm2756, %v2116, %v3032
  %v3309 = vsel %vm2757, %v2119, %v3033
  %v3310 = vsel %vm2758, %v2124, %v3034
  %v3311 = vsel %vm2759, %v2127, %v3035
  %v3312 = vsel %vm2760, %v2132, %v3036
  %v3313 = vsel %vm2761, %v2135, %v3037
  %v3314 = vsel %vm2762, %v2140, %v3038
  %v3315 = vsel %vm2763, %v2143, %v3039
  %v3316 = vsel %vm2764, %v2148, %v3040
  %v3317 = vsel %vm2765, %v2151, %v3041
  %v3318 = vsel %vm2766, %v2156, %v3042
  %v3319 = vsel %vm2767, %v2159, %v3043
  %v3320 = vsel %vm2768, %v2164, %v3044
  %v3321 = vsel %vm2769, %v2167, %v3045
  %v3322 = vsel %vm2770, %v2172, %v3046
  %v3323 = vsel %vm2771, %v2175, %v3047
  %v3324 = vsel %vm2772, %v2180, %v3048
  %v3325 = vsel %vm2773, %v2183, %v3049
  %v3326 = vsel %vm2774, %v2188, %v3050
  %v3327 = vsel %vm2775, %v2191, %v3051
  %v3328 = vsel %vm2776, %v2196, %v3052
  %v3329 = vsel %vm2777, %v2199, %v3053
  %v3330 = vsel %vm2778, %v2204, %v3054
  %v3331 = vsel %vm2779, %v2207, %v3055
  %v3332 = vsel %vm2780, %v2212, %v3056
  %v3333 = vsel %vm2781, %v2215, %v3057
  %v3334 = vsel %vm2782, %v2220, %v3058
  %v3335 = vsel %vm2783, %v2223, %v3059
  %v3336 = vsel %vm2784, %v2228, %v3060
  %v3337 = vsel %vm2785, %v2231, %v3061
  %v3338 = vsel %vm2786, %v2236, %v3062
  %v3339 = vsel %vm2787, %v2239, %v3063
  %v3340 = vsel %vm2788, %v2244, %v3064
  %v3341 = vsel %vm2789, %v2247, %v3065
  %v3342 = vsel %vm2790, %v2252, %v3066
  %v3343 = vsel %vm2791, %v2255, %v3067
  %v3344 = vsel %vm2792, %v2260, %v3068
  %v3345 = vsel %vm2793, %v2263, %v3069
  %v3346 = vsel %vm2794, %v2268, %v3070
  %v3347 = vsel %vm2795, %v2271, %v3071
  %v3348 = vsel %vm2796, %v2276, %v3072
  %v3349 = vsel %vm2797, %v2279, %v3073
  %v3350 = vsel %vm2798, %v2284, %v3074
  %v3351 = vsel %vm2799, %v2287, %v3075
  %v3352 = vsel %vm2800, %v2292, %v3076
  %v3353 = vsel %vm2801, %v2295, %v3077
  %v3354 = vsel %vm2802, %v2300, %v3078
  %v3355 = vsel %vm2803, %v2303, %v3079
  %v3356 = vsel %vm2804, %v2308, %v3080
  %v3357 = vsel %vm2805, %v2311, %v3081
  %v3358 = vsel %vm2806, %v2316, %v3082
  %v3359 = vsel %vm2807, %v2319, %v3083
  %v3360 = vsel %vm2808, %v2324, %v3084
  %v3361 = vsel %vm2809, %v2327, %v3085
  %v3362 = vsel %vm2810, %v2332, %v3086
  %v3363 = vsel %vm2811, %v2335, %v3087
  %v3364 = vsel %vm2812, %v2340, %v3088
  %v3365 = vsel %vm2813, %v2343, %v3089
  %v3366 = vsel %vm2814, %v2348, %v3090
  %v3367 = vsel %vm2815, %v2351, %v3091
  %v3368 = vsel %vm2816, %v2356, %v3092
  %v3369 = vsel %vm2817, %v2359, %v3093
  %v3370 = vsel %vm2818, %v2364, %v3094
  %v3371 = vsel %vm2819, %v2367, %v3095
  %v3372 = vsel %vm2820, %v2372, %v3096
  %v3373 = vsel %vm2821, %v2375, %v3097
  %v3374 = vsel %vm2822, %v2380, %v3098
  %v3375 = vsel %vm2823, %v2383, %v3099
  %v3376 = vsel %vm2824, %v2388, %v3100
  %v3377 = vsel %vm2825, %v2391, %v3101
  %v3378 = vsel %vm2826, %v2396, %v3102
  %v3379 = vsel %vm2827, %v2399, %v3103
  %v3380 = vsel %vm2828, %v2404, %v3104
  %v3381 = vsel %vm2829, %v2407, %v3105
  %v3382 = vsel %vm2830, %v2412, %v3106
  %v3383 = vsel %vm2831, %v2415, %v3107
  %v3384 = vsel %vm2832, %v2420, %v3108
  %v3385 = vsel %vm2833, %v2423, %v3109
  %v3386 = vsel %vm2834, %v2428, %v3110
  %v3387 = vsel %vm2835, %v2431, %v3111
  %v3388 = vsel %vm2836, %v2436, %v3112
  %v3389 = vsel %vm2837, %v2439, %v3113
  %v3390 = vsel %vm2838, %v2444, %v3114
  %v3391 = vsel %vm2839, %v2447, %v3115
  %v3392 = vsel %vm2840, %v2452, %v3116
  %v3393 = vsel %vm2841, %v2455, %v3117
  %v3394 = vsel %vm2842, %v2460, %v3118
  %v3395 = vsel %vm2843, %v2463, %v3119
  %v3396 = vsel %vm2844, %v2468, %v3120
  %v3397 = vsel %vm2845, %v2471, %v3121
  %v3398 = vsel %vm2846, %v2476, %v3122
  %v3399 = vsel %vm2847, %v2479, %v3123
  %v3400 = vsel %vm2848, %v2484, %v3124
  %v3401 = vsel %vm2849, %v2487, %v3125
  %v3402 = vsel %vm2850, %v2492, %v3126
  %v3403 = vsel %vm2851, %v2495, %v3127
  %v3404 = vsel %vm2852, %v2500, %v3128
  %v3405 = vsel %vm2853, %v2503, %v3129
  %v3406 = vsel %vm2854, %v2508, %v3130
  %v3407 = vsel %vm2855, %v2511, %v3131
  %v3408 = vsel %vm2856, %v2516, %v3132
  %v3409 = vsel %vm2857, %v2519, %v3133
  %v3410 = vsel %vm2858, %v2524, %v3134
  %v3411 = vsel %vm2859, %v2527, %v3135
  %v3412 = vsel %vm2860, %v2532, %v3136
  %v3413 = vsel %vm2861, %v2535, %v3137
  %v3414 = vsel %vm2862, %v2540, %v3138
  %v3415 = vsel %vm2863, %v2543, %v3139
  %v3416 = vsel %vm2864, %v2548, %v3140
  %v3417 = vsel %vm2865, %v2551, %v3141
  %v3418 = vsel %vm2866, %v2556, %v3142
  %v3419 = vsel %vm2867, %v2559, %v3143
  %v3420 = vsel %vm2868, %v2564, %v3144
  %v3421 = vsel %vm2869, %v2567, %v3145
  %v3422 = vsel %vm2870, %v2572, %v3146
  %v3423 = vsel %vm2871, %v2575, %v3147
  %v3424 = vsel %vm2872, %v2580, %v3148
  %v3425 = vsel %vm2873, %v2583, %v3149
  %v3426 = vsel %vm2874, %v2588, %v3150
  %v3427 = vsel %vm2875, %v2591, %v3151
  %v3428 = vsel %vm2876, %v2596, %v3152
  %v3429 = vsel %vm2877, %v2599, %v3153
  %vm3706 = vcmask 1046528
  %v3707 = vrot.slane %v3154, 1
  %v3708 = vrot.slane %v3155, 1
  %v3709 = vsel %vm3706, %v3707, %v3708
  %v3710 = vrot.slane %v3156, 1
  %v3711 = vsel %vm3706, %v3708, %v3710
  %v3712 = vrot.slane %v3157, 1
  %v3713 = vsel %vm3706, %v3710, %v3712
  %v3714 = vrot.slane %v3158, 1
  %v3715 = vsel %vm3706, %v3712, %v3714
  %v3716 = vrot.slane %v3159, 1
  %v3717 = vsel %vm3706, %v3714, %v3716
  %v3718 = vrot.slane %v3160, 1
  %v3719 = vsel %vm3706, %v3716, %v3718
  %v3720 = vrot.slane %v3161, 1
  %v3721 = vsel %vm3706, %v3718, %v3720
  %v3722 = vrot.slane %v3162, 1
  %v3723 = vsel %vm3706, %v3720, %v3722
  %v3724 = vrot.slane %v3163, 1
  %v3725 = vsel %vm3706, %v3722, %v3724
  %v3726 = vrot.slane %v3164, 1
  %v3727 = vsel %vm3706, %v3724, %v3726
  %v3728 = vrot.slane %v3165, 1
  %v3729 = vsel %vm3706, %v3726, %v3728
  %v3730 = vrot.slane %v3166, 1
  %v3731 = vsel %vm3706, %v3728, %v3730
  %v3732 = vrot.slane %v3167, 1
  %v3733 = vsel %vm3706, %v3730, %v3732
  %v3734 = vrot.slane %v3168, 1
  %v3735 = vsel %vm3706, %v3732, %v3734
  %v3736 = vrot.slane %v3169, 1
  %v3737 = vsel %vm3706, %v3734, %v3736
  %v3738 = vrot.slane %v3170, 1
  %v3739 = vsel %vm3706, %v3736, %v3738
  %v3740 = vrot.slane %v3171, 1
  %v3741 = vsel %vm3706, %v3738, %v3740
  %v3742 = vrot.slane %v3172, 1
  %v3743 = vsel %vm3706, %v3740, %v3742
  %v3744 = vrot.slane %v3173, 1
  %v3745 = vsel %vm3706, %v3742, %v3744
  %v3746 = vrot.slane %v3174, 1
  %v3747 = vsel %vm3706, %v3744, %v3746
  %v3748 = vrot.slane %v3175, 1
  %v3749 = vsel %vm3706, %v3746, %v3748
  %v3750 = vrot.slane %v3176, 1
  %v3751 = vsel %vm3706, %v3748, %v3750
  %v3752 = vrot.slane %v3177, 1
  %v3753 = vsel %vm3706, %v3750, %v3752
  %v3754 = vrot.slane %v3178, 1
  %v3755 = vsel %vm3706, %v3752, %v3754
  %v3756 = vrot.slane %v3179, 1
  %v3757 = vsel %vm3706, %v3754, %v3756
  %v3758 = vrot.slane %v3180, 1
  %v3759 = vsel %vm3706, %v3756, %v3758
  %v3760 = vrot.slane %v3181, 1
  %v3761 = vsel %vm3706, %v3758, %v3760
  %v3762 = vrot.slane %v3182, 1
  %v3763 = vsel %vm3706, %v3760, %v3762
  %v3764 = vrot.slane %v3183, 1
  %v3765 = vsel %vm3706, %v3762, %v3764
  %v3766 = vrot.slane %v3184, 1
  %v3767 = vsel %vm3706, %v3764, %v3766
  %v3768 = vrot.slane %v3185, 1
  %v3769 = vsel %vm3706, %v3766, %v3768
  %v3770 = vrot.slane %v3186, 1
  %v3771 = vsel %vm3706, %v3768, %v3770
  %v3772 = vrot.slane %v3187, 1
  %v3773 = vsel %vm3706, %v3770, %v3772
  %v3774 = vrot.slane %v3188, 1
  %v3775 = vsel %vm3706, %v3772, %v3774
  %v3776 = vrot.slane %v3189, 1
  %v3777 = vsel %vm3706, %v3774, %v3776
  %v3778 = vrot.slane %v3190, 1
  %v3779 = vsel %vm3706, %v3776, %v3778
  %v3780 = vrot.slane %v3191, 1
  %v3781 = vsel %vm3706, %v3778, %v3780
  %v3782 = vrot.slane %v3192, 1
  %v3783 = vsel %vm3706, %v3780, %v3782
  %v3784 = vrot.slane %v3193, 1
  %v3785 = vsel %vm3706, %v3782, %v3784
  %v3786 = vrot.slane %v3194, 1
  %v3787 = vsel %vm3706, %v3784, %v3786
  %v3788 = vrot.slane %v3195, 1
  %v3789 = vsel %vm3706, %v3786, %v3788
  %v3790 = vrot.slane %v3196, 1
  %v3791 = vsel %vm3706, %v3788, %v3790
  %v3792 = vrot.slane %v3197, 1
  %v3793 = vsel %vm3706, %v3790, %v3792
  %v3794 = vrot.slane %v3198, 1
  %v3795 = vsel %vm3706, %v3792, %v3794
  %v3796 = vrot.slane %v3199, 1
  %v3797 = vsel %vm3706, %v3794, %v3796
  %v3798 = vrot.slane %v3200, 1
  %v3799 = vsel %vm3706, %v3796, %v3798
  %v3800 = vrot.slane %v3201, 1
  %v3801 = vsel %vm3706, %v3798, %v3800
  %v3802 = vrot.slane %v3202, 1
  %v3803 = vsel %vm3706, %v3800, %v3802
  %v3804 = vrot.slane %v3203, 1
  %v3805 = vsel %vm3706, %v3802, %v3804
  %v3806 = vrot.slane %v3204, 1
  %v3807 = vsel %vm3706, %v3804, %v3806
  %v3808 = vrot.slane %v3205, 1
  %v3809 = vsel %vm3706, %v3806, %v3808
  %v3810 = vrot.slane %v3206, 1
  %v3811 = vsel %vm3706, %v3808, %v3810
  %v3812 = vrot.slane %v3207, 1
  %v3813 = vsel %vm3706, %v3810, %v3812
  %v3814 = vrot.slane %v3208, 1
  %v3815 = vsel %vm3706, %v3812, %v3814
  %v3816 = vrot.slane %v3209, 1
  %v3817 = vsel %vm3706, %v3814, %v3816
  %v3818 = vrot.slane %v3210, 1
  %v3819 = vsel %vm3706, %v3816, %v3818
  %v3820 = vrot.slane %v3211, 1
  %v3821 = vsel %vm3706, %v3818, %v3820
  %v3822 = vrot.slane %v3212, 1
  %v3823 = vsel %vm3706, %v3820, %v3822
  %v3824 = vrot.slane %v3213, 1
  %v3825 = vsel %vm3706, %v3822, %v3824
  %v3826 = vrot.slane %v3214, 1
  %v3827 = vsel %vm3706, %v3824, %v3826
  %v3828 = vrot.slane %v3215, 1
  %v3829 = vsel %vm3706, %v3826, %v3828
  %v3830 = vrot.slane %v3216, 1
  %v3831 = vsel %vm3706, %v3828, %v3830
  %v3832 = vrot.slane %v3217, 1
  %v3833 = vsel %vm3706, %v3830, %v3832
  %v3834 = vrot.slane %v3218, 1
  %v3835 = vsel %vm3706, %v3832, %v3834
  %v3836 = vrot.slane %v3219, 1
  %v3837 = vsel %vm3706, %v3834, %v3836
  %v3838 = vrot.slane %v3220, 1
  %v3839 = vsel %vm3706, %v3836, %v3838
  %v3840 = vrot.slane %v3221, 1
  %v3841 = vsel %vm3706, %v3838, %v3840
  %v3842 = vrot.slane %v3222, 1
  %v3843 = vsel %vm3706, %v3840, %v3842
  %v3844 = vrot.slane %v3223, 1
  %v3845 = vsel %vm3706, %v3842, %v3844
  %v3846 = vrot.slane %v3224, 1
  %v3847 = vsel %vm3706, %v3844, %v3846
  %v3848 = vrot.slane %v3225, 1
  %v3849 = vsel %vm3706, %v3846, %v3848
  %v3850 = vrot.slane %v3226, 1
  %v3851 = vsel %vm3706, %v3848, %v3850
  %v3852 = vrot.slane %v3227, 1
  %v3853 = vsel %vm3706, %v3850, %v3852
  %v3854 = vrot.slane %v3228, 1
  %v3855 = vsel %vm3706, %v3852, %v3854
  %v3856 = vrot.slane %v3229, 1
  %v3857 = vsel %vm3706, %v3854, %v3856
  %v3858 = vrot.slane %v3230, 1
  %v3859 = vsel %vm3706, %v3856, %v3858
  %v3860 = vrot.slane %v3231, 1
  %v3861 = vsel %vm3706, %v3858, %v3860
  %v3862 = vrot.slane %v3232, 1
  %v3863 = vsel %vm3706, %v3860, %v3862
  %v3864 = vrot.slane %v3233, 1
  %v3865 = vsel %vm3706, %v3862, %v3864
  %v3866 = vrot.slane %v3234, 1
  %v3867 = vsel %vm3706, %v3864, %v3866
  %v3868 = vrot.slane %v3235, 1
  %v3869 = vsel %vm3706, %v3866, %v3868
  %v3870 = vrot.slane %v3236, 1
  %v3871 = vsel %vm3706, %v3868, %v3870
  %v3872 = vrot.slane %v3237, 1
  %v3873 = vsel %vm3706, %v3870, %v3872
  %v3874 = vrot.slane %v3238, 1
  %v3875 = vsel %vm3706, %v3872, %v3874
  %v3876 = vrot.slane %v3239, 1
  %v3877 = vsel %vm3706, %v3874, %v3876
  %v3878 = vrot.slane %v3240, 1
  %v3879 = vsel %vm3706, %v3876, %v3878
  %v3880 = vrot.slane %v3241, 1
  %v3881 = vsel %vm3706, %v3878, %v3880
  %v3882 = vrot.slane %v3242, 1
  %v3883 = vsel %vm3706, %v3880, %v3882
  %v3884 = vrot.slane %v3243, 1
  %v3885 = vsel %vm3706, %v3882, %v3884
  %v3886 = vrot.slane %v3244, 1
  %v3887 = vsel %vm3706, %v3884, %v3886
  %v3888 = vrot.slane %v3245, 1
  %v3889 = vsel %vm3706, %v3886, %v3888
  %v3890 = vrot.slane %v3246, 1
  %v3891 = vsel %vm3706, %v3888, %v3890
  %v3892 = vrot.slane %v3247, 1
  %v3893 = vsel %vm3706, %v3890, %v3892
  %v3894 = vrot.slane %v3248, 1
  %v3895 = vsel %vm3706, %v3892, %v3894
  %v3896 = vrot.slane %v3249, 1
  %v3897 = vsel %vm3706, %v3894, %v3896
  %v3898 = vrot.slane %v3250, 1
  %v3899 = vsel %vm3706, %v3896, %v3898
  %v3900 = vrot.slane %v3251, 1
  %v3901 = vsel %vm3706, %v3898, %v3900
  %v3902 = vrot.slane %v3252, 1
  %v3903 = vsel %vm3706, %v3900, %v3902
  %v3904 = vrot.slane %v3253, 1
  %v3905 = vsel %vm3706, %v3902, %v3904
  %v3906 = vrot.slane %v3254, 1
  %v3907 = vsel %vm3706, %v3904, %v3906
  %v3908 = vrot.slane %v3255, 1
  %v3909 = vsel %vm3706, %v3906, %v3908
  %v3910 = vrot.slane %v3256, 1
  %v3911 = vsel %vm3706, %v3908, %v3910
  %v3912 = vrot.slane %v3257, 1
  %v3913 = vsel %vm3706, %v3910, %v3912
  %v3914 = vrot.slane %v3258, 1
  %v3915 = vsel %vm3706, %v3912, %v3914
  %v3916 = vrot.slane %v3259, 1
  %v3917 = vsel %vm3706, %v3914, %v3916
  %v3918 = vrot.slane %v3260, 1
  %v3919 = vsel %vm3706, %v3916, %v3918
  %v3920 = vrot.slane %v3261, 1
  %v3921 = vsel %vm3706, %v3918, %v3920
  %v3922 = vrot.slane %v3262, 1
  %v3923 = vsel %vm3706, %v3920, %v3922
  %v3924 = vrot.slane %v3263, 1
  %v3925 = vsel %vm3706, %v3922, %v3924
  %v3926 = vrot.slane %v3264, 1
  %v3927 = vsel %vm3706, %v3924, %v3926
  %v3928 = vrot.slane %v3265, 1
  %v3929 = vsel %vm3706, %v3926, %v3928
  %v3930 = vrot.slane %v3266, 1
  %v3931 = vsel %vm3706, %v3928, %v3930
  %v3932 = vrot.slane %v3267, 1
  %v3933 = vsel %vm3706, %v3930, %v3932
  %v3934 = vrot.slane %v3268, 1
  %v3935 = vsel %vm3706, %v3932, %v3934
  %v3936 = vrot.slane %v3269, 1
  %v3937 = vsel %vm3706, %v3934, %v3936
  %v3938 = vrot.slane %v3270, 1
  %v3939 = vsel %vm3706, %v3936, %v3938
  %v3940 = vrot.slane %v3271, 1
  %v3941 = vsel %vm3706, %v3938, %v3940
  %v3942 = vrot.slane %v3272, 1
  %v3943 = vsel %vm3706, %v3940, %v3942
  %v3944 = vrot.slane %v3273, 1
  %v3945 = vsel %vm3706, %v3942, %v3944
  %v3946 = vrot.slane %v3274, 1
  %v3947 = vsel %vm3706, %v3944, %v3946
  %v3948 = vrot.slane %v3275, 1
  %v3949 = vsel %vm3706, %v3946, %v3948
  %v3950 = vrot.slane %v3276, 1
  %v3951 = vsel %vm3706, %v3948, %v3950
  %v3952 = vrot.slane %v3277, 1
  %v3953 = vsel %vm3706, %v3950, %v3952
  %v3954 = vrot.slane %v3278, 1
  %v3955 = vsel %vm3706, %v3952, %v3954
  %v3956 = vrot.slane %v3279, 1
  %v3957 = vsel %vm3706, %v3954, %v3956
  %v3958 = vrot.slane %v3280, 1
  %v3959 = vsel %vm3706, %v3956, %v3958
  %v3960 = vrot.slane %v3281, 1
  %v3961 = vsel %vm3706, %v3958, %v3960
  %v3962 = vrot.slane %v3282, 1
  %v3963 = vsel %vm3706, %v3960, %v3962
  %v3964 = vrot.slane %v3283, 1
  %v3965 = vsel %vm3706, %v3962, %v3964
  %v3966 = vrot.slane %v3284, 1
  %v3967 = vsel %vm3706, %v3964, %v3966
  %v3968 = vrot.slane %v3285, 1
  %v3969 = vsel %vm3706, %v3966, %v3968
  %v3970 = vrot.slane %v3286, 1
  %v3971 = vsel %vm3706, %v3968, %v3970
  %v3972 = vrot.slane %v3287, 1
  %v3973 = vsel %vm3706, %v3970, %v3972
  %v3974 = vrot.slane %v3288, 1
  %v3975 = vsel %vm3706, %v3972, %v3974
  %v3976 = vrot.slane %v3289, 1
  %v3977 = vsel %vm3706, %v3974, %v3976
  %v3978 = vrot.slane %v3290, 1
  %v3979 = vsel %vm3706, %v3976, %v3978
  %v3980 = vrot.slane %v3291, 1
  %v3981 = vsel %vm3706, %v3978, %v3980
  %v3982 = vrot.slane %v3292, 1
  %v3983 = vsel %vm3706, %v3980, %v3982
  %v3984 = vrot.slane %v3293, 1
  %v3985 = vsel %vm3706, %v3982, %v3984
  %v3986 = vrot.slane %v3294, 1
  %v3987 = vsel %vm3706, %v3984, %v3986
  %v3988 = vrot.slane %v3295, 1
  %v3989 = vsel %vm3706, %v3986, %v3988
  %v3990 = vrot.slane %v3296, 1
  %v3991 = vsel %vm3706, %v3988, %v3990
  %v3992 = vrot.slane %v3297, 1
  %v3993 = vsel %vm3706, %v3990, %v3992
  %v3994 = vrot.slane %v3298, 1
  %v3995 = vsel %vm3706, %v3992, %v3994
  %v3996 = vrot.slane %v3299, 1
  %v3997 = vsel %vm3706, %v3994, %v3996
  %v3998 = vrot.slane %v3300, 1
  %v3999 = vsel %vm3706, %v3996, %v3998
  %v4000 = vrot.slane %v3301, 1
  %v4001 = vsel %vm3706, %v3998, %v4000
  %v4002 = vrot.slane %v3302, 1
  %v4003 = vsel %vm3706, %v4000, %v4002
  %v4004 = vrot.slane %v3303, 1
  %v4005 = vsel %vm3706, %v4002, %v4004
  %v4006 = vrot.slane %v3304, 1
  %v4007 = vsel %vm3706, %v4004, %v4006
  %v4008 = vrot.slane %v3305, 1
  %v4009 = vsel %vm3706, %v4006, %v4008
  %v4010 = vrot.slane %v3306, 1
  %v4011 = vsel %vm3706, %v4008, %v4010
  %v4012 = vrot.slane %v3307, 1
  %v4013 = vsel %vm3706, %v4010, %v4012
  %v4014 = vrot.slane %v3308, 1
  %v4015 = vsel %vm3706, %v4012, %v4014
  %v4016 = vrot.slane %v3309, 1
  %v4017 = vsel %vm3706, %v4014, %v4016
  %v4018 = vrot.slane %v3310, 1
  %v4019 = vsel %vm3706, %v4016, %v4018
  %v4020 = vrot.slane %v3311, 1
  %v4021 = vsel %vm3706, %v4018, %v4020
  %v4022 = vrot.slane %v3312, 1
  %v4023 = vsel %vm3706, %v4020, %v4022
  %v4024 = vrot.slane %v3313, 1
  %v4025 = vsel %vm3706, %v4022, %v4024
  %v4026 = vrot.slane %v3314, 1
  %v4027 = vsel %vm3706, %v4024, %v4026
  %v4028 = vrot.slane %v3315, 1
  %v4029 = vsel %vm3706, %v4026, %v4028
  %v4030 = vrot.slane %v3316, 1
  %v4031 = vsel %vm3706, %v4028, %v4030
  %v4032 = vrot.slane %v3317, 1
  %v4033 = vsel %vm3706, %v4030, %v4032
  %v4034 = vrot.slane %v3318, 1
  %v4035 = vsel %vm3706, %v4032, %v4034
  %v4036 = vrot.slane %v3319, 1
  %v4037 = vsel %vm3706, %v4034, %v4036
  %v4038 = vrot.slane %v3320, 1
  %v4039 = vsel %vm3706, %v4036, %v4038
  %v4040 = vrot.slane %v3321, 1
  %v4041 = vsel %vm3706, %v4038, %v4040
  %v4042 = vrot.slane %v3322, 1
  %v4043 = vsel %vm3706, %v4040, %v4042
  %v4044 = vrot.slane %v3323, 1
  %v4045 = vsel %vm3706, %v4042, %v4044
  %v4046 = vrot.slane %v3324, 1
  %v4047 = vsel %vm3706, %v4044, %v4046
  %v4048 = vrot.slane %v3325, 1
  %v4049 = vsel %vm3706, %v4046, %v4048
  %v4050 = vrot.slane %v3326, 1
  %v4051 = vsel %vm3706, %v4048, %v4050
  %v4052 = vrot.slane %v3327, 1
  %v4053 = vsel %vm3706, %v4050, %v4052
  %v4054 = vrot.slane %v3328, 1
  %v4055 = vsel %vm3706, %v4052, %v4054
  %v4056 = vrot.slane %v3329, 1
  %v4057 = vsel %vm3706, %v4054, %v4056
  %v4058 = vrot.slane %v3330, 1
  %v4059 = vsel %vm3706, %v4056, %v4058
  %v4060 = vrot.slane %v3331, 1
  %v4061 = vsel %vm3706, %v4058, %v4060
  %v4062 = vrot.slane %v3332, 1
  %v4063 = vsel %vm3706, %v4060, %v4062
  %v4064 = vrot.slane %v3333, 1
  %v4065 = vsel %vm3706, %v4062, %v4064
  %v4066 = vrot.slane %v3334, 1
  %v4067 = vsel %vm3706, %v4064, %v4066
  %v4068 = vrot.slane %v3335, 1
  %v4069 = vsel %vm3706, %v4066, %v4068
  %v4070 = vrot.slane %v3336, 1
  %v4071 = vsel %vm3706, %v4068, %v4070
  %v4072 = vrot.slane %v3337, 1
  %v4073 = vsel %vm3706, %v4070, %v4072
  %v4074 = vrot.slane %v3338, 1
  %v4075 = vsel %vm3706, %v4072, %v4074
  %v4076 = vrot.slane %v3339, 1
  %v4077 = vsel %vm3706, %v4074, %v4076
  %v4078 = vrot.slane %v3340, 1
  %v4079 = vsel %vm3706, %v4076, %v4078
  %v4080 = vrot.slane %v3341, 1
  %v4081 = vsel %vm3706, %v4078, %v4080
  %v4082 = vrot.slane %v3342, 1
  %v4083 = vsel %vm3706, %v4080, %v4082
  %v4084 = vrot.slane %v3343, 1
  %v4085 = vsel %vm3706, %v4082, %v4084
  %v4086 = vrot.slane %v3344, 1
  %v4087 = vsel %vm3706, %v4084, %v4086
  %v4088 = vrot.slane %v3345, 1
  %v4089 = vsel %vm3706, %v4086, %v4088
  %v4090 = vrot.slane %v3346, 1
  %v4091 = vsel %vm3706, %v4088, %v4090
  %v4092 = vrot.slane %v3347, 1
  %v4093 = vsel %vm3706, %v4090, %v4092
  %v4094 = vrot.slane %v3348, 1
  %v4095 = vsel %vm3706, %v4092, %v4094
  %v4096 = vrot.slane %v3349, 1
  %v4097 = vsel %vm3706, %v4094, %v4096
  %v4098 = vrot.slane %v3350, 1
  %v4099 = vsel %vm3706, %v4096, %v4098
  %v4100 = vrot.slane %v3351, 1
  %v4101 = vsel %vm3706, %v4098, %v4100
  %v4102 = vrot.slane %v3352, 1
  %v4103 = vsel %vm3706, %v4100, %v4102
  %v4104 = vrot.slane %v3353, 1
  %v4105 = vsel %vm3706, %v4102, %v4104
  %v4106 = vrot.slane %v3354, 1
  %v4107 = vsel %vm3706, %v4104, %v4106
  %v4108 = vrot.slane %v3355, 1
  %v4109 = vsel %vm3706, %v4106, %v4108
  %v4110 = vrot.slane %v3356, 1
  %v4111 = vsel %vm3706, %v4108, %v4110
  %v4112 = vrot.slane %v3357, 1
  %v4113 = vsel %vm3706, %v4110, %v4112
  %v4114 = vrot.slane %v3358, 1
  %v4115 = vsel %vm3706, %v4112, %v4114
  %v4116 = vrot.slane %v3359, 1
  %v4117 = vsel %vm3706, %v4114, %v4116
  %v4118 = vrot.slane %v3360, 1
  %v4119 = vsel %vm3706, %v4116, %v4118
  %v4120 = vrot.slane %v3361, 1
  %v4121 = vsel %vm3706, %v4118, %v4120
  %v4122 = vrot.slane %v3362, 1
  %v4123 = vsel %vm3706, %v4120, %v4122
  %v4124 = vrot.slane %v3363, 1
  %v4125 = vsel %vm3706, %v4122, %v4124
  %v4126 = vrot.slane %v3364, 1
  %v4127 = vsel %vm3706, %v4124, %v4126
  %v4128 = vrot.slane %v3365, 1
  %v4129 = vsel %vm3706, %v4126, %v4128
  %v4130 = vrot.slane %v3366, 1
  %v4131 = vsel %vm3706, %v4128, %v4130
  %v4132 = vrot.slane %v3367, 1
  %v4133 = vsel %vm3706, %v4130, %v4132
  %v4134 = vrot.slane %v3368, 1
  %v4135 = vsel %vm3706, %v4132, %v4134
  %v4136 = vrot.slane %v3369, 1
  %v4137 = vsel %vm3706, %v4134, %v4136
  %v4138 = vrot.slane %v3370, 1
  %v4139 = vsel %vm3706, %v4136, %v4138
  %v4140 = vrot.slane %v3371, 1
  %v4141 = vsel %vm3706, %v4138, %v4140
  %v4142 = vrot.slane %v3372, 1
  %v4143 = vsel %vm3706, %v4140, %v4142
  %v4144 = vrot.slane %v3373, 1
  %v4145 = vsel %vm3706, %v4142, %v4144
  %v4146 = vrot.slane %v3374, 1
  %v4147 = vsel %vm3706, %v4144, %v4146
  %v4148 = vrot.slane %v3375, 1
  %v4149 = vsel %vm3706, %v4146, %v4148
  %v4150 = vrot.slane %v3376, 1
  %v4151 = vsel %vm3706, %v4148, %v4150
  %v4152 = vrot.slane %v3377, 1
  %v4153 = vsel %vm3706, %v4150, %v4152
  %v4154 = vrot.slane %v3378, 1
  %v4155 = vsel %vm3706, %v4152, %v4154
  %v4156 = vrot.slane %v3379, 1
  %v4157 = vsel %vm3706, %v4154, %v4156
  %v4158 = vrot.slane %v3380, 1
  %v4159 = vsel %vm3706, %v4156, %v4158
  %v4160 = vrot.slane %v3381, 1
  %v4161 = vsel %vm3706, %v4158, %v4160
  %v4162 = vrot.slane %v3382, 1
  %v4163 = vsel %vm3706, %v4160, %v4162
  %v4164 = vrot.slane %v3383, 1
  %v4165 = vsel %vm3706, %v4162, %v4164
  %v4166 = vrot.slane %v3384, 1
  %v4167 = vsel %vm3706, %v4164, %v4166
  %v4168 = vrot.slane %v3385, 1
  %v4169 = vsel %vm3706, %v4166, %v4168
  %v4170 = vrot.slane %v3386, 1
  %v4171 = vsel %vm3706, %v4168, %v4170
  %v4172 = vrot.slane %v3387, 1
  %v4173 = vsel %vm3706, %v4170, %v4172
  %v4174 = vrot.slane %v3388, 1
  %v4175 = vsel %vm3706, %v4172, %v4174
  %v4176 = vrot.slane %v3389, 1
  %v4177 = vsel %vm3706, %v4174, %v4176
  %v4178 = vrot.slane %v3390, 1
  %v4179 = vsel %vm3706, %v4176, %v4178
  %v4180 = vrot.slane %v3391, 1
  %v4181 = vsel %vm3706, %v4178, %v4180
  %v4182 = vrot.slane %v3392, 1
  %v4183 = vsel %vm3706, %v4180, %v4182
  %v4184 = vrot.slane %v3393, 1
  %v4185 = vsel %vm3706, %v4182, %v4184
  %v4186 = vrot.slane %v3394, 1
  %v4187 = vsel %vm3706, %v4184, %v4186
  %v4188 = vrot.slane %v3395, 1
  %v4189 = vsel %vm3706, %v4186, %v4188
  %v4190 = vrot.slane %v3396, 1
  %v4191 = vsel %vm3706, %v4188, %v4190
  %v4192 = vrot.slane %v3397, 1
  %v4193 = vsel %vm3706, %v4190, %v4192
  %v4194 = vrot.slane %v3398, 1
  %v4195 = vsel %vm3706, %v4192, %v4194
  %v4196 = vrot.slane %v3399, 1
  %v4197 = vsel %vm3706, %v4194, %v4196
  %v4198 = vrot.slane %v3400, 1
  %v4199 = vsel %vm3706, %v4196, %v4198
  %v4200 = vrot.slane %v3401, 1
  %v4201 = vsel %vm3706, %v4198, %v4200
  %v4202 = vrot.slane %v3402, 1
  %v4203 = vsel %vm3706, %v4200, %v4202
  %v4204 = vrot.slane %v3403, 1
  %v4205 = vsel %vm3706, %v4202, %v4204
  %v4206 = vrot.slane %v3404, 1
  %v4207 = vsel %vm3706, %v4204, %v4206
  %v4208 = vrot.slane %v3405, 1
  %v4209 = vsel %vm3706, %v4206, %v4208
  %v4210 = vrot.slane %v3406, 1
  %v4211 = vsel %vm3706, %v4208, %v4210
  %v4212 = vrot.slane %v3407, 1
  %v4213 = vsel %vm3706, %v4210, %v4212
  %v4214 = vrot.slane %v3408, 1
  %v4215 = vsel %vm3706, %v4212, %v4214
  %v4216 = vrot.slane %v3409, 1
  %v4217 = vsel %vm3706, %v4214, %v4216
  %v4218 = vrot.slane %v3410, 1
  %v4219 = vsel %vm3706, %v4216, %v4218
  %v4220 = vrot.slane %v3411, 1
  %v4221 = vsel %vm3706, %v4218, %v4220
  %v4222 = vrot.slane %v3412, 1
  %v4223 = vsel %vm3706, %v4220, %v4222
  %v4224 = vrot.slane %v3413, 1
  %v4225 = vsel %vm3706, %v4222, %v4224
  %v4226 = vrot.slane %v3414, 1
  %v4227 = vsel %vm3706, %v4224, %v4226
  %v4228 = vrot.slane %v3415, 1
  %v4229 = vsel %vm3706, %v4226, %v4228
  %v4230 = vrot.slane %v3416, 1
  %v4231 = vsel %vm3706, %v4228, %v4230
  %v4232 = vrot.slane %v3417, 1
  %v4233 = vsel %vm3706, %v4230, %v4232
  %v4234 = vrot.slane %v3418, 1
  %v4235 = vsel %vm3706, %v4232, %v4234
  %v4236 = vrot.slane %v3419, 1
  %v4237 = vsel %vm3706, %v4234, %v4236
  %v4238 = vrot.slane %v3420, 1
  %v4239 = vsel %vm3706, %v4236, %v4238
  %v4240 = vrot.slane %v3421, 1
  %v4241 = vsel %vm3706, %v4238, %v4240
  %v4242 = vrot.slane %v3422, 1
  %v4243 = vsel %vm3706, %v4240, %v4242
  %v4244 = vrot.slane %v3423, 1
  %v4245 = vsel %vm3706, %v4242, %v4244
  %v4246 = vrot.slane %v3424, 1
  %v4247 = vsel %vm3706, %v4244, %v4246
  %v4248 = vrot.slane %v3425, 1
  %v4249 = vsel %vm3706, %v4246, %v4248
  %v4250 = vrot.slane %v3426, 1
  %v4251 = vsel %vm3706, %v4248, %v4250
  %v4252 = vrot.slane %v3427, 1
  %v4253 = vsel %vm3706, %v4250, %v4252
  %v4254 = vrot.slane %v3428, 1
  %v4255 = vsel %vm3706, %v4252, %v4254
  %v4256 = vrot.slane %v3429, 1
  %v4257 = vsel %vm3706, %v4254, %v4256
  %v4534 = vmax.f32 %v3154, %v3709
  %v4535 = vmax.f32 %v3155, %v3711
  %v4536 = vmax.f32 %v3156, %v3713
  %v4537 = vmax.f32 %v3157, %v3715
  %v4538 = vmax.f32 %v3158, %v3717
  %v4539 = vmax.f32 %v3159, %v3719
  %v4540 = vmax.f32 %v3160, %v3721
  %v4541 = vmax.f32 %v3161, %v3723
  %v4542 = vmax.f32 %v3162, %v3725
  %v4543 = vmax.f32 %v3163, %v3727
  %v4544 = vmax.f32 %v3164, %v3729
  %v4545 = vmax.f32 %v3165, %v3731
  %v4546 = vmax.f32 %v3166, %v3733
  %v4547 = vmax.f32 %v3167, %v3735
  %v4548 = vmax.f32 %v3168, %v3737
  %v4549 = vmax.f32 %v3169, %v3739
  %v4550 = vmax.f32 %v3170, %v3741
  %v4551 = vmax.f32 %v3171, %v3743
  %v4552 = vmax.f32 %v3172, %v3745
  %v4553 = vmax.f32 %v3173, %v3747
  %v4554 = vmax.f32 %v3174, %v3749
  %v4555 = vmax.f32 %v3175, %v3751
  %v4556 = vmax.f32 %v3176, %v3753
  %v4557 = vmax.f32 %v3177, %v3755
  %v4558 = vmax.f32 %v3178, %v3757
  %v4559 = vmax.f32 %v3179, %v3759
  %v4560 = vmax.f32 %v3180, %v3761
  %v4561 = vmax.f32 %v3181, %v3763
  %v4562 = vmax.f32 %v3182, %v3765
  %v4563 = vmax.f32 %v3183, %v3767
  %v4564 = vmax.f32 %v3184, %v3769
  %v4565 = vmax.f32 %v3185, %v3771
  %v4566 = vmax.f32 %v3186, %v3773
  %v4567 = vmax.f32 %v3187, %v3775
  %v4568 = vmax.f32 %v3188, %v3777
  %v4569 = vmax.f32 %v3189, %v3779
  %v4570 = vmax.f32 %v3190, %v3781
  %v4571 = vmax.f32 %v3191, %v3783
  %v4572 = vmax.f32 %v3192, %v3785
  %v4573 = vmax.f32 %v3193, %v3787
  %v4574 = vmax.f32 %v3194, %v3789
  %v4575 = vmax.f32 %v3195, %v3791
  %v4576 = vmax.f32 %v3196, %v3793
  %v4577 = vmax.f32 %v3197, %v3795
  %v4578 = vmax.f32 %v3198, %v3797
  %v4579 = vmax.f32 %v3199, %v3799
  %v4580 = vmax.f32 %v3200, %v3801
  %v4581 = vmax.f32 %v3201, %v3803
  %v4582 = vmax.f32 %v3202, %v3805
  %v4583 = vmax.f32 %v3203, %v3807
  %v4584 = vmax.f32 %v3204, %v3809
  %v4585 = vmax.f32 %v3205, %v3811
  %v4586 = vmax.f32 %v3206, %v3813
  %v4587 = vmax.f32 %v3207, %v3815
  %v4588 = vmax.f32 %v3208, %v3817
  %v4589 = vmax.f32 %v3209, %v3819
  %v4590 = vmax.f32 %v3210, %v3821
  %v4591 = vmax.f32 %v3211, %v3823
  %v4592 = vmax.f32 %v3212, %v3825
  %v4593 = vmax.f32 %v3213, %v3827
  %v4594 = vmax.f32 %v3214, %v3829
  %v4595 = vmax.f32 %v3215, %v3831
  %v4596 = vmax.f32 %v3216, %v3833
  %v4597 = vmax.f32 %v3217, %v3835
  %v4598 = vmax.f32 %v3218, %v3837
  %v4599 = vmax.f32 %v3219, %v3839
  %v4600 = vmax.f32 %v3220, %v3841
  %v4601 = vmax.f32 %v3221, %v3843
  %v4602 = vmax.f32 %v3222, %v3845
  %v4603 = vmax.f32 %v3223, %v3847
  %v4604 = vmax.f32 %v3224, %v3849
  %v4605 = vmax.f32 %v3225, %v3851
  %v4606 = vmax.f32 %v3226, %v3853
  %v4607 = vmax.f32 %v3227, %v3855
  %v4608 = vmax.f32 %v3228, %v3857
  %v4609 = vmax.f32 %v3229, %v3859
  %v4610 = vmax.f32 %v3230, %v3861
  %v4611 = vmax.f32 %v3231, %v3863
  %v4612 = vmax.f32 %v3232, %v3865
  %v4613 = vmax.f32 %v3233, %v3867
  %v4614 = vmax.f32 %v3234, %v3869
  %v4615 = vmax.f32 %v3235, %v3871
  %v4616 = vmax.f32 %v3236, %v3873
  %v4617 = vmax.f32 %v3237, %v3875
  %v4618 = vmax.f32 %v3238, %v3877
  %v4619 = vmax.f32 %v3239, %v3879
  %v4620 = vmax.f32 %v3240, %v3881
  %v4621 = vmax.f32 %v3241, %v3883
  %v4622 = vmax.f32 %v3242, %v3885
  %v4623 = vmax.f32 %v3243, %v3887
  %v4624 = vmax.f32 %v3244, %v3889
  %v4625 = vmax.f32 %v3245, %v3891
  %v4626 = vmax.f32 %v3246, %v3893
  %v4627 = vmax.f32 %v3247, %v3895
  %v4628 = vmax.f32 %v3248, %v3897
  %v4629 = vmax.f32 %v3249, %v3899
  %v4630 = vmax.f32 %v3250, %v3901
  %v4631 = vmax.f32 %v3251, %v3903
  %v4632 = vmax.f32 %v3252, %v3905
  %v4633 = vmax.f32 %v3253, %v3907
  %v4634 = vmax.f32 %v3254, %v3909
  %v4635 = vmax.f32 %v3255, %v3911
  %v4636 = vmax.f32 %v3256, %v3913
  %v4637 = vmax.f32 %v3257, %v3915
  %v4638 = vmax.f32 %v3258, %v3917
  %v4639 = vmax.f32 %v3259, %v3919
  %v4640 = vmax.f32 %v3260, %v3921
  %v4641 = vmax.f32 %v3261, %v3923
  %v4642 = vmax.f32 %v3262, %v3925
  %v4643 = vmax.f32 %v3263, %v3927
  %v4644 = vmax.f32 %v3264, %v3929
  %v4645 = vmax.f32 %v3265, %v3931
  %v4646 = vmax.f32 %v3266, %v3933
  %v4647 = vmax.f32 %v3267, %v3935
  %v4648 = vmax.f32 %v3268, %v3937
  %v4649 = vmax.f32 %v3269, %v3939
  %v4650 = vmax.f32 %v3270, %v3941
  %v4651 = vmax.f32 %v3271, %v3943
  %v4652 = vmax.f32 %v3272, %v3945
  %v4653 = vmax.f32 %v3273, %v3947
  %v4654 = vmax.f32 %v3274, %v3949
  %v4655 = vmax.f32 %v3275, %v3951
  %v4656 = vmax.f32 %v3276, %v3953
  %v4657 = vmax.f32 %v3277, %v3955
  %v4658 = vmax.f32 %v3278, %v3957
  %v4659 = vmax.f32 %v3279, %v3959
  %v4660 = vmax.f32 %v3280, %v3961
  %v4661 = vmax.f32 %v3281, %v3963
  %v4662 = vmax.f32 %v3282, %v3965
  %v4663 = vmax.f32 %v3283, %v3967
  %v4664 = vmax.f32 %v3284, %v3969
  %v4665 = vmax.f32 %v3285, %v3971
  %v4666 = vmax.f32 %v3286, %v3973
  %v4667 = vmax.f32 %v3287, %v3975
  %v4668 = vmax.f32 %v3288, %v3977
  %v4669 = vmax.f32 %v3289, %v3979
  %v4670 = vmax.f32 %v3290, %v3981
  %v4671 = vmax.f32 %v3291, %v3983
  %v4672 = vmax.f32 %v3292, %v3985
  %v4673 = vmax.f32 %v3293, %v3987
  %v4674 = vmax.f32 %v3294, %v3989
  %v4675 = vmax.f32 %v3295, %v3991
  %v4676 = vmax.f32 %v3296, %v3993
  %v4677 = vmax.f32 %v3297, %v3995
  %v4678 = vmax.f32 %v3298, %v3997
  %v4679 = vmax.f32 %v3299, %v3999
  %v4680 = vmax.f32 %v3300, %v4001
  %v4681 = vmax.f32 %v3301, %v4003
  %v4682 = vmax.f32 %v3302, %v4005
  %v4683 = vmax.f32 %v3303, %v4007
  %v4684 = vmax.f32 %v3304, %v4009
  %v4685 = vmax.f32 %v3305, %v4011
  %v4686 = vmax.f32 %v3306, %v4013
  %v4687 = vmax.f32 %v3307, %v4015
  %v4688 = vmax.f32 %v3308, %v4017
  %v4689 = vmax.f32 %v3309, %v4019
  %v4690 = vmax.f32 %v3310, %v4021
  %v4691 = vmax.f32 %v3311, %v4023
  %v4692 = vmax.f32 %v3312, %v4025
  %v4693 = vmax.f32 %v3313, %v4027
  %v4694 = vmax.f32 %v3314, %v4029
  %v4695 = vmax.f32 %v3315, %v4031
  %v4696 = vmax.f32 %v3316, %v4033
  %v4697 = vmax.f32 %v3317, %v4035
  %v4698 = vmax.f32 %v3318, %v4037
  %v4699 = vmax.f32 %v3319, %v4039
  %v4700 = vmax.f32 %v3320, %v4041
  %v4701 = vmax.f32 %v3321, %v4043
  %v4702 = vmax.f32 %v3322, %v4045
  %v4703 = vmax.f32 %v3323, %v4047
  %v4704 = vmax.f32 %v3324, %v4049
  %v4705 = vmax.f32 %v3325, %v4051
  %v4706 = vmax.f32 %v3326, %v4053
  %v4707 = vmax.f32 %v3327, %v4055
  %v4708 = vmax.f32 %v3328, %v4057
  %v4709 = vmax.f32 %v3329, %v4059
  %v4710 = vmax.f32 %v3330, %v4061
  %v4711 = vmax.f32 %v3331, %v4063
  %v4712 = vmax.f32 %v3332, %v4065
  %v4713 = vmax.f32 %v3333, %v4067
  %v4714 = vmax.f32 %v3334, %v4069
  %v4715 = vmax.f32 %v3335, %v4071
  %v4716 = vmax.f32 %v3336, %v4073
  %v4717 = vmax.f32 %v3337, %v4075
  %v4718 = vmax.f32 %v3338, %v4077
  %v4719 = vmax.f32 %v3339, %v4079
  %v4720 = vmax.f32 %v3340, %v4081
  %v4721 = vmax.f32 %v3341, %v4083
  %v4722 = vmax.f32 %v3342, %v4085
  %v4723 = vmax.f32 %v3343, %v4087
  %v4724 = vmax.f32 %v3344, %v4089
  %v4725 = vmax.f32 %v3345, %v4091
  %v4726 = vmax.f32 %v3346, %v4093
  %v4727 = vmax.f32 %v3347, %v4095
  %v4728 = vmax.f32 %v3348, %v4097
  %v4729 = vmax.f32 %v3349, %v4099
  %v4730 = vmax.f32 %v3350, %v4101
  %v4731 = vmax.f32 %v3351, %v4103
  %v4732 = vmax.f32 %v3352, %v4105
  %v4733 = vmax.f32 %v3353, %v4107
  %v4734 = vmax.f32 %v3354, %v4109
  %v4735 = vmax.f32 %v3355, %v4111
  %v4736 = vmax.f32 %v3356, %v4113
  %v4737 = vmax.f32 %v3357, %v4115
  %v4738 = vmax.f32 %v3358, %v4117
  %v4739 = vmax.f32 %v3359, %v4119
  %v4740 = vmax.f32 %v3360, %v4121
  %v4741 = vmax.f32 %v3361, %v4123
  %v4742 = vmax.f32 %v3362, %v4125
  %v4743 = vmax.f32 %v3363, %v4127
  %v4744 = vmax.f32 %v3364, %v4129
  %v4745 = vmax.f32 %v3365, %v4131
  %v4746 = vmax.f32 %v3366, %v4133
  %v4747 = vmax.f32 %v3367, %v4135
  %v4748 = vmax.f32 %v3368, %v4137
  %v4749 = vmax.f32 %v3369, %v4139
  %v4750 = vmax.f32 %v3370, %v4141
  %v4751 = vmax.f32 %v3371, %v4143
  %v4752 = vmax.f32 %v3372, %v4145
  %v4753 = vmax.f32 %v3373, %v4147
  %v4754 = vmax.f32 %v3374, %v4149
  %v4755 = vmax.f32 %v3375, %v4151
  %v4756 = vmax.f32 %v3376, %v4153
  %v4757 = vmax.f32 %v3377, %v4155
  %v4758 = vmax.f32 %v3378, %v4157
  %v4759 = vmax.f32 %v3379, %v4159
  %v4760 = vmax.f32 %v3380, %v4161
  %v4761 = vmax.f32 %v3381, %v4163
  %v4762 = vmax.f32 %v3382, %v4165
  %v4763 = vmax.f32 %v3383, %v4167
  %v4764 = vmax.f32 %v3384, %v4169
  %v4765 = vmax.f32 %v3385, %v4171
  %v4766 = vmax.f32 %v3386, %v4173
  %v4767 = vmax.f32 %v3387, %v4175
  %v4768 = vmax.f32 %v3388, %v4177
  %v4769 = vmax.f32 %v3389, %v4179
  %v4770 = vmax.f32 %v3390, %v4181
  %v4771 = vmax.f32 %v3391, %v4183
  %v4772 = vmax.f32 %v3392, %v4185
  %v4773 = vmax.f32 %v3393, %v4187
  %v4774 = vmax.f32 %v3394, %v4189
  %v4775 = vmax.f32 %v3395, %v4191
  %v4776 = vmax.f32 %v3396, %v4193
  %v4777 = vmax.f32 %v3397, %v4195
  %v4778 = vmax.f32 %v3398, %v4197
  %v4779 = vmax.f32 %v3399, %v4199
  %v4780 = vmax.f32 %v3400, %v4201
  %v4781 = vmax.f32 %v3401, %v4203
  %v4782 = vmax.f32 %v3402, %v4205
  %v4783 = vmax.f32 %v3403, %v4207
  %v4784 = vmax.f32 %v3404, %v4209
  %v4785 = vmax.f32 %v3405, %v4211
  %v4786 = vmax.f32 %v3406, %v4213
  %v4787 = vmax.f32 %v3407, %v4215
  %v4788 = vmax.f32 %v3408, %v4217
  %v4789 = vmax.f32 %v3409, %v4219
  %v4790 = vmax.f32 %v3410, %v4221
  %v4791 = vmax.f32 %v3411, %v4223
  %v4792 = vmax.f32 %v3412, %v4225
  %v4793 = vmax.f32 %v3413, %v4227
  %v4794 = vmax.f32 %v3414, %v4229
  %v4795 = vmax.f32 %v3415, %v4231
  %v4796 = vmax.f32 %v3416, %v4233
  %v4797 = vmax.f32 %v3417, %v4235
  %v4798 = vmax.f32 %v3418, %v4237
  %v4799 = vmax.f32 %v3419, %v4239
  %v4800 = vmax.f32 %v3420, %v4241
  %v4801 = vmax.f32 %v3421, %v4243
  %v4802 = vmax.f32 %v3422, %v4245
  %v4803 = vmax.f32 %v3423, %v4247
  %v4804 = vmax.f32 %v3424, %v4249
  %v4805 = vmax.f32 %v3425, %v4251
  %v4806 = vmax.f32 %v3426, %v4253
  %v4807 = vmax.f32 %v3427, %v4255
  %v4808 = vmax.f32 %v3428, %v4257
  %v4809 = vmax.f32 %v3429, %v4256
  %v4810 = vmax.f32 %v4534, %v4540
  %v4811 = vmax.f32 %v4535, %v4541
  %v4812 = vmax.f32 %v4536, %v4542
  %v4813 = vmax.f32 %v4537, %v4543
  %v4814 = vmax.f32 %v4538, %v4544
  %v4815 = vmax.f32 %v4539, %v4545
  %v4816 = vmax.f32 %v4546, %v4552
  %v4817 = vmax.f32 %v4547, %v4553
  %v4818 = vmax.f32 %v4548, %v4554
  %v4819 = vmax.f32 %v4549, %v4555
  %v4820 = vmax.f32 %v4550, %v4556
  %v4821 = vmax.f32 %v4551, %v4557
  %v4822 = vmax.f32 %v4558, %v4564
  %v4823 = vmax.f32 %v4559, %v4565
  %v4824 = vmax.f32 %v4560, %v4566
  %v4825 = vmax.f32 %v4561, %v4567
  %v4826 = vmax.f32 %v4562, %v4568
  %v4827 = vmax.f32 %v4563, %v4569
  %v4828 = vmax.f32 %v4570, %v4576
  %v4829 = vmax.f32 %v4571, %v4577
  %v4830 = vmax.f32 %v4572, %v4578
  %v4831 = vmax.f32 %v4573, %v4579
  %v4832 = vmax.f32 %v4574, %v4580
  %v4833 = vmax.f32 %v4575, %v4581
  %v4834 = vmax.f32 %v4582, %v4588
  %v4835 = vmax.f32 %v4583, %v4589
  %v4836 = vmax.f32 %v4584, %v4590
  %v4837 = vmax.f32 %v4585, %v4591
  %v4838 = vmax.f32 %v4586, %v4592
  %v4839 = vmax.f32 %v4587, %v4593
  %v4840 = vmax.f32 %v4594, %v4600
  %v4841 = vmax.f32 %v4595, %v4601
  %v4842 = vmax.f32 %v4596, %v4602
  %v4843 = vmax.f32 %v4597, %v4603
  %v4844 = vmax.f32 %v4598, %v4604
  %v4845 = vmax.f32 %v4599, %v4605
  %v4846 = vmax.f32 %v4606, %v4612
  %v4847 = vmax.f32 %v4607, %v4613
  %v4848 = vmax.f32 %v4608, %v4614
  %v4849 = vmax.f32 %v4609, %v4615
  %v4850 = vmax.f32 %v4610, %v4616
  %v4851 = vmax.f32 %v4611, %v4617
  %v4852 = vmax.f32 %v4618, %v4624
  %v4853 = vmax.f32 %v4619, %v4625
  %v4854 = vmax.f32 %v4620, %v4626
  %v4855 = vmax.f32 %v4621, %v4627
  %v4856 = vmax.f32 %v4622, %v4628
  %v4857 = vmax.f32 %v4623, %v4629
  %v4858 = vmax.f32 %v4630, %v4636
  %v4859 = vmax.f32 %v4631, %v4637
  %v4860 = vmax.f32 %v4632, %v4638
  %v4861 = vmax.f32 %v4633, %v4639
  %v4862 = vmax.f32 %v4634, %v4640
  %v4863 = vmax.f32 %v4635, %v4641
  %v4864 = vmax.f32 %v4642, %v4648
  %v4865 = vmax.f32 %v4643, %v4649
  %v4866 = vmax.f32 %v4644, %v4650
  %v4867 = vmax.f32 %v4645, %v4651
  %v4868 = vmax.f32 %v4646, %v4652
  %v4869 = vmax.f32 %v4647, %v4653
  %v4870 = vmax.f32 %v4654, %v4660
  %v4871 = vmax.f32 %v4655, %v4661
  %v4872 = vmax.f32 %v4656, %v4662
  %v4873 = vmax.f32 %v4657, %v4663
  %v4874 = vmax.f32 %v4658, %v4664
  %v4875 = vmax.f32 %v4659, %v4665
  %v4876 = vmax.f32 %v4666, %v4672
  %v4877 = vmax.f32 %v4667, %v4673
  %v4878 = vmax.f32 %v4668, %v4674
  %v4879 = vmax.f32 %v4669, %v4675
  %v4880 = vmax.f32 %v4670, %v4676
  %v4881 = vmax.f32 %v4671, %v4677
  %v4882 = vmax.f32 %v4678, %v4684
  %v4883 = vmax.f32 %v4679, %v4685
  %v4884 = vmax.f32 %v4680, %v4686
  %v4885 = vmax.f32 %v4681, %v4687
  %v4886 = vmax.f32 %v4682, %v4688
  %v4887 = vmax.f32 %v4683, %v4689
  %v4888 = vmax.f32 %v4690, %v4696
  %v4889 = vmax.f32 %v4691, %v4697
  %v4890 = vmax.f32 %v4692, %v4698
  %v4891 = vmax.f32 %v4693, %v4699
  %v4892 = vmax.f32 %v4694, %v4700
  %v4893 = vmax.f32 %v4695, %v4701
  %v4894 = vmax.f32 %v4702, %v4708
  %v4895 = vmax.f32 %v4703, %v4709
  %v4896 = vmax.f32 %v4704, %v4710
  %v4897 = vmax.f32 %v4705, %v4711
  %v4898 = vmax.f32 %v4706, %v4712
  %v4899 = vmax.f32 %v4707, %v4713
  %v4900 = vmax.f32 %v4714, %v4720
  %v4901 = vmax.f32 %v4715, %v4721
  %v4902 = vmax.f32 %v4716, %v4722
  %v4903 = vmax.f32 %v4717, %v4723
  %v4904 = vmax.f32 %v4718, %v4724
  %v4905 = vmax.f32 %v4719, %v4725
  %v4906 = vmax.f32 %v4726, %v4732
  %v4907 = vmax.f32 %v4727, %v4733
  %v4908 = vmax.f32 %v4728, %v4734
  %v4909 = vmax.f32 %v4729, %v4735
  %v4910 = vmax.f32 %v4730, %v4736
  %v4911 = vmax.f32 %v4731, %v4737
  %v4912 = vmax.f32 %v4738, %v4744
  %v4913 = vmax.f32 %v4739, %v4745
  %v4914 = vmax.f32 %v4740, %v4746
  %v4915 = vmax.f32 %v4741, %v4747
  %v4916 = vmax.f32 %v4742, %v4748
  %v4917 = vmax.f32 %v4743, %v4749
  %v4918 = vmax.f32 %v4750, %v4756
  %v4919 = vmax.f32 %v4751, %v4757
  %v4920 = vmax.f32 %v4752, %v4758
  %v4921 = vmax.f32 %v4753, %v4759
  %v4922 = vmax.f32 %v4754, %v4760
  %v4923 = vmax.f32 %v4755, %v4761
  %v4924 = vmax.f32 %v4762, %v4768
  %v4925 = vmax.f32 %v4763, %v4769
  %v4926 = vmax.f32 %v4764, %v4770
  %v4927 = vmax.f32 %v4765, %v4771
  %v4928 = vmax.f32 %v4766, %v4772
  %v4929 = vmax.f32 %v4767, %v4773
  %v4930 = vmax.f32 %v4774, %v4780
  %v4931 = vmax.f32 %v4775, %v4781
  %v4932 = vmax.f32 %v4776, %v4782
  %v4933 = vmax.f32 %v4777, %v4783
  %v4934 = vmax.f32 %v4778, %v4784
  %v4935 = vmax.f32 %v4779, %v4785
  %v4936 = vmax.f32 %v4786, %v4792
  %v4937 = vmax.f32 %v4787, %v4793
  %v4938 = vmax.f32 %v4788, %v4794
  %v4939 = vmax.f32 %v4789, %v4795
  %v4940 = vmax.f32 %v4790, %v4796
  %v4941 = vmax.f32 %v4791, %v4797
  %v4942 = vmax.f32 %v4798, %v4804
  %v4943 = vmax.f32 %v4799, %v4805
  %v4944 = vmax.f32 %v4800, %v4806
  %v4945 = vmax.f32 %v4801, %v4807
  %v4946 = vmax.f32 %v4802, %v4808
  %v4947 = vmax.f32 %v4803, %v4809
  %v4948 = vpack.c.bf16 %v4811, %v4810
  %v4949 = vpack.c.bf16 %v4813, %v4812
  %v4950 = vpack.c.bf16 %v4815, %v4814
  %v4951 = vpack.c.bf16 %v4817, %v4816
  %v4952 = vpack.c.bf16 %v4819, %v4818
  %v4953 = vpack.c.bf16 %v4821, %v4820
  %v4954 = vpack.c.bf16 %v4823, %v4822
  %v4955 = vpack.c.bf16 %v4825, %v4824
  %v4956 = vpack.c.bf16 %v4827, %v4826
  %v4957 = vpack.c.bf16 %v4829, %v4828
  %v4958 = vpack.c.bf16 %v4831, %v4830
  %v4959 = vpack.c.bf16 %v4833, %v4832
  %v4960 = vpack.c.bf16 %v4835, %v4834
  %v4961 = vpack.c.bf16 %v4837, %v4836
  %v4962 = vpack.c.bf16 %v4839, %v4838
  %v4963 = vpack.c.bf16 %v4841, %v4840
  %v4964 = vpack.c.bf16 %v4843, %v4842
  %v4965 = vpack.c.bf16 %v4845, %v4844
  %v4966 = vpack.c.bf16 %v4847, %v4846
  %v4967 = vpack.c.bf16 %v4849, %v4848
  %v4968 = vpack.c.bf16 %v4851, %v4850
  %v4969 = vpack.c.bf16 %v4853, %v4852
  %v4970 = vpack.c.bf16 %v4855, %v4854
  %v4971 = vpack.c.bf16 %v4857, %v4856
  %v4972 = vpack.c.bf16 %v4859, %v4858
  %v4973 = vpack.c.bf16 %v4861, %v4860
  %v4974 = vpack.c.bf16 %v4863, %v4862
  %v4975 = vpack.c.bf16 %v4865, %v4864
  %v4976 = vpack.c.bf16 %v4867, %v4866
  %v4977 = vpack.c.bf16 %v4869, %v4868
  %v4978 = vpack.c.bf16 %v4871, %v4870
  %v4979 = vpack.c.bf16 %v4873, %v4872
  %v4980 = vpack.c.bf16 %v4875, %v4874
  %v4981 = vpack.c.bf16 %v4877, %v4876
  %v4982 = vpack.c.bf16 %v4879, %v4878
  %v4983 = vpack.c.bf16 %v4881, %v4880
  %v4984 = vpack.c.bf16 %v4883, %v4882
  %v4985 = vpack.c.bf16 %v4885, %v4884
  %v4986 = vpack.c.bf16 %v4887, %v4886
  %v4987 = vpack.c.bf16 %v4889, %v4888
  %v4988 = vpack.c.bf16 %v4891, %v4890
  %v4989 = vpack.c.bf16 %v4893, %v4892
  %v4990 = vpack.c.bf16 %v4895, %v4894
  %v4991 = vpack.c.bf16 %v4897, %v4896
  %v4992 = vpack.c.bf16 %v4899, %v4898
  %v4993 = vpack.c.bf16 %v4901, %v4900
  %v4994 = vpack.c.bf16 %v4903, %v4902
  %v4995 = vpack.c.bf16 %v4905, %v4904
  %v4996 = vpack.c.bf16 %v4907, %v4906
  %v4997 = vpack.c.bf16 %v4909, %v4908
  %v4998 = vpack.c.bf16 %v4911, %v4910
  %v4999 = vpack.c.bf16 %v4913, %v4912
  %v5000 = vpack.c.bf16 %v4915, %v4914
  %v5001 = vpack.c.bf16 %v4917, %v4916
  %v5002 = vpack.c.bf16 %v4919, %v4918
  %v5003 = vpack.c.bf16 %v4921, %v4920
  %v5004 = vpack.c.bf16 %v4923, %v4922
  %v5005 = vpack.c.bf16 %v4925, %v4924
  %v5006 = vpack.c.bf16 %v4927, %v4926
  %v5007 = vpack.c.bf16 %v4929, %v4928
  %v5008 = vpack.c.bf16 %v4931, %v4930
  %v5009 = vpack.c.bf16 %v4933, %v4932
  %v5010 = vpack.c.bf16 %v4935, %v4934
  %v5011 = vpack.c.bf16 %v4937, %v4936
  %v5012 = vpack.c.bf16 %v4939, %v4938
  %v5013 = vpack.c.bf16 %v4941, %v4940
  %v5014 = vpack.c.bf16 %v4943, %v4942
  %v5015 = vpack.c.bf16 %v4945, %v4944
  %v5016 = vpack.c.bf16 %v4947, %v4946
  %v5020 = vunpack.c.l.b16 %v4948
  %v5021 = vunpack.c.h.b16 %v4948
  %v5022 = vunpack.c.l.b16 %v4949
  %v5023 = vunpack.c.h.b16 %v4949
  %v5024 = vunpack.c.l.b16 %v4950
  %v5025 = vunpack.c.h.b16 %v4950
  %v5026 = vpack.c.b16 %v5020, %v5020
  %v5027 = vpack.c.b16 %v5021, %v5021
  %v5028 = vpack.c.b16 %v5022, %v5022
  %v5029 = vpack.c.b16 %v5023, %v5023
  %v5030 = vpack.c.b16 %v5024, %v5024
  %v5031 = vpack.c.b16 %v5025, %v5025
  %vm5038 = vcmask 519168
  %5039 = vst.msk [vmem:[#allocation2] sm:$0xf] %vm5038, %v5026
  %5040 = vst.msk [vmem:[#allocation2 + $0x4] sm:$0xf] %vm5038, %v5027
  %5041 = vst.msk [vmem:[#allocation2 + $0x8] sm:$0xf] %vm5038, %v5028
  %5042 = vst.msk [vmem:[#allocation2 + $0xc] sm:$0xf] %vm5038, %v5029
  %5043 = vst.msk [vmem:[#allocation2 + $0x10] sm:$0xf] %vm5038, %v5030
  %vm5044 = vcmask 518144
  %vm5045 = vsmask.f32 2304
  %vm5046 = vmand %vm5044, %vm5045
  %v5047 = vld [vmem:[#allocation2 + $0x14] sm:$0x7]
  %v5048 = vsel %vm5046, %v5031, %v5047
  %5049 = vst [vmem:[#allocation2 + $0x14] sm:$0x7] %v5048
  %v5053 = vunpack.c.l.b16 %v4951
  %v5054 = vunpack.c.h.b16 %v4951
  %v5055 = vunpack.c.l.b16 %v4952
  %v5056 = vunpack.c.h.b16 %v4952
  %v5057 = vunpack.c.l.b16 %v4953
  %v5058 = vunpack.c.h.b16 %v4953
  %v5059 = vpack.c.b16 %v5053, %v5053
  %v5060 = vpack.c.b16 %v5054, %v5054
  %v5061 = vpack.c.b16 %v5055, %v5055
  %v5062 = vpack.c.b16 %v5056, %v5056
  %v5063 = vpack.c.b16 %v5057, %v5057
  %v5064 = vpack.c.b16 %v5058, %v5058
  %5071 = vst.msk [vmem:[#allocation2 + $0x18] sm:$0xf] %vm5038, %v5059
  %5072 = vst.msk [vmem:[#allocation2 + $0x1c] sm:$0xf] %vm5038, %v5060
  %5073 = vst.msk [vmem:[#allocation2 + $0x20] sm:$0xf] %vm5038, %v5061
  %5074 = vst.msk [vmem:[#allocation2 + $0x24] sm:$0xf] %vm5038, %v5062
  %5075 = vst.msk [vmem:[#allocation2 + $0x28] sm:$0xf] %vm5038, %v5063
  %v5076 = vld [vmem:[#allocation2 + $0x2c] sm:$0x7]
  %v5077 = vsel %vm5046, %v5064, %v5076
  %5078 = vst [vmem:[#allocation2 + $0x2c] sm:$0x7] %v5077
  %v5082 = vunpack.c.l.b16 %v4954
  %v5083 = vunpack.c.h.b16 %v4954
  %v5084 = vunpack.c.l.b16 %v4955
  %v5085 = vunpack.c.h.b16 %v4955
  %v5086 = vunpack.c.l.b16 %v4956
  %v5087 = vunpack.c.h.b16 %v4956
  %v5088 = vpack.c.b16 %v5082, %v5082
  %v5089 = vpack.c.b16 %v5083, %v5083
  %v5090 = vpack.c.b16 %v5084, %v5084
  %v5091 = vpack.c.b16 %v5085, %v5085
  %v5092 = vpack.c.b16 %v5086, %v5086
  %v5093 = vpack.c.b16 %v5087, %v5087
  %5100 = vst.msk [vmem:[#allocation2 + $0x30] sm:$0xf] %vm5038, %v5088
  %5101 = vst.msk [vmem:[#allocation2 + $0x34] sm:$0xf] %vm5038, %v5089
  %5102 = vst.msk [vmem:[#allocation2 + $0x38] sm:$0xf] %vm5038, %v5090
  %5103 = vst.msk [vmem:[#allocation2 + $0x3c] sm:$0xf] %vm5038, %v5091
  %5104 = vst.msk [vmem:[#allocation2 + $0x40] sm:$0xf] %vm5038, %v5092
  %v5105 = vld [vmem:[#allocation2 + $0x44] sm:$0x7]
  %v5106 = vsel %vm5046, %v5093, %v5105
  %5107 = vst [vmem:[#allocation2 + $0x44] sm:$0x7] %v5106
  %v5111 = vunpack.c.l.b16 %v4957
  %v5112 = vunpack.c.h.b16 %v4957
  %v5113 = vunpack.c.l.b16 %v4958
  %v5114 = vunpack.c.h.b16 %v4958
  %v5115 = vunpack.c.l.b16 %v4959
  %v5116 = vunpack.c.h.b16 %v4959
  %v5117 = vpack.c.b16 %v5111, %v5111
  %v5118 = vpack.c.b16 %v5112, %v5112
  %v5119 = vpack.c.b16 %v5113, %v5113
  %v5120 = vpack.c.b16 %v5114, %v5114
  %v5121 = vpack.c.b16 %v5115, %v5115
  %v5122 = vpack.c.b16 %v5116, %v5116
  %5129 = vst.msk [vmem:[#allocation2 + $0x48] sm:$0xf] %vm5038, %v5117
  %5130 = vst.msk [vmem:[#allocation2 + $0x4c] sm:$0xf] %vm5038, %v5118
  %5131 = vst.msk [vmem:[#allocation2 + $0x50] sm:$0xf] %vm5038, %v5119
  %5132 = vst.msk [vmem:[#allocation2 + $0x54] sm:$0xf] %vm5038, %v5120
  %5133 = vst.msk [vmem:[#allocation2 + $0x58] sm:$0xf] %vm5038, %v5121
  %v5134 = vld [vmem:[#allocation2 + $0x5c] sm:$0x7]
  %v5135 = vsel %vm5046, %v5122, %v5134
  %5136 = vst [vmem:[#allocation2 + $0x5c] sm:$0x7] %v5135
  %v5140 = vunpack.c.l.b16 %v4960
  %v5141 = vunpack.c.h.b16 %v4960
  %v5142 = vunpack.c.l.b16 %v4961
  %v5143 = vunpack.c.h.b16 %v4961
  %v5144 = vunpack.c.l.b16 %v4962
  %v5145 = vunpack.c.h.b16 %v4962
  %v5146 = vpack.c.b16 %v5140, %v5140
  %v5147 = vpack.c.b16 %v5141, %v5141
  %v5148 = vpack.c.b16 %v5142, %v5142
  %v5149 = vpack.c.b16 %v5143, %v5143
  %v5150 = vpack.c.b16 %v5144, %v5144
  %v5151 = vpack.c.b16 %v5145, %v5145
  %5158 = vst.msk [vmem:[#allocation2 + $0x60] sm:$0xf] %vm5038, %v5146
  %5159 = vst.msk [vmem:[#allocation2 + $0x64] sm:$0xf] %vm5038, %v5147
  %5160 = vst.msk [vmem:[#allocation2 + $0x68] sm:$0xf] %vm5038, %v5148
  %5161 = vst.msk [vmem:[#allocation2 + $0x6c] sm:$0xf] %vm5038, %v5149
  %5162 = vst.msk [vmem:[#allocation2 + $0x70] sm:$0xf] %vm5038, %v5150
  %v5163 = vld [vmem:[#allocation2 + $0x74] sm:$0x7]
  %v5164 = vsel %vm5046, %v5151, %v5163
  %5165 = vst [vmem:[#allocation2 + $0x74] sm:$0x7] %v5164
  %v5169 = vunpack.c.l.b16 %v4963
  %v5170 = vunpack.c.h.b16 %v4963
  %v5171 = vunpack.c.l.b16 %v4964
  %v5172 = vunpack.c.h.b16 %v4964
  %v5173 = vunpack.c.l.b16 %v4965
  %v5174 = vunpack.c.h.b16 %v4965
  %v5175 = vpack.c.b16 %v5169, %v5169
  %v5176 = vpack.c.b16 %v5170, %v5170
  %v5177 = vpack.c.b16 %v5171, %v5171
  %v5178 = vpack.c.b16 %v5172, %v5172
  %v5179 = vpack.c.b16 %v5173, %v5173
  %v5180 = vpack.c.b16 %v5174, %v5174
  %5187 = vst.msk [vmem:[#allocation2 + $0x78] sm:$0xf] %vm5038, %v5175
  %5188 = vst.msk [vmem:[#allocation2 + $0x7c] sm:$0xf] %vm5038, %v5176
  %5189 = vst.msk [vmem:[#allocation2 + $0x80] sm:$0xf] %vm5038, %v5177
  %5190 = vst.msk [vmem:[#allocation2 + $0x84] sm:$0xf] %vm5038, %v5178
  %5191 = vst.msk [vmem:[#allocation2 + $0x88] sm:$0xf] %vm5038, %v5179
  %v5192 = vld [vmem:[#allocation2 + $0x8c] sm:$0x7]
  %v5193 = vsel %vm5046, %v5180, %v5192
  %5194 = vst [vmem:[#allocation2 + $0x8c] sm:$0x7] %v5193
  %v5198 = vunpack.c.l.b16 %v4966
  %v5199 = vunpack.c.h.b16 %v4966
  %v5200 = vunpack.c.l.b16 %v4967
  %v5201 = vunpack.c.h.b16 %v4967
  %v5202 = vunpack.c.l.b16 %v4968
  %v5203 = vunpack.c.h.b16 %v4968
  %v5204 = vpack.c.b16 %v5198, %v5198
  %v5205 = vpack.c.b16 %v5199, %v5199
  %v5206 = vpack.c.b16 %v5200, %v5200
  %v5207 = vpack.c.b16 %v5201, %v5201
  %v5208 = vpack.c.b16 %v5202, %v5202
  %v5209 = vpack.c.b16 %v5203, %v5203
  %5216 = vst.msk [vmem:[#allocation2 + $0x90] sm:$0xf] %vm5038, %v5204
  %5217 = vst.msk [vmem:[#allocation2 + $0x94] sm:$0xf] %vm5038, %v5205
  %5218 = vst.msk [vmem:[#allocation2 + $0x98] sm:$0xf] %vm5038, %v5206
  %5219 = vst.msk [vmem:[#allocation2 + $0x9c] sm:$0xf] %vm5038, %v5207
  %5220 = vst.msk [vmem:[#allocation2 + $0xa0] sm:$0xf] %vm5038, %v5208
  %v5221 = vld [vmem:[#allocation2 + $0xa4] sm:$0x7]
  %v5222 = vsel %vm5046, %v5209, %v5221
  %5223 = vst [vmem:[#allocation2 + $0xa4] sm:$0x7] %v5222
  %v5227 = vunpack.c.l.b16 %v4969
  %v5228 = vunpack.c.h.b16 %v4969
  %v5229 = vunpack.c.l.b16 %v4970
  %v5230 = vunpack.c.h.b16 %v4970
  %v5231 = vunpack.c.l.b16 %v4971
  %v5232 = vunpack.c.h.b16 %v4971
  %v5233 = vpack.c.b16 %v5227, %v5227
  %v5234 = vpack.c.b16 %v5228, %v5228
  %v5235 = vpack.c.b16 %v5229, %v5229
  %v5236 = vpack.c.b16 %v5230, %v5230
  %v5237 = vpack.c.b16 %v5231, %v5231
  %v5238 = vpack.c.b16 %v5232, %v5232
  %5245 = vst.msk [vmem:[#allocation2 + $0xa8] sm:$0xf] %vm5038, %v5233
  %5246 = vst.msk [vmem:[#allocation2 + $0xac] sm:$0xf] %vm5038, %v5234
  %5247 = vst.msk [vmem:[#allocation2 + $0xb0] sm:$0xf] %vm5038, %v5235
  %5248 = vst.msk [vmem:[#allocation2 + $0xb4] sm:$0xf] %vm5038, %v5236
  %5249 = vst.msk [vmem:[#allocation2 + $0xb8] sm:$0xf] %vm5038, %v5237
  %v5250 = vld [vmem:[#allocation2 + $0xbc] sm:$0x7]
  %v5251 = vsel %vm5046, %v5238, %v5250
  %5252 = vst [vmem:[#allocation2 + $0xbc] sm:$0x7] %v5251
  %v5256 = vunpack.c.l.b16 %v4972
  %v5257 = vunpack.c.h.b16 %v4972
  %v5258 = vunpack.c.l.b16 %v4973
  %v5259 = vunpack.c.h.b16 %v4973
  %v5260 = vunpack.c.l.b16 %v4974
  %v5261 = vunpack.c.h.b16 %v4974
  %v5262 = vpack.c.b16 %v5256, %v5256
  %v5263 = vpack.c.b16 %v5257, %v5257
  %v5264 = vpack.c.b16 %v5258, %v5258
  %v5265 = vpack.c.b16 %v5259, %v5259
  %v5266 = vpack.c.b16 %v5260, %v5260
  %v5267 = vpack.c.b16 %v5261, %v5261
  %5274 = vst.msk [vmem:[#allocation2 + $0xc0] sm:$0xf] %vm5038, %v5262
  %5275 = vst.msk [vmem:[#allocation2 + $0xc4] sm:$0xf] %vm5038, %v5263
  %5276 = vst.msk [vmem:[#allocation2 + $0xc8] sm:$0xf] %vm5038, %v5264
  %5277 = vst.msk [vmem:[#allocation2 + $0xcc] sm:$0xf] %vm5038, %v5265
  %5278 = vst.msk [vmem:[#allocation2 + $0xd0] sm:$0xf] %vm5038, %v5266
  %v5279 = vld [vmem:[#allocation2 + $0xd4] sm:$0x7]
  %v5280 = vsel %vm5046, %v5267, %v5279
  %5281 = vst [vmem:[#allocation2 + $0xd4] sm:$0x7] %v5280
  %v5285 = vunpack.c.l.b16 %v4975
  %v5286 = vunpack.c.h.b16 %v4975
  %v5287 = vunpack.c.l.b16 %v4976
  %v5288 = vunpack.c.h.b16 %v4976
  %v5289 = vunpack.c.l.b16 %v4977
  %v5290 = vunpack.c.h.b16 %v4977
  %v5291 = vpack.c.b16 %v5285, %v5285
  %v5292 = vpack.c.b16 %v5286, %v5286
  %v5293 = vpack.c.b16 %v5287, %v5287
  %v5294 = vpack.c.b16 %v5288, %v5288
  %v5295 = vpack.c.b16 %v5289, %v5289
  %v5296 = vpack.c.b16 %v5290, %v5290
  %5303 = vst.msk [vmem:[#allocation2 + $0xd8] sm:$0xf] %vm5038, %v5291
  %5304 = vst.msk [vmem:[#allocation2 + $0xdc] sm:$0xf] %vm5038, %v5292
  %5305 = vst.msk [vmem:[#allocation2 + $0xe0] sm:$0xf] %vm5038, %v5293
  %5306 = vst.msk [vmem:[#allocation2 + $0xe4] sm:$0xf] %vm5038, %v5294
  %5307 = vst.msk [vmem:[#allocation2 + $0xe8] sm:$0xf] %vm5038, %v5295
  %v5308 = vld [vmem:[#allocation2 + $0xec] sm:$0x7]
  %v5309 = vsel %vm5046, %v5296, %v5308
  %5310 = vst [vmem:[#allocation2 + $0xec] sm:$0x7] %v5309
  %v5314 = vunpack.c.l.b16 %v4978
  %v5315 = vunpack.c.h.b16 %v4978
  %v5316 = vunpack.c.l.b16 %v4979
  %v5317 = vunpack.c.h.b16 %v4979
  %v5318 = vunpack.c.l.b16 %v4980
  %v5319 = vunpack.c.h.b16 %v4980
  %v5320 = vpack.c.b16 %v5314, %v5314
  %v5321 = vpack.c.b16 %v5315, %v5315
  %v5322 = vpack.c.b16 %v5316, %v5316
  %v5323 = vpack.c.b16 %v5317, %v5317
  %v5324 = vpack.c.b16 %v5318, %v5318
  %v5325 = vpack.c.b16 %v5319, %v5319
  %5332 = vst.msk [vmem:[#allocation2 + $0xf0] sm:$0xf] %vm5038, %v5320
  %5333 = vst.msk [vmem:[#allocation2 + $0xf4] sm:$0xf] %vm5038, %v5321
  %5334 = vst.msk [vmem:[#allocation2 + $0xf8] sm:$0xf] %vm5038, %v5322
  %5335 = vst.msk [vmem:[#allocation2 + $0xfc] sm:$0xf] %vm5038, %v5323
  %5336 = vst.msk [vmem:[#allocation2 + $0x100] sm:$0xf] %vm5038, %v5324
  %v5337 = vld [vmem:[#allocation2 + $0x104] sm:$0x7]
  %v5338 = vsel %vm5046, %v5325, %v5337
  %5339 = vst [vmem:[#allocation2 + $0x104] sm:$0x7] %v5338
  %v5343 = vunpack.c.l.b16 %v4981
  %v5344 = vunpack.c.h.b16 %v4981
  %v5345 = vunpack.c.l.b16 %v4982
  %v5346 = vunpack.c.h.b16 %v4982
  %v5347 = vunpack.c.l.b16 %v4983
  %v5348 = vunpack.c.h.b16 %v4983
  %v5349 = vpack.c.b16 %v5343, %v5343
  %v5350 = vpack.c.b16 %v5344, %v5344
  %v5351 = vpack.c.b16 %v5345, %v5345
  %v5352 = vpack.c.b16 %v5346, %v5346
  %v5353 = vpack.c.b16 %v5347, %v5347
  %v5354 = vpack.c.b16 %v5348, %v5348
  %5361 = vst.msk [vmem:[#allocation2 + $0x108] sm:$0xf] %vm5038, %v5349
  %5362 = vst.msk [vmem:[#allocation2 + $0x10c] sm:$0xf] %vm5038, %v5350
  %5363 = vst.msk [vmem:[#allocation2 + $0x110] sm:$0xf] %vm5038, %v5351
  %5364 = vst.msk [vmem:[#allocation2 + $0x114] sm:$0xf] %vm5038, %v5352
  %5365 = vst.msk [vmem:[#allocation2 + $0x118] sm:$0xf] %vm5038, %v5353
  %v5366 = vld [vmem:[#allocation2 + $0x11c] sm:$0x7]
  %v5367 = vsel %vm5046, %v5354, %v5366
  %5368 = vst [vmem:[#allocation2 + $0x11c] sm:$0x7] %v5367
  %v5372 = vunpack.c.l.b16 %v4984
  %v5373 = vunpack.c.h.b16 %v4984
  %v5374 = vunpack.c.l.b16 %v4985
  %v5375 = vunpack.c.h.b16 %v4985
  %v5376 = vunpack.c.l.b16 %v4986
  %v5377 = vunpack.c.h.b16 %v4986
  %v5378 = vpack.c.b16 %v5372, %v5372
  %v5379 = vpack.c.b16 %v5373, %v5373
  %v5380 = vpack.c.b16 %v5374, %v5374
  %v5381 = vpack.c.b16 %v5375, %v5375
  %v5382 = vpack.c.b16 %v5376, %v5376
  %v5383 = vpack.c.b16 %v5377, %v5377
  %5390 = vst.msk [vmem:[#allocation2 + $0x120] sm:$0xf] %vm5038, %v5378
  %5391 = vst.msk [vmem:[#allocation2 + $0x124] sm:$0xf] %vm5038, %v5379
  %5392 = vst.msk [vmem:[#allocation2 + $0x128] sm:$0xf] %vm5038, %v5380
  %5393 = vst.msk [vmem:[#allocation2 + $0x12c] sm:$0xf] %vm5038, %v5381
  %5394 = vst.msk [vmem:[#allocation2 + $0x130] sm:$0xf] %vm5038, %v5382
  %v5395 = vld [vmem:[#allocation2 + $0x134] sm:$0x7]
  %v5396 = vsel %vm5046, %v5383, %v5395
  %5397 = vst [vmem:[#allocation2 + $0x134] sm:$0x7] %v5396
  %v5401 = vunpack.c.l.b16 %v4987
  %v5402 = vunpack.c.h.b16 %v4987
  %v5403 = vunpack.c.l.b16 %v4988
  %v5404 = vunpack.c.h.b16 %v4988
  %v5405 = vunpack.c.l.b16 %v4989
  %v5406 = vunpack.c.h.b16 %v4989
  %v5407 = vpack.c.b16 %v5401, %v5401
  %v5408 = vpack.c.b16 %v5402, %v5402
  %v5409 = vpack.c.b16 %v5403, %v5403
  %v5410 = vpack.c.b16 %v5404, %v5404
  %v5411 = vpack.c.b16 %v5405, %v5405
  %v5412 = vpack.c.b16 %v5406, %v5406
  %5419 = vst.msk [vmem:[#allocation2 + $0x138] sm:$0xf] %vm5038, %v5407
  %5420 = vst.msk [vmem:[#allocation2 + $0x13c] sm:$0xf] %vm5038, %v5408
  %5421 = vst.msk [vmem:[#allocation2 + $0x140] sm:$0xf] %vm5038, %v5409
  %5422 = vst.msk [vmem:[#allocation2 + $0x144] sm:$0xf] %vm5038, %v5410
  %5423 = vst.msk [vmem:[#allocation2 + $0x148] sm:$0xf] %vm5038, %v5411
  %v5424 = vld [vmem:[#allocation2 + $0x14c] sm:$0x7]
  %v5425 = vsel %vm5046, %v5412, %v5424
  %5426 = vst [vmem:[#allocation2 + $0x14c] sm:$0x7] %v5425
  %v5430 = vunpack.c.l.b16 %v4990
  %v5431 = vunpack.c.h.b16 %v4990
  %v5432 = vunpack.c.l.b16 %v4991
  %v5433 = vunpack.c.h.b16 %v4991
  %v5434 = vunpack.c.l.b16 %v4992
  %v5435 = vunpack.c.h.b16 %v4992
  %v5436 = vpack.c.b16 %v5430, %v5430
  %v5437 = vpack.c.b16 %v5431, %v5431
  %v5438 = vpack.c.b16 %v5432, %v5432
  %v5439 = vpack.c.b16 %v5433, %v5433
  %v5440 = vpack.c.b16 %v5434, %v5434
  %v5441 = vpack.c.b16 %v5435, %v5435
  %5448 = vst.msk [vmem:[#allocation2 + $0x150] sm:$0xf] %vm5038, %v5436
  %5449 = vst.msk [vmem:[#allocation2 + $0x154] sm:$0xf] %vm5038, %v5437
  %5450 = vst.msk [vmem:[#allocation2 + $0x158] sm:$0xf] %vm5038, %v5438
  %5451 = vst.msk [vmem:[#allocation2 + $0x15c] sm:$0xf] %vm5038, %v5439
  %5452 = vst.msk [vmem:[#allocation2 + $0x160] sm:$0xf] %vm5038, %v5440
  %v5453 = vld [vmem:[#allocation2 + $0x164] sm:$0x7]
  %v5454 = vsel %vm5046, %v5441, %v5453
  %5455 = vst [vmem:[#allocation2 + $0x164] sm:$0x7] %v5454
  %v5459 = vunpack.c.l.b16 %v4993
  %v5460 = vunpack.c.h.b16 %v4993
  %v5461 = vunpack.c.l.b16 %v4994
  %v5462 = vunpack.c.h.b16 %v4994
  %v5463 = vunpack.c.l.b16 %v4995
  %v5464 = vunpack.c.h.b16 %v4995
  %v5465 = vpack.c.b16 %v5459, %v5459
  %v5466 = vpack.c.b16 %v5460, %v5460
  %v5467 = vpack.c.b16 %v5461, %v5461
  %v5468 = vpack.c.b16 %v5462, %v5462
  %v5469 = vpack.c.b16 %v5463, %v5463
  %v5470 = vpack.c.b16 %v5464, %v5464
  %5477 = vst.msk [vmem:[#allocation2 + $0x168] sm:$0xf] %vm5038, %v5465
  %5478 = vst.msk [vmem:[#allocation2 + $0x16c] sm:$0xf] %vm5038, %v5466
  %5479 = vst.msk [vmem:[#allocation2 + $0x170] sm:$0xf] %vm5038, %v5467
  %5480 = vst.msk [vmem:[#allocation2 + $0x174] sm:$0xf] %vm5038, %v5468
  %5481 = vst.msk [vmem:[#allocation2 + $0x178] sm:$0xf] %vm5038, %v5469
  %v5482 = vld [vmem:[#allocation2 + $0x17c] sm:$0x7]
  %v5483 = vsel %vm5046, %v5470, %v5482
  %5484 = vst [vmem:[#allocation2 + $0x17c] sm:$0x7] %v5483
  %v5488 = vunpack.c.l.b16 %v4996
  %v5489 = vunpack.c.h.b16 %v4996
  %v5490 = vunpack.c.l.b16 %v4997
  %v5491 = vunpack.c.h.b16 %v4997
  %v5492 = vunpack.c.l.b16 %v4998
  %v5493 = vunpack.c.h.b16 %v4998
  %v5494 = vpack.c.b16 %v5488, %v5488
  %v5495 = vpack.c.b16 %v5489, %v5489
  %v5496 = vpack.c.b16 %v5490, %v5490
  %v5497 = vpack.c.b16 %v5491, %v5491
  %v5498 = vpack.c.b16 %v5492, %v5492
  %v5499 = vpack.c.b16 %v5493, %v5493
  %5506 = vst.msk [vmem:[#allocation2 + $0x180] sm:$0xf] %vm5038, %v5494
  %5507 = vst.msk [vmem:[#allocation2 + $0x184] sm:$0xf] %vm5038, %v5495
  %5508 = vst.msk [vmem:[#allocation2 + $0x188] sm:$0xf] %vm5038, %v5496
  %5509 = vst.msk [vmem:[#allocation2 + $0x18c] sm:$0xf] %vm5038, %v5497
  %5510 = vst.msk [vmem:[#allocation2 + $0x190] sm:$0xf] %vm5038, %v5498
  %v5511 = vld [vmem:[#allocation2 + $0x194] sm:$0x7]
  %v5512 = vsel %vm5046, %v5499, %v5511
  %5513 = vst [vmem:[#allocation2 + $0x194] sm:$0x7] %v5512
  %v5517 = vunpack.c.l.b16 %v4999
  %v5518 = vunpack.c.h.b16 %v4999
  %v5519 = vunpack.c.l.b16 %v5000
  %v5520 = vunpack.c.h.b16 %v5000
  %v5521 = vunpack.c.l.b16 %v5001
  %v5522 = vunpack.c.h.b16 %v5001
  %v5523 = vpack.c.b16 %v5517, %v5517
  %v5524 = vpack.c.b16 %v5518, %v5518
  %v5525 = vpack.c.b16 %v5519, %v5519
  %v5526 = vpack.c.b16 %v5520, %v5520
  %v5527 = vpack.c.b16 %v5521, %v5521
  %v5528 = vpack.c.b16 %v5522, %v5522
  %5535 = vst.msk [vmem:[#allocation2 + $0x198] sm:$0xf] %vm5038, %v5523
  %5536 = vst.msk [vmem:[#allocation2 + $0x19c] sm:$0xf] %vm5038, %v5524
  %5537 = vst.msk [vmem:[#allocation2 + $0x1a0] sm:$0xf] %vm5038, %v5525
  %5538 = vst.msk [vmem:[#allocation2 + $0x1a4] sm:$0xf] %vm5038, %v5526
  %5539 = vst.msk [vmem:[#allocation2 + $0x1a8] sm:$0xf] %vm5038, %v5527
  %v5540 = vld [vmem:[#allocation2 + $0x1ac] sm:$0x7]
  %v5541 = vsel %vm5046, %v5528, %v5540
  %5542 = vst [vmem:[#allocation2 + $0x1ac] sm:$0x7] %v5541
  %v5546 = vunpack.c.l.b16 %v5002
  %v5547 = vunpack.c.h.b16 %v5002
  %v5548 = vunpack.c.l.b16 %v5003
  %v5549 = vunpack.c.h.b16 %v5003
  %v5550 = vunpack.c.l.b16 %v5004
  %v5551 = vunpack.c.h.b16 %v5004
  %v5552 = vpack.c.b16 %v5546, %v5546
  %v5553 = vpack.c.b16 %v5547, %v5547
  %v5554 = vpack.c.b16 %v5548, %v5548
  %v5555 = vpack.c.b16 %v5549, %v5549
  %v5556 = vpack.c.b16 %v5550, %v5550
  %v5557 = vpack.c.b16 %v5551, %v5551
  %5564 = vst.msk [vmem:[#allocation2 + $0x1b0] sm:$0xf] %vm5038, %v5552
  %5565 = vst.msk [vmem:[#allocation2 + $0x1b4] sm:$0xf] %vm5038, %v5553
  %5566 = vst.msk [vmem:[#allocation2 + $0x1b8] sm:$0xf] %vm5038, %v5554
  %5567 = vst.msk [vmem:[#allocation2 + $0x1bc] sm:$0xf] %vm5038, %v5555
  %5568 = vst.msk [vmem:[#allocation2 + $0x1c0] sm:$0xf] %vm5038, %v5556
  %v5569 = vld [vmem:[#allocation2 + $0x1c4] sm:$0x7]
  %v5570 = vsel %vm5046, %v5557, %v5569
  %5571 = vst [vmem:[#allocation2 + $0x1c4] sm:$0x7] %v5570
  %v5575 = vunpack.c.l.b16 %v5005
  %v5576 = vunpack.c.h.b16 %v5005
  %v5577 = vunpack.c.l.b16 %v5006
  %v5578 = vunpack.c.h.b16 %v5006
  %v5579 = vunpack.c.l.b16 %v5007
  %v5580 = vunpack.c.h.b16 %v5007
  %v5581 = vpack.c.b16 %v5575, %v5575
  %v5582 = vpack.c.b16 %v5576, %v5576
  %v5583 = vpack.c.b16 %v5577, %v5577
  %v5584 = vpack.c.b16 %v5578, %v5578
  %v5585 = vpack.c.b16 %v5579, %v5579
  %v5586 = vpack.c.b16 %v5580, %v5580
  %5593 = vst.msk [vmem:[#allocation2 + $0x1c8] sm:$0xf] %vm5038, %v5581
  %5594 = vst.msk [vmem:[#allocation2 + $0x1cc] sm:$0xf] %vm5038, %v5582
  %5595 = vst.msk [vmem:[#allocation2 + $0x1d0] sm:$0xf] %vm5038, %v5583
  %5596 = vst.msk [vmem:[#allocation2 + $0x1d4] sm:$0xf] %vm5038, %v5584
  %5597 = vst.msk [vmem:[#allocation2 + $0x1d8] sm:$0xf] %vm5038, %v5585
  %v5598 = vld [vmem:[#allocation2 + $0x1dc] sm:$0x7]
  %v5599 = vsel %vm5046, %v5586, %v5598
  %5600 = vst [vmem:[#allocation2 + $0x1dc] sm:$0x7] %v5599
  %v5604 = vunpack.c.l.b16 %v5008
  %v5605 = vunpack.c.h.b16 %v5008
  %v5606 = vunpack.c.l.b16 %v5009
  %v5607 = vunpack.c.h.b16 %v5009
  %v5608 = vunpack.c.l.b16 %v5010
  %v5609 = vunpack.c.h.b16 %v5010
  %v5610 = vpack.c.b16 %v5604, %v5604
  %v5611 = vpack.c.b16 %v5605, %v5605
  %v5612 = vpack.c.b16 %v5606, %v5606
  %v5613 = vpack.c.b16 %v5607, %v5607
  %v5614 = vpack.c.b16 %v5608, %v5608
  %v5615 = vpack.c.b16 %v5609, %v5609
  %5622 = vst.msk [vmem:[#allocation2 + $0x1e0] sm:$0xf] %vm5038, %v5610
  %5623 = vst.msk [vmem:[#allocation2 + $0x1e4] sm:$0xf] %vm5038, %v5611
  %5624 = vst.msk [vmem:[#allocation2 + $0x1e8] sm:$0xf] %vm5038, %v5612
  %5625 = vst.msk [vmem:[#allocation2 + $0x1ec] sm:$0xf] %vm5038, %v5613
  %5626 = vst.msk [vmem:[#allocation2 + $0x1f0] sm:$0xf] %vm5038, %v5614
  %v5627 = vld [vmem:[#allocation2 + $0x1f4] sm:$0x7]
  %v5628 = vsel %vm5046, %v5615, %v5627
  %5629 = vst [vmem:[#allocation2 + $0x1f4] sm:$0x7] %v5628
  %v5633 = vunpack.c.l.b16 %v5011
  %v5634 = vunpack.c.h.b16 %v5011
  %v5635 = vunpack.c.l.b16 %v5012
  %v5636 = vunpack.c.h.b16 %v5012
  %v5637 = vunpack.c.l.b16 %v5013
  %v5638 = vunpack.c.h.b16 %v5013
  %v5639 = vpack.c.b16 %v5633, %v5633
  %v5640 = vpack.c.b16 %v5634, %v5634
  %v5641 = vpack.c.b16 %v5635, %v5635
  %v5642 = vpack.c.b16 %v5636, %v5636
  %v5643 = vpack.c.b16 %v5637, %v5637
  %v5644 = vpack.c.b16 %v5638, %v5638
  %5651 = vst.msk [vmem:[#allocation2 + $0x1f8] sm:$0xf] %vm5038, %v5639
  %5652 = vst.msk [vmem:[#allocation2 + $0x1fc] sm:$0xf] %vm5038, %v5640
  %5653 = vst.msk [vmem:[#allocation2 + $0x200] sm:$0xf] %vm5038, %v5641
  %5654 = vst.msk [vmem:[#allocation2 + $0x204] sm:$0xf] %vm5038, %v5642
  %5655 = vst.msk [vmem:[#allocation2 + $0x208] sm:$0xf] %vm5038, %v5643
  %v5656 = vld [vmem:[#allocation2 + $0x20c] sm:$0x7]
  %v5657 = vsel %vm5046, %v5644, %v5656
  %5658 = vst [vmem:[#allocation2 + $0x20c] sm:$0x7] %v5657
  %v5662 = vunpack.c.l.b16 %v5014
  %v5663 = vunpack.c.h.b16 %v5014
  %v5664 = vunpack.c.l.b16 %v5015
  %v5665 = vunpack.c.h.b16 %v5015
  %v5666 = vunpack.c.l.b16 %v5016
  %v5667 = vunpack.c.h.b16 %v5016
  %v5668 = vpack.c.b16 %v5662, %v5662
  %v5669 = vpack.c.b16 %v5663, %v5663
  %v5670 = vpack.c.b16 %v5664, %v5664
  %v5671 = vpack.c.b16 %v5665, %v5665
  %v5672 = vpack.c.b16 %v5666, %v5666
  %v5673 = vpack.c.b16 %v5667, %v5667
  %5680 = vst.msk [vmem:[#allocation2 + $0x210] sm:$0xf] %vm5038, %v5668
  %5681 = vst.msk [vmem:[#allocation2 + $0x214] sm:$0xf] %vm5038, %v5669
  %5682 = vst.msk [vmem:[#allocation2 + $0x218] sm:$0xf] %vm5038, %v5670
  %5683 = vst.msk [vmem:[#allocation2 + $0x21c] sm:$0xf] %vm5038, %v5671
  %5684 = vst.msk [vmem:[#allocation2 + $0x220] sm:$0xf] %vm5038, %v5672
  %v5685 = vld [vmem:[#allocation2 + $0x224] sm:$0x7]
  %v5686 = vsel %vm5046, %v5673, %v5685
  %5687 = vst [vmem:[#allocation2 + $0x224] sm:$0x7] %v5686
  %v5688 = vld [vmem:[#allocation2] sm:$0xf]
  %v5689 = vld [vmem:[#allocation2 + $0x4] sm:$0xf]
  %v5690 = vld [vmem:[#allocation2 + $0x8] sm:$0xf]
  %v5691 = vld [vmem:[#allocation2 + $0xc] sm:$0xf]
  %v5692 = vld [vmem:[#allocation2 + $0x10] sm:$0xf]
  %v5693 = vld [vmem:[#allocation2 + $0x14] sm:$0xf]
  %v5694 = vld [vmem:[#allocation2 + $0x18] sm:$0xf]
  %v5695 = vld [vmem:[#allocation2 + $0x1c] sm:$0xf]
  %v5696 = vld [vmem:[#allocation2 + $0x20] sm:$0xf]
  %v5697 = vld [vmem:[#allocation2 + $0x24] sm:$0xf]
  %v5698 = vld [vmem:[#allocation2 + $0x28] sm:$0xf]
  %v5699 = vld [vmem:[#allocation2 + $0x2c] sm:$0xf]
  %v5700 = vld [vmem:[#allocation2 + $0x30] sm:$0xf]
  %v5701 = vld [vmem:[#allocation2 + $0x34] sm:$0xf]
  %v5702 = vld [vmem:[#allocation2 + $0x38] sm:$0xf]
  %v5703 = vld [vmem:[#allocation2 + $0x3c] sm:$0xf]
  %v5704 = vld [vmem:[#allocation2 + $0x40] sm:$0xf]
  %v5705 = vld [vmem:[#allocation2 + $0x44] sm:$0xf]
  %v5706 = vld [vmem:[#allocation2 + $0x48] sm:$0xf]
  %v5707 = vld [vmem:[#allocation2 + $0x4c] sm:$0xf]
  %v5708 = vld [vmem:[#allocation2 + $0x50] sm:$0xf]
  %v5709 = vld [vmem:[#allocation2 + $0x54] sm:$0xf]
  %v5710 = vld [vmem:[#allocation2 + $0x58] sm:$0xf]
  %v5711 = vld [vmem:[#allocation2 + $0x5c] sm:$0xf]
  %v5712 = vld [vmem:[#allocation2 + $0x60] sm:$0xf]
  %v5713 = vld [vmem:[#allocation2 + $0x64] sm:$0xf]
  %v5714 = vld [vmem:[#allocation2 + $0x68] sm:$0xf]
  %v5715 = vld [vmem:[#allocation2 + $0x6c] sm:$0xf]
  %v5716 = vld [vmem:[#allocation2 + $0x70] sm:$0xf]
  %v5717 = vld [vmem:[#allocation2 + $0x74] sm:$0xf]
  %v5718 = vld [vmem:[#allocation2 + $0x78] sm:$0xf]
  %v5719 = vld [vmem:[#allocation2 + $0x7c] sm:$0xf]
  %v5720 = vld [vmem:[#allocation2 + $0x80] sm:$0xf]
  %v5721 = vld [vmem:[#allocation2 + $0x84] sm:$0xf]
  %v5722 = vld [vmem:[#allocation2 + $0x88] sm:$0xf]
  %v5723 = vld [vmem:[#allocation2 + $0x8c] sm:$0xf]
  %v5724 = vld [vmem:[#allocation2 + $0x90] sm:$0xf]
  %v5725 = vld [vmem:[#allocation2 + $0x94] sm:$0xf]
  %v5726 = vld [vmem:[#allocation2 + $0x98] sm:$0xf]
  %v5727 = vld [vmem:[#allocation2 + $0x9c] sm:$0xf]
  %v5728 = vld [vmem:[#allocation2 + $0xa0] sm:$0xf]
  %v5729 = vld [vmem:[#allocation2 + $0xa4] sm:$0xf]
  %v5730 = vld [vmem:[#allocation2 + $0xa8] sm:$0xf]
  %v5731 = vld [vmem:[#allocation2 + $0xac] sm:$0xf]
  %v5732 = vld [vmem:[#allocation2 + $0xb0] sm:$0xf]
  %v5733 = vld [vmem:[#allocation2 + $0xb4] sm:$0xf]
  %v5734 = vld [vmem:[#allocation2 + $0xb8] sm:$0xf]
  %v5735 = vld [vmem:[#allocation2 + $0xbc] sm:$0xf]
  %v5736 = vld [vmem:[#allocation2 + $0xc0] sm:$0xf]
  %v5737 = vld [vmem:[#allocation2 + $0xc4] sm:$0xf]
  %v5738 = vld [vmem:[#allocation2 + $0xc8] sm:$0xf]
  %v5739 = vld [vmem:[#allocation2 + $0xcc] sm:$0xf]
  %v5740 = vld [vmem:[#allocation2 + $0xd0] sm:$0xf]
  %v5741 = vld [vmem:[#allocation2 + $0xd4] sm:$0xf]
  %v5742 = vld [vmem:[#allocation2 + $0xd8] sm:$0xf]
  %v5743 = vld [vmem:[#allocation2 + $0xdc] sm:$0xf]
  %v5744 = vld [vmem:[#allocation2 + $0xe0] sm:$0xf]
  %v5745 = vld [vmem:[#allocation2 + $0xe4] sm:$0xf]
  %v5746 = vld [vmem:[#allocation2 + $0xe8] sm:$0xf]
  %v5747 = vld [vmem:[#allocation2 + $0xec] sm:$0xf]
  %v5748 = vld [vmem:[#allocation2 + $0xf0] sm:$0xf]
  %v5749 = vld [vmem:[#allocation2 + $0xf4] sm:$0xf]
  %v5750 = vld [vmem:[#allocation2 + $0xf8] sm:$0xf]
  %v5751 = vld [vmem:[#allocation2 + $0xfc] sm:$0xf]
  %v5752 = vld [vmem:[#allocation2 + $0x100] sm:$0xf]
  %v5753 = vld [vmem:[#allocation2 + $0x104] sm:$0xf]
  %v5754 = vld [vmem:[#allocation2 + $0x108] sm:$0xf]
  %v5755 = vld [vmem:[#allocation2 + $0x10c] sm:$0xf]
  %v5756 = vld [vmem:[#allocation2 + $0x110] sm:$0xf]
  %v5757 = vld [vmem:[#allocation2 + $0x114] sm:$0xf]
  %v5758 = vld [vmem:[#allocation2 + $0x118] sm:$0xf]
  %v5759 = vld [vmem:[#allocation2 + $0x11c] sm:$0xf]
  %v5760 = vld [vmem:[#allocation2 + $0x120] sm:$0xf]
  %v5761 = vld [vmem:[#allocation2 + $0x124] sm:$0xf]
  %v5762 = vld [vmem:[#allocation2 + $0x128] sm:$0xf]
  %v5763 = vld [vmem:[#allocation2 + $0x12c] sm:$0xf]
  %v5764 = vld [vmem:[#allocation2 + $0x130] sm:$0xf]
  %v5765 = vld [vmem:[#allocation2 + $0x134] sm:$0xf]
  %v5766 = vld [vmem:[#allocation2 + $0x138] sm:$0xf]
  %v5767 = vld [vmem:[#allocation2 + $0x13c] sm:$0xf]
  %v5768 = vld [vmem:[#allocation2 + $0x140] sm:$0xf]
  %v5769 = vld [vmem:[#allocation2 + $0x144] sm:$0xf]
  %v5770 = vld [vmem:[#allocation2 + $0x148] sm:$0xf]
  %v5771 = vld [vmem:[#allocation2 + $0x14c] sm:$0xf]
  %v5772 = vld [vmem:[#allocation2 + $0x150] sm:$0xf]
  %v5773 = vld [vmem:[#allocation2 + $0x154] sm:$0xf]
  %v5774 = vld [vmem:[#allocation2 + $0x158] sm:$0xf]
  %v5775 = vld [vmem:[#allocation2 + $0x15c] sm:$0xf]
  %v5776 = vld [vmem:[#allocation2 + $0x160] sm:$0xf]
  %v5777 = vld [vmem:[#allocation2 + $0x164] sm:$0xf]
  %v5778 = vld [vmem:[#allocation2 + $0x168] sm:$0xf]
  %v5779 = vld [vmem:[#allocation2 + $0x16c] sm:$0xf]
  %v5780 = vld [vmem:[#allocation2 + $0x170] sm:$0xf]
  %v5781 = vld [vmem:[#allocation2 + $0x174] sm:$0xf]
  %v5782 = vld [vmem:[#allocation2 + $0x178] sm:$0xf]
  %v5783 = vld [vmem:[#allocation2 + $0x17c] sm:$0xf]
  %v5784 = vld [vmem:[#allocation2 + $0x180] sm:$0xf]
  %v5785 = vld [vmem:[#allocation2 + $0x184] sm:$0xf]
  %v5786 = vld [vmem:[#allocation2 + $0x188] sm:$0xf]
  %v5787 = vld [vmem:[#allocation2 + $0x18c] sm:$0xf]
  %v5788 = vld [vmem:[#allocation2 + $0x190] sm:$0xf]
  %v5789 = vld [vmem:[#allocation2 + $0x194] sm:$0xf]
  %v5790 = vld [vmem:[#allocation2 + $0x198] sm:$0xf]
  %v5791 = vld [vmem:[#allocation2 + $0x19c] sm:$0xf]
  %v5792 = vld [vmem:[#allocation2 + $0x1a0] sm:$0xf]
  %v5793 = vld [vmem:[#allocation2 + $0x1a4] sm:$0xf]
  %v5794 = vld [vmem:[#allocation2 + $0x1a8] sm:$0xf]
  %v5795 = vld [vmem:[#allocation2 + $0x1ac] sm:$0xf]
  %v5796 = vld [vmem:[#allocation2 + $0x1b0] sm:$0xf]
  %v5797 = vld [vmem:[#allocation2 + $0x1b4] sm:$0xf]
  %v5798 = vld [vmem:[#allocation2 + $0x1b8] sm:$0xf]
  %v5799 = vld [vmem:[#allocation2 + $0x1bc] sm:$0xf]
  %v5800 = vld [vmem:[#allocation2 + $0x1c0] sm:$0xf]
  %v5801 = vld [vmem:[#allocation2 + $0x1c4] sm:$0xf]
  %v5802 = vld [vmem:[#allocation2 + $0x1c8] sm:$0xf]
  %v5803 = vld [vmem:[#allocation2 + $0x1cc] sm:$0xf]
  %v5804 = vld [vmem:[#allocation2 + $0x1d0] sm:$0xf]
  %v5805 = vld [vmem:[#allocation2 + $0x1d4] sm:$0xf]
  %v5806 = vld [vmem:[#allocation2 + $0x1d8] sm:$0xf]
  %v5807 = vld [vmem:[#allocation2 + $0x1dc] sm:$0xf]
  %v5808 = vld [vmem:[#allocation2 + $0x1e0] sm:$0xf]
  %v5809 = vld [vmem:[#allocation2 + $0x1e4] sm:$0xf]
  %v5810 = vld [vmem:[#allocation2 + $0x1e8] sm:$0xf]
  %v5811 = vld [vmem:[#allocation2 + $0x1ec] sm:$0xf]
  %v5812 = vld [vmem:[#allocation2 + $0x1f0] sm:$0xf]
  %v5813 = vld [vmem:[#allocation2 + $0x1f4] sm:$0xf]
  %v5814 = vld [vmem:[#allocation2 + $0x1f8] sm:$0xf]
  %v5815 = vld [vmem:[#allocation2 + $0x1fc] sm:$0xf]
  %v5816 = vld [vmem:[#allocation2 + $0x200] sm:$0xf]
  %v5817 = vld [vmem:[#allocation2 + $0x204] sm:$0xf]
  %v5818 = vld [vmem:[#allocation2 + $0x208] sm:$0xf]
  %v5819 = vld [vmem:[#allocation2 + $0x20c] sm:$0xf]
  %v5820 = vld [vmem:[#allocation2 + $0x210] sm:$0xf]
  %v5821 = vld [vmem:[#allocation2 + $0x214] sm:$0xf]
  %v5822 = vld [vmem:[#allocation2 + $0x218] sm:$0xf]
  %v5823 = vld [vmem:[#allocation2 + $0x21c] sm:$0xf]
  %v5824 = vld [vmem:[#allocation2 + $0x220] sm:$0xf]
  %v5825 = vld [vmem:[#allocation2 + $0x224] sm:$0x1]
  %v5826 = vld [vmem:[#allocation2] sm:$0xe]
  %v5827 = vld [vmem:[#allocation2 + $0x224] sm:$0x3]
  %v5828 = vld [vmem:[#allocation2] sm:$0xc]
  %v5829 = vld [vmem:[#allocation2 + $0x224] sm:$0x7]
  %v5968 = vunpack.c.l.b16 %v5688
  %v5969 = vunpack.c.l.b16 %v5689
  %v5970 = vunpack.c.l.b16 %v5690
  %v5971 = vunpack.c.l.b16 %v5691
  %v5972 = vunpack.c.l.b16 %v5692
  %v5973 = vunpack.c.l.b16 %v5693
  %v5974 = vunpack.c.l.b16 %v5694
  %v5975 = vunpack.c.l.b16 %v5695
  %v5976 = vunpack.c.l.b16 %v5696
  %v5977 = vunpack.c.l.b16 %v5697
  %v5978 = vunpack.c.l.b16 %v5698
  %v5979 = vunpack.c.l.b16 %v5699
  %v5980 = vunpack.c.l.b16 %v5700
  %v5981 = vunpack.c.l.b16 %v5701
  %v5982 = vunpack.c.l.b16 %v5702
  %v5983 = vunpack.c.l.b16 %v5703
  %v5984 = vunpack.c.l.b16 %v5704
  %v5985 = vunpack.c.l.b16 %v5705
  %v5986 = vunpack.c.l.b16 %v5706
  %v5987 = vunpack.c.l.b16 %v5707
  %v5988 = vunpack.c.l.b16 %v5708
  %v5989 = vunpack.c.l.b16 %v5709
  %v5990 = vunpack.c.l.b16 %v5710
  %v5991 = vunpack.c.l.b16 %v5711
  %v5992 = vunpack.c.l.b16 %v5712
  %v5993 = vunpack.c.l.b16 %v5713
  %v5994 = vunpack.c.l.b16 %v5714
  %v5995 = vunpack.c.l.b16 %v5715
  %v5996 = vunpack.c.l.b16 %v5716
  %v5997 = vunpack.c.l.b16 %v5717
  %v5998 = vunpack.c.l.b16 %v5718
  %v5999 = vunpack.c.l.b16 %v5719
  %v6000 = vunpack.c.l.b16 %v5720
  %v6001 = vunpack.c.l.b16 %v5721
  %v6002 = vunpack.c.l.b16 %v5722
  %v6003 = vunpack.c.l.b16 %v5723
  %v6004 = vunpack.c.l.b16 %v5724
  %v6005 = vunpack.c.l.b16 %v5725
  %v6006 = vunpack.c.l.b16 %v5726
  %v6007 = vunpack.c.l.b16 %v5727
  %v6008 = vunpack.c.l.b16 %v5728
  %v6009 = vunpack.c.l.b16 %v5729
  %v6010 = vunpack.c.l.b16 %v5730
  %v6011 = vunpack.c.l.b16 %v5731
  %v6012 = vunpack.c.l.b16 %v5732
  %v6013 = vunpack.c.l.b16 %v5733
  %v6014 = vunpack.c.l.b16 %v5734
  %v6015 = vunpack.c.l.b16 %v5735
  %v6016 = vunpack.c.l.b16 %v5736
  %v6017 = vunpack.c.l.b16 %v5737
  %v6018 = vunpack.c.l.b16 %v5738
  %v6019 = vunpack.c.l.b16 %v5739
  %v6020 = vunpack.c.l.b16 %v5740
  %v6021 = vunpack.c.l.b16 %v5741
  %v6022 = vunpack.c.l.b16 %v5742
  %v6023 = vunpack.c.l.b16 %v5743
  %v6024 = vunpack.c.l.b16 %v5744
  %v6025 = vunpack.c.l.b16 %v5745
  %v6026 = vunpack.c.l.b16 %v5746
  %v6027 = vunpack.c.l.b16 %v5747
  %v6028 = vunpack.c.l.b16 %v5748
  %v6029 = vunpack.c.l.b16 %v5749
  %v6030 = vunpack.c.l.b16 %v5750
  %v6031 = vunpack.c.l.b16 %v5751
  %v6032 = vunpack.c.l.b16 %v5752
  %v6033 = vunpack.c.l.b16 %v5753
  %v6034 = vunpack.c.l.b16 %v5754
  %v6035 = vunpack.c.l.b16 %v5755
  %v6036 = vunpack.c.l.b16 %v5756
  %v6037 = vunpack.c.l.b16 %v5757
  %v6038 = vunpack.c.l.b16 %v5758
  %v6039 = vunpack.c.l.b16 %v5759
  %v6040 = vunpack.c.l.b16 %v5760
  %v6041 = vunpack.c.l.b16 %v5761
  %v6042 = vunpack.c.l.b16 %v5762
  %v6043 = vunpack.c.l.b16 %v5763
  %v6044 = vunpack.c.l.b16 %v5764
  %v6045 = vunpack.c.l.b16 %v5765
  %v6046 = vunpack.c.l.b16 %v5766
  %v6047 = vunpack.c.l.b16 %v5767
  %v6048 = vunpack.c.l.b16 %v5768
  %v6049 = vunpack.c.l.b16 %v5769
  %v6050 = vunpack.c.l.b16 %v5770
  %v6051 = vunpack.c.l.b16 %v5771
  %v6052 = vunpack.c.l.b16 %v5772
  %v6053 = vunpack.c.l.b16 %v5773
  %v6054 = vunpack.c.l.b16 %v5774
  %v6055 = vunpack.c.l.b16 %v5775
  %v6056 = vunpack.c.l.b16 %v5776
  %v6057 = vunpack.c.l.b16 %v5777
  %v6058 = vunpack.c.l.b16 %v5778
  %v6059 = vunpack.c.l.b16 %v5779
  %v6060 = vunpack.c.l.b16 %v5780
  %v6061 = vunpack.c.l.b16 %v5781
  %v6062 = vunpack.c.l.b16 %v5782
  %v6063 = vunpack.c.l.b16 %v5783
  %v6064 = vunpack.c.l.b16 %v5784
  %v6065 = vunpack.c.l.b16 %v5785
  %v6066 = vunpack.c.l.b16 %v5786
  %v6067 = vunpack.c.l.b16 %v5787
  %v6068 = vunpack.c.l.b16 %v5788
  %v6069 = vunpack.c.l.b16 %v5789
  %v6070 = vunpack.c.l.b16 %v5790
  %v6071 = vunpack.c.l.b16 %v5791
  %v6072 = vunpack.c.l.b16 %v5792
  %v6073 = vunpack.c.l.b16 %v5793
  %v6074 = vunpack.c.l.b16 %v5794
  %v6075 = vunpack.c.l.b16 %v5795
  %v6076 = vunpack.c.l.b16 %v5796
  %v6077 = vunpack.c.l.b16 %v5797
  %v6078 = vunpack.c.l.b16 %v5798
  %v6079 = vunpack.c.l.b16 %v5799
  %v6080 = vunpack.c.l.b16 %v5800
  %v6081 = vunpack.c.l.b16 %v5801
  %v6082 = vunpack.c.l.b16 %v5802
  %v6083 = vunpack.c.l.b16 %v5803
  %v6084 = vunpack.c.l.b16 %v5804
  %v6085 = vunpack.c.l.b16 %v5805
  %v6086 = vunpack.c.l.b16 %v5806
  %v6087 = vunpack.c.l.b16 %v5807
  %v6088 = vunpack.c.l.b16 %v5808
  %v6089 = vunpack.c.l.b16 %v5809
  %v6090 = vunpack.c.l.b16 %v5810
  %v6091 = vunpack.c.l.b16 %v5811
  %v6092 = vunpack.c.l.b16 %v5812
  %v6093 = vunpack.c.l.b16 %v5813
  %v6094 = vunpack.c.l.b16 %v5814
  %v6095 = vunpack.c.l.b16 %v5815
  %v6096 = vunpack.c.l.b16 %v5816
  %v6097 = vunpack.c.l.b16 %v5817
  %v6098 = vunpack.c.l.b16 %v5818
  %v6099 = vunpack.c.l.b16 %v5819
  %v6100 = vunpack.c.l.b16 %v5820
  %v6101 = vunpack.c.l.b16 %v5821
  %v6102 = vunpack.c.l.b16 %v5822
  %v6103 = vunpack.c.l.b16 %v5823
  %v6104 = vunpack.c.l.b16 %v5824
  %v6105 = vunpack.c.l.b16 %v5825
  %v6106 = vpack.c.b16 %v5969, %v5968
  %v6107 = vpack.c.b16 %v5971, %v5970
  %v6108 = vpack.c.b16 %v5973, %v5972
  %v6109 = vpack.c.b16 %v5975, %v5974
  %v6110 = vpack.c.b16 %v5977, %v5976
  %v6111 = vpack.c.b16 %v5979, %v5978
  %v6112 = vpack.c.b16 %v5981, %v5980
  %v6113 = vpack.c.b16 %v5983, %v5982
  %v6114 = vpack.c.b16 %v5985, %v5984
  %v6115 = vpack.c.b16 %v5987, %v5986
  %v6116 = vpack.c.b16 %v5989, %v5988
  %v6117 = vpack.c.b16 %v5991, %v5990
  %v6118 = vpack.c.b16 %v5993, %v5992
  %v6119 = vpack.c.b16 %v5995, %v5994
  %v6120 = vpack.c.b16 %v5997, %v5996
  %v6121 = vpack.c.b16 %v5999, %v5998
  %v6122 = vpack.c.b16 %v6001, %v6000
  %v6123 = vpack.c.b16 %v6003, %v6002
  %v6124 = vpack.c.b16 %v6005, %v6004
  %v6125 = vpack.c.b16 %v6007, %v6006
  %v6126 = vpack.c.b16 %v6009, %v6008
  %v6127 = vpack.c.b16 %v6011, %v6010
  %v6128 = vpack.c.b16 %v6013, %v6012
  %v6129 = vpack.c.b16 %v6015, %v6014
  %v6130 = vpack.c.b16 %v6017, %v6016
  %v6131 = vpack.c.b16 %v6019, %v6018
  %v6132 = vpack.c.b16 %v6021, %v6020
  %v6133 = vpack.c.b16 %v6023, %v6022
  %v6134 = vpack.c.b16 %v6025, %v6024
  %v6135 = vpack.c.b16 %v6027, %v6026
  %v6136 = vpack.c.b16 %v6029, %v6028
  %v6137 = vpack.c.b16 %v6031, %v6030
  %v6138 = vpack.c.b16 %v6033, %v6032
  %v6139 = vpack.c.b16 %v6035, %v6034
  %v6140 = vpack.c.b16 %v6037, %v6036
  %v6141 = vpack.c.b16 %v6039, %v6038
  %v6142 = vpack.c.b16 %v6041, %v6040
  %v6143 = vpack.c.b16 %v6043, %v6042
  %v6144 = vpack.c.b16 %v6045, %v6044
  %v6145 = vpack.c.b16 %v6047, %v6046
  %v6146 = vpack.c.b16 %v6049, %v6048
  %v6147 = vpack.c.b16 %v6051, %v6050
  %v6148 = vpack.c.b16 %v6053, %v6052
  %v6149 = vpack.c.b16 %v6055, %v6054
  %v6150 = vpack.c.b16 %v6057, %v6056
  %v6151 = vpack.c.b16 %v6059, %v6058
  %v6152 = vpack.c.b16 %v6061, %v6060
  %v6153 = vpack.c.b16 %v6063, %v6062
  %v6154 = vpack.c.b16 %v6065, %v6064
  %v6155 = vpack.c.b16 %v6067, %v6066
  %v6156 = vpack.c.b16 %v6069, %v6068
  %v6157 = vpack.c.b16 %v6071, %v6070
  %v6158 = vpack.c.b16 %v6073, %v6072
  %v6159 = vpack.c.b16 %v6075, %v6074
  %v6160 = vpack.c.b16 %v6077, %v6076
  %v6161 = vpack.c.b16 %v6079, %v6078
  %v6162 = vpack.c.b16 %v6081, %v6080
  %v6163 = vpack.c.b16 %v6083, %v6082
  %v6164 = vpack.c.b16 %v6085, %v6084
  %v6165 = vpack.c.b16 %v6087, %v6086
  %v6166 = vpack.c.b16 %v6089, %v6088
  %v6167 = vpack.c.b16 %v6091, %v6090
  %v6168 = vpack.c.b16 %v6093, %v6092
  %v6169 = vpack.c.b16 %v6095, %v6094
  %v6170 = vpack.c.b16 %v6097, %v6096
  %v6171 = vpack.c.b16 %v6099, %v6098
  %v6172 = vpack.c.b16 %v6101, %v6100
  %v6173 = vpack.c.b16 %v6103, %v6102
  %v6174 = vpack.c.b16 %v6105, %v6104
  %v6177 = vunpack.c.l.b16 %v5826
  %v6178 = vunpack.c.l.b16 %v5827
  %v6179 = vpack.c.b16 %v5969, %v6177
  %v6180 = vpack.c.b16 %v6178, %v6104
  %vm6181 = vcmask 1046528
  %v6182 = vrot.slane %v6179, 1
  %v6183 = vrot.slane %v6107, 1
  %v6184 = vsel %vm6181, %v6182, %v6183
  %v6185 = vrot.slane %v6108, 1
  %v6186 = vsel %vm6181, %v6183, %v6185
  %v6187 = vrot.slane %v6109, 1
  %v6188 = vsel %vm6181, %v6185, %v6187
  %v6189 = vrot.slane %v6110, 1
  %v6190 = vsel %vm6181, %v6187, %v6189
  %v6191 = vrot.slane %v6111, 1
  %v6192 = vsel %vm6181, %v6189, %v6191
  %v6193 = vrot.slane %v6112, 1
  %v6194 = vsel %vm6181, %v6191, %v6193
  %v6195 = vrot.slane %v6113, 1
  %v6196 = vsel %vm6181, %v6193, %v6195
  %v6197 = vrot.slane %v6114, 1
  %v6198 = vsel %vm6181, %v6195, %v6197
  %v6199 = vrot.slane %v6115, 1
  %v6200 = vsel %vm6181, %v6197, %v6199
  %v6201 = vrot.slane %v6116, 1
  %v6202 = vsel %vm6181, %v6199, %v6201
  %v6203 = vrot.slane %v6117, 1
  %v6204 = vsel %vm6181, %v6201, %v6203
  %v6205 = vrot.slane %v6118, 1
  %v6206 = vsel %vm6181, %v6203, %v6205
  %v6207 = vrot.slane %v6119, 1
  %v6208 = vsel %vm6181, %v6205, %v6207
  %v6209 = vrot.slane %v6120, 1
  %v6210 = vsel %vm6181, %v6207, %v6209
  %v6211 = vrot.slane %v6121, 1
  %v6212 = vsel %vm6181, %v6209, %v6211
  %v6213 = vrot.slane %v6122, 1
  %v6214 = vsel %vm6181, %v6211, %v6213
  %v6215 = vrot.slane %v6123, 1
  %v6216 = vsel %vm6181, %v6213, %v6215
  %v6217 = vrot.slane %v6124, 1
  %v6218 = vsel %vm6181, %v6215, %v6217
  %v6219 = vrot.slane %v6125, 1
  %v6220 = vsel %vm6181, %v6217, %v6219
  %v6221 = vrot.slane %v6126, 1
  %v6222 = vsel %vm6181, %v6219, %v6221
  %v6223 = vrot.slane %v6127, 1
  %v6224 = vsel %vm6181, %v6221, %v6223
  %v6225 = vrot.slane %v6128, 1
  %v6226 = vsel %vm6181, %v6223, %v6225
  %v6227 = vrot.slane %v6129, 1
  %v6228 = vsel %vm6181, %v6225, %v6227
  %v6229 = vrot.slane %v6130, 1
  %v6230 = vsel %vm6181, %v6227, %v6229
  %v6231 = vrot.slane %v6131, 1
  %v6232 = vsel %vm6181, %v6229, %v6231
  %v6233 = vrot.slane %v6132, 1
  %v6234 = vsel %vm6181, %v6231, %v6233
  %v6235 = vrot.slane %v6133, 1
  %v6236 = vsel %vm6181, %v6233, %v6235
  %v6237 = vrot.slane %v6134, 1
  %v6238 = vsel %vm6181, %v6235, %v6237
  %v6239 = vrot.slane %v6135, 1
  %v6240 = vsel %vm6181, %v6237, %v6239
  %v6241 = vrot.slane %v6136, 1
  %v6242 = vsel %vm6181, %v6239, %v6241
  %v6243 = vrot.slane %v6137, 1
  %v6244 = vsel %vm6181, %v6241, %v6243
  %v6245 = vrot.slane %v6138, 1
  %v6246 = vsel %vm6181, %v6243, %v6245
  %v6247 = vrot.slane %v6139, 1
  %v6248 = vsel %vm6181, %v6245, %v6247
  %v6249 = vrot.slane %v6140, 1
  %v6250 = vsel %vm6181, %v6247, %v6249
  %v6251 = vrot.slane %v6141, 1
  %v6252 = vsel %vm6181, %v6249, %v6251
  %v6253 = vrot.slane %v6142, 1
  %v6254 = vsel %vm6181, %v6251, %v6253
  %v6255 = vrot.slane %v6143, 1
  %v6256 = vsel %vm6181, %v6253, %v6255
  %v6257 = vrot.slane %v6144, 1
  %v6258 = vsel %vm6181, %v6255, %v6257
  %v6259 = vrot.slane %v6145, 1
  %v6260 = vsel %vm6181, %v6257, %v6259
  %v6261 = vrot.slane %v6146, 1
  %v6262 = vsel %vm6181, %v6259, %v6261
  %v6263 = vrot.slane %v6147, 1
  %v6264 = vsel %vm6181, %v6261, %v6263
  %v6265 = vrot.slane %v6148, 1
  %v6266 = vsel %vm6181, %v6263, %v6265
  %v6267 = vrot.slane %v6149, 1
  %v6268 = vsel %vm6181, %v6265, %v6267
  %v6269 = vrot.slane %v6150, 1
  %v6270 = vsel %vm6181, %v6267, %v6269
  %v6271 = vrot.slane %v6151, 1
  %v6272 = vsel %vm6181, %v6269, %v6271
  %v6273 = vrot.slane %v6152, 1
  %v6274 = vsel %vm6181, %v6271, %v6273
  %v6275 = vrot.slane %v6153, 1
  %v6276 = vsel %vm6181, %v6273, %v6275
  %v6277 = vrot.slane %v6154, 1
  %v6278 = vsel %vm6181, %v6275, %v6277
  %v6279 = vrot.slane %v6155, 1
  %v6280 = vsel %vm6181, %v6277, %v6279
  %v6281 = vrot.slane %v6156, 1
  %v6282 = vsel %vm6181, %v6279, %v6281
  %v6283 = vrot.slane %v6157, 1
  %v6284 = vsel %vm6181, %v6281, %v6283
  %v6285 = vrot.slane %v6158, 1
  %v6286 = vsel %vm6181, %v6283, %v6285
  %v6287 = vrot.slane %v6159, 1
  %v6288 = vsel %vm6181, %v6285, %v6287
  %v6289 = vrot.slane %v6160, 1
  %v6290 = vsel %vm6181, %v6287, %v6289
  %v6291 = vrot.slane %v6161, 1
  %v6292 = vsel %vm6181, %v6289, %v6291
  %v6293 = vrot.slane %v6162, 1
  %v6294 = vsel %vm6181, %v6291, %v6293
  %v6295 = vrot.slane %v6163, 1
  %v6296 = vsel %vm6181, %v6293, %v6295
  %v6297 = vrot.slane %v6164, 1
  %v6298 = vsel %vm6181, %v6295, %v6297
  %v6299 = vrot.slane %v6165, 1
  %v6300 = vsel %vm6181, %v6297, %v6299
  %v6301 = vrot.slane %v6166, 1
  %v6302 = vsel %vm6181, %v6299, %v6301
  %v6303 = vrot.slane %v6167, 1
  %v6304 = vsel %vm6181, %v6301, %v6303
  %v6305 = vrot.slane %v6168, 1
  %v6306 = vsel %vm6181, %v6303, %v6305
  %v6307 = vrot.slane %v6169, 1
  %v6308 = vsel %vm6181, %v6305, %v6307
  %v6309 = vrot.slane %v6170, 1
  %v6310 = vsel %vm6181, %v6307, %v6309
  %v6311 = vrot.slane %v6171, 1
  %v6312 = vsel %vm6181, %v6309, %v6311
  %v6313 = vrot.slane %v6172, 1
  %v6314 = vsel %vm6181, %v6311, %v6313
  %v6315 = vrot.slane %v6173, 1
  %v6316 = vsel %vm6181, %v6313, %v6315
  %v6317 = vrot.slane %v6180, 1
  %v6318 = vsel %vm6181, %v6315, %v6317
  %6319 = vrot.lane.b32.xlu0 %v6184, 64
  %v6320 = vpop.permute.xlu0 %6319
  %6321 = vrot.lane.b32.xlu0 %v6186, 64
  %v6322 = vpop.permute.xlu0 %6321
  %6323 = vrot.lane.b32.xlu0 %v6188, 64
  %v6324 = vpop.permute.xlu0 %6323
  %6325 = vrot.lane.b32.xlu0 %v6190, 64
  %v6326 = vpop.permute.xlu0 %6325
  %6327 = vrot.lane.b32.xlu0 %v6192, 64
  %v6328 = vpop.permute.xlu0 %6327
  %6329 = vrot.lane.b32.xlu0 %v6194, 64
  %v6330 = vpop.permute.xlu0 %6329
  %6331 = vrot.lane.b32.xlu0 %v6196, 64
  %v6332 = vpop.permute.xlu0 %6331
  %6333 = vrot.lane.b32.xlu0 %v6198, 64
  %v6334 = vpop.permute.xlu0 %6333
  %6335 = vrot.lane.b32.xlu0 %v6200, 64
  %v6336 = vpop.permute.xlu0 %6335
  %6337 = vrot.lane.b32.xlu0 %v6202, 64
  %v6338 = vpop.permute.xlu0 %6337
  %6339 = vrot.lane.b32.xlu0 %v6204, 64
  %v6340 = vpop.permute.xlu0 %6339
  %6341 = vrot.lane.b32.xlu0 %v6206, 64
  %v6342 = vpop.permute.xlu0 %6341
  %6343 = vrot.lane.b32.xlu0 %v6208, 64
  %v6344 = vpop.permute.xlu0 %6343
  %6345 = vrot.lane.b32.xlu0 %v6210, 64
  %v6346 = vpop.permute.xlu0 %6345
  %6347 = vrot.lane.b32.xlu0 %v6212, 64
  %v6348 = vpop.permute.xlu0 %6347
  %6349 = vrot.lane.b32.xlu0 %v6214, 64
  %v6350 = vpop.permute.xlu0 %6349
  %6351 = vrot.lane.b32.xlu0 %v6216, 64
  %v6352 = vpop.permute.xlu0 %6351
  %6353 = vrot.lane.b32.xlu0 %v6218, 64
  %v6354 = vpop.permute.xlu0 %6353
  %6355 = vrot.lane.b32.xlu0 %v6220, 64
  %v6356 = vpop.permute.xlu0 %6355
  %6357 = vrot.lane.b32.xlu0 %v6222, 64
  %v6358 = vpop.permute.xlu0 %6357
  %6359 = vrot.lane.b32.xlu0 %v6224, 64
  %v6360 = vpop.permute.xlu0 %6359
  %6361 = vrot.lane.b32.xlu0 %v6226, 64
  %v6362 = vpop.permute.xlu0 %6361
  %6363 = vrot.lane.b32.xlu0 %v6228, 64
  %v6364 = vpop.permute.xlu0 %6363
  %6365 = vrot.lane.b32.xlu0 %v6230, 64
  %v6366 = vpop.permute.xlu0 %6365
  %6367 = vrot.lane.b32.xlu0 %v6232, 64
  %v6368 = vpop.permute.xlu0 %6367
  %6369 = vrot.lane.b32.xlu0 %v6234, 64
  %v6370 = vpop.permute.xlu0 %6369
  %6371 = vrot.lane.b32.xlu0 %v6236, 64
  %v6372 = vpop.permute.xlu0 %6371
  %6373 = vrot.lane.b32.xlu0 %v6238, 64
  %v6374 = vpop.permute.xlu0 %6373
  %6375 = vrot.lane.b32.xlu0 %v6240, 64
  %v6376 = vpop.permute.xlu0 %6375
  %6377 = vrot.lane.b32.xlu0 %v6242, 64
  %v6378 = vpop.permute.xlu0 %6377
  %6379 = vrot.lane.b32.xlu0 %v6244, 64
  %v6380 = vpop.permute.xlu0 %6379
  %6381 = vrot.lane.b32.xlu0 %v6246, 64
  %v6382 = vpop.permute.xlu0 %6381
  %6383 = vrot.lane.b32.xlu0 %v6248, 64
  %v6384 = vpop.permute.xlu0 %6383
  %6385 = vrot.lane.b32.xlu0 %v6250, 64
  %v6386 = vpop.permute.xlu0 %6385
  %6387 = vrot.lane.b32.xlu0 %v6252, 64
  %v6388 = vpop.permute.xlu0 %6387
  %6389 = vrot.lane.b32.xlu0 %v6254, 64
  %v6390 = vpop.permute.xlu0 %6389
  %6391 = vrot.lane.b32.xlu0 %v6256, 64
  %v6392 = vpop.permute.xlu0 %6391
  %6393 = vrot.lane.b32.xlu0 %v6258, 64
  %v6394 = vpop.permute.xlu0 %6393
  %6395 = vrot.lane.b32.xlu0 %v6260, 64
  %v6396 = vpop.permute.xlu0 %6395
  %6397 = vrot.lane.b32.xlu0 %v6262, 64
  %v6398 = vpop.permute.xlu0 %6397
  %6399 = vrot.lane.b32.xlu0 %v6264, 64
  %v6400 = vpop.permute.xlu0 %6399
  %6401 = vrot.lane.b32.xlu0 %v6266, 64
  %v6402 = vpop.permute.xlu0 %6401
  %6403 = vrot.lane.b32.xlu0 %v6268, 64
  %v6404 = vpop.permute.xlu0 %6403
  %6405 = vrot.lane.b32.xlu0 %v6270, 64
  %v6406 = vpop.permute.xlu0 %6405
  %6407 = vrot.lane.b32.xlu0 %v6272, 64
  %v6408 = vpop.permute.xlu0 %6407
  %6409 = vrot.lane.b32.xlu0 %v6274, 64
  %v6410 = vpop.permute.xlu0 %6409
  %6411 = vrot.lane.b32.xlu0 %v6276, 64
  %v6412 = vpop.permute.xlu0 %6411
  %6413 = vrot.lane.b32.xlu0 %v6278, 64
  %v6414 = vpop.permute.xlu0 %6413
  %6415 = vrot.lane.b32.xlu0 %v6280, 64
  %v6416 = vpop.permute.xlu0 %6415
  %6417 = vrot.lane.b32.xlu0 %v6282, 64
  %v6418 = vpop.permute.xlu0 %6417
  %6419 = vrot.lane.b32.xlu0 %v6284, 64
  %v6420 = vpop.permute.xlu0 %6419
  %6421 = vrot.lane.b32.xlu0 %v6286, 64
  %v6422 = vpop.permute.xlu0 %6421
  %6423 = vrot.lane.b32.xlu0 %v6288, 64
  %v6424 = vpop.permute.xlu0 %6423
  %6425 = vrot.lane.b32.xlu0 %v6290, 64
  %v6426 = vpop.permute.xlu0 %6425
  %6427 = vrot.lane.b32.xlu0 %v6292, 64
  %v6428 = vpop.permute.xlu0 %6427
  %6429 = vrot.lane.b32.xlu0 %v6294, 64
  %v6430 = vpop.permute.xlu0 %6429
  %6431 = vrot.lane.b32.xlu0 %v6296, 64
  %v6432 = vpop.permute.xlu0 %6431
  %6433 = vrot.lane.b32.xlu0 %v6298, 64
  %v6434 = vpop.permute.xlu0 %6433
  %6435 = vrot.lane.b32.xlu0 %v6300, 64
  %v6436 = vpop.permute.xlu0 %6435
  %6437 = vrot.lane.b32.xlu0 %v6302, 64
  %v6438 = vpop.permute.xlu0 %6437
  %6439 = vrot.lane.b32.xlu0 %v6304, 64
  %v6440 = vpop.permute.xlu0 %6439
  %6441 = vrot.lane.b32.xlu0 %v6306, 64
  %v6442 = vpop.permute.xlu0 %6441
  %6443 = vrot.lane.b32.xlu0 %v6308, 64
  %v6444 = vpop.permute.xlu0 %6443
  %6445 = vrot.lane.b32.xlu0 %v6310, 64
  %v6446 = vpop.permute.xlu0 %6445
  %6447 = vrot.lane.b32.xlu0 %v6312, 64
  %v6448 = vpop.permute.xlu0 %6447
  %6449 = vrot.lane.b32.xlu0 %v6314, 64
  %v6450 = vpop.permute.xlu0 %6449
  %6451 = vrot.lane.b32.xlu0 %v6316, 64
  %v6452 = vpop.permute.xlu0 %6451
  %6453 = vrot.lane.b32.xlu0 %v6318, 64
  %v6454 = vpop.permute.xlu0 %6453
  %6455 = vrot.lane.b32.xlu0 %v6317, 64
  %v6456 = vpop.permute.xlu0 %6455
  %v6459 = vunpack.c.l.b16 %v5828
  %v6460 = vunpack.c.l.b16 %v5829
  %v6461 = vpack.c.b16 %v5969, %v6459
  %v6462 = vpack.c.b16 %v6460, %v6104
  %vm6463 = vcmask 1045504
  %v6464 = vrot.slane %v6461, 2
  %v6465 = vrot.slane %v6107, 2
  %v6466 = vsel %vm6463, %v6464, %v6465
  %v6467 = vrot.slane %v6108, 2
  %v6468 = vsel %vm6463, %v6465, %v6467
  %v6469 = vrot.slane %v6109, 2
  %v6470 = vsel %vm6463, %v6467, %v6469
  %v6471 = vrot.slane %v6110, 2
  %v6472 = vsel %vm6463, %v6469, %v6471
  %v6473 = vrot.slane %v6111, 2
  %v6474 = vsel %vm6463, %v6471, %v6473
  %v6475 = vrot.slane %v6112, 2
  %v6476 = vsel %vm6463, %v6473, %v6475
  %v6477 = vrot.slane %v6113, 2
  %v6478 = vsel %vm6463, %v6475, %v6477
  %v6479 = vrot.slane %v6114, 2
  %v6480 = vsel %vm6463, %v6477, %v6479
  %v6481 = vrot.slane %v6115, 2
  %v6482 = vsel %vm6463, %v6479, %v6481
  %v6483 = vrot.slane %v6116, 2
  %v6484 = vsel %vm6463, %v6481, %v6483
  %v6485 = vrot.slane %v6117, 2
  %v6486 = vsel %vm6463, %v6483, %v6485
  %v6487 = vrot.slane %v6118, 2
  %v6488 = vsel %vm6463, %v6485, %v6487
  %v6489 = vrot.slane %v6119, 2
  %v6490 = vsel %vm6463, %v6487, %v6489
  %v6491 = vrot.slane %v6120, 2
  %v6492 = vsel %vm6463, %v6489, %v6491
  %v6493 = vrot.slane %v6121, 2
  %v6494 = vsel %vm6463, %v6491, %v6493
  %v6495 = vrot.slane %v6122, 2
  %v6496 = vsel %vm6463, %v6493, %v6495
  %v6497 = vrot.slane %v6123, 2
  %v6498 = vsel %vm6463, %v6495, %v6497
  %v6499 = vrot.slane %v6124, 2
  %v6500 = vsel %vm6463, %v6497, %v6499
  %v6501 = vrot.slane %v6125, 2
  %v6502 = vsel %vm6463, %v6499, %v6501
  %v6503 = vrot.slane %v6126, 2
  %v6504 = vsel %vm6463, %v6501, %v6503
  %v6505 = vrot.slane %v6127, 2
  %v6506 = vsel %vm6463, %v6503, %v6505
  %v6507 = vrot.slane %v6128, 2
  %v6508 = vsel %vm6463, %v6505, %v6507
  %v6509 = vrot.slane %v6129, 2
  %v6510 = vsel %vm6463, %v6507, %v6509
  %v6511 = vrot.slane %v6130, 2
  %v6512 = vsel %vm6463, %v6509, %v6511
  %v6513 = vrot.slane %v6131, 2
  %v6514 = vsel %vm6463, %v6511, %v6513
  %v6515 = vrot.slane %v6132, 2
  %v6516 = vsel %vm6463, %v6513, %v6515
  %v6517 = vrot.slane %v6133, 2
  %v6518 = vsel %vm6463, %v6515, %v6517
  %v6519 = vrot.slane %v6134, 2
  %v6520 = vsel %vm6463, %v6517, %v6519
  %v6521 = vrot.slane %v6135, 2
  %v6522 = vsel %vm6463, %v6519, %v6521
  %v6523 = vrot.slane %v6136, 2
  %v6524 = vsel %vm6463, %v6521, %v6523
  %v6525 = vrot.slane %v6137, 2
  %v6526 = vsel %vm6463, %v6523, %v6525
  %v6527 = vrot.slane %v6138, 2
  %v6528 = vsel %vm6463, %v6525, %v6527
  %v6529 = vrot.slane %v6139, 2
  %v6530 = vsel %vm6463, %v6527, %v6529
  %v6531 = vrot.slane %v6140, 2
  %v6532 = vsel %vm6463, %v6529, %v6531
  %v6533 = vrot.slane %v6141, 2
  %v6534 = vsel %vm6463, %v6531, %v6533
  %v6535 = vrot.slane %v6142, 2
  %v6536 = vsel %vm6463, %v6533, %v6535
  %v6537 = vrot.slane %v6143, 2
  %v6538 = vsel %vm6463, %v6535, %v6537
  %v6539 = vrot.slane %v6144, 2
  %v6540 = vsel %vm6463, %v6537, %v6539
  %v6541 = vrot.slane %v6145, 2
  %v6542 = vsel %vm6463, %v6539, %v6541
  %v6543 = vrot.slane %v6146, 2
  %v6544 = vsel %vm6463, %v6541, %v6543
  %v6545 = vrot.slane %v6147, 2
  %v6546 = vsel %vm6463, %v6543, %v6545
  %v6547 = vrot.slane %v6148, 2
  %v6548 = vsel %vm6463, %v6545, %v6547
  %v6549 = vrot.slane %v6149, 2
  %v6550 = vsel %vm6463, %v6547, %v6549
  %v6551 = vrot.slane %v6150, 2
  %v6552 = vsel %vm6463, %v6549, %v6551
  %v6553 = vrot.slane %v6151, 2
  %v6554 = vsel %vm6463, %v6551, %v6553
  %v6555 = vrot.slane %v6152, 2
  %v6556 = vsel %vm6463, %v6553, %v6555
  %v6557 = vrot.slane %v6153, 2
  %v6558 = vsel %vm6463, %v6555, %v6557
  %v6559 = vrot.slane %v6154, 2
  %v6560 = vsel %vm6463, %v6557, %v6559
  %v6561 = vrot.slane %v6155, 2
  %v6562 = vsel %vm6463, %v6559, %v6561
  %v6563 = vrot.slane %v6156, 2
  %v6564 = vsel %vm6463, %v6561, %v6563
  %v6565 = vrot.slane %v6157, 2
  %v6566 = vsel %vm6463, %v6563, %v6565
  %v6567 = vrot.slane %v6158, 2
  %v6568 = vsel %vm6463, %v6565, %v6567
  %v6569 = vrot.slane %v6159, 2
  %v6570 = vsel %vm6463, %v6567, %v6569
  %v6571 = vrot.slane %v6160, 2
  %v6572 = vsel %vm6463, %v6569, %v6571
  %v6573 = vrot.slane %v6161, 2
  %v6574 = vsel %vm6463, %v6571, %v6573
  %v6575 = vrot.slane %v6162, 2
  %v6576 = vsel %vm6463, %v6573, %v6575
  %v6577 = vrot.slane %v6163, 2
  %v6578 = vsel %vm6463, %v6575, %v6577
  %v6579 = vrot.slane %v6164, 2
  %v6580 = vsel %vm6463, %v6577, %v6579
  %v6581 = vrot.slane %v6165, 2
  %v6582 = vsel %vm6463, %v6579, %v6581
  %v6583 = vrot.slane %v6166, 2
  %v6584 = vsel %vm6463, %v6581, %v6583
  %v6585 = vrot.slane %v6167, 2
  %v6586 = vsel %vm6463, %v6583, %v6585
  %v6587 = vrot.slane %v6168, 2
  %v6588 = vsel %vm6463, %v6585, %v6587
  %v6589 = vrot.slane %v6169, 2
  %v6590 = vsel %vm6463, %v6587, %v6589
  %v6591 = vrot.slane %v6170, 2
  %v6592 = vsel %vm6463, %v6589, %v6591
  %v6593 = vrot.slane %v6171, 2
  %v6594 = vsel %vm6463, %v6591, %v6593
  %v6595 = vrot.slane %v6172, 2
  %v6596 = vsel %vm6463, %v6593, %v6595
  %v6597 = vrot.slane %v6173, 2
  %v6598 = vsel %vm6463, %v6595, %v6597
  %v6599 = vrot.slane %v6462, 2
  %v6600 = vsel %vm6463, %v6597, %v6599
  %vm6601 = vcmask 523264
  %v6604 = vsel %vm6601, %v6106, %v6320
  %v6608 = vsel %vm6601, %v6107, %v6322
  %v6612 = vsel %vm6601, %v6108, %v6324
  %v6616 = vsel %vm6601, %v6109, %v6326
  %v6620 = vsel %vm6601, %v6110, %v6328
  %v6624 = vsel %vm6601, %v6111, %v6330
  %v6628 = vsel %vm6601, %v6112, %v6332
  %v6632 = vsel %vm6601, %v6113, %v6334
  %v6636 = vsel %vm6601, %v6114, %v6336
  %v6640 = vsel %vm6601, %v6115, %v6338
  %v6644 = vsel %vm6601, %v6116, %v6340
  %v6648 = vsel %vm6601, %v6117, %v6342
  %v6652 = vsel %vm6601, %v6118, %v6344
  %v6656 = vsel %vm6601, %v6119, %v6346
  %v6660 = vsel %vm6601, %v6120, %v6348
  %v6664 = vsel %vm6601, %v6121, %v6350
  %v6668 = vsel %vm6601, %v6122, %v6352
  %v6672 = vsel %vm6601, %v6123, %v6354
  %v6676 = vsel %vm6601, %v6124, %v6356
  %v6680 = vsel %vm6601, %v6125, %v6358
  %v6684 = vsel %vm6601, %v6126, %v6360
  %v6688 = vsel %vm6601, %v6127, %v6362
  %v6692 = vsel %vm6601, %v6128, %v6364
  %v6696 = vsel %vm6601, %v6129, %v6366
  %v6700 = vsel %vm6601, %v6130, %v6368
  %v6704 = vsel %vm6601, %v6131, %v6370
  %v6708 = vsel %vm6601, %v6132, %v6372
  %v6712 = vsel %vm6601, %v6133, %v6374
  %v6716 = vsel %vm6601, %v6134, %v6376
  %v6720 = vsel %vm6601, %v6135, %v6378
  %v6724 = vsel %vm6601, %v6136, %v6380
  %v6728 = vsel %vm6601, %v6137, %v6382
  %v6732 = vsel %vm6601, %v6138, %v6384
  %v6736 = vsel %vm6601, %v6139, %v6386
  %v6740 = vsel %vm6601, %v6140, %v6388
  %v6744 = vsel %vm6601, %v6141, %v6390
  %v6748 = vsel %vm6601, %v6142, %v6392
  %v6752 = vsel %vm6601, %v6143, %v6394
  %v6756 = vsel %vm6601, %v6144, %v6396
  %v6760 = vsel %vm6601, %v6145, %v6398
  %v6764 = vsel %vm6601, %v6146, %v6400
  %v6768 = vsel %vm6601, %v6147, %v6402
  %v6772 = vsel %vm6601, %v6148, %v6404
  %v6776 = vsel %vm6601, %v6149, %v6406
  %v6780 = vsel %vm6601, %v6150, %v6408
  %v6784 = vsel %vm6601, %v6151, %v6410
  %v6788 = vsel %vm6601, %v6152, %v6412
  %v6792 = vsel %vm6601, %v6153, %v6414
  %v6796 = vsel %vm6601, %v6154, %v6416
  %v6800 = vsel %vm6601, %v6155, %v6418
  %v6804 = vsel %vm6601, %v6156, %v6420
  %v6808 = vsel %vm6601, %v6157, %v6422
  %v6812 = vsel %vm6601, %v6158, %v6424
  %v6816 = vsel %vm6601, %v6159, %v6426
  %v6820 = vsel %vm6601, %v6160, %v6428
  %v6824 = vsel %vm6601, %v6161, %v6430
  %v6828 = vsel %vm6601, %v6162, %v6432
  %v6832 = vsel %vm6601, %v6163, %v6434
  %v6836 = vsel %vm6601, %v6164, %v6436
  %v6840 = vsel %vm6601, %v6165, %v6438
  %v6844 = vsel %vm6601, %v6166, %v6440
  %v6848 = vsel %vm6601, %v6167, %v6442
  %v6852 = vsel %vm6601, %v6168, %v6444
  %v6856 = vsel %vm6601, %v6169, %v6446
  %v6860 = vsel %vm6601, %v6170, %v6448
  %v6864 = vsel %vm6601, %v6171, %v6450
  %v6868 = vsel %vm6601, %v6172, %v6452
  %v6872 = vsel %vm6601, %v6173, %v6454
  %v6876 = vsel %vm6601, %v6174, %v6456
  %6941 = vrot.lane.b32.xlu0 %v6616, 64
  %v6942 = vpop.permute.xlu0 %6941
  %6943 = vrot.lane.b32.xlu0 %v6472, 64
  %v6944 = vpop.permute.xlu0 %6943
  %6945 = vrot.lane.b32.xlu0 %v6620, 64
  %v6946 = vpop.permute.xlu0 %6945
  %6947 = vrot.lane.b32.xlu0 %v6474, 64
  %v6948 = vpop.permute.xlu0 %6947
  %6949 = vrot.lane.b32.xlu0 %v6624, 64
  %v6950 = vpop.permute.xlu0 %6949
  %6951 = vrot.lane.b32.xlu0 %v6476, 64
  %v6952 = vpop.permute.xlu0 %6951
  %6953 = vrot.lane.b32.xlu0 %v6628, 64
  %v6954 = vpop.permute.xlu0 %6953
  %6955 = vrot.lane.b32.xlu0 %v6478, 64
  %v6956 = vpop.permute.xlu0 %6955
  %6957 = vrot.lane.b32.xlu0 %v6632, 64
  %v6958 = vpop.permute.xlu0 %6957
  %6959 = vrot.lane.b32.xlu0 %v6480, 64
  %v6960 = vpop.permute.xlu0 %6959
  %6961 = vrot.lane.b32.xlu0 %v6636, 64
  %v6962 = vpop.permute.xlu0 %6961
  %6963 = vrot.lane.b32.xlu0 %v6482, 64
  %v6964 = vpop.permute.xlu0 %6963
  %6965 = vrot.lane.b32.xlu0 %v6640, 64
  %v6966 = vpop.permute.xlu0 %6965
  %6967 = vrot.lane.b32.xlu0 %v6484, 64
  %v6968 = vpop.permute.xlu0 %6967
  %6969 = vrot.lane.b32.xlu0 %v6644, 64
  %v6970 = vpop.permute.xlu0 %6969
  %6971 = vrot.lane.b32.xlu0 %v6486, 64
  %v6972 = vpop.permute.xlu0 %6971
  %6973 = vrot.lane.b32.xlu0 %v6648, 64
  %v6974 = vpop.permute.xlu0 %6973
  %6975 = vrot.lane.b32.xlu0 %v6488, 64
  %v6976 = vpop.permute.xlu0 %6975
  %6977 = vrot.lane.b32.xlu0 %v6652, 64
  %v6978 = vpop.permute.xlu0 %6977
  %6979 = vrot.lane.b32.xlu0 %v6490, 64
  %v6980 = vpop.permute.xlu0 %6979
  %6981 = vrot.lane.b32.xlu0 %v6656, 64
  %v6982 = vpop.permute.xlu0 %6981
  %6983 = vrot.lane.b32.xlu0 %v6492, 64
  %v6984 = vpop.permute.xlu0 %6983
  %6985 = vrot.lane.b32.xlu0 %v6660, 64
  %v6986 = vpop.permute.xlu0 %6985
  %6987 = vrot.lane.b32.xlu0 %v6494, 64
  %v6988 = vpop.permute.xlu0 %6987
  %6989 = vrot.lane.b32.xlu0 %v6664, 64
  %v6990 = vpop.permute.xlu0 %6989
  %6991 = vrot.lane.b32.xlu0 %v6496, 64
  %v6992 = vpop.permute.xlu0 %6991
  %6993 = vrot.lane.b32.xlu0 %v6668, 64
  %v6994 = vpop.permute.xlu0 %6993
  %6995 = vrot.lane.b32.xlu0 %v6498, 64
  %v6996 = vpop.permute.xlu0 %6995
  %6997 = vrot.lane.b32.xlu0 %v6672, 64
  %v6998 = vpop.permute.xlu0 %6997
  %6999 = vrot.lane.b32.xlu0 %v6500, 64
  %v7000 = vpop.permute.xlu0 %6999
  %7001 = vrot.lane.b32.xlu0 %v6676, 64
  %v7002 = vpop.permute.xlu0 %7001
  %7003 = vrot.lane.b32.xlu0 %v6502, 64
  %v7004 = vpop.permute.xlu0 %7003
  %7005 = vrot.lane.b32.xlu0 %v6680, 64
  %v7006 = vpop.permute.xlu0 %7005
  %7007 = vrot.lane.b32.xlu0 %v6504, 64
  %v7008 = vpop.permute.xlu0 %7007
  %7009 = vrot.lane.b32.xlu0 %v6684, 64
  %v7010 = vpop.permute.xlu0 %7009
  %7011 = vrot.lane.b32.xlu0 %v6506, 64
  %v7012 = vpop.permute.xlu0 %7011
  %7013 = vrot.lane.b32.xlu0 %v6688, 64
  %v7014 = vpop.permute.xlu0 %7013
  %7015 = vrot.lane.b32.xlu0 %v6508, 64
  %v7016 = vpop.permute.xlu0 %7015
  %7017 = vrot.lane.b32.xlu0 %v6692, 64
  %v7018 = vpop.permute.xlu0 %7017
  %7019 = vrot.lane.b32.xlu0 %v6510, 64
  %v7020 = vpop.permute.xlu0 %7019
  %7021 = vrot.lane.b32.xlu0 %v6696, 64
  %v7022 = vpop.permute.xlu0 %7021
  %7023 = vrot.lane.b32.xlu0 %v6512, 64
  %v7024 = vpop.permute.xlu0 %7023
  %7025 = vrot.lane.b32.xlu0 %v6700, 64
  %v7026 = vpop.permute.xlu0 %7025
  %7027 = vrot.lane.b32.xlu0 %v6514, 64
  %v7028 = vpop.permute.xlu0 %7027
  %7029 = vrot.lane.b32.xlu0 %v6704, 64
  %v7030 = vpop.permute.xlu0 %7029
  %7031 = vrot.lane.b32.xlu0 %v6516, 64
  %v7032 = vpop.permute.xlu0 %7031
  %7033 = vrot.lane.b32.xlu0 %v6708, 64
  %v7034 = vpop.permute.xlu0 %7033
  %7035 = vrot.lane.b32.xlu0 %v6518, 64
  %v7036 = vpop.permute.xlu0 %7035
  %7037 = vrot.lane.b32.xlu0 %v6712, 64
  %v7038 = vpop.permute.xlu0 %7037
  %7039 = vrot.lane.b32.xlu0 %v6520, 64
  %v7040 = vpop.permute.xlu0 %7039
  %7041 = vrot.lane.b32.xlu0 %v6716, 64
  %v7042 = vpop.permute.xlu0 %7041
  %7043 = vrot.lane.b32.xlu0 %v6522, 64
  %v7044 = vpop.permute.xlu0 %7043
  %7045 = vrot.lane.b32.xlu0 %v6720, 64
  %v7046 = vpop.permute.xlu0 %7045
  %7047 = vrot.lane.b32.xlu0 %v6524, 64
  %v7048 = vpop.permute.xlu0 %7047
  %7049 = vrot.lane.b32.xlu0 %v6724, 64
  %v7050 = vpop.permute.xlu0 %7049
  %7051 = vrot.lane.b32.xlu0 %v6526, 64
  %v7052 = vpop.permute.xlu0 %7051
  %7053 = vrot.lane.b32.xlu0 %v6728, 64
  %v7054 = vpop.permute.xlu0 %7053
  %7055 = vrot.lane.b32.xlu0 %v6528, 64
  %v7056 = vpop.permute.xlu0 %7055
  %7057 = vrot.lane.b32.xlu0 %v6732, 64
  %v7058 = vpop.permute.xlu0 %7057
  %7059 = vrot.lane.b32.xlu0 %v6530, 64
  %v7060 = vpop.permute.xlu0 %7059
  %7061 = vrot.lane.b32.xlu0 %v6736, 64
  %v7062 = vpop.permute.xlu0 %7061
  %7063 = vrot.lane.b32.xlu0 %v6532, 64
  %v7064 = vpop.permute.xlu0 %7063
  %7065 = vrot.lane.b32.xlu0 %v6740, 64
  %v7066 = vpop.permute.xlu0 %7065
  %7067 = vrot.lane.b32.xlu0 %v6534, 64
  %v7068 = vpop.permute.xlu0 %7067
  %7069 = vrot.lane.b32.xlu0 %v6744, 64
  %v7070 = vpop.permute.xlu0 %7069
  %7071 = vrot.lane.b32.xlu0 %v6536, 64
  %v7072 = vpop.permute.xlu0 %7071
  %7073 = vrot.lane.b32.xlu0 %v6748, 64
  %v7074 = vpop.permute.xlu0 %7073
  %7075 = vrot.lane.b32.xlu0 %v6538, 64
  %v7076 = vpop.permute.xlu0 %7075
  %7077 = vrot.lane.b32.xlu0 %v6752, 64
  %v7078 = vpop.permute.xlu0 %7077
  %7079 = vrot.lane.b32.xlu0 %v6540, 64
  %v7080 = vpop.permute.xlu0 %7079
  %7081 = vrot.lane.b32.xlu0 %v6756, 64
  %v7082 = vpop.permute.xlu0 %7081
  %7083 = vrot.lane.b32.xlu0 %v6542, 64
  %v7084 = vpop.permute.xlu0 %7083
  %7085 = vrot.lane.b32.xlu0 %v6760, 64
  %v7086 = vpop.permute.xlu0 %7085
  %7087 = vrot.lane.b32.xlu0 %v6544, 64
  %v7088 = vpop.permute.xlu0 %7087
  %7089 = vrot.lane.b32.xlu0 %v6764, 64
  %v7090 = vpop.permute.xlu0 %7089
  %7091 = vrot.lane.b32.xlu0 %v6546, 64
  %v7092 = vpop.permute.xlu0 %7091
  %7093 = vrot.lane.b32.xlu0 %v6768, 64
  %v7094 = vpop.permute.xlu0 %7093
  %7095 = vrot.lane.b32.xlu0 %v6548, 64
  %v7096 = vpop.permute.xlu0 %7095
  %7097 = vrot.lane.b32.xlu0 %v6772, 64
  %v7098 = vpop.permute.xlu0 %7097
  %7099 = vrot.lane.b32.xlu0 %v6550, 64
  %v7100 = vpop.permute.xlu0 %7099
  %7101 = vrot.lane.b32.xlu0 %v6776, 64
  %v7102 = vpop.permute.xlu0 %7101
  %7103 = vrot.lane.b32.xlu0 %v6552, 64
  %v7104 = vpop.permute.xlu0 %7103
  %7105 = vrot.lane.b32.xlu0 %v6780, 64
  %v7106 = vpop.permute.xlu0 %7105
  %7107 = vrot.lane.b32.xlu0 %v6554, 64
  %v7108 = vpop.permute.xlu0 %7107
  %7109 = vrot.lane.b32.xlu0 %v6784, 64
  %v7110 = vpop.permute.xlu0 %7109
  %7111 = vrot.lane.b32.xlu0 %v6556, 64
  %v7112 = vpop.permute.xlu0 %7111
  %7113 = vrot.lane.b32.xlu0 %v6788, 64
  %v7114 = vpop.permute.xlu0 %7113
  %7115 = vrot.lane.b32.xlu0 %v6558, 64
  %v7116 = vpop.permute.xlu0 %7115
  %7117 = vrot.lane.b32.xlu0 %v6792, 64
  %v7118 = vpop.permute.xlu0 %7117
  %7119 = vrot.lane.b32.xlu0 %v6560, 64
  %v7120 = vpop.permute.xlu0 %7119
  %7121 = vrot.lane.b32.xlu0 %v6796, 64
  %v7122 = vpop.permute.xlu0 %7121
  %7123 = vrot.lane.b32.xlu0 %v6562, 64
  %v7124 = vpop.permute.xlu0 %7123
  %7125 = vrot.lane.b32.xlu0 %v6800, 64
  %v7126 = vpop.permute.xlu0 %7125
  %7127 = vrot.lane.b32.xlu0 %v6564, 64
  %v7128 = vpop.permute.xlu0 %7127
  %7129 = vrot.lane.b32.xlu0 %v6804, 64
  %v7130 = vpop.permute.xlu0 %7129
  %7131 = vrot.lane.b32.xlu0 %v6566, 64
  %v7132 = vpop.permute.xlu0 %7131
  %7133 = vrot.lane.b32.xlu0 %v6808, 64
  %v7134 = vpop.permute.xlu0 %7133
  %7135 = vrot.lane.b32.xlu0 %v6568, 64
  %v7136 = vpop.permute.xlu0 %7135
  %7137 = vrot.lane.b32.xlu0 %v6812, 64
  %v7138 = vpop.permute.xlu0 %7137
  %7139 = vrot.lane.b32.xlu0 %v6570, 64
  %v7140 = vpop.permute.xlu0 %7139
  %7141 = vrot.lane.b32.xlu0 %v6816, 64
  %v7142 = vpop.permute.xlu0 %7141
  %7143 = vrot.lane.b32.xlu0 %v6572, 64
  %v7144 = vpop.permute.xlu0 %7143
  %7145 = vrot.lane.b32.xlu0 %v6820, 64
  %v7146 = vpop.permute.xlu0 %7145
  %7147 = vrot.lane.b32.xlu0 %v6574, 64
  %v7148 = vpop.permute.xlu0 %7147
  %7149 = vrot.lane.b32.xlu0 %v6824, 64
  %v7150 = vpop.permute.xlu0 %7149
  %7151 = vrot.lane.b32.xlu0 %v6576, 64
  %v7152 = vpop.permute.xlu0 %7151
  %7153 = vrot.lane.b32.xlu0 %v6828, 64
  %v7154 = vpop.permute.xlu0 %7153
  %7155 = vrot.lane.b32.xlu0 %v6578, 64
  %v7156 = vpop.permute.xlu0 %7155
  %7157 = vrot.lane.b32.xlu0 %v6832, 64
  %v7158 = vpop.permute.xlu0 %7157
  %7159 = vrot.lane.b32.xlu0 %v6580, 64
  %v7160 = vpop.permute.xlu0 %7159
  %7161 = vrot.lane.b32.xlu0 %v6836, 64
  %v7162 = vpop.permute.xlu0 %7161
  %7163 = vrot.lane.b32.xlu0 %v6582, 64
  %v7164 = vpop.permute.xlu0 %7163
  %7165 = vrot.lane.b32.xlu0 %v6840, 64
  %v7166 = vpop.permute.xlu0 %7165
  %7167 = vrot.lane.b32.xlu0 %v6584, 64
  %v7168 = vpop.permute.xlu0 %7167
  %7169 = vrot.lane.b32.xlu0 %v6844, 64
  %v7170 = vpop.permute.xlu0 %7169
  %7171 = vrot.lane.b32.xlu0 %v6586, 64
  %v7172 = vpop.permute.xlu0 %7171
  %7173 = vrot.lane.b32.xlu0 %v6848, 64
  %v7174 = vpop.permute.xlu0 %7173
  %7175 = vrot.lane.b32.xlu0 %v6588, 64
  %v7176 = vpop.permute.xlu0 %7175
  %7177 = vrot.lane.b32.xlu0 %v6852, 64
  %v7178 = vpop.permute.xlu0 %7177
  %7179 = vrot.lane.b32.xlu0 %v6590, 64
  %v7180 = vpop.permute.xlu0 %7179
  %7181 = vrot.lane.b32.xlu0 %v6856, 64
  %v7182 = vpop.permute.xlu0 %7181
  %7183 = vrot.lane.b32.xlu0 %v6592, 64
  %v7184 = vpop.permute.xlu0 %7183
  %7185 = vrot.lane.b32.xlu0 %v6860, 64
  %v7186 = vpop.permute.xlu0 %7185
  %7187 = vrot.lane.b32.xlu0 %v6594, 64
  %v7188 = vpop.permute.xlu0 %7187
  %7189 = vrot.lane.b32.xlu0 %v6864, 64
  %v7190 = vpop.permute.xlu0 %7189
  %7191 = vrot.lane.b32.xlu0 %v6596, 64
  %v7192 = vpop.permute.xlu0 %7191
  %vm7193 = vcmask 523264
  %v7194 = vsel %vm7193, %v6942, %v6944
  %v7195 = vsel %vm7193, %v6946, %v6948
  %v7196 = vsel %vm7193, %v6950, %v6952
  %v7197 = vsel %vm7193, %v6954, %v6956
  %v7198 = vsel %vm7193, %v6958, %v6960
  %v7199 = vsel %vm7193, %v6962, %v6964
  %v7200 = vsel %vm7193, %v6966, %v6968
  %v7201 = vsel %vm7193, %v6970, %v6972
  %v7202 = vsel %vm7193, %v6974, %v6976
  %v7203 = vsel %vm7193, %v6978, %v6980
  %v7204 = vsel %vm7193, %v6982, %v6984
  %v7205 = vsel %vm7193, %v6986, %v6988
  %v7206 = vsel %vm7193, %v6990, %v6992
  %v7207 = vsel %vm7193, %v6994, %v6996
  %v7208 = vsel %vm7193, %v6998, %v7000
  %v7209 = vsel %vm7193, %v7002, %v7004
  %v7210 = vsel %vm7193, %v7006, %v7008
  %v7211 = vsel %vm7193, %v7010, %v7012
  %v7212 = vsel %vm7193, %v7014, %v7016
  %v7213 = vsel %vm7193, %v7018, %v7020
  %v7214 = vsel %vm7193, %v7022, %v7024
  %v7215 = vsel %vm7193, %v7026, %v7028
  %v7216 = vsel %vm7193, %v7030, %v7032
  %v7217 = vsel %vm7193, %v7034, %v7036
  %v7218 = vsel %vm7193, %v7038, %v7040
  %v7219 = vsel %vm7193, %v7042, %v7044
  %v7220 = vsel %vm7193, %v7046, %v7048
  %v7221 = vsel %vm7193, %v7050, %v7052
  %v7222 = vsel %vm7193, %v7054, %v7056
  %v7223 = vsel %vm7193, %v7058, %v7060
  %v7224 = vsel %vm7193, %v7062, %v7064
  %v7225 = vsel %vm7193, %v7066, %v7068
  %v7226 = vsel %vm7193, %v7070, %v7072
  %v7227 = vsel %vm7193, %v7074, %v7076
  %v7228 = vsel %vm7193, %v7078, %v7080
  %v7229 = vsel %vm7193, %v7082, %v7084
  %v7230 = vsel %vm7193, %v7086, %v7088
  %v7231 = vsel %vm7193, %v7090, %v7092
  %v7232 = vsel %vm7193, %v7094, %v7096
  %v7233 = vsel %vm7193, %v7098, %v7100
  %v7234 = vsel %vm7193, %v7102, %v7104
  %v7235 = vsel %vm7193, %v7106, %v7108
  %v7236 = vsel %vm7193, %v7110, %v7112
  %v7237 = vsel %vm7193, %v7114, %v7116
  %v7238 = vsel %vm7193, %v7118, %v7120
  %v7239 = vsel %vm7193, %v7122, %v7124
  %v7240 = vsel %vm7193, %v7126, %v7128
  %v7241 = vsel %vm7193, %v7130, %v7132
  %v7242 = vsel %vm7193, %v7134, %v7136
  %v7243 = vsel %vm7193, %v7138, %v7140
  %v7244 = vsel %vm7193, %v7142, %v7144
  %v7245 = vsel %vm7193, %v7146, %v7148
  %v7246 = vsel %vm7193, %v7150, %v7152
  %v7247 = vsel %vm7193, %v7154, %v7156
  %v7248 = vsel %vm7193, %v7158, %v7160
  %v7249 = vsel %vm7193, %v7162, %v7164
  %v7250 = vsel %vm7193, %v7166, %v7168
  %v7251 = vsel %vm7193, %v7170, %v7172
  %v7252 = vsel %vm7193, %v7174, %v7176
  %v7253 = vsel %vm7193, %v7178, %v7180
  %v7254 = vsel %vm7193, %v7182, %v7184
  %v7255 = vsel %vm7193, %v7186, %v7188
  %v7256 = vsel %vm7193, %v7190, %v7192
  %v7322 = vsel %vm6601, %v6466, %v6942
  %v7326 = vsel %vm6601, %v6468, %v6946
  %v7330 = vsel %vm6601, %v6470, %v6950
  %v7334 = vsel %vm6601, %v6472, %v6954
  %v7338 = vsel %vm6601, %v6474, %v6958
  %v7342 = vsel %vm6601, %v6476, %v6962
  %v7346 = vsel %vm6601, %v6478, %v6966
  %v7350 = vsel %vm6601, %v6480, %v6970
  %v7354 = vsel %vm6601, %v6482, %v6974
  %v7358 = vsel %vm6601, %v6484, %v6978
  %v7362 = vsel %vm6601, %v6486, %v6982
  %v7366 = vsel %vm6601, %v6488, %v6986
  %v7370 = vsel %vm6601, %v6490, %v6990
  %v7374 = vsel %vm6601, %v6492, %v6994
  %v7378 = vsel %vm6601, %v6494, %v6998
  %v7382 = vsel %vm6601, %v6496, %v7002
  %v7386 = vsel %vm6601, %v6498, %v7006
  %v7390 = vsel %vm6601, %v6500, %v7010
  %v7394 = vsel %vm6601, %v6502, %v7014
  %v7398 = vsel %vm6601, %v6504, %v7018
  %v7402 = vsel %vm6601, %v6506, %v7022
  %v7406 = vsel %vm6601, %v6508, %v7026
  %v7410 = vsel %vm6601, %v6510, %v7030
  %v7414 = vsel %vm6601, %v6512, %v7034
  %v7418 = vsel %vm6601, %v6514, %v7038
  %v7422 = vsel %vm6601, %v6516, %v7042
  %v7426 = vsel %vm6601, %v6518, %v7046
  %v7430 = vsel %vm6601, %v6520, %v7050
  %v7434 = vsel %vm6601, %v6522, %v7054
  %v7438 = vsel %vm6601, %v6524, %v7058
  %v7442 = vsel %vm6601, %v6526, %v7062
  %v7446 = vsel %vm6601, %v6528, %v7066
  %v7450 = vsel %vm6601, %v6530, %v7070
  %v7454 = vsel %vm6601, %v6532, %v7074
  %v7458 = vsel %vm6601, %v6534, %v7078
  %v7462 = vsel %vm6601, %v6536, %v7082
  %v7466 = vsel %vm6601, %v6538, %v7086
  %v7470 = vsel %vm6601, %v6540, %v7090
  %v7474 = vsel %vm6601, %v6542, %v7094
  %v7478 = vsel %vm6601, %v6544, %v7098
  %v7482 = vsel %vm6601, %v6546, %v7102
  %v7486 = vsel %vm6601, %v6548, %v7106
  %v7490 = vsel %vm6601, %v6550, %v7110
  %v7494 = vsel %vm6601, %v6552, %v7114
  %v7498 = vsel %vm6601, %v6554, %v7118
  %v7502 = vsel %vm6601, %v6556, %v7122
  %v7506 = vsel %vm6601, %v6558, %v7126
  %v7510 = vsel %vm6601, %v6560, %v7130
  %v7514 = vsel %vm6601, %v6562, %v7134
  %v7518 = vsel %vm6601, %v6564, %v7138
  %v7522 = vsel %vm6601, %v6566, %v7142
  %v7526 = vsel %vm6601, %v6568, %v7146
  %v7530 = vsel %vm6601, %v6570, %v7150
  %v7534 = vsel %vm6601, %v6572, %v7154
  %v7538 = vsel %vm6601, %v6574, %v7158
  %v7542 = vsel %vm6601, %v6576, %v7162
  %v7546 = vsel %vm6601, %v6578, %v7166
  %v7550 = vsel %vm6601, %v6580, %v7170
  %v7554 = vsel %vm6601, %v6582, %v7174
  %v7558 = vsel %vm6601, %v6584, %v7178
  %v7562 = vsel %vm6601, %v6586, %v7182
  %v7566 = vsel %vm6601, %v6588, %v7186
  %v7570 = vsel %vm6601, %v6590, %v7190
  %v7572 = vld [vmem:[%s3] sm:$0xf]
  %v7573 = vld [vmem:[%s3 + $0x4] sm:$0xf]
  %v7574 = vld [vmem:[%s3 + $0x8] sm:$0xf]
  %v7575 = vld [vmem:[%s3 + $0xc] sm:$0xf]
  %v7576 = vld [vmem:[%s3 + $0x10] sm:$0xf]
  %v7577 = vld [vmem:[%s3 + $0x14] sm:$0xf]
  %v7578 = vld [vmem:[%s3 + $0x18] sm:$0xf]
  %v7579 = vld [vmem:[%s3 + $0x1c] sm:$0xf]
  %v7580 = vld [vmem:[%s3 + $0x20] sm:$0xf]
  %v7581 = vld [vmem:[%s3 + $0x24] sm:$0xf]
  %v7582 = vld [vmem:[%s3 + $0x28] sm:$0xf]
  %v7583 = vld [vmem:[%s3 + $0x2c] sm:$0xf]
  %v7584 = vld [vmem:[%s3 + $0x30] sm:$0xf]
  %v7585 = vld [vmem:[%s3 + $0x34] sm:$0xf]
  %v7586 = vld [vmem:[%s3 + $0x38] sm:$0xf]
  %v7587 = vld [vmem:[%s3 + $0x3c] sm:$0xf]
  %v7588 = vld [vmem:[%s3 + $0x40] sm:$0xf]
  %v7589 = vld [vmem:[%s3 + $0x44] sm:$0xf]
  %v7590 = vld [vmem:[%s3 + $0x48] sm:$0xf]
  %v7591 = vld [vmem:[%s3 + $0x4c] sm:$0xf]
  %v7592 = vld [vmem:[%s3 + $0x50] sm:$0xf]
  %v7593 = vld [vmem:[%s3 + $0x54] sm:$0xf]
  %v7594 = vld [vmem:[%s3 + $0x58] sm:$0xf]
  %v7595 = vld [vmem:[%s3 + $0x5c] sm:$0xf]
  %v7596 = vld [vmem:[%s3 + $0x60] sm:$0xf]
  %v7597 = vld [vmem:[%s3 + $0x64] sm:$0xf]
  %v7598 = vld [vmem:[%s3 + $0x68] sm:$0xf]
  %v7599 = vld [vmem:[%s3 + $0x6c] sm:$0xf]
  %v7600 = vld [vmem:[%s3 + $0x70] sm:$0xf]
  %v7601 = vld [vmem:[%s3 + $0x74] sm:$0xf]
  %v7602 = vld [vmem:[%s3 + $0x78] sm:$0xf]
  %v7603 = vld [vmem:[%s3 + $0x7c] sm:$0xf]
  %v7604 = vld [vmem:[%s3 + $0x80] sm:$0xf]
  %v7605 = vld [vmem:[%s3 + $0x84] sm:$0xf]
  %v7606 = vld [vmem:[%s3 + $0x88] sm:$0xf]
  %v7607 = vld [vmem:[%s3 + $0x8c] sm:$0xf]
  %v7608 = vld [vmem:[%s3 + $0x90] sm:$0xf]
  %v7609 = vld [vmem:[%s3 + $0x94] sm:$0xf]
  %v7610 = vld [vmem:[%s3 + $0x98] sm:$0xf]
  %v7611 = vld [vmem:[%s3 + $0x9c] sm:$0xf]
  %v7612 = vld [vmem:[%s3 + $0xa0] sm:$0xf]
  %v7613 = vld [vmem:[%s3 + $0xa4] sm:$0xf]
  %v7614 = vld [vmem:[%s3 + $0xa8] sm:$0xf]
  %v7615 = vld [vmem:[%s3 + $0xac] sm:$0xf]
  %v7616 = vld [vmem:[%s3 + $0xb0] sm:$0xf]
  %v7617 = vld [vmem:[%s3 + $0xb4] sm:$0xf]
  %v7618 = vld [vmem:[%s3 + $0xb8] sm:$0xf]
  %v7619 = vld [vmem:[%s3 + $0xbc] sm:$0xf]
  %v7620 = vld [vmem:[%s3 + $0xc0] sm:$0xf]
  %v7621 = vld [vmem:[%s3 + $0xc4] sm:$0xf]
  %v7622 = vld [vmem:[%s3 + $0xc8] sm:$0xf]
  %v7623 = vld [vmem:[%s3 + $0xcc] sm:$0xf]
  %v7624 = vld [vmem:[%s3 + $0xd0] sm:$0xf]
  %v7625 = vld [vmem:[%s3 + $0xd4] sm:$0xf]
  %v7626 = vld [vmem:[%s3 + $0xd8] sm:$0xf]
  %v7627 = vld [vmem:[%s3 + $0xdc] sm:$0xf]
  %v7628 = vld [vmem:[%s3 + $0xe0] sm:$0xf]
  %v7629 = vld [vmem:[%s3 + $0xe4] sm:$0xf]
  %v7630 = vld [vmem:[%s3 + $0xe8] sm:$0xf]
  %v7631 = vld [vmem:[%s3 + $0xec] sm:$0xf]
  %v7632 = vld [vmem:[%s3 + $0xf0] sm:$0xf]
  %v7633 = vld [vmem:[%s3 + $0xf4] sm:$0xf]
  %v7634 = vld [vmem:[%s3 + $0xf8] sm:$0xf]
  %v7635 = vld [vmem:[%s3 + $0xfc] sm:$0xf]
  %v7636 = vld [vmem:[%s3 + $0x100] sm:$0xf]
  %v7637 = vld [vmem:[%s3 + $0x104] sm:$0xf]
  %v7638 = vld [vmem:[%s3 + $0x108] sm:$0xf]
  %v7639 = vld [vmem:[%s3 + $0x10c] sm:$0xf]
  %v7640 = vld [vmem:[%s3 + $0x110] sm:$0xf]
  %v7641 = vld [vmem:[%s3 + $0x114] sm:$0xf]
  %v7642 = vld [vmem:[%s3 + $0x118] sm:$0xf]
  %v7643 = vld [vmem:[%s3 + $0x11c] sm:$0xf]
  %v7644 = vld [vmem:[%s4] sm:$0x1]
  %v7646 = vlaneseq
  %v7647 = vshrl.u32 %v7646, 7
  %v7648 = vsub.s32 0, %v7647
  %v7649 = vrot.slane %v7644, %v7648
  %v7723 = vunpack.c.l.b16 %v7572
  %v7724 = vunpack.c.l.b16 %v7573
  %v7725 = vunpack.c.l.b16 %v7574
  %v7726 = vunpack.c.l.b16 %v7575
  %v7727 = vunpack.c.l.b16 %v7576
  %v7728 = vunpack.c.l.b16 %v7577
  %v7729 = vunpack.c.l.b16 %v7578
  %v7730 = vunpack.c.l.b16 %v7579
  %v7731 = vunpack.c.l.b16 %v7580
  %v7732 = vunpack.c.l.b16 %v7581
  %v7733 = vunpack.c.l.b16 %v7582
  %v7734 = vunpack.c.l.b16 %v7583
  %v7735 = vunpack.c.l.b16 %v7584
  %v7736 = vunpack.c.l.b16 %v7585
  %v7737 = vunpack.c.l.b16 %v7586
  %v7738 = vunpack.c.l.b16 %v7587
  %v7739 = vunpack.c.l.b16 %v7588
  %v7740 = vunpack.c.l.b16 %v7589
  %v7741 = vunpack.c.l.b16 %v7590
  %v7742 = vunpack.c.l.b16 %v7591
  %v7743 = vunpack.c.l.b16 %v7592
  %v7744 = vunpack.c.l.b16 %v7593
  %v7745 = vunpack.c.l.b16 %v7594
  %v7746 = vunpack.c.l.b16 %v7595
  %v7747 = vunpack.c.l.b16 %v7596
  %v7748 = vunpack.c.l.b16 %v7597
  %v7749 = vunpack.c.l.b16 %v7598
  %v7750 = vunpack.c.l.b16 %v7599
  %v7751 = vunpack.c.l.b16 %v7600
  %v7752 = vunpack.c.l.b16 %v7601
  %v7753 = vunpack.c.l.b16 %v7602
  %v7754 = vunpack.c.l.b16 %v7603
  %v7755 = vunpack.c.l.b16 %v7604
  %v7756 = vunpack.c.l.b16 %v7605
  %v7757 = vunpack.c.l.b16 %v7606
  %v7758 = vunpack.c.l.b16 %v7607
  %v7759 = vunpack.c.l.b16 %v7608
  %v7760 = vunpack.c.l.b16 %v7609
  %v7761 = vunpack.c.l.b16 %v7610
  %v7762 = vunpack.c.l.b16 %v7611
  %v7763 = vunpack.c.l.b16 %v7612
  %v7764 = vunpack.c.l.b16 %v7613
  %v7765 = vunpack.c.l.b16 %v7614
  %v7766 = vunpack.c.l.b16 %v7615
  %v7767 = vunpack.c.l.b16 %v7616
  %v7768 = vunpack.c.l.b16 %v7617
  %v7769 = vunpack.c.l.b16 %v7618
  %v7770 = vunpack.c.l.b16 %v7619
  %v7771 = vunpack.c.l.b16 %v7620
  %v7772 = vunpack.c.l.b16 %v7621
  %v7773 = vunpack.c.l.b16 %v7622
  %v7774 = vunpack.c.l.b16 %v7623
  %v7775 = vunpack.c.l.b16 %v7624
  %v7776 = vunpack.c.l.b16 %v7625
  %v7777 = vunpack.c.l.b16 %v7626
  %v7778 = vunpack.c.l.b16 %v7627
  %v7779 = vunpack.c.l.b16 %v7628
  %v7780 = vunpack.c.l.b16 %v7629
  %v7781 = vunpack.c.l.b16 %v7630
  %v7782 = vunpack.c.l.b16 %v7631
  %v7783 = vunpack.c.l.b16 %v7632
  %v7784 = vunpack.c.l.b16 %v7633
  %v7785 = vunpack.c.l.b16 %v7634
  %v7786 = vunpack.c.l.b16 %v7635
  %v7787 = vunpack.c.l.b16 %v7636
  %v7788 = vunpack.c.l.b16 %v7637
  %v7789 = vunpack.c.l.b16 %v7638
  %v7790 = vunpack.c.l.b16 %v7639
  %v7791 = vunpack.c.l.b16 %v7640
  %v7792 = vunpack.c.l.b16 %v7641
  %v7793 = vunpack.c.l.b16 %v7642
  %v7794 = vunpack.c.l.b16 %v7643
  %v7795 = vpack.c.b16 %v7724, %v7723
  %v7796 = vpack.c.b16 %v7726, %v7725
  %v7797 = vpack.c.b16 %v7728, %v7727
  %v7798 = vpack.c.b16 %v7730, %v7729
  %v7799 = vpack.c.b16 %v7732, %v7731
  %v7800 = vpack.c.b16 %v7734, %v7733
  %v7801 = vpack.c.b16 %v7736, %v7735
  %v7802 = vpack.c.b16 %v7738, %v7737
  %v7803 = vpack.c.b16 %v7740, %v7739
  %v7804 = vpack.c.b16 %v7742, %v7741
  %v7805 = vpack.c.b16 %v7744, %v7743
  %v7806 = vpack.c.b16 %v7746, %v7745
  %v7807 = vpack.c.b16 %v7748, %v7747
  %v7808 = vpack.c.b16 %v7750, %v7749
  %v7809 = vpack.c.b16 %v7752, %v7751
  %v7810 = vpack.c.b16 %v7754, %v7753
  %v7811 = vpack.c.b16 %v7756, %v7755
  %v7812 = vpack.c.b16 %v7758, %v7757
  %v7813 = vpack.c.b16 %v7760, %v7759
  %v7814 = vpack.c.b16 %v7762, %v7761
  %v7815 = vpack.c.b16 %v7764, %v7763
  %v7816 = vpack.c.b16 %v7766, %v7765
  %v7817 = vpack.c.b16 %v7768, %v7767
  %v7818 = vpack.c.b16 %v7770, %v7769
  %v7819 = vpack.c.b16 %v7772, %v7771
  %v7820 = vpack.c.b16 %v7774, %v7773
  %v7821 = vpack.c.b16 %v7776, %v7775
  %v7822 = vpack.c.b16 %v7778, %v7777
  %v7823 = vpack.c.b16 %v7780, %v7779
  %v7824 = vpack.c.b16 %v7782, %v7781
  %v7825 = vpack.c.b16 %v7784, %v7783
  %v7826 = vpack.c.b16 %v7786, %v7785
  %v7827 = vpack.c.b16 %v7788, %v7787
  %v7828 = vpack.c.b16 %v7790, %v7789
  %v7829 = vpack.c.b16 %v7792, %v7791
  %v7830 = vpack.c.b16 %v7794, %v7793
  %v7867 = vsel %vm6601, %v6478, 0
  %v7869 = vsel %vm6601, %v6480, 0
  %v7871 = vsel %vm6601, %v6482, 0
  %v7873 = vsel %vm6601, %v6484, 0
  %v7875 = vsel %vm6601, %v6486, 0
  %v7877 = vsel %vm6601, %v6488, 0
  %v7879 = vsel %vm6601, %v6490, 0
  %v7881 = vsel %vm6601, %v6492, 0
  %v7883 = vsel %vm6601, %v6494, 0
  %v7885 = vsel %vm6601, %v6496, 0
  %v7887 = vsel %vm6601, %v6498, 0
  %v7889 = vsel %vm6601, %v6500, 0
  %v7891 = vsel %vm6601, %v6502, 0
  %v7893 = vsel %vm6601, %v6504, 0
  %v7895 = vsel %vm6601, %v6506, 0
  %v7897 = vsel %vm6601, %v6508, 0
  %v7899 = vsel %vm6601, %v6510, 0
  %v7901 = vsel %vm6601, %v6512, 0
  %v7903 = vsel %vm6601, %v6514, 0
  %v7905 = vsel %vm6601, %v6516, 0
  %v7907 = vsel %vm6601, %v6518, 0
  %v7909 = vsel %vm6601, %v6520, 0
  %v7911 = vsel %vm6601, %v6522, 0
  %v7913 = vsel %vm6601, %v6524, 0
  %v7915 = vsel %vm6601, %v6526, 0
  %v7917 = vsel %vm6601, %v6528, 0
  %v7919 = vsel %vm6601, %v6530, 0
  %v7921 = vsel %vm6601, %v6532, 0
  %v7923 = vsel %vm6601, %v6534, 0
  %v7925 = vsel %vm6601, %v6536, 0
  %v7927 = vsel %vm6601, %v6538, 0
  %v7929 = vsel %vm6601, %v6540, 0
  %v7931 = vsel %vm6601, %v6542, 0
  %v7933 = vsel %vm6601, %v6544, 0
  %v7935 = vsel %vm6601, %v6546, 0
  %v7937 = vsel %vm6601, %v6548, 0
  %v7939 = vsel %vm6601, %v6550, 0
  %v7941 = vsel %vm6601, %v6552, 0
  %v7943 = vsel %vm6601, %v6554, 0
  %v7945 = vsel %vm6601, %v6556, 0
  %v7947 = vsel %vm6601, %v6558, 0
  %v7949 = vsel %vm6601, %v6560, 0
  %v7951 = vsel %vm6601, %v6562, 0
  %v7953 = vsel %vm6601, %v6564, 0
  %v7955 = vsel %vm6601, %v6566, 0
  %v7957 = vsel %vm6601, %v6568, 0
  %v7959 = vsel %vm6601, %v6570, 0
  %v7961 = vsel %vm6601, %v6572, 0
  %v7963 = vsel %vm6601, %v6574, 0
  %v7965 = vsel %vm6601, %v6576, 0
  %v7967 = vsel %vm6601, %v6578, 0
  %v7969 = vsel %vm6601, %v6580, 0
  %v7971 = vsel %vm6601, %v6582, 0
  %v7973 = vsel %vm6601, %v6584, 0
  %v7975 = vsel %vm6601, %v6586, 0
  %v7977 = vsel %vm6601, %v6588, 0
  %v7979 = vsel %vm6601, %v6590, 0
  %v7982 = vsel %vm6601, %v6592, 0
  %v7985 = vsel %vm6601, %v6594, 0
  %v7988 = vsel %vm6601, %v6596, 0
  %v7991 = vsel %vm6601, %v6598, 0
  %v7994 = vsel %vm6601, %v6600, 0
  %v7997 = vsel %vm6601, %v6599, 0
  %7999 = vmatprep.subr.bf16.mxu0 0
  %8000 = vmatpush1.bf16.msra.mxu0 %v7802
  %8001 = vmatprep.subr.bf16.mxu0 0
  %8002 = vmatpush1.bf16.msra.mxu0 %v7801
  %8003 = vmatprep.subr.bf16.mxu0 0
  %8004 = vmatpush1.bf16.msra.mxu0 %v7800
  %8005 = vmatprep.subr.bf16.mxu0 0
  %8006 = vmatpush1.bf16.msra.mxu0 %v7799
  %8007 = vmatprep.subr.bf16.mxu0 0
  %8008 = vmatpush1.bf16.msra.mxu0 %v7798
  %8009 = vmatprep.subr.bf16.mxu0 0
  %8010 = vmatpush1.bf16.msra.mxu0 %v7797
  %8011 = vmatprep.subr.bf16.mxu0 0
  %8012 = vmatpush1.bf16.msra.mxu0 %v7796
  %8013 = vmatprep.subr.bf16.mxu0 0
  %8014 = vmatpush1.bf16.msra.mxu0 %v7795
  %8015 = vmatprep.subr.bf16.mxu0 0
  %8016 = vmatpush2.bf16.msra.mxu0 %v7810
  %8017 = vmatprep.subr.bf16.mxu0 0
  %8018 = vmatpush2.bf16.msra.mxu0 %v7809
  %8019 = vmatprep.subr.bf16.mxu0 0
  %8020 = vmatpush2.bf16.msra.mxu0 %v7808
  %8021 = vmatprep.subr.bf16.mxu0 0
  %8022 = vmatpush2.bf16.msra.mxu0 %v7807
  %8023 = vmatprep.subr.bf16.mxu0 0
  %8024 = vmatpush2.bf16.msra.mxu0 %v7806
  %8025 = vmatprep.subr.bf16.mxu0 0
  %8026 = vmatpush2.bf16.msra.mxu0 %v7805
  %8027 = vmatprep.subr.bf16.mxu0 0
  %8028 = vmatpush2.bf16.msra.mxu0 %v7804
  %8029 = vmatprep.subr.bf16.mxu0 0
  %8030 = vmatpush2.bf16.msra.mxu0 %v7803
  %8031 = vmatprep.mubr.bf16.mxu0 %v7322
  %8032 = vmatmul.mubr.bf16.gmra.mxu0 %v6604
  %v8033 = vpop.f32.mrf.mxu0
  %v8034 = vadd.f32 %v7649, %v8033
  %v8035 = vpop.f32.mrf.mxu0
  %v8036 = vpop.f32.mrf.mxu0
  %v8037 = vadd.f32 %v7649, %v8036
  %v8038 = vpop.f32.mrf.mxu0
  %8039 = vmatprep.mubr.bf16.mxu0 %v7326
  %8040 = vmatmul.mubr.bf16.gmra.mxu0 %v6608
  %v8041 = vpop.f32.mrf.mxu0
  %v8042 = vadd.f32 %v7649, %v8041
  %v8043 = vpop.f32.mrf.mxu0
  %v8044 = vpop.f32.mrf.mxu0
  %v8045 = vadd.f32 %v7649, %v8044
  %v8046 = vpop.f32.mrf.mxu0
  %8047 = vmatprep.mubr.bf16.mxu0 %v7330
  %8048 = vmatmul.mubr.bf16.gmra.mxu0 %v6612
  %v8049 = vpop.f32.mrf.mxu0
  %v8050 = vadd.f32 %v7649, %v8049
  %v8051 = vpop.f32.mrf.mxu0
  %v8052 = vpop.f32.mrf.mxu0
  %v8053 = vadd.f32 %v7649, %v8052
  %v8054 = vpop.f32.mrf.mxu0
  %8055 = vmatprep.mubr.bf16.mxu0 %v7334
  %8056 = vmatmul.mubr.bf16.gmra.mxu0 %v6616
  %v8057 = vpop.f32.mrf.mxu0
  %v8058 = vadd.f32 %v7649, %v8057
  %v8059 = vpop.f32.mrf.mxu0
  %v8060 = vpop.f32.mrf.mxu0
  %v8061 = vadd.f32 %v7649, %v8060
  %v8062 = vpop.f32.mrf.mxu0
  %8063 = vmatprep.mubr.bf16.mxu0 %v7338
  %8064 = vmatmul.mubr.bf16.gmra.mxu0 %v6620
  %v8065 = vpop.f32.mrf.mxu0
  %v8066 = vadd.f32 %v7649, %v8065
  %v8067 = vpop.f32.mrf.mxu0
  %v8068 = vpop.f32.mrf.mxu0
  %v8069 = vadd.f32 %v7649, %v8068
  %v8070 = vpop.f32.mrf.mxu0
  %8071 = vmatprep.mubr.bf16.mxu0 %v7342
  %8072 = vmatmul.mubr.bf16.gmra.mxu0 %v6624
  %v8073 = vpop.f32.mrf.mxu0
  %v8074 = vadd.f32 %v7649, %v8073
  %v8075 = vpop.f32.mrf.mxu0
  %v8076 = vpop.f32.mrf.mxu0
  %v8077 = vadd.f32 %v7649, %v8076
  %v8078 = vpop.f32.mrf.mxu0
  %8079 = vmatprep.mubr.bf16.mxu0 %v7346
  %8080 = vmatmul.mubr.bf16.gmra.mxu0 %v6628
  %v8081 = vpop.f32.mrf.mxu0
  %v8082 = vadd.f32 %v7649, %v8081
  %v8083 = vpop.f32.mrf.mxu0
  %v8084 = vpop.f32.mrf.mxu0
  %v8085 = vadd.f32 %v7649, %v8084
  %v8086 = vpop.f32.mrf.mxu0
  %8087 = vmatprep.mubr.bf16.mxu0 %v7350
  %8088 = vmatmul.mubr.bf16.gmra.mxu0 %v6632
  %v8089 = vpop.f32.mrf.mxu0
  %v8090 = vadd.f32 %v7649, %v8089
  %v8091 = vpop.f32.mrf.mxu0
  %v8092 = vpop.f32.mrf.mxu0
  %v8093 = vadd.f32 %v7649, %v8092
  %v8094 = vpop.f32.mrf.mxu0
  %8095 = vmatprep.mubr.bf16.mxu0 %v7354
  %8096 = vmatmul.mubr.bf16.gmra.mxu0 %v6636
  %v8097 = vpop.f32.mrf.mxu0
  %v8098 = vadd.f32 %v7649, %v8097
  %v8099 = vpop.f32.mrf.mxu0
  %v8100 = vpop.f32.mrf.mxu0
  %v8101 = vadd.f32 %v7649, %v8100
  %v8102 = vpop.f32.mrf.mxu0
  %8103 = vmatprep.mubr.bf16.mxu0 %v7358
  %8104 = vmatmul.mubr.bf16.gmra.mxu0 %v6640
  %v8105 = vpop.f32.mrf.mxu0
  %v8106 = vadd.f32 %v7649, %v8105
  %v8107 = vpop.f32.mrf.mxu0
  %v8108 = vpop.f32.mrf.mxu0
  %v8109 = vadd.f32 %v7649, %v8108
  %v8110 = vpop.f32.mrf.mxu0
  %8111 = vmatprep.mubr.bf16.mxu0 %v7362
  %8112 = vmatmul.mubr.bf16.gmra.mxu0 %v6644
  %v8113 = vpop.f32.mrf.mxu0
  %v8114 = vadd.f32 %v7649, %v8113
  %v8115 = vpop.f32.mrf.mxu0
  %v8116 = vpop.f32.mrf.mxu0
  %v8117 = vadd.f32 %v7649, %v8116
  %v8118 = vpop.f32.mrf.mxu0
  %8119 = vmatprep.mubr.bf16.mxu0 %v7366
  %8120 = vmatmul.mubr.bf16.gmra.mxu0 %v6648
  %v8121 = vpop.f32.mrf.mxu0
  %v8122 = vadd.f32 %v7649, %v8121
  %v8123 = vpop.f32.mrf.mxu0
  %v8124 = vpop.f32.mrf.mxu0
  %v8125 = vadd.f32 %v7649, %v8124
  %v8126 = vpop.f32.mrf.mxu0
  %8127 = vmatprep.mubr.bf16.mxu0 %v7370
  %8128 = vmatmul.mubr.bf16.gmra.mxu0 %v6652
  %v8129 = vpop.f32.mrf.mxu0
  %v8130 = vadd.f32 %v7649, %v8129
  %v8131 = vpop.f32.mrf.mxu0
  %v8132 = vpop.f32.mrf.mxu0
  %v8133 = vadd.f32 %v7649, %v8132
  %v8134 = vpop.f32.mrf.mxu0
  %8135 = vmatprep.mubr.bf16.mxu0 %v7374
  %8136 = vmatmul.mubr.bf16.gmra.mxu0 %v6656
  %v8137 = vpop.f32.mrf.mxu0
  %v8138 = vadd.f32 %v7649, %v8137
  %v8139 = vpop.f32.mrf.mxu0
  %v8140 = vpop.f32.mrf.mxu0
  %v8141 = vadd.f32 %v7649, %v8140
  %v8142 = vpop.f32.mrf.mxu0
  %8143 = vmatprep.mubr.bf16.mxu0 %v7378
  %8144 = vmatmul.mubr.bf16.gmra.mxu0 %v6660
  %v8145 = vpop.f32.mrf.mxu0
  %v8146 = vadd.f32 %v7649, %v8145
  %v8147 = vpop.f32.mrf.mxu0
  %v8148 = vpop.f32.mrf.mxu0
  %v8149 = vadd.f32 %v7649, %v8148
  %v8150 = vpop.f32.mrf.mxu0
  %8151 = vmatprep.mubr.bf16.mxu0 %v7382
  %8152 = vmatmul.mubr.bf16.gmra.mxu0 %v6664
  %v8153 = vpop.f32.mrf.mxu0
  %v8154 = vadd.f32 %v7649, %v8153
  %v8155 = vpop.f32.mrf.mxu0
  %v8156 = vpop.f32.mrf.mxu0
  %v8157 = vadd.f32 %v7649, %v8156
  %v8158 = vpop.f32.mrf.mxu0
  %8159 = vmatprep.mubr.bf16.mxu0 %v7386
  %8160 = vmatmul.mubr.bf16.gmra.mxu0 %v6668
  %v8161 = vpop.f32.mrf.mxu0
  %v8162 = vadd.f32 %v7649, %v8161
  %v8163 = vpop.f32.mrf.mxu0
  %v8164 = vpop.f32.mrf.mxu0
  %v8165 = vadd.f32 %v7649, %v8164
  %v8166 = vpop.f32.mrf.mxu0
  %8167 = vmatprep.mubr.bf16.mxu0 %v7390
  %8168 = vmatmul.mubr.bf16.gmra.mxu0 %v6672
  %v8169 = vpop.f32.mrf.mxu0
  %v8170 = vadd.f32 %v7649, %v8169
  %v8171 = vpop.f32.mrf.mxu0
  %v8172 = vpop.f32.mrf.mxu0
  %v8173 = vadd.f32 %v7649, %v8172
  %v8174 = vpop.f32.mrf.mxu0
  %8175 = vmatprep.mubr.bf16.mxu0 %v7394
  %8176 = vmatmul.mubr.bf16.gmra.mxu0 %v6676
  %v8177 = vpop.f32.mrf.mxu0
  %v8178 = vadd.f32 %v7649, %v8177
  %v8179 = vpop.f32.mrf.mxu0
  %v8180 = vpop.f32.mrf.mxu0
  %v8181 = vadd.f32 %v7649, %v8180
  %v8182 = vpop.f32.mrf.mxu0
  %8183 = vmatprep.mubr.bf16.mxu0 %v7398
  %8184 = vmatmul.mubr.bf16.gmra.mxu0 %v6680
  %v8185 = vpop.f32.mrf.mxu0
  %v8186 = vadd.f32 %v7649, %v8185
  %v8187 = vpop.f32.mrf.mxu0
  %v8188 = vpop.f32.mrf.mxu0
  %v8189 = vadd.f32 %v7649, %v8188
  %v8190 = vpop.f32.mrf.mxu0
  %8191 = vmatprep.mubr.bf16.mxu0 %v7402
  %8192 = vmatmul.mubr.bf16.gmra.mxu0 %v6684
  %v8193 = vpop.f32.mrf.mxu0
  %v8194 = vadd.f32 %v7649, %v8193
  %v8195 = vpop.f32.mrf.mxu0
  %v8196 = vpop.f32.mrf.mxu0
  %v8197 = vadd.f32 %v7649, %v8196
  %v8198 = vpop.f32.mrf.mxu0
  %8199 = vmatprep.mubr.bf16.mxu0 %v7406
  %8200 = vmatmul.mubr.bf16.gmra.mxu0 %v6688
  %v8201 = vpop.f32.mrf.mxu0
  %v8202 = vadd.f32 %v7649, %v8201
  %v8203 = vpop.f32.mrf.mxu0
  %v8204 = vpop.f32.mrf.mxu0
  %v8205 = vadd.f32 %v7649, %v8204
  %v8206 = vpop.f32.mrf.mxu0
  %8207 = vmatprep.mubr.bf16.mxu0 %v7410
  %8208 = vmatmul.mubr.bf16.gmra.mxu0 %v6692
  %v8209 = vpop.f32.mrf.mxu0
  %v8210 = vadd.f32 %v7649, %v8209
  %v8211 = vpop.f32.mrf.mxu0
  %v8212 = vpop.f32.mrf.mxu0
  %v8213 = vadd.f32 %v7649, %v8212
  %v8214 = vpop.f32.mrf.mxu0
  %8215 = vmatprep.mubr.bf16.mxu0 %v7414
  %8216 = vmatmul.mubr.bf16.gmra.mxu0 %v6696
  %v8217 = vpop.f32.mrf.mxu0
  %v8218 = vadd.f32 %v7649, %v8217
  %v8219 = vpop.f32.mrf.mxu0
  %v8220 = vpop.f32.mrf.mxu0
  %v8221 = vadd.f32 %v7649, %v8220
  %v8222 = vpop.f32.mrf.mxu0
  %8223 = vmatprep.mubr.bf16.mxu0 %v7418
  %8224 = vmatmul.mubr.bf16.gmra.mxu0 %v6700
  %v8225 = vpop.f32.mrf.mxu0
  %v8226 = vadd.f32 %v7649, %v8225
  %v8227 = vpop.f32.mrf.mxu0
  %v8228 = vpop.f32.mrf.mxu0
  %v8229 = vadd.f32 %v7649, %v8228
  %v8230 = vpop.f32.mrf.mxu0
  %8231 = vmatprep.mubr.bf16.mxu0 %v7422
  %8232 = vmatmul.mubr.bf16.gmra.mxu0 %v6704
  %v8233 = vpop.f32.mrf.mxu0
  %v8234 = vadd.f32 %v7649, %v8233
  %v8235 = vpop.f32.mrf.mxu0
  %v8236 = vpop.f32.mrf.mxu0
  %v8237 = vadd.f32 %v7649, %v8236
  %v8238 = vpop.f32.mrf.mxu0
  %8239 = vmatprep.mubr.bf16.mxu0 %v7426
  %8240 = vmatmul.mubr.bf16.gmra.mxu0 %v6708
  %v8241 = vpop.f32.mrf.mxu0
  %v8242 = vadd.f32 %v7649, %v8241
  %v8243 = vpop.f32.mrf.mxu0
  %v8244 = vpop.f32.mrf.mxu0
  %v8245 = vadd.f32 %v7649, %v8244
  %v8246 = vpop.f32.mrf.mxu0
  %8247 = vmatprep.mubr.bf16.mxu0 %v7430
  %8248 = vmatmul.mubr.bf16.gmra.mxu0 %v6712
  %v8249 = vpop.f32.mrf.mxu0
  %v8250 = vadd.f32 %v7649, %v8249
  %v8251 = vpop.f32.mrf.mxu0
  %v8252 = vpop.f32.mrf.mxu0
  %v8253 = vadd.f32 %v7649, %v8252
  %v8254 = vpop.f32.mrf.mxu0
  %8255 = vmatprep.mubr.bf16.mxu0 %v7434
  %8256 = vmatmul.mubr.bf16.gmra.mxu0 %v6716
  %v8257 = vpop.f32.mrf.mxu0
  %v8258 = vadd.f32 %v7649, %v8257
  %v8259 = vpop.f32.mrf.mxu0
  %v8260 = vpop.f32.mrf.mxu0
  %v8261 = vadd.f32 %v7649, %v8260
  %v8262 = vpop.f32.mrf.mxu0
  %8263 = vmatprep.mubr.bf16.mxu0 %v7438
  %8264 = vmatmul.mubr.bf16.gmra.mxu0 %v6720
  %v8265 = vpop.f32.mrf.mxu0
  %v8266 = vadd.f32 %v7649, %v8265
  %v8267 = vpop.f32.mrf.mxu0
  %v8268 = vpop.f32.mrf.mxu0
  %v8269 = vadd.f32 %v7649, %v8268
  %v8270 = vpop.f32.mrf.mxu0
  %8271 = vmatprep.mubr.bf16.mxu0 %v7442
  %8272 = vmatmul.mubr.bf16.gmra.mxu0 %v6724
  %v8273 = vpop.f32.mrf.mxu0
  %v8274 = vadd.f32 %v7649, %v8273
  %v8275 = vpop.f32.mrf.mxu0
  %v8276 = vpop.f32.mrf.mxu0
  %v8277 = vadd.f32 %v7649, %v8276
  %v8278 = vpop.f32.mrf.mxu0
  %8279 = vmatprep.mubr.bf16.mxu0 %v7446
  %8280 = vmatmul.mubr.bf16.gmra.mxu0 %v6728
  %v8281 = vpop.f32.mrf.mxu0
  %v8282 = vadd.f32 %v7649, %v8281
  %v8283 = vpop.f32.mrf.mxu0
  %v8284 = vpop.f32.mrf.mxu0
  %v8285 = vadd.f32 %v7649, %v8284
  %v8286 = vpop.f32.mrf.mxu0
  %8287 = vmatprep.mubr.bf16.mxu0 %v7450
  %8288 = vmatmul.mubr.bf16.gmra.mxu0 %v6732
  %v8289 = vpop.f32.mrf.mxu0
  %v8290 = vadd.f32 %v7649, %v8289
  %v8291 = vpop.f32.mrf.mxu0
  %v8292 = vpop.f32.mrf.mxu0
  %v8293 = vadd.f32 %v7649, %v8292
  %v8294 = vpop.f32.mrf.mxu0
  %8295 = vmatprep.mubr.bf16.mxu0 %v7454
  %8296 = vmatmul.mubr.bf16.gmra.mxu0 %v6736
  %v8297 = vpop.f32.mrf.mxu0
  %v8298 = vadd.f32 %v7649, %v8297
  %v8299 = vpop.f32.mrf.mxu0
  %v8300 = vpop.f32.mrf.mxu0
  %v8301 = vadd.f32 %v7649, %v8300
  %v8302 = vpop.f32.mrf.mxu0
  %8303 = vmatprep.mubr.bf16.mxu0 %v7458
  %8304 = vmatmul.mubr.bf16.gmra.mxu0 %v6740
  %v8305 = vpop.f32.mrf.mxu0
  %v8306 = vadd.f32 %v7649, %v8305
  %v8307 = vpop.f32.mrf.mxu0
  %v8308 = vpop.f32.mrf.mxu0
  %v8309 = vadd.f32 %v7649, %v8308
  %v8310 = vpop.f32.mrf.mxu0
  %8311 = vmatprep.mubr.bf16.mxu0 %v7462
  %8312 = vmatmul.mubr.bf16.gmra.mxu0 %v6744
  %v8313 = vpop.f32.mrf.mxu0
  %v8314 = vadd.f32 %v7649, %v8313
  %v8315 = vpop.f32.mrf.mxu0
  %v8316 = vpop.f32.mrf.mxu0
  %v8317 = vadd.f32 %v7649, %v8316
  %v8318 = vpop.f32.mrf.mxu0
  %8319 = vmatprep.mubr.bf16.mxu0 %v7466
  %8320 = vmatmul.mubr.bf16.gmra.mxu0 %v6748
  %v8321 = vpop.f32.mrf.mxu0
  %v8322 = vadd.f32 %v7649, %v8321
  %v8323 = vpop.f32.mrf.mxu0
  %v8324 = vpop.f32.mrf.mxu0
  %v8325 = vadd.f32 %v7649, %v8324
  %v8326 = vpop.f32.mrf.mxu0
  %8327 = vmatprep.mubr.bf16.mxu0 %v7470
  %8328 = vmatmul.mubr.bf16.gmra.mxu0 %v6752
  %v8329 = vpop.f32.mrf.mxu0
  %v8330 = vadd.f32 %v7649, %v8329
  %v8331 = vpop.f32.mrf.mxu0
  %v8332 = vpop.f32.mrf.mxu0
  %v8333 = vadd.f32 %v7649, %v8332
  %v8334 = vpop.f32.mrf.mxu0
  %8335 = vmatprep.mubr.bf16.mxu0 %v7474
  %8336 = vmatmul.mubr.bf16.gmra.mxu0 %v6756
  %v8337 = vpop.f32.mrf.mxu0
  %v8338 = vadd.f32 %v7649, %v8337
  %v8339 = vpop.f32.mrf.mxu0
  %v8340 = vpop.f32.mrf.mxu0
  %v8341 = vadd.f32 %v7649, %v8340
  %v8342 = vpop.f32.mrf.mxu0
  %8343 = vmatprep.mubr.bf16.mxu0 %v7478
  %8344 = vmatmul.mubr.bf16.gmra.mxu0 %v6760
  %v8345 = vpop.f32.mrf.mxu0
  %v8346 = vadd.f32 %v7649, %v8345
  %v8347 = vpop.f32.mrf.mxu0
  %v8348 = vpop.f32.mrf.mxu0
  %v8349 = vadd.f32 %v7649, %v8348
  %v8350 = vpop.f32.mrf.mxu0
  %8351 = vmatprep.mubr.bf16.mxu0 %v7482
  %8352 = vmatmul.mubr.bf16.gmra.mxu0 %v6764
  %v8353 = vpop.f32.mrf.mxu0
  %v8354 = vadd.f32 %v7649, %v8353
  %v8355 = vpop.f32.mrf.mxu0
  %v8356 = vpop.f32.mrf.mxu0
  %v8357 = vadd.f32 %v7649, %v8356
  %v8358 = vpop.f32.mrf.mxu0
  %8359 = vmatprep.mubr.bf16.mxu0 %v7486
  %8360 = vmatmul.mubr.bf16.gmra.mxu0 %v6768
  %v8361 = vpop.f32.mrf.mxu0
  %v8362 = vadd.f32 %v7649, %v8361
  %v8363 = vpop.f32.mrf.mxu0
  %v8364 = vpop.f32.mrf.mxu0
  %v8365 = vadd.f32 %v7649, %v8364
  %v8366 = vpop.f32.mrf.mxu0
  %8367 = vmatprep.mubr.bf16.mxu0 %v7490
  %8368 = vmatmul.mubr.bf16.gmra.mxu0 %v6772
  %v8369 = vpop.f32.mrf.mxu0
  %v8370 = vadd.f32 %v7649, %v8369
  %v8371 = vpop.f32.mrf.mxu0
  %v8372 = vpop.f32.mrf.mxu0
  %v8373 = vadd.f32 %v7649, %v8372
  %v8374 = vpop.f32.mrf.mxu0
  %8375 = vmatprep.mubr.bf16.mxu0 %v7494
  %8376 = vmatmul.mubr.bf16.gmra.mxu0 %v6776
  %v8377 = vpop.f32.mrf.mxu0
  %v8378 = vadd.f32 %v7649, %v8377
  %v8379 = vpop.f32.mrf.mxu0
  %v8380 = vpop.f32.mrf.mxu0
  %v8381 = vadd.f32 %v7649, %v8380
  %v8382 = vpop.f32.mrf.mxu0
  %8383 = vmatprep.mubr.bf16.mxu0 %v7498
  %8384 = vmatmul.mubr.bf16.gmra.mxu0 %v6780
  %v8385 = vpop.f32.mrf.mxu0
  %v8386 = vadd.f32 %v7649, %v8385
  %v8387 = vpop.f32.mrf.mxu0
  %v8388 = vpop.f32.mrf.mxu0
  %v8389 = vadd.f32 %v7649, %v8388
  %v8390 = vpop.f32.mrf.mxu0
  %8391 = vmatprep.mubr.bf16.mxu0 %v7502
  %8392 = vmatmul.mubr.bf16.gmra.mxu0 %v6784
  %v8393 = vpop.f32.mrf.mxu0
  %v8394 = vadd.f32 %v7649, %v8393
  %v8395 = vpop.f32.mrf.mxu0
  %v8396 = vpop.f32.mrf.mxu0
  %v8397 = vadd.f32 %v7649, %v8396
  %v8398 = vpop.f32.mrf.mxu0
  %8399 = vmatprep.mubr.bf16.mxu0 %v7506
  %8400 = vmatmul.mubr.bf16.gmra.mxu0 %v6788
  %v8401 = vpop.f32.mrf.mxu0
  %v8402 = vadd.f32 %v7649, %v8401
  %v8403 = vpop.f32.mrf.mxu0
  %v8404 = vpop.f32.mrf.mxu0
  %v8405 = vadd.f32 %v7649, %v8404
  %v8406 = vpop.f32.mrf.mxu0
  %8407 = vmatprep.mubr.bf16.mxu0 %v7510
  %8408 = vmatmul.mubr.bf16.gmra.mxu0 %v6792
  %v8409 = vpop.f32.mrf.mxu0
  %v8410 = vadd.f32 %v7649, %v8409
  %v8411 = vpop.f32.mrf.mxu0
  %v8412 = vpop.f32.mrf.mxu0
  %v8413 = vadd.f32 %v7649, %v8412
  %v8414 = vpop.f32.mrf.mxu0
  %8415 = vmatprep.mubr.bf16.mxu0 %v7514
  %8416 = vmatmul.mubr.bf16.gmra.mxu0 %v6796
  %v8417 = vpop.f32.mrf.mxu0
  %v8418 = vadd.f32 %v7649, %v8417
  %v8419 = vpop.f32.mrf.mxu0
  %v8420 = vpop.f32.mrf.mxu0
  %v8421 = vadd.f32 %v7649, %v8420
  %v8422 = vpop.f32.mrf.mxu0
  %8423 = vmatprep.mubr.bf16.mxu0 %v7518
  %8424 = vmatmul.mubr.bf16.gmra.mxu0 %v6800
  %v8425 = vpop.f32.mrf.mxu0
  %v8426 = vadd.f32 %v7649, %v8425
  %v8427 = vpop.f32.mrf.mxu0
  %v8428 = vpop.f32.mrf.mxu0
  %v8429 = vadd.f32 %v7649, %v8428
  %v8430 = vpop.f32.mrf.mxu0
  %8431 = vmatprep.mubr.bf16.mxu0 %v7522
  %8432 = vmatmul.mubr.bf16.gmra.mxu0 %v6804
  %v8433 = vpop.f32.mrf.mxu0
  %v8434 = vadd.f32 %v7649, %v8433
  %v8435 = vpop.f32.mrf.mxu0
  %v8436 = vpop.f32.mrf.mxu0
  %v8437 = vadd.f32 %v7649, %v8436
  %v8438 = vpop.f32.mrf.mxu0
  %8439 = vmatprep.mubr.bf16.mxu0 %v7526
  %8440 = vmatmul.mubr.bf16.gmra.mxu0 %v6808
  %v8441 = vpop.f32.mrf.mxu0
  %v8442 = vadd.f32 %v7649, %v8441
  %v8443 = vpop.f32.mrf.mxu0
  %v8444 = vpop.f32.mrf.mxu0
  %v8445 = vadd.f32 %v7649, %v8444
  %v8446 = vpop.f32.mrf.mxu0
  %8447 = vmatprep.mubr.bf16.mxu0 %v7530
  %8448 = vmatmul.mubr.bf16.gmra.mxu0 %v6812
  %v8449 = vpop.f32.mrf.mxu0
  %v8450 = vadd.f32 %v7649, %v8449
  %v8451 = vpop.f32.mrf.mxu0
  %v8452 = vpop.f32.mrf.mxu0
  %v8453 = vadd.f32 %v7649, %v8452
  %v8454 = vpop.f32.mrf.mxu0
  %8455 = vmatprep.mubr.bf16.mxu0 %v7534
  %8456 = vmatmul.mubr.bf16.gmra.mxu0 %v6816
  %v8457 = vpop.f32.mrf.mxu0
  %v8458 = vadd.f32 %v7649, %v8457
  %v8459 = vpop.f32.mrf.mxu0
  %v8460 = vpop.f32.mrf.mxu0
  %v8461 = vadd.f32 %v7649, %v8460
  %v8462 = vpop.f32.mrf.mxu0
  %8463 = vmatprep.mubr.bf16.mxu0 %v7538
  %8464 = vmatmul.mubr.bf16.gmra.mxu0 %v6820
  %v8465 = vpop.f32.mrf.mxu0
  %v8466 = vadd.f32 %v7649, %v8465
  %v8467 = vpop.f32.mrf.mxu0
  %v8468 = vpop.f32.mrf.mxu0
  %v8469 = vadd.f32 %v7649, %v8468
  %v8470 = vpop.f32.mrf.mxu0
  %8471 = vmatprep.mubr.bf16.mxu0 %v7542
  %8472 = vmatmul.mubr.bf16.gmra.mxu0 %v6824
  %v8473 = vpop.f32.mrf.mxu0
  %v8474 = vadd.f32 %v7649, %v8473
  %v8475 = vpop.f32.mrf.mxu0
  %v8476 = vpop.f32.mrf.mxu0
  %v8477 = vadd.f32 %v7649, %v8476
  %v8478 = vpop.f32.mrf.mxu0
  %8479 = vmatprep.mubr.bf16.mxu0 %v7546
  %8480 = vmatmul.mubr.bf16.gmra.mxu0 %v6828
  %v8481 = vpop.f32.mrf.mxu0
  %v8482 = vadd.f32 %v7649, %v8481
  %v8483 = vpop.f32.mrf.mxu0
  %v8484 = vpop.f32.mrf.mxu0
  %v8485 = vadd.f32 %v7649, %v8484
  %v8486 = vpop.f32.mrf.mxu0
  %8487 = vmatprep.mubr.bf16.mxu0 %v7550
  %8488 = vmatmul.mubr.bf16.gmra.mxu0 %v6832
  %v8489 = vpop.f32.mrf.mxu0
  %v8490 = vadd.f32 %v7649, %v8489
  %v8491 = vpop.f32.mrf.mxu0
  %v8492 = vpop.f32.mrf.mxu0
  %v8493 = vadd.f32 %v7649, %v8492
  %v8494 = vpop.f32.mrf.mxu0
  %8495 = vmatprep.mubr.bf16.mxu0 %v7554
  %8496 = vmatmul.mubr.bf16.gmra.mxu0 %v6836
  %v8497 = vpop.f32.mrf.mxu0
  %v8498 = vadd.f32 %v7649, %v8497
  %v8499 = vpop.f32.mrf.mxu0
  %v8500 = vpop.f32.mrf.mxu0
  %v8501 = vadd.f32 %v7649, %v8500
  %v8502 = vpop.f32.mrf.mxu0
  %8503 = vmatprep.mubr.bf16.mxu0 %v7558
  %8504 = vmatmul.mubr.bf16.gmra.mxu0 %v6840
  %v8505 = vpop.f32.mrf.mxu0
  %v8506 = vadd.f32 %v7649, %v8505
  %v8507 = vpop.f32.mrf.mxu0
  %v8508 = vpop.f32.mrf.mxu0
  %v8509 = vadd.f32 %v7649, %v8508
  %v8510 = vpop.f32.mrf.mxu0
  %8511 = vmatprep.mubr.bf16.mxu0 %v7562
  %8512 = vmatmul.mubr.bf16.gmra.mxu0 %v6844
  %v8513 = vpop.f32.mrf.mxu0
  %v8514 = vadd.f32 %v7649, %v8513
  %v8515 = vpop.f32.mrf.mxu0
  %v8516 = vpop.f32.mrf.mxu0
  %v8517 = vpop.f32.mrf.mxu0
  %8518 = vmatprep.mubr.bf16.mxu0 %v7566
  %8519 = vmatmul.mubr.bf16.gmra.mxu0 %v6848
  %v8520 = vpop.f32.mrf.mxu0
  %v8521 = vpop.f32.mrf.mxu0
  %v8522 = vpop.f32.mrf.mxu0
  %v8523 = vpop.f32.mrf.mxu0
  %8524 = vmatprep.mubr.bf16.mxu0 %v7570
  %8525 = vmatmul.mubr.bf16.gmra.mxu0 %v6852
  %v8526 = vpop.f32.mrf.mxu0
  %v8527 = vpop.f32.mrf.mxu0
  %v8528 = vpop.f32.mrf.mxu0
  %v8529 = vpop.f32.mrf.mxu0
  %8530 = vdwg.mxu0
  %8531 = vmatprep.subr.bf16.mxu0 0
  %8532 = vmatpush1.bf16.msra.mxu0 %v7818
  %8533 = vmatprep.subr.bf16.mxu0 0
  %8534 = vmatpush1.bf16.msra.mxu0 %v7817
  %8535 = vmatprep.subr.bf16.mxu0 0
  %8536 = vmatpush1.bf16.msra.mxu0 %v7816
  %8537 = vmatprep.subr.bf16.mxu0 0
  %8538 = vmatpush1.bf16.msra.mxu0 %v7815
  %8539 = vmatprep.subr.bf16.mxu0 0
  %8540 = vmatpush1.bf16.msra.mxu0 %v7814
  %8541 = vmatprep.subr.bf16.mxu0 0
  %8542 = vmatpush1.bf16.msra.mxu0 %v7813
  %8543 = vmatprep.subr.bf16.mxu0 0
  %8544 = vmatpush1.bf16.msra.mxu0 %v7812
  %8545 = vmatprep.subr.bf16.mxu0 0
  %8546 = vmatpush1.bf16.msra.mxu0 %v7811
  %8547 = vmatprep.subr.bf16.mxu0 0
  %8548 = vmatpush2.bf16.msra.mxu0 %v7826
  %8549 = vmatprep.subr.bf16.mxu0 0
  %8550 = vmatpush2.bf16.msra.mxu0 %v7825
  %8551 = vmatprep.subr.bf16.mxu0 0
  %8552 = vmatpush2.bf16.msra.mxu0 %v7824
  %8553 = vmatprep.subr.bf16.mxu0 0
  %8554 = vmatpush2.bf16.msra.mxu0 %v7823
  %8555 = vmatprep.subr.bf16.mxu0 0
  %8556 = vmatpush2.bf16.msra.mxu0 %v7822
  %8557 = vmatprep.subr.bf16.mxu0 0
  %8558 = vmatpush2.bf16.msra.mxu0 %v7821
  %8559 = vmatprep.subr.bf16.mxu0 0
  %8560 = vmatpush2.bf16.msra.mxu0 %v7820
  %8561 = vmatprep.subr.bf16.mxu0 0
  %8562 = vmatpush2.bf16.msra.mxu0 %v7819
  %8563 = vmatprep.mubr.bf16.mxu0 %v6628
  %8564 = vmatmul.mubr.bf16.gmra.mxu0 %v7194
  %v8565 = vpop.f32.mrf.mxu0
  %v8566 = vadd.f32 %v8034, %v8565
  %v8567 = vpop.f32.mrf.mxu0
  %v8568 = vpop.f32.mrf.mxu0
  %v8569 = vadd.f32 %v8037, %v8568
  %v8570 = vpop.f32.mrf.mxu0
  %8571 = vmatprep.mubr.bf16.mxu0 %v6632
  %8572 = vmatmul.mubr.bf16.gmra.mxu0 %v7195
  %v8573 = vpop.f32.mrf.mxu0
  %v8574 = vadd.f32 %v8042, %v8573
  %v8575 = vpop.f32.mrf.mxu0
  %v8576 = vpop.f32.mrf.mxu0
  %v8577 = vadd.f32 %v8045, %v8576
  %v8578 = vpop.f32.mrf.mxu0
  %8579 = vmatprep.mubr.bf16.mxu0 %v6636
  %8580 = vmatmul.mubr.bf16.gmra.mxu0 %v7196
  %v8581 = vpop.f32.mrf.mxu0
  %v8582 = vadd.f32 %v8050, %v8581
  %v8583 = vpop.f32.mrf.mxu0
  %v8584 = vpop.f32.mrf.mxu0
  %v8585 = vadd.f32 %v8053, %v8584
  %v8586 = vpop.f32.mrf.mxu0
  %8587 = vmatprep.mubr.bf16.mxu0 %v6640
  %8588 = vmatmul.mubr.bf16.gmra.mxu0 %v7197
  %v8589 = vpop.f32.mrf.mxu0
  %v8590 = vadd.f32 %v8058, %v8589
  %v8591 = vpop.f32.mrf.mxu0
  %v8592 = vpop.f32.mrf.mxu0
  %v8593 = vadd.f32 %v8061, %v8592
  %v8594 = vpop.f32.mrf.mxu0
  %8595 = vmatprep.mubr.bf16.mxu0 %v6644
  %8596 = vmatmul.mubr.bf16.gmra.mxu0 %v7198
  %v8597 = vpop.f32.mrf.mxu0
  %v8598 = vadd.f32 %v8066, %v8597
  %v8599 = vpop.f32.mrf.mxu0
  %v8600 = vpop.f32.mrf.mxu0
  %v8601 = vadd.f32 %v8069, %v8600
  %v8602 = vpop.f32.mrf.mxu0
  %8603 = vmatprep.mubr.bf16.mxu0 %v6648
  %8604 = vmatmul.mubr.bf16.gmra.mxu0 %v7199
  %v8605 = vpop.f32.mrf.mxu0
  %v8606 = vadd.f32 %v8074, %v8605
  %v8607 = vpop.f32.mrf.mxu0
  %v8608 = vpop.f32.mrf.mxu0
  %v8609 = vadd.f32 %v8077, %v8608
  %v8610 = vpop.f32.mrf.mxu0
  %8611 = vmatprep.mubr.bf16.mxu0 %v6652
  %8612 = vmatmul.mubr.bf16.gmra.mxu0 %v7200
  %v8613 = vpop.f32.mrf.mxu0
  %v8614 = vadd.f32 %v8082, %v8613
  %v8615 = vpop.f32.mrf.mxu0
  %v8616 = vpop.f32.mrf.mxu0
  %v8617 = vadd.f32 %v8085, %v8616
  %v8618 = vpop.f32.mrf.mxu0
  %8619 = vmatprep.mubr.bf16.mxu0 %v6656
  %8620 = vmatmul.mubr.bf16.gmra.mxu0 %v7201
  %v8621 = vpop.f32.mrf.mxu0
  %v8622 = vadd.f32 %v8090, %v8621
  %v8623 = vpop.f32.mrf.mxu0
  %v8624 = vpop.f32.mrf.mxu0
  %v8625 = vadd.f32 %v8093, %v8624
  %v8626 = vpop.f32.mrf.mxu0
  %8627 = vmatprep.mubr.bf16.mxu0 %v6660
  %8628 = vmatmul.mubr.bf16.gmra.mxu0 %v7202
  %v8629 = vpop.f32.mrf.mxu0
  %v8630 = vadd.f32 %v8098, %v8629
  %v8631 = vpop.f32.mrf.mxu0
  %v8632 = vpop.f32.mrf.mxu0
  %v8633 = vadd.f32 %v8101, %v8632
  %v8634 = vpop.f32.mrf.mxu0
  %8635 = vmatprep.mubr.bf16.mxu0 %v6664
  %8636 = vmatmul.mubr.bf16.gmra.mxu0 %v7203
  %v8637 = vpop.f32.mrf.mxu0
  %v8638 = vadd.f32 %v8106, %v8637
  %v8639 = vpop.f32.mrf.mxu0
  %v8640 = vpop.f32.mrf.mxu0
  %v8641 = vadd.f32 %v8109, %v8640
  %v8642 = vpop.f32.mrf.mxu0
  %8643 = vmatprep.mubr.bf16.mxu0 %v6668
  %8644 = vmatmul.mubr.bf16.gmra.mxu0 %v7204
  %v8645 = vpop.f32.mrf.mxu0
  %v8646 = vadd.f32 %v8114, %v8645
  %v8647 = vpop.f32.mrf.mxu0
  %v8648 = vpop.f32.mrf.mxu0
  %v8649 = vadd.f32 %v8117, %v8648
  %v8650 = vpop.f32.mrf.mxu0
  %8651 = vmatprep.mubr.bf16.mxu0 %v6672
  %8652 = vmatmul.mubr.bf16.gmra.mxu0 %v7205
  %v8653 = vpop.f32.mrf.mxu0
  %v8654 = vadd.f32 %v8122, %v8653
  %v8655 = vpop.f32.mrf.mxu0
  %v8656 = vpop.f32.mrf.mxu0
  %v8657 = vadd.f32 %v8125, %v8656
  %v8658 = vpop.f32.mrf.mxu0
  %8659 = vmatprep.mubr.bf16.mxu0 %v6676
  %8660 = vmatmul.mubr.bf16.gmra.mxu0 %v7206
  %v8661 = vpop.f32.mrf.mxu0
  %v8662 = vadd.f32 %v8130, %v8661
  %v8663 = vpop.f32.mrf.mxu0
  %v8664 = vpop.f32.mrf.mxu0
  %v8665 = vadd.f32 %v8133, %v8664
  %v8666 = vpop.f32.mrf.mxu0
  %8667 = vmatprep.mubr.bf16.mxu0 %v6680
  %8668 = vmatmul.mubr.bf16.gmra.mxu0 %v7207
  %v8669 = vpop.f32.mrf.mxu0
  %v8670 = vadd.f32 %v8138, %v8669
  %v8671 = vpop.f32.mrf.mxu0
  %v8672 = vpop.f32.mrf.mxu0
  %v8673 = vadd.f32 %v8141, %v8672
  %v8674 = vpop.f32.mrf.mxu0
  %8675 = vmatprep.mubr.bf16.mxu0 %v6684
  %8676 = vmatmul.mubr.bf16.gmra.mxu0 %v7208
  %v8677 = vpop.f32.mrf.mxu0
  %v8678 = vadd.f32 %v8146, %v8677
  %v8679 = vpop.f32.mrf.mxu0
  %v8680 = vpop.f32.mrf.mxu0
  %v8681 = vadd.f32 %v8149, %v8680
  %v8682 = vpop.f32.mrf.mxu0
  %8683 = vmatprep.mubr.bf16.mxu0 %v6688
  %8684 = vmatmul.mubr.bf16.gmra.mxu0 %v7209
  %v8685 = vpop.f32.mrf.mxu0
  %v8686 = vadd.f32 %v8154, %v8685
  %v8687 = vpop.f32.mrf.mxu0
  %v8688 = vpop.f32.mrf.mxu0
  %v8689 = vadd.f32 %v8157, %v8688
  %v8690 = vpop.f32.mrf.mxu0
  %8691 = vmatprep.mubr.bf16.mxu0 %v6692
  %8692 = vmatmul.mubr.bf16.gmra.mxu0 %v7210
  %v8693 = vpop.f32.mrf.mxu0
  %v8694 = vadd.f32 %v8162, %v8693
  %v8695 = vpop.f32.mrf.mxu0
  %v8696 = vpop.f32.mrf.mxu0
  %v8697 = vadd.f32 %v8165, %v8696
  %v8698 = vpop.f32.mrf.mxu0
  %8699 = vmatprep.mubr.bf16.mxu0 %v6696
  %8700 = vmatmul.mubr.bf16.gmra.mxu0 %v7211
  %v8701 = vpop.f32.mrf.mxu0
  %v8702 = vadd.f32 %v8170, %v8701
  %v8703 = vpop.f32.mrf.mxu0
  %v8704 = vpop.f32.mrf.mxu0
  %v8705 = vadd.f32 %v8173, %v8704
  %v8706 = vpop.f32.mrf.mxu0
  %8707 = vmatprep.mubr.bf16.mxu0 %v6700
  %8708 = vmatmul.mubr.bf16.gmra.mxu0 %v7212
  %v8709 = vpop.f32.mrf.mxu0
  %v8710 = vadd.f32 %v8178, %v8709
  %v8711 = vpop.f32.mrf.mxu0
  %v8712 = vpop.f32.mrf.mxu0
  %v8713 = vadd.f32 %v8181, %v8712
  %v8714 = vpop.f32.mrf.mxu0
  %8715 = vmatprep.mubr.bf16.mxu0 %v6704
  %8716 = vmatmul.mubr.bf16.gmra.mxu0 %v7213
  %v8717 = vpop.f32.mrf.mxu0
  %v8718 = vadd.f32 %v8186, %v8717
  %v8719 = vpop.f32.mrf.mxu0
  %v8720 = vpop.f32.mrf.mxu0
  %v8721 = vadd.f32 %v8189, %v8720
  %v8722 = vpop.f32.mrf.mxu0
  %8723 = vmatprep.mubr.bf16.mxu0 %v6708
  %8724 = vmatmul.mubr.bf16.gmra.mxu0 %v7214
  %v8725 = vpop.f32.mrf.mxu0
  %v8726 = vadd.f32 %v8194, %v8725
  %v8727 = vpop.f32.mrf.mxu0
  %v8728 = vpop.f32.mrf.mxu0
  %v8729 = vadd.f32 %v8197, %v8728
  %v8730 = vpop.f32.mrf.mxu0
  %8731 = vmatprep.mubr.bf16.mxu0 %v6712
  %8732 = vmatmul.mubr.bf16.gmra.mxu0 %v7215
  %v8733 = vpop.f32.mrf.mxu0
  %v8734 = vadd.f32 %v8202, %v8733
  %v8735 = vpop.f32.mrf.mxu0
  %v8736 = vpop.f32.mrf.mxu0
  %v8737 = vadd.f32 %v8205, %v8736
  %v8738 = vpop.f32.mrf.mxu0
  %8739 = vmatprep.mubr.bf16.mxu0 %v6716
  %8740 = vmatmul.mubr.bf16.gmra.mxu0 %v7216
  %v8741 = vpop.f32.mrf.mxu0
  %v8742 = vadd.f32 %v8210, %v8741
  %v8743 = vpop.f32.mrf.mxu0
  %v8744 = vpop.f32.mrf.mxu0
  %v8745 = vadd.f32 %v8213, %v8744
  %v8746 = vpop.f32.mrf.mxu0
  %8747 = vmatprep.mubr.bf16.mxu0 %v6720
  %8748 = vmatmul.mubr.bf16.gmra.mxu0 %v7217
  %v8749 = vpop.f32.mrf.mxu0
  %v8750 = vadd.f32 %v8218, %v8749
  %v8751 = vpop.f32.mrf.mxu0
  %v8752 = vpop.f32.mrf.mxu0
  %v8753 = vadd.f32 %v8221, %v8752
  %v8754 = vpop.f32.mrf.mxu0
  %8755 = vmatprep.mubr.bf16.mxu0 %v6724
  %8756 = vmatmul.mubr.bf16.gmra.mxu0 %v7218
  %v8757 = vpop.f32.mrf.mxu0
  %v8758 = vadd.f32 %v8226, %v8757
  %v8759 = vpop.f32.mrf.mxu0
  %v8760 = vpop.f32.mrf.mxu0
  %v8761 = vadd.f32 %v8229, %v8760
  %v8762 = vpop.f32.mrf.mxu0
  %8763 = vmatprep.mubr.bf16.mxu0 %v6728
  %8764 = vmatmul.mubr.bf16.gmra.mxu0 %v7219
  %v8765 = vpop.f32.mrf.mxu0
  %v8766 = vadd.f32 %v8234, %v8765
  %v8767 = vpop.f32.mrf.mxu0
  %v8768 = vpop.f32.mrf.mxu0
  %v8769 = vadd.f32 %v8237, %v8768
  %v8770 = vpop.f32.mrf.mxu0
  %8771 = vmatprep.mubr.bf16.mxu0 %v6732
  %8772 = vmatmul.mubr.bf16.gmra.mxu0 %v7220
  %v8773 = vpop.f32.mrf.mxu0
  %v8774 = vadd.f32 %v8242, %v8773
  %v8775 = vpop.f32.mrf.mxu0
  %v8776 = vpop.f32.mrf.mxu0
  %v8777 = vadd.f32 %v8245, %v8776
  %v8778 = vpop.f32.mrf.mxu0
  %8779 = vmatprep.mubr.bf16.mxu0 %v6736
  %8780 = vmatmul.mubr.bf16.gmra.mxu0 %v7221
  %v8781 = vpop.f32.mrf.mxu0
  %v8782 = vadd.f32 %v8250, %v8781
  %v8783 = vpop.f32.mrf.mxu0
  %v8784 = vpop.f32.mrf.mxu0
  %v8785 = vadd.f32 %v8253, %v8784
  %v8786 = vpop.f32.mrf.mxu0
  %8787 = vmatprep.mubr.bf16.mxu0 %v6740
  %8788 = vmatmul.mubr.bf16.gmra.mxu0 %v7222
  %v8789 = vpop.f32.mrf.mxu0
  %v8790 = vadd.f32 %v8258, %v8789
  %v8791 = vpop.f32.mrf.mxu0
  %v8792 = vpop.f32.mrf.mxu0
  %v8793 = vadd.f32 %v8261, %v8792
  %v8794 = vpop.f32.mrf.mxu0
  %8795 = vmatprep.mubr.bf16.mxu0 %v6744
  %8796 = vmatmul.mubr.bf16.gmra.mxu0 %v7223
  %v8797 = vpop.f32.mrf.mxu0
  %v8798 = vadd.f32 %v8266, %v8797
  %v8799 = vpop.f32.mrf.mxu0
  %v8800 = vpop.f32.mrf.mxu0
  %v8801 = vadd.f32 %v8269, %v8800
  %v8802 = vpop.f32.mrf.mxu0
  %8803 = vmatprep.mubr.bf16.mxu0 %v6748
  %8804 = vmatmul.mubr.bf16.gmra.mxu0 %v7224
  %v8805 = vpop.f32.mrf.mxu0
  %v8806 = vadd.f32 %v8274, %v8805
  %v8807 = vpop.f32.mrf.mxu0
  %v8808 = vpop.f32.mrf.mxu0
  %v8809 = vadd.f32 %v8277, %v8808
  %v8810 = vpop.f32.mrf.mxu0
  %8811 = vmatprep.mubr.bf16.mxu0 %v6752
  %8812 = vmatmul.mubr.bf16.gmra.mxu0 %v7225
  %v8813 = vpop.f32.mrf.mxu0
  %v8814 = vadd.f32 %v8282, %v8813
  %v8815 = vpop.f32.mrf.mxu0
  %v8816 = vpop.f32.mrf.mxu0
  %v8817 = vadd.f32 %v8285, %v8816
  %v8818 = vpop.f32.mrf.mxu0
  %8819 = vmatprep.mubr.bf16.mxu0 %v6756
  %8820 = vmatmul.mubr.bf16.gmra.mxu0 %v7226
  %v8821 = vpop.f32.mrf.mxu0
  %v8822 = vadd.f32 %v8290, %v8821
  %v8823 = vpop.f32.mrf.mxu0
  %v8824 = vpop.f32.mrf.mxu0
  %v8825 = vadd.f32 %v8293, %v8824
  %v8826 = vpop.f32.mrf.mxu0
  %8827 = vmatprep.mubr.bf16.mxu0 %v6760
  %8828 = vmatmul.mubr.bf16.gmra.mxu0 %v7227
  %v8829 = vpop.f32.mrf.mxu0
  %v8830 = vadd.f32 %v8298, %v8829
  %v8831 = vpop.f32.mrf.mxu0
  %v8832 = vpop.f32.mrf.mxu0
  %v8833 = vadd.f32 %v8301, %v8832
  %v8834 = vpop.f32.mrf.mxu0
  %8835 = vmatprep.mubr.bf16.mxu0 %v6764
  %8836 = vmatmul.mubr.bf16.gmra.mxu0 %v7228
  %v8837 = vpop.f32.mrf.mxu0
  %v8838 = vadd.f32 %v8306, %v8837
  %v8839 = vpop.f32.mrf.mxu0
  %v8840 = vpop.f32.mrf.mxu0
  %v8841 = vadd.f32 %v8309, %v8840
  %v8842 = vpop.f32.mrf.mxu0
  %8843 = vmatprep.mubr.bf16.mxu0 %v6768
  %8844 = vmatmul.mubr.bf16.gmra.mxu0 %v7229
  %v8845 = vpop.f32.mrf.mxu0
  %v8846 = vadd.f32 %v8314, %v8845
  %v8847 = vpop.f32.mrf.mxu0
  %v8848 = vpop.f32.mrf.mxu0
  %v8849 = vadd.f32 %v8317, %v8848
  %v8850 = vpop.f32.mrf.mxu0
  %8851 = vmatprep.mubr.bf16.mxu0 %v6772
  %8852 = vmatmul.mubr.bf16.gmra.mxu0 %v7230
  %v8853 = vpop.f32.mrf.mxu0
  %v8854 = vadd.f32 %v8322, %v8853
  %v8855 = vpop.f32.mrf.mxu0
  %v8856 = vpop.f32.mrf.mxu0
  %v8857 = vadd.f32 %v8325, %v8856
  %v8858 = vpop.f32.mrf.mxu0
  %8859 = vmatprep.mubr.bf16.mxu0 %v6776
  %8860 = vmatmul.mubr.bf16.gmra.mxu0 %v7231
  %v8861 = vpop.f32.mrf.mxu0
  %v8862 = vadd.f32 %v8330, %v8861
  %v8863 = vpop.f32.mrf.mxu0
  %v8864 = vpop.f32.mrf.mxu0
  %v8865 = vadd.f32 %v8333, %v8864
  %v8866 = vpop.f32.mrf.mxu0
  %8867 = vmatprep.mubr.bf16.mxu0 %v6780
  %8868 = vmatmul.mubr.bf16.gmra.mxu0 %v7232
  %v8869 = vpop.f32.mrf.mxu0
  %v8870 = vadd.f32 %v8338, %v8869
  %v8871 = vpop.f32.mrf.mxu0
  %v8872 = vpop.f32.mrf.mxu0
  %v8873 = vadd.f32 %v8341, %v8872
  %v8874 = vpop.f32.mrf.mxu0
  %8875 = vmatprep.mubr.bf16.mxu0 %v6784
  %8876 = vmatmul.mubr.bf16.gmra.mxu0 %v7233
  %v8877 = vpop.f32.mrf.mxu0
  %v8878 = vadd.f32 %v8346, %v8877
  %v8879 = vpop.f32.mrf.mxu0
  %v8880 = vpop.f32.mrf.mxu0
  %v8881 = vadd.f32 %v8349, %v8880
  %v8882 = vpop.f32.mrf.mxu0
  %8883 = vmatprep.mubr.bf16.mxu0 %v6788
  %8884 = vmatmul.mubr.bf16.gmra.mxu0 %v7234
  %v8885 = vpop.f32.mrf.mxu0
  %v8886 = vadd.f32 %v8354, %v8885
  %v8887 = vpop.f32.mrf.mxu0
  %v8888 = vpop.f32.mrf.mxu0
  %v8889 = vadd.f32 %v8357, %v8888
  %v8890 = vpop.f32.mrf.mxu0
  %8891 = vmatprep.mubr.bf16.mxu0 %v6792
  %8892 = vmatmul.mubr.bf16.gmra.mxu0 %v7235
  %v8893 = vpop.f32.mrf.mxu0
  %v8894 = vadd.f32 %v8362, %v8893
  %v8895 = vpop.f32.mrf.mxu0
  %v8896 = vpop.f32.mrf.mxu0
  %v8897 = vadd.f32 %v8365, %v8896
  %v8898 = vpop.f32.mrf.mxu0
  %8899 = vmatprep.mubr.bf16.mxu0 %v6796
  %8900 = vmatmul.mubr.bf16.gmra.mxu0 %v7236
  %v8901 = vpop.f32.mrf.mxu0
  %v8902 = vadd.f32 %v8370, %v8901
  %v8903 = vpop.f32.mrf.mxu0
  %v8904 = vpop.f32.mrf.mxu0
  %v8905 = vadd.f32 %v8373, %v8904
  %v8906 = vpop.f32.mrf.mxu0
  %8907 = vmatprep.mubr.bf16.mxu0 %v6800
  %8908 = vmatmul.mubr.bf16.gmra.mxu0 %v7237
  %v8909 = vpop.f32.mrf.mxu0
  %v8910 = vadd.f32 %v8378, %v8909
  %v8911 = vpop.f32.mrf.mxu0
  %v8912 = vpop.f32.mrf.mxu0
  %v8913 = vadd.f32 %v8381, %v8912
  %v8914 = vpop.f32.mrf.mxu0
  %8915 = vmatprep.mubr.bf16.mxu0 %v6804
  %8916 = vmatmul.mubr.bf16.gmra.mxu0 %v7238
  %v8917 = vpop.f32.mrf.mxu0
  %v8918 = vadd.f32 %v8386, %v8917
  %v8919 = vpop.f32.mrf.mxu0
  %v8920 = vpop.f32.mrf.mxu0
  %v8921 = vadd.f32 %v8389, %v8920
  %v8922 = vpop.f32.mrf.mxu0
  %8923 = vmatprep.mubr.bf16.mxu0 %v6808
  %8924 = vmatmul.mubr.bf16.gmra.mxu0 %v7239
  %v8925 = vpop.f32.mrf.mxu0
  %v8926 = vadd.f32 %v8394, %v8925
  %v8927 = vpop.f32.mrf.mxu0
  %v8928 = vpop.f32.mrf.mxu0
  %v8929 = vadd.f32 %v8397, %v8928
  %v8930 = vpop.f32.mrf.mxu0
  %8931 = vmatprep.mubr.bf16.mxu0 %v6812
  %8932 = vmatmul.mubr.bf16.gmra.mxu0 %v7240
  %v8933 = vpop.f32.mrf.mxu0
  %v8934 = vadd.f32 %v8402, %v8933
  %v8935 = vpop.f32.mrf.mxu0
  %v8936 = vpop.f32.mrf.mxu0
  %v8937 = vadd.f32 %v8405, %v8936
  %v8938 = vpop.f32.mrf.mxu0
  %8939 = vmatprep.mubr.bf16.mxu0 %v6816
  %8940 = vmatmul.mubr.bf16.gmra.mxu0 %v7241
  %v8941 = vpop.f32.mrf.mxu0
  %v8942 = vadd.f32 %v8410, %v8941
  %v8943 = vpop.f32.mrf.mxu0
  %v8944 = vpop.f32.mrf.mxu0
  %v8945 = vadd.f32 %v8413, %v8944
  %v8946 = vpop.f32.mrf.mxu0
  %8947 = vmatprep.mubr.bf16.mxu0 %v6820
  %8948 = vmatmul.mubr.bf16.gmra.mxu0 %v7242
  %v8949 = vpop.f32.mrf.mxu0
  %v8950 = vadd.f32 %v8418, %v8949
  %v8951 = vpop.f32.mrf.mxu0
  %v8952 = vpop.f32.mrf.mxu0
  %v8953 = vadd.f32 %v8421, %v8952
  %v8954 = vpop.f32.mrf.mxu0
  %8955 = vmatprep.mubr.bf16.mxu0 %v6824
  %8956 = vmatmul.mubr.bf16.gmra.mxu0 %v7243
  %v8957 = vpop.f32.mrf.mxu0
  %v8958 = vadd.f32 %v8426, %v8957
  %v8959 = vpop.f32.mrf.mxu0
  %v8960 = vpop.f32.mrf.mxu0
  %v8961 = vadd.f32 %v8429, %v8960
  %v8962 = vpop.f32.mrf.mxu0
  %8963 = vmatprep.mubr.bf16.mxu0 %v6828
  %8964 = vmatmul.mubr.bf16.gmra.mxu0 %v7244
  %v8965 = vpop.f32.mrf.mxu0
  %v8966 = vadd.f32 %v8434, %v8965
  %v8967 = vpop.f32.mrf.mxu0
  %v8968 = vpop.f32.mrf.mxu0
  %v8969 = vadd.f32 %v8437, %v8968
  %v8970 = vpop.f32.mrf.mxu0
  %8971 = vmatprep.mubr.bf16.mxu0 %v6832
  %8972 = vmatmul.mubr.bf16.gmra.mxu0 %v7245
  %v8973 = vpop.f32.mrf.mxu0
  %v8974 = vadd.f32 %v8442, %v8973
  %v8975 = vpop.f32.mrf.mxu0
  %v8976 = vpop.f32.mrf.mxu0
  %v8977 = vadd.f32 %v8445, %v8976
  %v8978 = vpop.f32.mrf.mxu0
  %8979 = vmatprep.mubr.bf16.mxu0 %v6836
  %8980 = vmatmul.mubr.bf16.gmra.mxu0 %v7246
  %v8981 = vpop.f32.mrf.mxu0
  %v8982 = vadd.f32 %v8450, %v8981
  %v8983 = vpop.f32.mrf.mxu0
  %v8984 = vpop.f32.mrf.mxu0
  %v8985 = vadd.f32 %v8453, %v8984
  %v8986 = vpop.f32.mrf.mxu0
  %8987 = vmatprep.mubr.bf16.mxu0 %v6840
  %8988 = vmatmul.mubr.bf16.gmra.mxu0 %v7247
  %v8989 = vpop.f32.mrf.mxu0
  %v8990 = vadd.f32 %v8458, %v8989
  %v8991 = vpop.f32.mrf.mxu0
  %v8992 = vpop.f32.mrf.mxu0
  %v8993 = vadd.f32 %v8461, %v8992
  %v8994 = vpop.f32.mrf.mxu0
  %8995 = vmatprep.mubr.bf16.mxu0 %v6844
  %8996 = vmatmul.mubr.bf16.gmra.mxu0 %v7248
  %v8997 = vpop.f32.mrf.mxu0
  %v8998 = vadd.f32 %v8466, %v8997
  %v8999 = vpop.f32.mrf.mxu0
  %v9000 = vpop.f32.mrf.mxu0
  %v9001 = vadd.f32 %v8469, %v9000
  %v9002 = vpop.f32.mrf.mxu0
  %9003 = vmatprep.mubr.bf16.mxu0 %v6848
  %9004 = vmatmul.mubr.bf16.gmra.mxu0 %v7249
  %v9005 = vpop.f32.mrf.mxu0
  %v9006 = vadd.f32 %v8474, %v9005
  %v9007 = vpop.f32.mrf.mxu0
  %v9008 = vpop.f32.mrf.mxu0
  %v9009 = vadd.f32 %v8477, %v9008
  %v9010 = vpop.f32.mrf.mxu0
  %9011 = vmatprep.mubr.bf16.mxu0 %v6852
  %9012 = vmatmul.mubr.bf16.gmra.mxu0 %v7250
  %v9013 = vpop.f32.mrf.mxu0
  %v9014 = vadd.f32 %v8482, %v9013
  %v9015 = vpop.f32.mrf.mxu0
  %v9016 = vpop.f32.mrf.mxu0
  %v9017 = vadd.f32 %v8485, %v9016
  %v9018 = vpop.f32.mrf.mxu0
  %9019 = vmatprep.mubr.bf16.mxu0 %v6856
  %9020 = vmatmul.mubr.bf16.gmra.mxu0 %v7251
  %v9021 = vpop.f32.mrf.mxu0
  %v9022 = vadd.f32 %v8490, %v9021
  %v9023 = vpop.f32.mrf.mxu0
  %v9024 = vpop.f32.mrf.mxu0
  %v9025 = vadd.f32 %v8493, %v9024
  %v9026 = vpop.f32.mrf.mxu0
  %9027 = vmatprep.mubr.bf16.mxu0 %v6860
  %9028 = vmatmul.mubr.bf16.gmra.mxu0 %v7252
  %v9029 = vpop.f32.mrf.mxu0
  %v9030 = vadd.f32 %v8498, %v9029
  %v9031 = vpop.f32.mrf.mxu0
  %v9032 = vpop.f32.mrf.mxu0
  %v9033 = vadd.f32 %v8501, %v9032
  %v9034 = vpop.f32.mrf.mxu0
  %9035 = vmatprep.mubr.bf16.mxu0 %v6864
  %9036 = vmatmul.mubr.bf16.gmra.mxu0 %v7253
  %v9037 = vpop.f32.mrf.mxu0
  %v9038 = vadd.f32 %v8506, %v9037
  %v9039 = vpop.f32.mrf.mxu0
  %v9040 = vpop.f32.mrf.mxu0
  %v9041 = vadd.f32 %v8509, %v9040
  %v9042 = vpop.f32.mrf.mxu0
  %9043 = vmatprep.mubr.bf16.mxu0 %v6868
  %9044 = vmatmul.mubr.bf16.gmra.mxu0 %v7254
  %v9045 = vpop.f32.mrf.mxu0
  %v9046 = vadd.f32 %v8514, %v9045
  %v9047 = vpop.f32.mrf.mxu0
  %v9048 = vpop.f32.mrf.mxu0
  %v9049 = vpop.f32.mrf.mxu0
  %9050 = vmatprep.mubr.bf16.mxu0 %v6872
  %9051 = vmatmul.mubr.bf16.gmra.mxu0 %v7255
  %v9052 = vpop.f32.mrf.mxu0
  %v9053 = vpop.f32.mrf.mxu0
  %v9054 = vpop.f32.mrf.mxu0
  %v9055 = vpop.f32.mrf.mxu0
  %9056 = vmatprep.mubr.bf16.mxu0 %v6876
  %9057 = vmatmul.mubr.bf16.gmra.mxu0 %v7256
  %v9058 = vpop.f32.mrf.mxu0
  %v9059 = vpop.f32.mrf.mxu0
  %v9060 = vpop.f32.mrf.mxu0
  %v9061 = vpop.f32.mrf.mxu0
  %9062 = vdwg.mxu0
  %9063 = vmatprep.subr.bf16.mxu0 0
  %9064 = vmatpush1.bf16.msra.mxu0 0
  %9065 = vmatprep.subr.bf16.mxu0 0
  %9066 = vmatpush1.bf16.msra.mxu0 0
  %9067 = vmatprep.subr.bf16.mxu0 0
  %9068 = vmatpush1.bf16.msra.mxu0 0
  %9069 = vmatprep.subr.bf16.mxu0 0
  %9070 = vmatpush1.bf16.msra.mxu0 0
  %9071 = vmatprep.subr.bf16.mxu0 0
  %9072 = vmatpush1.bf16.msra.mxu0 %v7830
  %9073 = vmatprep.subr.bf16.mxu0 0
  %9074 = vmatpush1.bf16.msra.mxu0 %v7829
  %9075 = vmatprep.subr.bf16.mxu0 0
  %9076 = vmatpush1.bf16.msra.mxu0 %v7828
  %9077 = vmatprep.subr.bf16.mxu0 0
  %9078 = vmatpush1.bf16.msra.mxu0 %v7827
  %9079 = vmatprep.subr.bf16.mxu0 0
  %9080 = vmatpush2.bf16.msra.mxu0 0
  %9081 = vmatprep.subr.bf16.mxu0 0
  %9082 = vmatpush2.bf16.msra.mxu0 0
  %9083 = vmatprep.subr.bf16.mxu0 0
  %9084 = vmatpush2.bf16.msra.mxu0 0
  %9085 = vmatprep.subr.bf16.mxu0 0
  %9086 = vmatpush2.bf16.msra.mxu0 0
  %9087 = vmatprep.subr.bf16.mxu0 0
  %9088 = vmatpush2.bf16.msra.mxu0 0
  %9089 = vmatprep.subr.bf16.mxu0 0
  %9090 = vmatpush2.bf16.msra.mxu0 0
  %9091 = vmatprep.subr.bf16.mxu0 0
  %9092 = vmatpush2.bf16.msra.mxu0 0
  %9093 = vmatprep.subr.bf16.mxu0 0
  %9094 = vmatpush2.bf16.msra.mxu0 0
  %9095 = vmatprep.mubr.bf16.mxu0 0
  %9096 = vmatmul.mubr.bf16.gmra.mxu0 %v7867
  %v9097 = vpop.f32.mrf.mxu0
  %v9098 = vadd.f32 %v8566, %v9097
  %v9099 = vpop.f32.mrf.mxu0
  %v9100 = vpop.f32.mrf.mxu0
  %v9101 = vadd.f32 %v8569, %v9100
  %v9102 = vpop.f32.mrf.mxu0
  %9103 = vmatprep.mubr.bf16.mxu0 0
  %9104 = vmatmul.mubr.bf16.gmra.mxu0 %v7869
  %v9105 = vpop.f32.mrf.mxu0
  %v9106 = vadd.f32 %v8574, %v9105
  %v9107 = vpop.f32.mrf.mxu0
  %v9108 = vpop.f32.mrf.mxu0
  %v9109 = vadd.f32 %v8577, %v9108
  %v9110 = vpop.f32.mrf.mxu0
  %9111 = vmatprep.mubr.bf16.mxu0 0
  %9112 = vmatmul.mubr.bf16.gmra.mxu0 %v7871
  %v9113 = vpop.f32.mrf.mxu0
  %v9114 = vadd.f32 %v8582, %v9113
  %v9115 = vpop.f32.mrf.mxu0
  %v9116 = vpop.f32.mrf.mxu0
  %v9117 = vadd.f32 %v8585, %v9116
  %v9118 = vpop.f32.mrf.mxu0
  %9119 = vmatprep.mubr.bf16.mxu0 0
  %9120 = vmatmul.mubr.bf16.gmra.mxu0 %v7873
  %v9121 = vpop.f32.mrf.mxu0
  %v9122 = vadd.f32 %v8590, %v9121
  %v9123 = vpop.f32.mrf.mxu0
  %v9124 = vpop.f32.mrf.mxu0
  %v9125 = vadd.f32 %v8593, %v9124
  %v9126 = vpop.f32.mrf.mxu0
  %9127 = vmatprep.mubr.bf16.mxu0 0
  %9128 = vmatmul.mubr.bf16.gmra.mxu0 %v7875
  %v9129 = vpop.f32.mrf.mxu0
  %v9130 = vadd.f32 %v8598, %v9129
  %v9131 = vpop.f32.mrf.mxu0
  %v9132 = vpop.f32.mrf.mxu0
  %v9133 = vadd.f32 %v8601, %v9132
  %v9134 = vpop.f32.mrf.mxu0
  %9135 = vmatprep.mubr.bf16.mxu0 0
  %9136 = vmatmul.mubr.bf16.gmra.mxu0 %v7877
  %v9137 = vpop.f32.mrf.mxu0
  %v9138 = vadd.f32 %v8606, %v9137
  %v9139 = vpop.f32.mrf.mxu0
  %v9140 = vpop.f32.mrf.mxu0
  %v9141 = vadd.f32 %v8609, %v9140
  %v9142 = vpop.f32.mrf.mxu0
  %9143 = vmatprep.mubr.bf16.mxu0 0
  %9144 = vmatmul.mubr.bf16.gmra.mxu0 %v7879
  %v9145 = vpop.f32.mrf.mxu0
  %v9146 = vadd.f32 %v8614, %v9145
  %v9147 = vpop.f32.mrf.mxu0
  %v9148 = vpop.f32.mrf.mxu0
  %v9149 = vadd.f32 %v8617, %v9148
  %v9150 = vpop.f32.mrf.mxu0
  %9151 = vmatprep.mubr.bf16.mxu0 0
  %9152 = vmatmul.mubr.bf16.gmra.mxu0 %v7881
  %v9153 = vpop.f32.mrf.mxu0
  %v9154 = vadd.f32 %v8622, %v9153
  %v9155 = vpop.f32.mrf.mxu0
  %v9156 = vpop.f32.mrf.mxu0
  %v9157 = vadd.f32 %v8625, %v9156
  %v9158 = vpop.f32.mrf.mxu0
  %9159 = vmatprep.mubr.bf16.mxu0 0
  %9160 = vmatmul.mubr.bf16.gmra.mxu0 %v7883
  %v9161 = vpop.f32.mrf.mxu0
  %v9162 = vadd.f32 %v8630, %v9161
  %v9163 = vpop.f32.mrf.mxu0
  %v9164 = vpop.f32.mrf.mxu0
  %v9165 = vadd.f32 %v8633, %v9164
  %v9166 = vpop.f32.mrf.mxu0
  %9167 = vmatprep.mubr.bf16.mxu0 0
  %9168 = vmatmul.mubr.bf16.gmra.mxu0 %v7885
  %v9169 = vpop.f32.mrf.mxu0
  %v9170 = vadd.f32 %v8638, %v9169
  %v9171 = vpop.f32.mrf.mxu0
  %v9172 = vpop.f32.mrf.mxu0
  %v9173 = vadd.f32 %v8641, %v9172
  %v9174 = vpop.f32.mrf.mxu0
  %9175 = vmatprep.mubr.bf16.mxu0 0
  %9176 = vmatmul.mubr.bf16.gmra.mxu0 %v7887
  %v9177 = vpop.f32.mrf.mxu0
  %v9178 = vadd.f32 %v8646, %v9177
  %v9179 = vpop.f32.mrf.mxu0
  %v9180 = vpop.f32.mrf.mxu0
  %v9181 = vadd.f32 %v8649, %v9180
  %v9182 = vpop.f32.mrf.mxu0
  %9183 = vmatprep.mubr.bf16.mxu0 0
  %9184 = vmatmul.mubr.bf16.gmra.mxu0 %v7889
  %v9185 = vpop.f32.mrf.mxu0
  %v9186 = vadd.f32 %v8654, %v9185
  %v9187 = vpop.f32.mrf.mxu0
  %v9188 = vpop.f32.mrf.mxu0
  %v9189 = vadd.f32 %v8657, %v9188
  %v9190 = vpop.f32.mrf.mxu0
  %9191 = vmatprep.mubr.bf16.mxu0 0
  %9192 = vmatmul.mubr.bf16.gmra.mxu0 %v7891
  %v9193 = vpop.f32.mrf.mxu0
  %v9194 = vadd.f32 %v8662, %v9193
  %v9195 = vpop.f32.mrf.mxu0
  %v9196 = vpop.f32.mrf.mxu0
  %v9197 = vadd.f32 %v8665, %v9196
  %v9198 = vpop.f32.mrf.mxu0
  %9199 = vmatprep.mubr.bf16.mxu0 0
  %9200 = vmatmul.mubr.bf16.gmra.mxu0 %v7893
  %v9201 = vpop.f32.mrf.mxu0
  %v9202 = vadd.f32 %v8670, %v9201
  %v9203 = vpop.f32.mrf.mxu0
  %v9204 = vpop.f32.mrf.mxu0
  %v9205 = vadd.f32 %v8673, %v9204
  %v9206 = vpop.f32.mrf.mxu0
  %9207 = vmatprep.mubr.bf16.mxu0 0
  %9208 = vmatmul.mubr.bf16.gmra.mxu0 %v7895
  %v9209 = vpop.f32.mrf.mxu0
  %v9210 = vadd.f32 %v8678, %v9209
  %v9211 = vpop.f32.mrf.mxu0
  %v9212 = vpop.f32.mrf.mxu0
  %v9213 = vadd.f32 %v8681, %v9212
  %v9214 = vpop.f32.mrf.mxu0
  %9215 = vmatprep.mubr.bf16.mxu0 0
  %9216 = vmatmul.mubr.bf16.gmra.mxu0 %v7897
  %v9217 = vpop.f32.mrf.mxu0
  %v9218 = vadd.f32 %v8686, %v9217
  %v9219 = vpop.f32.mrf.mxu0
  %v9220 = vpop.f32.mrf.mxu0
  %v9221 = vadd.f32 %v8689, %v9220
  %v9222 = vpop.f32.mrf.mxu0
  %9223 = vmatprep.mubr.bf16.mxu0 0
  %9224 = vmatmul.mubr.bf16.gmra.mxu0 %v7899
  %v9225 = vpop.f32.mrf.mxu0
  %v9226 = vadd.f32 %v8694, %v9225
  %v9227 = vpop.f32.mrf.mxu0
  %v9228 = vpop.f32.mrf.mxu0
  %v9229 = vadd.f32 %v8697, %v9228
  %v9230 = vpop.f32.mrf.mxu0
  %9231 = vmatprep.mubr.bf16.mxu0 0
  %9232 = vmatmul.mubr.bf16.gmra.mxu0 %v7901
  %v9233 = vpop.f32.mrf.mxu0
  %v9234 = vadd.f32 %v8702, %v9233
  %v9235 = vpop.f32.mrf.mxu0
  %v9236 = vpop.f32.mrf.mxu0
  %v9237 = vadd.f32 %v8705, %v9236
  %v9238 = vpop.f32.mrf.mxu0
  %9239 = vmatprep.mubr.bf16.mxu0 0
  %9240 = vmatmul.mubr.bf16.gmra.mxu0 %v7903
  %v9241 = vpop.f32.mrf.mxu0
  %v9242 = vadd.f32 %v8710, %v9241
  %v9243 = vpop.f32.mrf.mxu0
  %v9244 = vpop.f32.mrf.mxu0
  %v9245 = vadd.f32 %v8713, %v9244
  %v9246 = vpop.f32.mrf.mxu0
  %9247 = vmatprep.mubr.bf16.mxu0 0
  %9248 = vmatmul.mubr.bf16.gmra.mxu0 %v7905
  %v9249 = vpop.f32.mrf.mxu0
  %v9250 = vadd.f32 %v8718, %v9249
  %v9251 = vpop.f32.mrf.mxu0
  %v9252 = vpop.f32.mrf.mxu0
  %v9253 = vadd.f32 %v8721, %v9252
  %v9254 = vpop.f32.mrf.mxu0
  %9255 = vmatprep.mubr.bf16.mxu0 0
  %9256 = vmatmul.mubr.bf16.gmra.mxu0 %v7907
  %v9257 = vpop.f32.mrf.mxu0
  %v9258 = vadd.f32 %v8726, %v9257
  %v9259 = vpop.f32.mrf.mxu0
  %v9260 = vpop.f32.mrf.mxu0
  %v9261 = vadd.f32 %v8729, %v9260
  %v9262 = vpop.f32.mrf.mxu0
  %9263 = vmatprep.mubr.bf16.mxu0 0
  %9264 = vmatmul.mubr.bf16.gmra.mxu0 %v7909
  %v9265 = vpop.f32.mrf.mxu0
  %v9266 = vadd.f32 %v8734, %v9265
  %v9267 = vpop.f32.mrf.mxu0
  %v9268 = vpop.f32.mrf.mxu0
  %v9269 = vadd.f32 %v8737, %v9268
  %v9270 = vpop.f32.mrf.mxu0
  %9271 = vmatprep.mubr.bf16.mxu0 0
  %9272 = vmatmul.mubr.bf16.gmra.mxu0 %v7911
  %v9273 = vpop.f32.mrf.mxu0
  %v9274 = vadd.f32 %v8742, %v9273
  %v9275 = vpop.f32.mrf.mxu0
  %v9276 = vpop.f32.mrf.mxu0
  %v9277 = vadd.f32 %v8745, %v9276
  %v9278 = vpop.f32.mrf.mxu0
  %9279 = vmatprep.mubr.bf16.mxu0 0
  %9280 = vmatmul.mubr.bf16.gmra.mxu0 %v7913
  %v9281 = vpop.f32.mrf.mxu0
  %v9282 = vadd.f32 %v8750, %v9281
  %v9283 = vpop.f32.mrf.mxu0
  %v9284 = vpop.f32.mrf.mxu0
  %v9285 = vadd.f32 %v8753, %v9284
  %v9286 = vpop.f32.mrf.mxu0
  %9287 = vmatprep.mubr.bf16.mxu0 0
  %9288 = vmatmul.mubr.bf16.gmra.mxu0 %v7915
  %v9289 = vpop.f32.mrf.mxu0
  %v9290 = vadd.f32 %v8758, %v9289
  %v9291 = vpop.f32.mrf.mxu0
  %v9292 = vpop.f32.mrf.mxu0
  %v9293 = vadd.f32 %v8761, %v9292
  %v9294 = vpop.f32.mrf.mxu0
  %9295 = vmatprep.mubr.bf16.mxu0 0
  %9296 = vmatmul.mubr.bf16.gmra.mxu0 %v7917
  %v9297 = vpop.f32.mrf.mxu0
  %v9298 = vadd.f32 %v8766, %v9297
  %v9299 = vpop.f32.mrf.mxu0
  %v9300 = vpop.f32.mrf.mxu0
  %v9301 = vadd.f32 %v8769, %v9300
  %v9302 = vpop.f32.mrf.mxu0
  %9303 = vmatprep.mubr.bf16.mxu0 0
  %9304 = vmatmul.mubr.bf16.gmra.mxu0 %v7919
  %v9305 = vpop.f32.mrf.mxu0
  %v9306 = vadd.f32 %v8774, %v9305
  %v9307 = vpop.f32.mrf.mxu0
  %v9308 = vpop.f32.mrf.mxu0
  %v9309 = vadd.f32 %v8777, %v9308
  %v9310 = vpop.f32.mrf.mxu0
  %9311 = vmatprep.mubr.bf16.mxu0 0
  %9312 = vmatmul.mubr.bf16.gmra.mxu0 %v7921
  %v9313 = vpop.f32.mrf.mxu0
  %v9314 = vadd.f32 %v8782, %v9313
  %v9315 = vpop.f32.mrf.mxu0
  %v9316 = vpop.f32.mrf.mxu0
  %v9317 = vadd.f32 %v8785, %v9316
  %v9318 = vpop.f32.mrf.mxu0
  %9319 = vmatprep.mubr.bf16.mxu0 0
  %9320 = vmatmul.mubr.bf16.gmra.mxu0 %v7923
  %v9321 = vpop.f32.mrf.mxu0
  %v9322 = vadd.f32 %v8790, %v9321
  %v9323 = vpop.f32.mrf.mxu0
  %v9324 = vpop.f32.mrf.mxu0
  %v9325 = vadd.f32 %v8793, %v9324
  %v9326 = vpop.f32.mrf.mxu0
  %9327 = vmatprep.mubr.bf16.mxu0 0
  %9328 = vmatmul.mubr.bf16.gmra.mxu0 %v7925
  %v9329 = vpop.f32.mrf.mxu0
  %v9330 = vadd.f32 %v8798, %v9329
  %v9331 = vpop.f32.mrf.mxu0
  %v9332 = vpop.f32.mrf.mxu0
  %v9333 = vadd.f32 %v8801, %v9332
  %v9334 = vpop.f32.mrf.mxu0
  %9335 = vmatprep.mubr.bf16.mxu0 0
  %9336 = vmatmul.mubr.bf16.gmra.mxu0 %v7927
  %v9337 = vpop.f32.mrf.mxu0
  %v9338 = vadd.f32 %v8806, %v9337
  %v9339 = vpop.f32.mrf.mxu0
  %v9340 = vpop.f32.mrf.mxu0
  %v9341 = vadd.f32 %v8809, %v9340
  %v9342 = vpop.f32.mrf.mxu0
  %9343 = vmatprep.mubr.bf16.mxu0 0
  %9344 = vmatmul.mubr.bf16.gmra.mxu0 %v7929
  %v9345 = vpop.f32.mrf.mxu0
  %v9346 = vadd.f32 %v8814, %v9345
  %v9347 = vpop.f32.mrf.mxu0
  %v9348 = vpop.f32.mrf.mxu0
  %v9349 = vadd.f32 %v8817, %v9348
  %v9350 = vpop.f32.mrf.mxu0
  %9351 = vmatprep.mubr.bf16.mxu0 0
  %9352 = vmatmul.mubr.bf16.gmra.mxu0 %v7931
  %v9353 = vpop.f32.mrf.mxu0
  %v9354 = vadd.f32 %v8822, %v9353
  %v9355 = vpop.f32.mrf.mxu0
  %v9356 = vpop.f32.mrf.mxu0
  %v9357 = vadd.f32 %v8825, %v9356
  %v9358 = vpop.f32.mrf.mxu0
  %9359 = vmatprep.mubr.bf16.mxu0 0
  %9360 = vmatmul.mubr.bf16.gmra.mxu0 %v7933
  %v9361 = vpop.f32.mrf.mxu0
  %v9362 = vadd.f32 %v8830, %v9361
  %v9363 = vpop.f32.mrf.mxu0
  %v9364 = vpop.f32.mrf.mxu0
  %v9365 = vadd.f32 %v8833, %v9364
  %v9366 = vpop.f32.mrf.mxu0
  %9367 = vmatprep.mubr.bf16.mxu0 0
  %9368 = vmatmul.mubr.bf16.gmra.mxu0 %v7935
  %v9369 = vpop.f32.mrf.mxu0
  %v9370 = vadd.f32 %v8838, %v9369
  %v9371 = vpop.f32.mrf.mxu0
  %v9372 = vpop.f32.mrf.mxu0
  %v9373 = vadd.f32 %v8841, %v9372
  %v9374 = vpop.f32.mrf.mxu0
  %9375 = vmatprep.mubr.bf16.mxu0 0
  %9376 = vmatmul.mubr.bf16.gmra.mxu0 %v7937
  %v9377 = vpop.f32.mrf.mxu0
  %v9378 = vadd.f32 %v8846, %v9377
  %v9379 = vpop.f32.mrf.mxu0
  %v9380 = vpop.f32.mrf.mxu0
  %v9381 = vadd.f32 %v8849, %v9380
  %v9382 = vpop.f32.mrf.mxu0
  %9383 = vmatprep.mubr.bf16.mxu0 0
  %9384 = vmatmul.mubr.bf16.gmra.mxu0 %v7939
  %v9385 = vpop.f32.mrf.mxu0
  %v9386 = vadd.f32 %v8854, %v9385
  %v9387 = vpop.f32.mrf.mxu0
  %v9388 = vpop.f32.mrf.mxu0
  %v9389 = vadd.f32 %v8857, %v9388
  %v9390 = vpop.f32.mrf.mxu0
  %9391 = vmatprep.mubr.bf16.mxu0 0
  %9392 = vmatmul.mubr.bf16.gmra.mxu0 %v7941
  %v9393 = vpop.f32.mrf.mxu0
  %v9394 = vadd.f32 %v8862, %v9393
  %v9395 = vpop.f32.mrf.mxu0
  %v9396 = vpop.f32.mrf.mxu0
  %v9397 = vadd.f32 %v8865, %v9396
  %v9398 = vpop.f32.mrf.mxu0
  %9399 = vmatprep.mubr.bf16.mxu0 0
  %9400 = vmatmul.mubr.bf16.gmra.mxu0 %v7943
  %v9401 = vpop.f32.mrf.mxu0
  %v9402 = vadd.f32 %v8870, %v9401
  %v9403 = vpop.f32.mrf.mxu0
  %v9404 = vpop.f32.mrf.mxu0
  %v9405 = vadd.f32 %v8873, %v9404
  %v9406 = vpop.f32.mrf.mxu0
  %9407 = vmatprep.mubr.bf16.mxu0 0
  %9408 = vmatmul.mubr.bf16.gmra.mxu0 %v7945
  %v9409 = vpop.f32.mrf.mxu0
  %v9410 = vadd.f32 %v8878, %v9409
  %v9411 = vpop.f32.mrf.mxu0
  %v9412 = vpop.f32.mrf.mxu0
  %v9413 = vadd.f32 %v8881, %v9412
  %v9414 = vpop.f32.mrf.mxu0
  %9415 = vmatprep.mubr.bf16.mxu0 0
  %9416 = vmatmul.mubr.bf16.gmra.mxu0 %v7947
  %v9417 = vpop.f32.mrf.mxu0
  %v9418 = vadd.f32 %v8886, %v9417
  %v9419 = vpop.f32.mrf.mxu0
  %v9420 = vpop.f32.mrf.mxu0
  %v9421 = vadd.f32 %v8889, %v9420
  %v9422 = vpop.f32.mrf.mxu0
  %9423 = vmatprep.mubr.bf16.mxu0 0
  %9424 = vmatmul.mubr.bf16.gmra.mxu0 %v7949
  %v9425 = vpop.f32.mrf.mxu0
  %v9426 = vadd.f32 %v8894, %v9425
  %v9427 = vpop.f32.mrf.mxu0
  %v9428 = vpop.f32.mrf.mxu0
  %v9429 = vadd.f32 %v8897, %v9428
  %v9430 = vpop.f32.mrf.mxu0
  %9431 = vmatprep.mubr.bf16.mxu0 0
  %9432 = vmatmul.mubr.bf16.gmra.mxu0 %v7951
  %v9433 = vpop.f32.mrf.mxu0
  %v9434 = vadd.f32 %v8902, %v9433
  %v9435 = vpop.f32.mrf.mxu0
  %v9436 = vpop.f32.mrf.mxu0
  %v9437 = vadd.f32 %v8905, %v9436
  %v9438 = vpop.f32.mrf.mxu0
  %9439 = vmatprep.mubr.bf16.mxu0 0
  %9440 = vmatmul.mubr.bf16.gmra.mxu0 %v7953
  %v9441 = vpop.f32.mrf.mxu0
  %v9442 = vadd.f32 %v8910, %v9441
  %v9443 = vpop.f32.mrf.mxu0
  %v9444 = vpop.f32.mrf.mxu0
  %v9445 = vadd.f32 %v8913, %v9444
  %v9446 = vpop.f32.mrf.mxu0
  %9447 = vmatprep.mubr.bf16.mxu0 0
  %9448 = vmatmul.mubr.bf16.gmra.mxu0 %v7955
  %v9449 = vpop.f32.mrf.mxu0
  %v9450 = vadd.f32 %v8918, %v9449
  %v9451 = vpop.f32.mrf.mxu0
  %v9452 = vpop.f32.mrf.mxu0
  %v9453 = vadd.f32 %v8921, %v9452
  %v9454 = vpop.f32.mrf.mxu0
  %9455 = vmatprep.mubr.bf16.mxu0 0
  %9456 = vmatmul.mubr.bf16.gmra.mxu0 %v7957
  %v9457 = vpop.f32.mrf.mxu0
  %v9458 = vadd.f32 %v8926, %v9457
  %v9459 = vpop.f32.mrf.mxu0
  %v9460 = vpop.f32.mrf.mxu0
  %v9461 = vadd.f32 %v8929, %v9460
  %v9462 = vpop.f32.mrf.mxu0
  %9463 = vmatprep.mubr.bf16.mxu0 0
  %9464 = vmatmul.mubr.bf16.gmra.mxu0 %v7959
  %v9465 = vpop.f32.mrf.mxu0
  %v9466 = vadd.f32 %v8934, %v9465
  %v9467 = vpop.f32.mrf.mxu0
  %v9468 = vpop.f32.mrf.mxu0
  %v9469 = vadd.f32 %v8937, %v9468
  %v9470 = vpop.f32.mrf.mxu0
  %9471 = vmatprep.mubr.bf16.mxu0 0
  %9472 = vmatmul.mubr.bf16.gmra.mxu0 %v7961
  %v9473 = vpop.f32.mrf.mxu0
  %v9474 = vadd.f32 %v8942, %v9473
  %v9475 = vpop.f32.mrf.mxu0
  %v9476 = vpop.f32.mrf.mxu0
  %v9477 = vadd.f32 %v8945, %v9476
  %v9478 = vpop.f32.mrf.mxu0
  %9479 = vmatprep.mubr.bf16.mxu0 0
  %9480 = vmatmul.mubr.bf16.gmra.mxu0 %v7963
  %v9481 = vpop.f32.mrf.mxu0
  %v9482 = vadd.f32 %v8950, %v9481
  %v9483 = vpop.f32.mrf.mxu0
  %v9484 = vpop.f32.mrf.mxu0
  %v9485 = vadd.f32 %v8953, %v9484
  %v9486 = vpop.f32.mrf.mxu0
  %9487 = vmatprep.mubr.bf16.mxu0 0
  %9488 = vmatmul.mubr.bf16.gmra.mxu0 %v7965
  %v9489 = vpop.f32.mrf.mxu0
  %v9490 = vadd.f32 %v8958, %v9489
  %v9491 = vpop.f32.mrf.mxu0
  %v9492 = vpop.f32.mrf.mxu0
  %v9493 = vadd.f32 %v8961, %v9492
  %v9494 = vpop.f32.mrf.mxu0
  %9495 = vmatprep.mubr.bf16.mxu0 0
  %9496 = vmatmul.mubr.bf16.gmra.mxu0 %v7967
  %v9497 = vpop.f32.mrf.mxu0
  %v9498 = vadd.f32 %v8966, %v9497
  %v9499 = vpop.f32.mrf.mxu0
  %v9500 = vpop.f32.mrf.mxu0
  %v9501 = vadd.f32 %v8969, %v9500
  %v9502 = vpop.f32.mrf.mxu0
  %9503 = vmatprep.mubr.bf16.mxu0 0
  %9504 = vmatmul.mubr.bf16.gmra.mxu0 %v7969
  %v9505 = vpop.f32.mrf.mxu0
  %v9506 = vadd.f32 %v8974, %v9505
  %v9507 = vpop.f32.mrf.mxu0
  %v9508 = vpop.f32.mrf.mxu0
  %v9509 = vadd.f32 %v8977, %v9508
  %v9510 = vpop.f32.mrf.mxu0
  %9511 = vmatprep.mubr.bf16.mxu0 0
  %9512 = vmatmul.mubr.bf16.gmra.mxu0 %v7971
  %v9513 = vpop.f32.mrf.mxu0
  %v9514 = vadd.f32 %v8982, %v9513
  %v9515 = vpop.f32.mrf.mxu0
  %v9516 = vpop.f32.mrf.mxu0
  %v9517 = vadd.f32 %v8985, %v9516
  %v9518 = vpop.f32.mrf.mxu0
  %9519 = vmatprep.mubr.bf16.mxu0 0
  %9520 = vmatmul.mubr.bf16.gmra.mxu0 %v7973
  %v9521 = vpop.f32.mrf.mxu0
  %v9522 = vadd.f32 %v8990, %v9521
  %v9523 = vpop.f32.mrf.mxu0
  %v9524 = vpop.f32.mrf.mxu0
  %v9525 = vadd.f32 %v8993, %v9524
  %v9526 = vpop.f32.mrf.mxu0
  %9527 = vmatprep.mubr.bf16.mxu0 0
  %9528 = vmatmul.mubr.bf16.gmra.mxu0 %v7975
  %v9529 = vpop.f32.mrf.mxu0
  %v9530 = vadd.f32 %v8998, %v9529
  %v9531 = vpop.f32.mrf.mxu0
  %v9532 = vpop.f32.mrf.mxu0
  %v9533 = vadd.f32 %v9001, %v9532
  %v9534 = vpop.f32.mrf.mxu0
  %9535 = vmatprep.mubr.bf16.mxu0 0
  %9536 = vmatmul.mubr.bf16.gmra.mxu0 %v7977
  %v9537 = vpop.f32.mrf.mxu0
  %v9538 = vadd.f32 %v9006, %v9537
  %v9539 = vpop.f32.mrf.mxu0
  %v9540 = vpop.f32.mrf.mxu0
  %v9541 = vadd.f32 %v9009, %v9540
  %v9542 = vpop.f32.mrf.mxu0
  %9543 = vmatprep.mubr.bf16.mxu0 0
  %9544 = vmatmul.mubr.bf16.gmra.mxu0 %v7979
  %v9545 = vpop.f32.mrf.mxu0
  %v9546 = vadd.f32 %v9014, %v9545
  %v9547 = vpop.f32.mrf.mxu0
  %v9548 = vpop.f32.mrf.mxu0
  %v9549 = vadd.f32 %v9017, %v9548
  %v9550 = vpop.f32.mrf.mxu0
  %9551 = vmatprep.mubr.bf16.mxu0 0
  %9552 = vmatmul.mubr.bf16.gmra.mxu0 %v7982
  %v9553 = vpop.f32.mrf.mxu0
  %v9554 = vadd.f32 %v9022, %v9553
  %v9555 = vpop.f32.mrf.mxu0
  %v9556 = vpop.f32.mrf.mxu0
  %v9557 = vadd.f32 %v9025, %v9556
  %v9558 = vpop.f32.mrf.mxu0
  %9559 = vmatprep.mubr.bf16.mxu0 0
  %9560 = vmatmul.mubr.bf16.gmra.mxu0 %v7985
  %v9561 = vpop.f32.mrf.mxu0
  %v9562 = vadd.f32 %v9030, %v9561
  %v9563 = vpop.f32.mrf.mxu0
  %v9564 = vpop.f32.mrf.mxu0
  %v9565 = vadd.f32 %v9033, %v9564
  %v9566 = vpop.f32.mrf.mxu0
  %9567 = vmatprep.mubr.bf16.mxu0 0
  %9568 = vmatmul.mubr.bf16.gmra.mxu0 %v7988
  %v9569 = vpop.f32.mrf.mxu0
  %v9570 = vadd.f32 %v9038, %v9569
  %v9571 = vpop.f32.mrf.mxu0
  %v9572 = vpop.f32.mrf.mxu0
  %v9573 = vadd.f32 %v9041, %v9572
  %v9574 = vpop.f32.mrf.mxu0
  %9575 = vmatprep.mubr.bf16.mxu0 0
  %9576 = vmatmul.mubr.bf16.gmra.mxu0 %v7991
  %v9577 = vpop.f32.mrf.mxu0
  %v9578 = vadd.f32 %v9046, %v9577
  %v9579 = vpop.f32.mrf.mxu0
  %v9580 = vpop.f32.mrf.mxu0
  %v9581 = vpop.f32.mrf.mxu0
  %9582 = vmatprep.mubr.bf16.mxu0 0
  %9583 = vmatmul.mubr.bf16.gmra.mxu0 %v7994
  %v9584 = vpop.f32.mrf.mxu0
  %v9585 = vpop.f32.mrf.mxu0
  %v9586 = vpop.f32.mrf.mxu0
  %v9587 = vpop.f32.mrf.mxu0
  %9588 = vmatprep.mubr.bf16.mxu0 0
  %9589 = vmatmul.mubr.bf16.gmra.mxu0 %v7997
  %v9590 = vpop.f32.mrf.mxu0
  %v9591 = vpop.f32.mrf.mxu0
  %v9592 = vpop.f32.mrf.mxu0
  %v9593 = vpop.f32.mrf.mxu0
  %9594 = vdwg.mxu0
  %vm9595 = vcmp.ge.f32.partialorder %v9098, 0.0
  %vm9596 = vcmp.ge.f32.partialorder %v9101, 0.0
  %vm9597 = vcmp.ge.f32.partialorder %v9106, 0.0
  %vm9598 = vcmp.ge.f32.partialorder %v9109, 0.0
  %vm9599 = vcmp.ge.f32.partialorder %v9114, 0.0
  %vm9600 = vcmp.ge.f32.partialorder %v9117, 0.0
  %vm9601 = vcmp.ge.f32.partialorder %v9122, 0.0
  %vm9602 = vcmp.ge.f32.partialorder %v9125, 0.0
  %vm9603 = vcmp.ge.f32.partialorder %v9130, 0.0
  %vm9604 = vcmp.ge.f32.partialorder %v9133, 0.0
  %vm9605 = vcmp.ge.f32.partialorder %v9138, 0.0
  %vm9606 = vcmp.ge.f32.partialorder %v9141, 0.0
  %vm9607 = vcmp.ge.f32.partialorder %v9146, 0.0
  %vm9608 = vcmp.ge.f32.partialorder %v9149, 0.0
  %vm9609 = vcmp.ge.f32.partialorder %v9154, 0.0
  %vm9610 = vcmp.ge.f32.partialorder %v9157, 0.0
  %vm9611 = vcmp.ge.f32.partialorder %v9162, 0.0
  %vm9612 = vcmp.ge.f32.partialorder %v9165, 0.0
  %vm9613 = vcmp.ge.f32.partialorder %v9170, 0.0
  %vm9614 = vcmp.ge.f32.partialorder %v9173, 0.0
  %vm9615 = vcmp.ge.f32.partialorder %v9178, 0.0
  %vm9616 = vcmp.ge.f32.partialorder %v9181, 0.0
  %vm9617 = vcmp.ge.f32.partialorder %v9186, 0.0
  %vm9618 = vcmp.ge.f32.partialorder %v9189, 0.0
  %vm9619 = vcmp.ge.f32.partialorder %v9194, 0.0
  %vm9620 = vcmp.ge.f32.partialorder %v9197, 0.0
  %vm9621 = vcmp.ge.f32.partialorder %v9202, 0.0
  %vm9622 = vcmp.ge.f32.partialorder %v9205, 0.0
  %vm9623 = vcmp.ge.f32.partialorder %v9210, 0.0
  %vm9624 = vcmp.ge.f32.partialorder %v9213, 0.0
  %vm9625 = vcmp.ge.f32.partialorder %v9218, 0.0
  %vm9626 = vcmp.ge.f32.partialorder %v9221, 0.0
  %vm9627 = vcmp.ge.f32.partialorder %v9226, 0.0
  %vm9628 = vcmp.ge.f32.partialorder %v9229, 0.0
  %vm9629 = vcmp.ge.f32.partialorder %v9234, 0.0
  %vm9630 = vcmp.ge.f32.partialorder %v9237, 0.0
  %vm9631 = vcmp.ge.f32.partialorder %v9242, 0.0
  %vm9632 = vcmp.ge.f32.partialorder %v9245, 0.0
  %vm9633 = vcmp.ge.f32.partialorder %v9250, 0.0
  %vm9634 = vcmp.ge.f32.partialorder %v9253, 0.0
  %vm9635 = vcmp.ge.f32.partialorder %v9258, 0.0
  %vm9636 = vcmp.ge.f32.partialorder %v9261, 0.0
  %vm9637 = vcmp.ge.f32.partialorder %v9266, 0.0
  %vm9638 = vcmp.ge.f32.partialorder %v9269, 0.0
  %vm9639 = vcmp.ge.f32.partialorder %v9274, 0.0
  %vm9640 = vcmp.ge.f32.partialorder %v9277, 0.0
  %vm9641 = vcmp.ge.f32.partialorder %v9282, 0.0
  %vm9642 = vcmp.ge.f32.partialorder %v9285, 0.0
  %vm9643 = vcmp.ge.f32.partialorder %v9290, 0.0
  %vm9644 = vcmp.ge.f32.partialorder %v9293, 0.0
  %vm9645 = vcmp.ge.f32.partialorder %v9298, 0.0
  %vm9646 = vcmp.ge.f32.partialorder %v9301, 0.0
  %vm9647 = vcmp.ge.f32.partialorder %v9306, 0.0
  %vm9648 = vcmp.ge.f32.partialorder %v9309, 0.0
  %vm9649 = vcmp.ge.f32.partialorder %v9314, 0.0
  %vm9650 = vcmp.ge.f32.partialorder %v9317, 0.0
  %vm9651 = vcmp.ge.f32.partialorder %v9322, 0.0
  %vm9652 = vcmp.ge.f32.partialorder %v9325, 0.0
  %vm9653 = vcmp.ge.f32.partialorder %v9330, 0.0
  %vm9654 = vcmp.ge.f32.partialorder %v9333, 0.0
  %vm9655 = vcmp.ge.f32.partialorder %v9338, 0.0
  %vm9656 = vcmp.ge.f32.partialorder %v9341, 0.0
  %vm9657 = vcmp.ge.f32.partialorder %v9346, 0.0
  %vm9658 = vcmp.ge.f32.partialorder %v9349, 0.0
  %vm9659 = vcmp.ge.f32.partialorder %v9354, 0.0
  %vm9660 = vcmp.ge.f32.partialorder %v9357, 0.0
  %vm9661 = vcmp.ge.f32.partialorder %v9362, 0.0
  %vm9662 = vcmp.ge.f32.partialorder %v9365, 0.0
  %vm9663 = vcmp.ge.f32.partialorder %v9370, 0.0
  %vm9664 = vcmp.ge.f32.partialorder %v9373, 0.0
  %vm9665 = vcmp.ge.f32.partialorder %v9378, 0.0
  %vm9666 = vcmp.ge.f32.partialorder %v9381, 0.0
  %vm9667 = vcmp.ge.f32.partialorder %v9386, 0.0
  %vm9668 = vcmp.ge.f32.partialorder %v9389, 0.0
  %vm9669 = vcmp.ge.f32.partialorder %v9394, 0.0
  %vm9670 = vcmp.ge.f32.partialorder %v9397, 0.0
  %vm9671 = vcmp.ge.f32.partialorder %v9402, 0.0
  %vm9672 = vcmp.ge.f32.partialorder %v9405, 0.0
  %vm9673 = vcmp.ge.f32.partialorder %v9410, 0.0
  %vm9674 = vcmp.ge.f32.partialorder %v9413, 0.0
  %vm9675 = vcmp.ge.f32.partialorder %v9418, 0.0
  %vm9676 = vcmp.ge.f32.partialorder %v9421, 0.0
  %vm9677 = vcmp.ge.f32.partialorder %v9426, 0.0
  %vm9678 = vcmp.ge.f32.partialorder %v9429, 0.0
  %vm9679 = vcmp.ge.f32.partialorder %v9434, 0.0
  %vm9680 = vcmp.ge.f32.partialorder %v9437, 0.0
  %vm9681 = vcmp.ge.f32.partialorder %v9442, 0.0
  %vm9682 = vcmp.ge.f32.partialorder %v9445, 0.0
  %vm9683 = vcmp.ge.f32.partialorder %v9450, 0.0
  %vm9684 = vcmp.ge.f32.partialorder %v9453, 0.0
  %vm9685 = vcmp.ge.f32.partialorder %v9458, 0.0
  %vm9686 = vcmp.ge.f32.partialorder %v9461, 0.0
  %vm9687 = vcmp.ge.f32.partialorder %v9466, 0.0
  %vm9688 = vcmp.ge.f32.partialorder %v9469, 0.0
  %vm9689 = vcmp.ge.f32.partialorder %v9474, 0.0
  %vm9690 = vcmp.ge.f32.partialorder %v9477, 0.0
  %vm9691 = vcmp.ge.f32.partialorder %v9482, 0.0
  %vm9692 = vcmp.ge.f32.partialorder %v9485, 0.0
  %vm9693 = vcmp.ge.f32.partialorder %v9490, 0.0
  %vm9694 = vcmp.ge.f32.partialorder %v9493, 0.0
  %vm9695 = vcmp.ge.f32.partialorder %v9498, 0.0
  %vm9696 = vcmp.ge.f32.partialorder %v9501, 0.0
  %vm9697 = vcmp.ge.f32.partialorder %v9506, 0.0
  %vm9698 = vcmp.ge.f32.partialorder %v9509, 0.0
  %vm9699 = vcmp.ge.f32.partialorder %v9514, 0.0
  %vm9700 = vcmp.ge.f32.partialorder %v9517, 0.0
  %vm9701 = vcmp.ge.f32.partialorder %v9522, 0.0
  %vm9702 = vcmp.ge.f32.partialorder %v9525, 0.0
  %vm9703 = vcmp.ge.f32.partialorder %v9530, 0.0
  %vm9704 = vcmp.ge.f32.partialorder %v9533, 0.0
  %vm9705 = vcmp.ge.f32.partialorder %v9538, 0.0
  %vm9706 = vcmp.ge.f32.partialorder %v9541, 0.0
  %vm9707 = vcmp.ge.f32.partialorder %v9546, 0.0
  %vm9708 = vcmp.ge.f32.partialorder %v9549, 0.0
  %vm9709 = vcmp.ge.f32.partialorder %v9554, 0.0
  %vm9710 = vcmp.ge.f32.partialorder %v9557, 0.0
  %vm9711 = vcmp.ge.f32.partialorder %v9562, 0.0
  %vm9712 = vcmp.ge.f32.partialorder %v9565, 0.0
  %vm9713 = vcmp.ge.f32.partialorder %v9570, 0.0
  %vm9714 = vcmp.ge.f32.partialorder %v9573, 0.0
  %vm9715 = vcmp.ge.f32.partialorder %v9578, 0.0
  %v9716 = vmul.f32 %v9098, 0.01
  %v9717 = vmul.f32 %v9101, 0.01
  %v9718 = vmul.f32 %v9106, 0.01
  %v9719 = vmul.f32 %v9109, 0.01
  %v9720 = vmul.f32 %v9114, 0.01
  %v9721 = vmul.f32 %v9117, 0.01
  %v9722 = vmul.f32 %v9122, 0.01
  %v9723 = vmul.f32 %v9125, 0.01
  %v9724 = vmul.f32 %v9130, 0.01
  %v9725 = vmul.f32 %v9133, 0.01
  %v9726 = vmul.f32 %v9138, 0.01
  %v9727 = vmul.f32 %v9141, 0.01
  %v9728 = vmul.f32 %v9146, 0.01
  %v9729 = vmul.f32 %v9149, 0.01
  %v9730 = vmul.f32 %v9154, 0.01
  %v9731 = vmul.f32 %v9157, 0.01
  %v9732 = vmul.f32 %v9162, 0.01
  %v9733 = vmul.f32 %v9165, 0.01
  %v9734 = vmul.f32 %v9170, 0.01
  %v9735 = vmul.f32 %v9173, 0.01
  %v9736 = vmul.f32 %v9178, 0.01
  %v9737 = vmul.f32 %v9181, 0.01
  %v9738 = vmul.f32 %v9186, 0.01
  %v9739 = vmul.f32 %v9189, 0.01
  %v9740 = vmul.f32 %v9194, 0.01
  %v9741 = vmul.f32 %v9197, 0.01
  %v9742 = vmul.f32 %v9202, 0.01
  %v9743 = vmul.f32 %v9205, 0.01
  %v9744 = vmul.f32 %v9210, 0.01
  %v9745 = vmul.f32 %v9213, 0.01
  %v9746 = vmul.f32 %v9218, 0.01
  %v9747 = vmul.f32 %v9221, 0.01
  %v9748 = vmul.f32 %v9226, 0.01
  %v9749 = vmul.f32 %v9229, 0.01
  %v9750 = vmul.f32 %v9234, 0.01
  %v9751 = vmul.f32 %v9237, 0.01
  %v9752 = vmul.f32 %v9242, 0.01
  %v9753 = vmul.f32 %v9245, 0.01
  %v9754 = vmul.f32 %v9250, 0.01
  %v9755 = vmul.f32 %v9253, 0.01
  %v9756 = vmul.f32 %v9258, 0.01
  %v9757 = vmul.f32 %v9261, 0.01
  %v9758 = vmul.f32 %v9266, 0.01
  %v9759 = vmul.f32 %v9269, 0.01
  %v9760 = vmul.f32 %v9274, 0.01
  %v9761 = vmul.f32 %v9277, 0.01
  %v9762 = vmul.f32 %v9282, 0.01
  %v9763 = vmul.f32 %v9285, 0.01
  %v9764 = vmul.f32 %v9290, 0.01
  %v9765 = vmul.f32 %v9293, 0.01
  %v9766 = vmul.f32 %v9298, 0.01
  %v9767 = vmul.f32 %v9301, 0.01
  %v9768 = vmul.f32 %v9306, 0.01
  %v9769 = vmul.f32 %v9309, 0.01
  %v9770 = vmul.f32 %v9314, 0.01
  %v9771 = vmul.f32 %v9317, 0.01
  %v9772 = vmul.f32 %v9322, 0.01
  %v9773 = vmul.f32 %v9325, 0.01
  %v9774 = vmul.f32 %v9330, 0.01
  %v9775 = vmul.f32 %v9333, 0.01
  %v9776 = vmul.f32 %v9338, 0.01
  %v9777 = vmul.f32 %v9341, 0.01
  %v9778 = vmul.f32 %v9346, 0.01
  %v9779 = vmul.f32 %v9349, 0.01
  %v9780 = vmul.f32 %v9354, 0.01
  %v9781 = vmul.f32 %v9357, 0.01
  %v9782 = vmul.f32 %v9362, 0.01
  %v9783 = vmul.f32 %v9365, 0.01
  %v9784 = vmul.f32 %v9370, 0.01
  %v9785 = vmul.f32 %v9373, 0.01
  %v9786 = vmul.f32 %v9378, 0.01
  %v9787 = vmul.f32 %v9381, 0.01
  %v9788 = vmul.f32 %v9386, 0.01
  %v9789 = vmul.f32 %v9389, 0.01
  %v9790 = vmul.f32 %v9394, 0.01
  %v9791 = vmul.f32 %v9397, 0.01
  %v9792 = vmul.f32 %v9402, 0.01
  %v9793 = vmul.f32 %v9405, 0.01
  %v9794 = vmul.f32 %v9410, 0.01
  %v9795 = vmul.f32 %v9413, 0.01
  %v9796 = vmul.f32 %v9418, 0.01
  %v9797 = vmul.f32 %v9421, 0.01
  %v9798 = vmul.f32 %v9426, 0.01
  %v9799 = vmul.f32 %v9429, 0.01
  %v9800 = vmul.f32 %v9434, 0.01
  %v9801 = vmul.f32 %v9437, 0.01
  %v9802 = vmul.f32 %v9442, 0.01
  %v9803 = vmul.f32 %v9445, 0.01
  %v9804 = vmul.f32 %v9450, 0.01
  %v9805 = vmul.f32 %v9453, 0.01
  %v9806 = vmul.f32 %v9458, 0.01
  %v9807 = vmul.f32 %v9461, 0.01
  %v9808 = vmul.f32 %v9466, 0.01
  %v9809 = vmul.f32 %v9469, 0.01
  %v9810 = vmul.f32 %v9474, 0.01
  %v9811 = vmul.f32 %v9477, 0.01
  %v9812 = vmul.f32 %v9482, 0.01
  %v9813 = vmul.f32 %v9485, 0.01
  %v9814 = vmul.f32 %v9490, 0.01
  %v9815 = vmul.f32 %v9493, 0.01
  %v9816 = vmul.f32 %v9498, 0.01
  %v9817 = vmul.f32 %v9501, 0.01
  %v9818 = vmul.f32 %v9506, 0.01
  %v9819 = vmul.f32 %v9509, 0.01
  %v9820 = vmul.f32 %v9514, 0.01
  %v9821 = vmul.f32 %v9517, 0.01
  %v9822 = vmul.f32 %v9522, 0.01
  %v9823 = vmul.f32 %v9525, 0.01
  %v9824 = vmul.f32 %v9530, 0.01
  %v9825 = vmul.f32 %v9533, 0.01
  %v9826 = vmul.f32 %v9538, 0.01
  %v9827 = vmul.f32 %v9541, 0.01
  %v9828 = vmul.f32 %v9546, 0.01
  %v9829 = vmul.f32 %v9549, 0.01
  %v9830 = vmul.f32 %v9554, 0.01
  %v9831 = vmul.f32 %v9557, 0.01
  %v9832 = vmul.f32 %v9562, 0.01
  %v9833 = vmul.f32 %v9565, 0.01
  %v9834 = vmul.f32 %v9570, 0.01
  %v9835 = vmul.f32 %v9573, 0.01
  %v9836 = vmul.f32 %v9578, 0.01
  %v9837 = vsel %vm9595, %v9098, %v9716
  %v9838 = vsel %vm9596, %v9101, %v9717
  %v9839 = vsel %vm9597, %v9106, %v9718
  %v9840 = vsel %vm9598, %v9109, %v9719
  %v9841 = vsel %vm9599, %v9114, %v9720
  %v9842 = vsel %vm9600, %v9117, %v9721
  %v9843 = vsel %vm9601, %v9122, %v9722
  %v9844 = vsel %vm9602, %v9125, %v9723
  %v9845 = vsel %vm9603, %v9130, %v9724
  %v9846 = vsel %vm9604, %v9133, %v9725
  %v9847 = vsel %vm9605, %v9138, %v9726
  %v9848 = vsel %vm9606, %v9141, %v9727
  %v9849 = vsel %vm9607, %v9146, %v9728
  %v9850 = vsel %vm9608, %v9149, %v9729
  %v9851 = vsel %vm9609, %v9154, %v9730
  %v9852 = vsel %vm9610, %v9157, %v9731
  %v9853 = vsel %vm9611, %v9162, %v9732
  %v9854 = vsel %vm9612, %v9165, %v9733
  %v9855 = vsel %vm9613, %v9170, %v9734
  %v9856 = vsel %vm9614, %v9173, %v9735
  %v9857 = vsel %vm9615, %v9178, %v9736
  %v9858 = vsel %vm9616, %v9181, %v9737
  %v9859 = vsel %vm9617, %v9186, %v9738
  %v9860 = vsel %vm9618, %v9189, %v9739
  %v9861 = vsel %vm9619, %v9194, %v9740
  %v9862 = vsel %vm9620, %v9197, %v9741
  %v9863 = vsel %vm9621, %v9202, %v9742
  %v9864 = vsel %vm9622, %v9205, %v9743
  %v9865 = vsel %vm9623, %v9210, %v9744
  %v9866 = vsel %vm9624, %v9213, %v9745
  %v9867 = vsel %vm9625, %v9218, %v9746
  %v9868 = vsel %vm9626, %v9221, %v9747
  %v9869 = vsel %vm9627, %v9226, %v9748
  %v9870 = vsel %vm9628, %v9229, %v9749
  %v9871 = vsel %vm9629, %v9234, %v9750
  %v9872 = vsel %vm9630, %v9237, %v9751
  %v9873 = vsel %vm9631, %v9242, %v9752
  %v9874 = vsel %vm9632, %v9245, %v9753
  %v9875 = vsel %vm9633, %v9250, %v9754
  %v9876 = vsel %vm9634, %v9253, %v9755
  %v9877 = vsel %vm9635, %v9258, %v9756
  %v9878 = vsel %vm9636, %v9261, %v9757
  %v9879 = vsel %vm9637, %v9266, %v9758
  %v9880 = vsel %vm9638, %v9269, %v9759
  %v9881 = vsel %vm9639, %v9274, %v9760
  %v9882 = vsel %vm9640, %v9277, %v9761
  %v9883 = vsel %vm9641, %v9282, %v9762
  %v9884 = vsel %vm9642, %v9285, %v9763
  %v9885 = vsel %vm9643, %v9290, %v9764
  %v9886 = vsel %vm9644, %v9293, %v9765
  %v9887 = vsel %vm9645, %v9298, %v9766
  %v9888 = vsel %vm9646, %v9301, %v9767
  %v9889 = vsel %vm9647, %v9306, %v9768
  %v9890 = vsel %vm9648, %v9309, %v9769
  %v9891 = vsel %vm9649, %v9314, %v9770
  %v9892 = vsel %vm9650, %v9317, %v9771
  %v9893 = vsel %vm9651, %v9322, %v9772
  %v9894 = vsel %vm9652, %v9325, %v9773
  %v9895 = vsel %vm9653, %v9330, %v9774
  %v9896 = vsel %vm9654, %v9333, %v9775
  %v9897 = vsel %vm9655, %v9338, %v9776
  %v9898 = vsel %vm9656, %v9341, %v9777
  %v9899 = vsel %vm9657, %v9346, %v9778
  %v9900 = vsel %vm9658, %v9349, %v9779
  %v9901 = vsel %vm9659, %v9354, %v9780
  %v9902 = vsel %vm9660, %v9357, %v9781
  %v9903 = vsel %vm9661, %v9362, %v9782
  %v9904 = vsel %vm9662, %v9365, %v9783
  %v9905 = vsel %vm9663, %v9370, %v9784
  %v9906 = vsel %vm9664, %v9373, %v9785
  %v9907 = vsel %vm9665, %v9378, %v9786
  %v9908 = vsel %vm9666, %v9381, %v9787
  %v9909 = vsel %vm9667, %v9386, %v9788
  %v9910 = vsel %vm9668, %v9389, %v9789
  %v9911 = vsel %vm9669, %v9394, %v9790
  %v9912 = vsel %vm9670, %v9397, %v9791
  %v9913 = vsel %vm9671, %v9402, %v9792
  %v9914 = vsel %vm9672, %v9405, %v9793
  %v9915 = vsel %vm9673, %v9410, %v9794
  %v9916 = vsel %vm9674, %v9413, %v9795
  %v9917 = vsel %vm9675, %v9418, %v9796
  %v9918 = vsel %vm9676, %v9421, %v9797
  %v9919 = vsel %vm9677, %v9426, %v9798
  %v9920 = vsel %vm9678, %v9429, %v9799
  %v9921 = vsel %vm9679, %v9434, %v9800
  %v9922 = vsel %vm9680, %v9437, %v9801
  %v9923 = vsel %vm9681, %v9442, %v9802
  %v9924 = vsel %vm9682, %v9445, %v9803
  %v9925 = vsel %vm9683, %v9450, %v9804
  %v9926 = vsel %vm9684, %v9453, %v9805
  %v9927 = vsel %vm9685, %v9458, %v9806
  %v9928 = vsel %vm9686, %v9461, %v9807
  %v9929 = vsel %vm9687, %v9466, %v9808
  %v9930 = vsel %vm9688, %v9469, %v9809
  %v9931 = vsel %vm9689, %v9474, %v9810
  %v9932 = vsel %vm9690, %v9477, %v9811
  %v9933 = vsel %vm9691, %v9482, %v9812
  %v9934 = vsel %vm9692, %v9485, %v9813
  %v9935 = vsel %vm9693, %v9490, %v9814
  %v9936 = vsel %vm9694, %v9493, %v9815
  %v9937 = vsel %vm9695, %v9498, %v9816
  %v9938 = vsel %vm9696, %v9501, %v9817
  %v9939 = vsel %vm9697, %v9506, %v9818
  %v9940 = vsel %vm9698, %v9509, %v9819
  %v9941 = vsel %vm9699, %v9514, %v9820
  %v9942 = vsel %vm9700, %v9517, %v9821
  %v9943 = vsel %vm9701, %v9522, %v9822
  %v9944 = vsel %vm9702, %v9525, %v9823
  %v9945 = vsel %vm9703, %v9530, %v9824
  %v9946 = vsel %vm9704, %v9533, %v9825
  %v9947 = vsel %vm9705, %v9538, %v9826
  %v9948 = vsel %vm9706, %v9541, %v9827
  %v9949 = vsel %vm9707, %v9546, %v9828
  %v9950 = vsel %vm9708, %v9549, %v9829
  %v9951 = vsel %vm9709, %v9554, %v9830
  %v9952 = vsel %vm9710, %v9557, %v9831
  %v9953 = vsel %vm9711, %v9562, %v9832
  %v9954 = vsel %vm9712, %v9565, %v9833
  %v9955 = vsel %vm9713, %v9570, %v9834
  %v9956 = vsel %vm9714, %v9573, %v9835
  %v9957 = vsel %vm9715, %v9578, %v9836
  %vm10079 = vcmask 1045504
  %v10080 = vrot.slane %v9837, 2
  %v10081 = vrot.slane %v9838, 2
  %v10082 = vsel %vm10079, %v10080, %v10081
  %v10083 = vrot.slane %v9839, 2
  %v10084 = vsel %vm10079, %v10081, %v10083
  %v10085 = vrot.slane %v9840, 2
  %v10086 = vsel %vm10079, %v10083, %v10085
  %v10087 = vrot.slane %v9841, 2
  %v10088 = vsel %vm10079, %v10085, %v10087
  %v10089 = vrot.slane %v9842, 2
  %v10090 = vsel %vm10079, %v10087, %v10089
  %v10091 = vrot.slane %v9843, 2
  %v10092 = vsel %vm10079, %v10089, %v10091
  %v10093 = vrot.slane %v9844, 2
  %v10094 = vsel %vm10079, %v10091, %v10093
  %v10095 = vrot.slane %v9845, 2
  %v10096 = vsel %vm10079, %v10093, %v10095
  %v10097 = vrot.slane %v9846, 2
  %v10098 = vsel %vm10079, %v10095, %v10097
  %v10099 = vrot.slane %v9847, 2
  %v10100 = vsel %vm10079, %v10097, %v10099
  %v10101 = vrot.slane %v9848, 2
  %v10102 = vsel %vm10079, %v10099, %v10101
  %v10103 = vrot.slane %v9849, 2
  %v10104 = vsel %vm10079, %v10101, %v10103
  %v10105 = vrot.slane %v9850, 2
  %v10106 = vsel %vm10079, %v10103, %v10105
  %v10107 = vrot.slane %v9851, 2
  %v10108 = vsel %vm10079, %v10105, %v10107
  %v10109 = vrot.slane %v9852, 2
  %v10110 = vsel %vm10079, %v10107, %v10109
  %v10111 = vrot.slane %v9853, 2
  %v10112 = vsel %vm10079, %v10109, %v10111
  %v10113 = vrot.slane %v9854, 2
  %v10114 = vsel %vm10079, %v10111, %v10113
  %v10115 = vrot.slane %v9855, 2
  %v10116 = vsel %vm10079, %v10113, %v10115
  %v10117 = vrot.slane %v9856, 2
  %v10118 = vsel %vm10079, %v10115, %v10117
  %v10119 = vrot.slane %v9857, 2
  %v10120 = vsel %vm10079, %v10117, %v10119
  %v10121 = vrot.slane %v9858, 2
  %v10122 = vsel %vm10079, %v10119, %v10121
  %v10123 = vrot.slane %v9859, 2
  %v10124 = vsel %vm10079, %v10121, %v10123
  %v10125 = vrot.slane %v9860, 2
  %v10126 = vsel %vm10079, %v10123, %v10125
  %v10127 = vrot.slane %v9861, 2
  %v10128 = vsel %vm10079, %v10125, %v10127
  %v10129 = vrot.slane %v9862, 2
  %v10130 = vsel %vm10079, %v10127, %v10129
  %v10131 = vrot.slane %v9863, 2
  %v10132 = vsel %vm10079, %v10129, %v10131
  %v10133 = vrot.slane %v9864, 2
  %v10134 = vsel %vm10079, %v10131, %v10133
  %v10135 = vrot.slane %v9865, 2
  %v10136 = vsel %vm10079, %v10133, %v10135
  %v10137 = vrot.slane %v9866, 2
  %v10138 = vsel %vm10079, %v10135, %v10137
  %v10139 = vrot.slane %v9867, 2
  %v10140 = vsel %vm10079, %v10137, %v10139
  %v10141 = vrot.slane %v9868, 2
  %v10142 = vsel %vm10079, %v10139, %v10141
  %v10143 = vrot.slane %v9869, 2
  %v10144 = vsel %vm10079, %v10141, %v10143
  %v10145 = vrot.slane %v9870, 2
  %v10146 = vsel %vm10079, %v10143, %v10145
  %v10147 = vrot.slane %v9871, 2
  %v10148 = vsel %vm10079, %v10145, %v10147
  %v10149 = vrot.slane %v9872, 2
  %v10150 = vsel %vm10079, %v10147, %v10149
  %v10151 = vrot.slane %v9873, 2
  %v10152 = vsel %vm10079, %v10149, %v10151
  %v10153 = vrot.slane %v9874, 2
  %v10154 = vsel %vm10079, %v10151, %v10153
  %v10155 = vrot.slane %v9875, 2
  %v10156 = vsel %vm10079, %v10153, %v10155
  %v10157 = vrot.slane %v9876, 2
  %v10158 = vsel %vm10079, %v10155, %v10157
  %v10159 = vrot.slane %v9877, 2
  %v10160 = vsel %vm10079, %v10157, %v10159
  %v10161 = vrot.slane %v9878, 2
  %v10162 = vsel %vm10079, %v10159, %v10161
  %v10163 = vrot.slane %v9879, 2
  %v10164 = vsel %vm10079, %v10161, %v10163
  %v10165 = vrot.slane %v9880, 2
  %v10166 = vsel %vm10079, %v10163, %v10165
  %v10167 = vrot.slane %v9881, 2
  %v10168 = vsel %vm10079, %v10165, %v10167
  %v10169 = vrot.slane %v9882, 2
  %v10170 = vsel %vm10079, %v10167, %v10169
  %v10171 = vrot.slane %v9883, 2
  %v10172 = vsel %vm10079, %v10169, %v10171
  %v10173 = vrot.slane %v9884, 2
  %v10174 = vsel %vm10079, %v10171, %v10173
  %v10175 = vrot.slane %v9885, 2
  %v10176 = vsel %vm10079, %v10173, %v10175
  %v10177 = vrot.slane %v9886, 2
  %v10178 = vsel %vm10079, %v10175, %v10177
  %v10179 = vrot.slane %v9887, 2
  %v10180 = vsel %vm10079, %v10177, %v10179
  %v10181 = vrot.slane %v9888, 2
  %v10182 = vsel %vm10079, %v10179, %v10181
  %v10183 = vrot.slane %v9889, 2
  %v10184 = vsel %vm10079, %v10181, %v10183
  %v10185 = vrot.slane %v9890, 2
  %v10186 = vsel %vm10079, %v10183, %v10185
  %v10187 = vrot.slane %v9891, 2
  %v10188 = vsel %vm10079, %v10185, %v10187
  %v10189 = vrot.slane %v9892, 2
  %v10190 = vsel %vm10079, %v10187, %v10189
  %v10191 = vrot.slane %v9893, 2
  %v10192 = vsel %vm10079, %v10189, %v10191
  %v10193 = vrot.slane %v9894, 2
  %v10194 = vsel %vm10079, %v10191, %v10193
  %v10195 = vrot.slane %v9895, 2
  %v10196 = vsel %vm10079, %v10193, %v10195
  %v10197 = vrot.slane %v9896, 2
  %v10198 = vsel %vm10079, %v10195, %v10197
  %v10199 = vrot.slane %v9897, 2
  %v10200 = vsel %vm10079, %v10197, %v10199
  %v10201 = vrot.slane %v9898, 2
  %v10202 = vsel %vm10079, %v10199, %v10201
  %v10203 = vrot.slane %v9899, 2
  %v10204 = vsel %vm10079, %v10201, %v10203
  %v10205 = vrot.slane %v9900, 2
  %v10206 = vsel %vm10079, %v10203, %v10205
  %v10207 = vrot.slane %v9901, 2
  %v10208 = vsel %vm10079, %v10205, %v10207
  %v10209 = vrot.slane %v9902, 2
  %v10210 = vsel %vm10079, %v10207, %v10209
  %v10211 = vrot.slane %v9903, 2
  %v10212 = vsel %vm10079, %v10209, %v10211
  %v10213 = vrot.slane %v9904, 2
  %v10214 = vsel %vm10079, %v10211, %v10213
  %v10215 = vrot.slane %v9905, 2
  %v10216 = vsel %vm10079, %v10213, %v10215
  %v10217 = vrot.slane %v9906, 2
  %v10218 = vsel %vm10079, %v10215, %v10217
  %v10219 = vrot.slane %v9907, 2
  %v10220 = vsel %vm10079, %v10217, %v10219
  %v10221 = vrot.slane %v9908, 2
  %v10222 = vsel %vm10079, %v10219, %v10221
  %v10223 = vrot.slane %v9909, 2
  %v10224 = vsel %vm10079, %v10221, %v10223
  %v10225 = vrot.slane %v9910, 2
  %v10226 = vsel %vm10079, %v10223, %v10225
  %v10227 = vrot.slane %v9911, 2
  %v10228 = vsel %vm10079, %v10225, %v10227
  %v10229 = vrot.slane %v9912, 2
  %v10230 = vsel %vm10079, %v10227, %v10229
  %v10231 = vrot.slane %v9913, 2
  %v10232 = vsel %vm10079, %v10229, %v10231
  %v10233 = vrot.slane %v9914, 2
  %v10234 = vsel %vm10079, %v10231, %v10233
  %v10235 = vrot.slane %v9915, 2
  %v10236 = vsel %vm10079, %v10233, %v10235
  %v10237 = vrot.slane %v9916, 2
  %v10238 = vsel %vm10079, %v10235, %v10237
  %v10239 = vrot.slane %v9917, 2
  %v10240 = vsel %vm10079, %v10237, %v10239
  %v10241 = vrot.slane %v9918, 2
  %v10242 = vsel %vm10079, %v10239, %v10241
  %v10243 = vrot.slane %v9919, 2
  %v10244 = vsel %vm10079, %v10241, %v10243
  %v10245 = vrot.slane %v9920, 2
  %v10246 = vsel %vm10079, %v10243, %v10245
  %v10247 = vrot.slane %v9921, 2
  %v10248 = vsel %vm10079, %v10245, %v10247
  %v10249 = vrot.slane %v9922, 2
  %v10250 = vsel %vm10079, %v10247, %v10249
  %v10251 = vrot.slane %v9923, 2
  %v10252 = vsel %vm10079, %v10249, %v10251
  %v10253 = vrot.slane %v9924, 2
  %v10254 = vsel %vm10079, %v10251, %v10253
  %v10255 = vrot.slane %v9925, 2
  %v10256 = vsel %vm10079, %v10253, %v10255
  %v10257 = vrot.slane %v9926, 2
  %v10258 = vsel %vm10079, %v10255, %v10257
  %v10259 = vrot.slane %v9927, 2
  %v10260 = vsel %vm10079, %v10257, %v10259
  %v10261 = vrot.slane %v9928, 2
  %v10262 = vsel %vm10079, %v10259, %v10261
  %v10263 = vrot.slane %v9929, 2
  %v10264 = vsel %vm10079, %v10261, %v10263
  %v10265 = vrot.slane %v9930, 2
  %v10266 = vsel %vm10079, %v10263, %v10265
  %v10267 = vrot.slane %v9931, 2
  %v10268 = vsel %vm10079, %v10265, %v10267
  %v10269 = vrot.slane %v9932, 2
  %v10270 = vsel %vm10079, %v10267, %v10269
  %v10271 = vrot.slane %v9933, 2
  %v10272 = vsel %vm10079, %v10269, %v10271
  %v10273 = vrot.slane %v9934, 2
  %v10274 = vsel %vm10079, %v10271, %v10273
  %v10275 = vrot.slane %v9935, 2
  %v10276 = vsel %vm10079, %v10273, %v10275
  %v10277 = vrot.slane %v9936, 2
  %v10278 = vsel %vm10079, %v10275, %v10277
  %v10279 = vrot.slane %v9937, 2
  %v10280 = vsel %vm10079, %v10277, %v10279
  %v10281 = vrot.slane %v9938, 2
  %v10282 = vsel %vm10079, %v10279, %v10281
  %v10283 = vrot.slane %v9939, 2
  %v10284 = vsel %vm10079, %v10281, %v10283
  %v10285 = vrot.slane %v9940, 2
  %v10286 = vsel %vm10079, %v10283, %v10285
  %v10287 = vrot.slane %v9941, 2
  %v10288 = vsel %vm10079, %v10285, %v10287
  %v10289 = vrot.slane %v9942, 2
  %v10290 = vsel %vm10079, %v10287, %v10289
  %v10291 = vrot.slane %v9943, 2
  %v10292 = vsel %vm10079, %v10289, %v10291
  %v10293 = vrot.slane %v9944, 2
  %v10294 = vsel %vm10079, %v10291, %v10293
  %v10295 = vrot.slane %v9945, 2
  %v10296 = vsel %vm10079, %v10293, %v10295
  %v10297 = vrot.slane %v9946, 2
  %v10298 = vsel %vm10079, %v10295, %v10297
  %v10299 = vrot.slane %v9947, 2
  %v10300 = vsel %vm10079, %v10297, %v10299
  %v10301 = vrot.slane %v9948, 2
  %v10302 = vsel %vm10079, %v10299, %v10301
  %v10303 = vrot.slane %v9949, 2
  %v10304 = vsel %vm10079, %v10301, %v10303
  %v10305 = vrot.slane %v9950, 2
  %v10306 = vsel %vm10079, %v10303, %v10305
  %v10307 = vrot.slane %v9951, 2
  %v10308 = vsel %vm10079, %v10305, %v10307
  %v10309 = vrot.slane %v9952, 2
  %v10310 = vsel %vm10079, %v10307, %v10309
  %v10311 = vrot.slane %v9953, 2
  %v10312 = vsel %vm10079, %v10309, %v10311
  %v10313 = vrot.slane %v9954, 2
  %v10314 = vsel %vm10079, %v10311, %v10313
  %v10315 = vrot.slane %v9955, 2
  %v10316 = vsel %vm10079, %v10313, %v10315
  %v10317 = vrot.slane %v9956, 2
  %v10318 = vsel %vm10079, %v10315, %v10317
  %v10319 = vrot.slane %v9957, 2
  %v10320 = vsel %vm10079, %v10317, %v10319
  %v10441 = vmax.f32 %v9837, %v10082
  %v10442 = vmax.f32 %v9838, %v10084
  %v10443 = vmax.f32 %v9839, %v10086
  %v10444 = vmax.f32 %v9840, %v10088
  %v10445 = vmax.f32 %v9841, %v10090
  %v10446 = vmax.f32 %v9842, %v10092
  %v10447 = vmax.f32 %v9843, %v10094
  %v10448 = vmax.f32 %v9844, %v10096
  %v10449 = vmax.f32 %v9845, %v10098
  %v10450 = vmax.f32 %v9846, %v10100
  %v10451 = vmax.f32 %v9847, %v10102
  %v10452 = vmax.f32 %v9848, %v10104
  %v10453 = vmax.f32 %v9849, %v10106
  %v10454 = vmax.f32 %v9850, %v10108
  %v10455 = vmax.f32 %v9851, %v10110
  %v10456 = vmax.f32 %v9852, %v10112
  %v10457 = vmax.f32 %v9853, %v10114
  %v10458 = vmax.f32 %v9854, %v10116
  %v10459 = vmax.f32 %v9855, %v10118
  %v10460 = vmax.f32 %v9856, %v10120
  %v10461 = vmax.f32 %v9857, %v10122
  %v10462 = vmax.f32 %v9858, %v10124
  %v10463 = vmax.f32 %v9859, %v10126
  %v10464 = vmax.f32 %v9860, %v10128
  %v10465 = vmax.f32 %v9861, %v10130
  %v10466 = vmax.f32 %v9862, %v10132
  %v10467 = vmax.f32 %v9863, %v10134
  %v10468 = vmax.f32 %v9864, %v10136
  %v10469 = vmax.f32 %v9865, %v10138
  %v10470 = vmax.f32 %v9866, %v10140
  %v10471 = vmax.f32 %v9867, %v10142
  %v10472 = vmax.f32 %v9868, %v10144
  %v10473 = vmax.f32 %v9869, %v10146
  %v10474 = vmax.f32 %v9870, %v10148
  %v10475 = vmax.f32 %v9871, %v10150
  %v10476 = vmax.f32 %v9872, %v10152
  %v10477 = vmax.f32 %v9873, %v10154
  %v10478 = vmax.f32 %v9874, %v10156
  %v10479 = vmax.f32 %v9875, %v10158
  %v10480 = vmax.f32 %v9876, %v10160
  %v10481 = vmax.f32 %v9877, %v10162
  %v10482 = vmax.f32 %v9878, %v10164
  %v10483 = vmax.f32 %v9879, %v10166
  %v10484 = vmax.f32 %v9880, %v10168
  %v10485 = vmax.f32 %v9881, %v10170
  %v10486 = vmax.f32 %v9882, %v10172
  %v10487 = vmax.f32 %v9883, %v10174
  %v10488 = vmax.f32 %v9884, %v10176
  %v10489 = vmax.f32 %v9885, %v10178
  %v10490 = vmax.f32 %v9886, %v10180
  %v10491 = vmax.f32 %v9887, %v10182
  %v10492 = vmax.f32 %v9888, %v10184
  %v10493 = vmax.f32 %v9889, %v10186
  %v10494 = vmax.f32 %v9890, %v10188
  %v10495 = vmax.f32 %v9891, %v10190
  %v10496 = vmax.f32 %v9892, %v10192
  %v10497 = vmax.f32 %v9893, %v10194
  %v10498 = vmax.f32 %v9894, %v10196
  %v10499 = vmax.f32 %v9895, %v10198
  %v10500 = vmax.f32 %v9896, %v10200
  %v10501 = vmax.f32 %v9897, %v10202
  %v10502 = vmax.f32 %v9898, %v10204
  %v10503 = vmax.f32 %v9899, %v10206
  %v10504 = vmax.f32 %v9900, %v10208
  %v10505 = vmax.f32 %v9901, %v10210
  %v10506 = vmax.f32 %v9902, %v10212
  %v10507 = vmax.f32 %v9903, %v10214
  %v10508 = vmax.f32 %v9904, %v10216
  %v10509 = vmax.f32 %v9905, %v10218
  %v10510 = vmax.f32 %v9906, %v10220
  %v10511 = vmax.f32 %v9907, %v10222
  %v10512 = vmax.f32 %v9908, %v10224
  %v10513 = vmax.f32 %v9909, %v10226
  %v10514 = vmax.f32 %v9910, %v10228
  %v10515 = vmax.f32 %v9911, %v10230
  %v10516 = vmax.f32 %v9912, %v10232
  %v10517 = vmax.f32 %v9913, %v10234
  %v10518 = vmax.f32 %v9914, %v10236
  %v10519 = vmax.f32 %v9915, %v10238
  %v10520 = vmax.f32 %v9916, %v10240
  %v10521 = vmax.f32 %v9917, %v10242
  %v10522 = vmax.f32 %v9918, %v10244
  %v10523 = vmax.f32 %v9919, %v10246
  %v10524 = vmax.f32 %v9920, %v10248
  %v10525 = vmax.f32 %v9921, %v10250
  %v10526 = vmax.f32 %v9922, %v10252
  %v10527 = vmax.f32 %v9923, %v10254
  %v10528 = vmax.f32 %v9924, %v10256
  %v10529 = vmax.f32 %v9925, %v10258
  %v10530 = vmax.f32 %v9926, %v10260
  %v10531 = vmax.f32 %v9927, %v10262
  %v10532 = vmax.f32 %v9928, %v10264
  %v10533 = vmax.f32 %v9929, %v10266
  %v10534 = vmax.f32 %v9930, %v10268
  %v10535 = vmax.f32 %v9931, %v10270
  %v10536 = vmax.f32 %v9932, %v10272
  %v10537 = vmax.f32 %v9933, %v10274
  %v10538 = vmax.f32 %v9934, %v10276
  %v10539 = vmax.f32 %v9935, %v10278
  %v10540 = vmax.f32 %v9936, %v10280
  %v10541 = vmax.f32 %v9937, %v10282
  %v10542 = vmax.f32 %v9938, %v10284
  %v10543 = vmax.f32 %v9939, %v10286
  %v10544 = vmax.f32 %v9940, %v10288
  %v10545 = vmax.f32 %v9941, %v10290
  %v10546 = vmax.f32 %v9942, %v10292
  %v10547 = vmax.f32 %v9943, %v10294
  %v10548 = vmax.f32 %v9944, %v10296
  %v10549 = vmax.f32 %v9945, %v10298
  %v10550 = vmax.f32 %v9946, %v10300
  %v10551 = vmax.f32 %v9947, %v10302
  %v10552 = vmax.f32 %v9948, %v10304
  %v10553 = vmax.f32 %v9949, %v10306
  %v10554 = vmax.f32 %v9950, %v10308
  %v10555 = vmax.f32 %v9951, %v10310
  %v10556 = vmax.f32 %v9952, %v10312
  %v10557 = vmax.f32 %v9953, %v10314
  %v10558 = vmax.f32 %v9954, %v10316
  %v10559 = vmax.f32 %v9955, %v10318
  %v10560 = vmax.f32 %v9956, %v10320
  %v10561 = vmax.f32 %v10441, %v10447
  %v10562 = vmax.f32 %v10442, %v10448
  %v10563 = vmax.f32 %v10443, %v10449
  %v10564 = vmax.f32 %v10444, %v10450
  %v10565 = vmax.f32 %v10445, %v10451
  %v10566 = vmax.f32 %v10446, %v10452
  %v10567 = vmax.f32 %v10453, %v10459
  %v10568 = vmax.f32 %v10454, %v10460
  %v10569 = vmax.f32 %v10455, %v10461
  %v10570 = vmax.f32 %v10456, %v10462
  %v10571 = vmax.f32 %v10457, %v10463
  %v10572 = vmax.f32 %v10458, %v10464
  %v10573 = vmax.f32 %v10465, %v10471
  %v10574 = vmax.f32 %v10466, %v10472
  %v10575 = vmax.f32 %v10467, %v10473
  %v10576 = vmax.f32 %v10468, %v10474
  %v10577 = vmax.f32 %v10469, %v10475
  %v10578 = vmax.f32 %v10470, %v10476
  %v10579 = vmax.f32 %v10477, %v10483
  %v10580 = vmax.f32 %v10478, %v10484
  %v10581 = vmax.f32 %v10479, %v10485
  %v10582 = vmax.f32 %v10480, %v10486
  %v10583 = vmax.f32 %v10481, %v10487
  %v10584 = vmax.f32 %v10482, %v10488
  %v10585 = vmax.f32 %v10489, %v10495
  %v10586 = vmax.f32 %v10490, %v10496
  %v10587 = vmax.f32 %v10491, %v10497
  %v10588 = vmax.f32 %v10492, %v10498
  %v10589 = vmax.f32 %v10493, %v10499
  %v10590 = vmax.f32 %v10494, %v10500
  %v10591 = vmax.f32 %v10501, %v10507
  %v10592 = vmax.f32 %v10502, %v10508
  %v10593 = vmax.f32 %v10503, %v10509
  %v10594 = vmax.f32 %v10504, %v10510
  %v10595 = vmax.f32 %v10505, %v10511
  %v10596 = vmax.f32 %v10506, %v10512
  %v10597 = vmax.f32 %v10513, %v10519
  %v10598 = vmax.f32 %v10514, %v10520
  %v10599 = vmax.f32 %v10515, %v10521
  %v10600 = vmax.f32 %v10516, %v10522
  %v10601 = vmax.f32 %v10517, %v10523
  %v10602 = vmax.f32 %v10518, %v10524
  %v10603 = vmax.f32 %v10525, %v10531
  %v10604 = vmax.f32 %v10526, %v10532
  %v10605 = vmax.f32 %v10527, %v10533
  %v10606 = vmax.f32 %v10528, %v10534
  %v10607 = vmax.f32 %v10529, %v10535
  %v10608 = vmax.f32 %v10530, %v10536
  %v10609 = vmax.f32 %v10537, %v10543
  %v10610 = vmax.f32 %v10538, %v10544
  %v10611 = vmax.f32 %v10539, %v10545
  %v10612 = vmax.f32 %v10540, %v10546
  %v10613 = vmax.f32 %v10541, %v10547
  %v10614 = vmax.f32 %v10542, %v10548
  %v10615 = vmax.f32 %v10549, %v10555
  %v10616 = vmax.f32 %v10550, %v10556
  %v10617 = vmax.f32 %v10551, %v10557
  %v10618 = vmax.f32 %v10552, %v10558
  %v10619 = vmax.f32 %v10553, %v10559
  %v10620 = vmax.f32 %v10554, %v10560
  %v10621 = vpack.c.bf16 %v10562, %v10561
  %v10622 = vpack.c.bf16 %v10564, %v10563
  %v10623 = vpack.c.bf16 %v10566, %v10565
  %v10624 = vpack.c.bf16 %v10568, %v10567
  %v10625 = vpack.c.bf16 %v10570, %v10569
  %v10626 = vpack.c.bf16 %v10572, %v10571
  %v10627 = vpack.c.bf16 %v10574, %v10573
  %v10628 = vpack.c.bf16 %v10576, %v10575
  %v10629 = vpack.c.bf16 %v10578, %v10577
  %v10630 = vpack.c.bf16 %v10580, %v10579
  %v10631 = vpack.c.bf16 %v10582, %v10581
  %v10632 = vpack.c.bf16 %v10584, %v10583
  %v10633 = vpack.c.bf16 %v10586, %v10585
  %v10634 = vpack.c.bf16 %v10588, %v10587
  %v10635 = vpack.c.bf16 %v10590, %v10589
  %v10636 = vpack.c.bf16 %v10592, %v10591
  %v10637 = vpack.c.bf16 %v10594, %v10593
  %v10638 = vpack.c.bf16 %v10596, %v10595
  %v10639 = vpack.c.bf16 %v10598, %v10597
  %v10640 = vpack.c.bf16 %v10600, %v10599
  %v10641 = vpack.c.bf16 %v10602, %v10601
  %v10642 = vpack.c.bf16 %v10604, %v10603
  %v10643 = vpack.c.bf16 %v10606, %v10605
  %v10644 = vpack.c.bf16 %v10608, %v10607
  %v10645 = vpack.c.bf16 %v10610, %v10609
  %v10646 = vpack.c.bf16 %v10612, %v10611
  %v10647 = vpack.c.bf16 %v10614, %v10613
  %v10648 = vpack.c.bf16 %v10616, %v10615
  %v10649 = vpack.c.bf16 %v10618, %v10617
  %v10650 = vpack.c.bf16 %v10620, %v10619
  %v10654 = vunpack.c.l.b16 %v10621
  %v10655 = vunpack.c.h.b16 %v10621
  %v10656 = vunpack.c.l.b16 %v10622
  %v10657 = vunpack.c.h.b16 %v10622
  %v10658 = vunpack.c.l.b16 %v10623
  %v10659 = vpack.c.b16 %v10654, %v10654
  %v10660 = vpack.c.b16 %v10655, %v10655
  %v10661 = vpack.c.b16 %v10656, %v10656
  %v10662 = vpack.c.b16 %v10657, %v10657
  %v10663 = vpack.c.b16 %v10658, %v10658
  %10669 = vst.msk [vmem:[#allocation3] sm:$0xf] %vm5038, %v10659
  %10670 = vst.msk [vmem:[#allocation3 + $0x4] sm:$0xf] %vm5038, %v10660
  %10671 = vst.msk [vmem:[#allocation3 + $0x8] sm:$0xf] %vm5038, %v10661
  %10672 = vst.msk [vmem:[#allocation3 + $0xc] sm:$0xf] %vm5038, %v10662
  %v10673 = vld [vmem:[#allocation3 + $0x10] sm:$0x7]
  %v10674 = vsel %vm5046, %v10663, %v10673
  %10675 = vst [vmem:[#allocation3 + $0x10] sm:$0x7] %v10674
  %v10679 = vunpack.c.l.b16 %v10624
  %v10680 = vunpack.c.h.b16 %v10624
  %v10681 = vunpack.c.l.b16 %v10625
  %v10682 = vunpack.c.h.b16 %v10625
  %v10683 = vunpack.c.l.b16 %v10626
  %v10684 = vpack.c.b16 %v10679, %v10679
  %v10685 = vpack.c.b16 %v10680, %v10680
  %v10686 = vpack.c.b16 %v10681, %v10681
  %v10687 = vpack.c.b16 %v10682, %v10682
  %v10688 = vpack.c.b16 %v10683, %v10683
  %10694 = vst.msk [vmem:[#allocation3 + $0x18] sm:$0xf] %vm5038, %v10684
  %10695 = vst.msk [vmem:[#allocation3 + $0x1c] sm:$0xf] %vm5038, %v10685
  %10696 = vst.msk [vmem:[#allocation3 + $0x20] sm:$0xf] %vm5038, %v10686
  %10697 = vst.msk [vmem:[#allocation3 + $0x24] sm:$0xf] %vm5038, %v10687
  %v10698 = vld [vmem:[#allocation3 + $0x28] sm:$0x7]
  %v10699 = vsel %vm5046, %v10688, %v10698
  %10700 = vst [vmem:[#allocation3 + $0x28] sm:$0x7] %v10699
  %v10704 = vunpack.c.l.b16 %v10627
  %v10705 = vunpack.c.h.b16 %v10627
  %v10706 = vunpack.c.l.b16 %v10628
  %v10707 = vunpack.c.h.b16 %v10628
  %v10708 = vunpack.c.l.b16 %v10629
  %v10709 = vpack.c.b16 %v10704, %v10704
  %v10710 = vpack.c.b16 %v10705, %v10705
  %v10711 = vpack.c.b16 %v10706, %v10706
  %v10712 = vpack.c.b16 %v10707, %v10707
  %v10713 = vpack.c.b16 %v10708, %v10708
  %10719 = vst.msk [vmem:[#allocation3 + $0x30] sm:$0xf] %vm5038, %v10709
  %10720 = vst.msk [vmem:[#allocation3 + $0x34] sm:$0xf] %vm5038, %v10710
  %10721 = vst.msk [vmem:[#allocation3 + $0x38] sm:$0xf] %vm5038, %v10711
  %10722 = vst.msk [vmem:[#allocation3 + $0x3c] sm:$0xf] %vm5038, %v10712
  %v10723 = vld [vmem:[#allocation3 + $0x40] sm:$0x7]
  %v10724 = vsel %vm5046, %v10713, %v10723
  %10725 = vst [vmem:[#allocation3 + $0x40] sm:$0x7] %v10724
  %v10729 = vunpack.c.l.b16 %v10630
  %v10730 = vunpack.c.h.b16 %v10630
  %v10731 = vunpack.c.l.b16 %v10631
  %v10732 = vunpack.c.h.b16 %v10631
  %v10733 = vunpack.c.l.b16 %v10632
  %v10734 = vpack.c.b16 %v10729, %v10729
  %v10735 = vpack.c.b16 %v10730, %v10730
  %v10736 = vpack.c.b16 %v10731, %v10731
  %v10737 = vpack.c.b16 %v10732, %v10732
  %v10738 = vpack.c.b16 %v10733, %v10733
  %10744 = vst.msk [vmem:[#allocation3 + $0x48] sm:$0xf] %vm5038, %v10734
  %10745 = vst.msk [vmem:[#allocation3 + $0x4c] sm:$0xf] %vm5038, %v10735
  %10746 = vst.msk [vmem:[#allocation3 + $0x50] sm:$0xf] %vm5038, %v10736
  %10747 = vst.msk [vmem:[#allocation3 + $0x54] sm:$0xf] %vm5038, %v10737
  %v10748 = vld [vmem:[#allocation3 + $0x58] sm:$0x7]
  %v10749 = vsel %vm5046, %v10738, %v10748
  %10750 = vst [vmem:[#allocation3 + $0x58] sm:$0x7] %v10749
  %v10754 = vunpack.c.l.b16 %v10633
  %v10755 = vunpack.c.h.b16 %v10633
  %v10756 = vunpack.c.l.b16 %v10634
  %v10757 = vunpack.c.h.b16 %v10634
  %v10758 = vunpack.c.l.b16 %v10635
  %v10759 = vpack.c.b16 %v10754, %v10754
  %v10760 = vpack.c.b16 %v10755, %v10755
  %v10761 = vpack.c.b16 %v10756, %v10756
  %v10762 = vpack.c.b16 %v10757, %v10757
  %v10763 = vpack.c.b16 %v10758, %v10758
  %10769 = vst.msk [vmem:[#allocation3 + $0x60] sm:$0xf] %vm5038, %v10759
  %10770 = vst.msk [vmem:[#allocation3 + $0x64] sm:$0xf] %vm5038, %v10760
  %10771 = vst.msk [vmem:[#allocation3 + $0x68] sm:$0xf] %vm5038, %v10761
  %10772 = vst.msk [vmem:[#allocation3 + $0x6c] sm:$0xf] %vm5038, %v10762
  %v10773 = vld [vmem:[#allocation3 + $0x70] sm:$0x7]
  %v10774 = vsel %vm5046, %v10763, %v10773
  %10775 = vst [vmem:[#allocation3 + $0x70] sm:$0x7] %v10774
  %v10779 = vunpack.c.l.b16 %v10636
  %v10780 = vunpack.c.h.b16 %v10636
  %v10781 = vunpack.c.l.b16 %v10637
  %v10782 = vunpack.c.h.b16 %v10637
  %v10783 = vunpack.c.l.b16 %v10638
  %v10784 = vpack.c.b16 %v10779, %v10779
  %v10785 = vpack.c.b16 %v10780, %v10780
  %v10786 = vpack.c.b16 %v10781, %v10781
  %v10787 = vpack.c.b16 %v10782, %v10782
  %v10788 = vpack.c.b16 %v10783, %v10783
  %10794 = vst.msk [vmem:[#allocation3 + $0x78] sm:$0xf] %vm5038, %v10784
  %10795 = vst.msk [vmem:[#allocation3 + $0x7c] sm:$0xf] %vm5038, %v10785
  %10796 = vst.msk [vmem:[#allocation3 + $0x80] sm:$0xf] %vm5038, %v10786
  %10797 = vst.msk [vmem:[#allocation3 + $0x84] sm:$0xf] %vm5038, %v10787
  %v10798 = vld [vmem:[#allocation3 + $0x88] sm:$0x7]
  %v10799 = vsel %vm5046, %v10788, %v10798
  %10800 = vst [vmem:[#allocation3 + $0x88] sm:$0x7] %v10799
  %v10804 = vunpack.c.l.b16 %v10639
  %v10805 = vunpack.c.h.b16 %v10639
  %v10806 = vunpack.c.l.b16 %v10640
  %v10807 = vunpack.c.h.b16 %v10640
  %v10808 = vunpack.c.l.b16 %v10641
  %v10809 = vpack.c.b16 %v10804, %v10804
  %v10810 = vpack.c.b16 %v10805, %v10805
  %v10811 = vpack.c.b16 %v10806, %v10806
  %v10812 = vpack.c.b16 %v10807, %v10807
  %v10813 = vpack.c.b16 %v10808, %v10808
  %10819 = vst.msk [vmem:[#allocation3 + $0x90] sm:$0xf] %vm5038, %v10809
  %10820 = vst.msk [vmem:[#allocation3 + $0x94] sm:$0xf] %vm5038, %v10810
  %10821 = vst.msk [vmem:[#allocation3 + $0x98] sm:$0xf] %vm5038, %v10811
  %10822 = vst.msk [vmem:[#allocation3 + $0x9c] sm:$0xf] %vm5038, %v10812
  %v10823 = vld [vmem:[#allocation3 + $0xa0] sm:$0x7]
  %v10824 = vsel %vm5046, %v10813, %v10823
  %10825 = vst [vmem:[#allocation3 + $0xa0] sm:$0x7] %v10824
  %v10829 = vunpack.c.l.b16 %v10642
  %v10830 = vunpack.c.h.b16 %v10642
  %v10831 = vunpack.c.l.b16 %v10643
  %v10832 = vunpack.c.h.b16 %v10643
  %v10833 = vunpack.c.l.b16 %v10644
  %v10834 = vpack.c.b16 %v10829, %v10829
  %v10835 = vpack.c.b16 %v10830, %v10830
  %v10836 = vpack.c.b16 %v10831, %v10831
  %v10837 = vpack.c.b16 %v10832, %v10832
  %v10838 = vpack.c.b16 %v10833, %v10833
  %10844 = vst.msk [vmem:[#allocation3 + $0xa8] sm:$0xf] %vm5038, %v10834
  %10845 = vst.msk [vmem:[#allocation3 + $0xac] sm:$0xf] %vm5038, %v10835
  %10846 = vst.msk [vmem:[#allocation3 + $0xb0] sm:$0xf] %vm5038, %v10836
  %10847 = vst.msk [vmem:[#allocation3 + $0xb4] sm:$0xf] %vm5038, %v10837
  %v10848 = vld [vmem:[#allocation3 + $0xb8] sm:$0x7]
  %v10849 = vsel %vm5046, %v10838, %v10848
  %10850 = vst [vmem:[#allocation3 + $0xb8] sm:$0x7] %v10849
  %v10854 = vunpack.c.l.b16 %v10645
  %v10855 = vunpack.c.h.b16 %v10645
  %v10856 = vunpack.c.l.b16 %v10646
  %v10857 = vunpack.c.h.b16 %v10646
  %v10858 = vunpack.c.l.b16 %v10647
  %v10859 = vpack.c.b16 %v10854, %v10854
  %v10860 = vpack.c.b16 %v10855, %v10855
  %v10861 = vpack.c.b16 %v10856, %v10856
  %v10862 = vpack.c.b16 %v10857, %v10857
  %v10863 = vpack.c.b16 %v10858, %v10858
  %10869 = vst.msk [vmem:[#allocation3 + $0xc0] sm:$0xf] %vm5038, %v10859
  %10870 = vst.msk [vmem:[#allocation3 + $0xc4] sm:$0xf] %vm5038, %v10860
  %10871 = vst.msk [vmem:[#allocation3 + $0xc8] sm:$0xf] %vm5038, %v10861
  %10872 = vst.msk [vmem:[#allocation3 + $0xcc] sm:$0xf] %vm5038, %v10862
  %v10873 = vld [vmem:[#allocation3 + $0xd0] sm:$0x7]
  %v10874 = vsel %vm5046, %v10863, %v10873
  %10875 = vst [vmem:[#allocation3 + $0xd0] sm:$0x7] %v10874
  %v10879 = vunpack.c.l.b16 %v10648
  %v10880 = vunpack.c.h.b16 %v10648
  %v10881 = vunpack.c.l.b16 %v10649
  %v10882 = vunpack.c.h.b16 %v10649
  %v10883 = vunpack.c.l.b16 %v10650
  %v10884 = vpack.c.b16 %v10879, %v10879
  %v10885 = vpack.c.b16 %v10880, %v10880
  %v10886 = vpack.c.b16 %v10881, %v10881
  %v10887 = vpack.c.b16 %v10882, %v10882
  %v10888 = vpack.c.b16 %v10883, %v10883
  %10894 = vst.msk [vmem:[#allocation3 + $0xd8] sm:$0xf] %vm5038, %v10884
  %10895 = vst.msk [vmem:[#allocation3 + $0xdc] sm:$0xf] %vm5038, %v10885
  %10896 = vst.msk [vmem:[#allocation3 + $0xe0] sm:$0xf] %vm5038, %v10886
  %10897 = vst.msk [vmem:[#allocation3 + $0xe4] sm:$0xf] %vm5038, %v10887
  %v10898 = vld [vmem:[#allocation3 + $0xe8] sm:$0x7]
  %v10899 = vsel %vm5046, %v10888, %v10898
  %10900 = vst [vmem:[#allocation3 + $0xe8] sm:$0x7] %v10899
  %v10901 = vld [vmem:[#allocation3] sm:$0xf]
  %v10902 = vld [vmem:[#allocation3 + $0x4] sm:$0xf]
  %v10903 = vld [vmem:[#allocation3 + $0x8] sm:$0xf]
  %v10904 = vld [vmem:[#allocation3 + $0xc] sm:$0xf]
  %v10905 = vld [vmem:[#allocation3 + $0x10] sm:$0xf]
  %v10906 = vld [vmem:[#allocation3 + $0x14] sm:$0xf]
  %v10907 = vld [vmem:[#allocation3 + $0x18] sm:$0xf]
  %v10908 = vld [vmem:[#allocation3 + $0x1c] sm:$0xf]
  %v10909 = vld [vmem:[#allocation3 + $0x20] sm:$0xf]
  %v10910 = vld [vmem:[#allocation3 + $0x24] sm:$0xf]
  %v10911 = vld [vmem:[#allocation3 + $0x28] sm:$0xf]
  %v10912 = vld [vmem:[#allocation3 + $0x2c] sm:$0xf]
  %v10913 = vld [vmem:[#allocation3 + $0x30] sm:$0xf]
  %v10914 = vld [vmem:[#allocation3 + $0x34] sm:$0xf]
  %v10915 = vld [vmem:[#allocation3 + $0x38] sm:$0xf]
  %v10916 = vld [vmem:[#allocation3 + $0x3c] sm:$0xf]
  %v10917 = vld [vmem:[#allocation3 + $0x40] sm:$0xf]
  %v10918 = vld [vmem:[#allocation3 + $0x44] sm:$0xf]
  %v10919 = vld [vmem:[#allocation3 + $0x48] sm:$0xf]
  %v10920 = vld [vmem:[#allocation3 + $0x4c] sm:$0xf]
  %v10921 = vld [vmem:[#allocation3 + $0x50] sm:$0xf]
  %v10922 = vld [vmem:[#allocation3 + $0x54] sm:$0xf]
  %v10923 = vld [vmem:[#allocation3 + $0x58] sm:$0xf]
  %v10924 = vld [vmem:[#allocation3 + $0x5c] sm:$0xf]
  %v10925 = vld [vmem:[#allocation3 + $0x60] sm:$0xf]
  %v10926 = vld [vmem:[#allocation3 + $0x64] sm:$0xf]
  %v10927 = vld [vmem:[#allocation3 + $0x68] sm:$0xf]
  %v10928 = vld [vmem:[#allocation3 + $0x6c] sm:$0xf]
  %v10929 = vld [vmem:[#allocation3 + $0x70] sm:$0xf]
  %v10930 = vld [vmem:[#allocation3 + $0x74] sm:$0xf]
  %v10931 = vld [vmem:[#allocation3 + $0x78] sm:$0xf]
  %v10932 = vld [vmem:[#allocation3 + $0x7c] sm:$0xf]
  %v10933 = vld [vmem:[#allocation3 + $0x80] sm:$0xf]
  %v10934 = vld [vmem:[#allocation3 + $0x84] sm:$0xf]
  %v10935 = vld [vmem:[#allocation3 + $0x88] sm:$0xf]
  %v10936 = vld [vmem:[#allocation3 + $0x8c] sm:$0xf]
  %v10937 = vld [vmem:[#allocation3 + $0x90] sm:$0xf]
  %v10938 = vld [vmem:[#allocation3 + $0x94] sm:$0xf]
  %v10939 = vld [vmem:[#allocation3 + $0x98] sm:$0xf]
  %v10940 = vld [vmem:[#allocation3 + $0x9c] sm:$0xf]
  %v10941 = vld [vmem:[#allocation3 + $0xa0] sm:$0xf]
  %v10942 = vld [vmem:[#allocation3 + $0xa4] sm:$0xf]
  %v10943 = vld [vmem:[#allocation3 + $0xa8] sm:$0xf]
  %v10944 = vld [vmem:[#allocation3 + $0xac] sm:$0xf]
  %v10945 = vld [vmem:[#allocation3 + $0xb0] sm:$0xf]
  %v10946 = vld [vmem:[#allocation3 + $0xb4] sm:$0xf]
  %v10947 = vld [vmem:[#allocation3 + $0xb8] sm:$0xf]
  %v10948 = vld [vmem:[#allocation3 + $0xbc] sm:$0xf]
  %v10949 = vld [vmem:[#allocation3 + $0xc0] sm:$0xf]
  %v10950 = vld [vmem:[#allocation3 + $0xc4] sm:$0xf]
  %v10951 = vld [vmem:[#allocation3 + $0xc8] sm:$0xf]
  %v10952 = vld [vmem:[#allocation3 + $0xcc] sm:$0xf]
  %v10953 = vld [vmem:[#allocation3 + $0xd0] sm:$0xf]
  %v10954 = vld [vmem:[#allocation3 + $0xd4] sm:$0xf]
  %v10955 = vld [vmem:[#allocation3 + $0xd8] sm:$0xf]
  %v10956 = vld [vmem:[#allocation3 + $0xdc] sm:$0xf]
  %v10957 = vld [vmem:[#allocation3 + $0xe0] sm:$0xf]
  %v10958 = vld [vmem:[#allocation3 + $0xe4] sm:$0x7]
  %v10959 = vld [vmem:[#allocation3] sm:$0xc]
  %v10960 = vld [vmem:[#allocation3 + $0xe4] sm:$0xf]
  %v10961 = vld [vmem:[#allocation3 + $0xe8] sm:$0x1]
  %v10962 = vld [vmem:[#allocation3 + $0xe8] sm:$0x7]
  %v11021 = vunpack.c.l.b16 %v10901
  %v11022 = vunpack.c.l.b16 %v10902
  %v11023 = vunpack.c.l.b16 %v10903
  %v11024 = vunpack.c.l.b16 %v10904
  %v11025 = vunpack.c.l.b16 %v10905
  %v11026 = vunpack.c.l.b16 %v10906
  %v11027 = vunpack.c.l.b16 %v10907
  %v11028 = vunpack.c.l.b16 %v10908
  %v11029 = vunpack.c.l.b16 %v10909
  %v11030 = vunpack.c.l.b16 %v10910
  %v11031 = vunpack.c.l.b16 %v10911
  %v11032 = vunpack.c.l.b16 %v10912
  %v11033 = vunpack.c.l.b16 %v10913
  %v11034 = vunpack.c.l.b16 %v10914
  %v11035 = vunpack.c.l.b16 %v10915
  %v11036 = vunpack.c.l.b16 %v10916
  %v11037 = vunpack.c.l.b16 %v10917
  %v11038 = vunpack.c.l.b16 %v10918
  %v11039 = vunpack.c.l.b16 %v10919
  %v11040 = vunpack.c.l.b16 %v10920
  %v11041 = vunpack.c.l.b16 %v10921
  %v11042 = vunpack.c.l.b16 %v10922
  %v11043 = vunpack.c.l.b16 %v10923
  %v11044 = vunpack.c.l.b16 %v10924
  %v11045 = vunpack.c.l.b16 %v10925
  %v11046 = vunpack.c.l.b16 %v10926
  %v11047 = vunpack.c.l.b16 %v10927
  %v11048 = vunpack.c.l.b16 %v10928
  %v11049 = vunpack.c.l.b16 %v10929
  %v11050 = vunpack.c.l.b16 %v10930
  %v11051 = vunpack.c.l.b16 %v10931
  %v11052 = vunpack.c.l.b16 %v10932
  %v11053 = vunpack.c.l.b16 %v10933
  %v11054 = vunpack.c.l.b16 %v10934
  %v11055 = vunpack.c.l.b16 %v10935
  %v11056 = vunpack.c.l.b16 %v10936
  %v11057 = vunpack.c.l.b16 %v10937
  %v11058 = vunpack.c.l.b16 %v10938
  %v11059 = vunpack.c.l.b16 %v10939
  %v11060 = vunpack.c.l.b16 %v10940
  %v11061 = vunpack.c.l.b16 %v10941
  %v11062 = vunpack.c.l.b16 %v10942
  %v11063 = vunpack.c.l.b16 %v10943
  %v11064 = vunpack.c.l.b16 %v10944
  %v11065 = vunpack.c.l.b16 %v10945
  %v11066 = vunpack.c.l.b16 %v10946
  %v11067 = vunpack.c.l.b16 %v10947
  %v11068 = vunpack.c.l.b16 %v10948
  %v11069 = vunpack.c.l.b16 %v10949
  %v11070 = vunpack.c.l.b16 %v10950
  %v11071 = vunpack.c.l.b16 %v10951
  %v11072 = vunpack.c.l.b16 %v10952
  %v11073 = vunpack.c.l.b16 %v10953
  %v11074 = vunpack.c.l.b16 %v10954
  %v11075 = vunpack.c.l.b16 %v10955
  %v11076 = vunpack.c.l.b16 %v10956
  %v11077 = vunpack.c.l.b16 %v10957
  %v11078 = vunpack.c.l.b16 %v10958
  %v11079 = vpack.c.b16 %v11022, %v11021
  %v11080 = vpack.c.b16 %v11024, %v11023
  %v11081 = vpack.c.b16 %v11026, %v11025
  %v11082 = vpack.c.b16 %v11028, %v11027
  %v11083 = vpack.c.b16 %v11030, %v11029
  %v11084 = vpack.c.b16 %v11032, %v11031
  %v11085 = vpack.c.b16 %v11034, %v11033
  %v11086 = vpack.c.b16 %v11036, %v11035
  %v11087 = vpack.c.b16 %v11038, %v11037
  %v11088 = vpack.c.b16 %v11040, %v11039
  %v11089 = vpack.c.b16 %v11042, %v11041
  %v11090 = vpack.c.b16 %v11044, %v11043
  %v11091 = vpack.c.b16 %v11046, %v11045
  %v11092 = vpack.c.b16 %v11048, %v11047
  %v11093 = vpack.c.b16 %v11050, %v11049
  %v11094 = vpack.c.b16 %v11052, %v11051
  %v11095 = vpack.c.b16 %v11054, %v11053
  %v11096 = vpack.c.b16 %v11056, %v11055
  %v11097 = vpack.c.b16 %v11058, %v11057
  %v11098 = vpack.c.b16 %v11060, %v11059
  %v11099 = vpack.c.b16 %v11062, %v11061
  %v11100 = vpack.c.b16 %v11064, %v11063
  %v11101 = vpack.c.b16 %v11066, %v11065
  %v11102 = vpack.c.b16 %v11068, %v11067
  %v11103 = vpack.c.b16 %v11070, %v11069
  %v11104 = vpack.c.b16 %v11072, %v11071
  %v11105 = vpack.c.b16 %v11074, %v11073
  %v11106 = vpack.c.b16 %v11076, %v11075
  %v11107 = vpack.c.b16 %v11078, %v11077
  %v11111 = vunpack.c.l.b16 %v10959
  %v11112 = vunpack.c.l.b16 %v10960
  %v11113 = vunpack.c.l.b16 %v10961
  %v11114 = vpack.c.b16 %v11022, %v11111
  %v11115 = vpack.c.b16 %v11112, %v11077
  %v11116 = vpack.c.b16 %v11113, %v11113
  %v11117 = vrot.slane %v11114, 2
  %v11118 = vrot.slane %v11080, 2
  %v11119 = vsel %vm6463, %v11117, %v11118
  %v11120 = vrot.slane %v11081, 2
  %v11121 = vsel %vm6463, %v11118, %v11120
  %v11122 = vrot.slane %v11082, 2
  %v11123 = vsel %vm6463, %v11120, %v11122
  %v11124 = vrot.slane %v11083, 2
  %v11125 = vsel %vm6463, %v11122, %v11124
  %v11126 = vrot.slane %v11084, 2
  %v11127 = vsel %vm6463, %v11124, %v11126
  %v11128 = vrot.slane %v11085, 2
  %v11129 = vsel %vm6463, %v11126, %v11128
  %v11130 = vrot.slane %v11086, 2
  %v11131 = vsel %vm6463, %v11128, %v11130
  %v11132 = vrot.slane %v11087, 2
  %v11133 = vsel %vm6463, %v11130, %v11132
  %v11134 = vrot.slane %v11088, 2
  %v11135 = vsel %vm6463, %v11132, %v11134
  %v11136 = vrot.slane %v11089, 2
  %v11137 = vsel %vm6463, %v11134, %v11136
  %v11138 = vrot.slane %v11090, 2
  %v11139 = vsel %vm6463, %v11136, %v11138
  %v11140 = vrot.slane %v11091, 2
  %v11141 = vsel %vm6463, %v11138, %v11140
  %v11142 = vrot.slane %v11092, 2
  %v11143 = vsel %vm6463, %v11140, %v11142
  %v11144 = vrot.slane %v11093, 2
  %v11145 = vsel %vm6463, %v11142, %v11144
  %v11146 = vrot.slane %v11094, 2
  %v11147 = vsel %vm6463, %v11144, %v11146
  %v11148 = vrot.slane %v11095, 2
  %v11149 = vsel %vm6463, %v11146, %v11148
  %v11150 = vrot.slane %v11096, 2
  %v11151 = vsel %vm6463, %v11148, %v11150
  %v11152 = vrot.slane %v11097, 2
  %v11153 = vsel %vm6463, %v11150, %v11152
  %v11154 = vrot.slane %v11098, 2
  %v11155 = vsel %vm6463, %v11152, %v11154
  %v11156 = vrot.slane %v11099, 2
  %v11157 = vsel %vm6463, %v11154, %v11156
  %v11158 = vrot.slane %v11100, 2
  %v11159 = vsel %vm6463, %v11156, %v11158
  %v11160 = vrot.slane %v11101, 2
  %v11161 = vsel %vm6463, %v11158, %v11160
  %v11162 = vrot.slane %v11102, 2
  %v11163 = vsel %vm6463, %v11160, %v11162
  %v11164 = vrot.slane %v11103, 2
  %v11165 = vsel %vm6463, %v11162, %v11164
  %v11166 = vrot.slane %v11104, 2
  %v11167 = vsel %vm6463, %v11164, %v11166
  %v11168 = vrot.slane %v11105, 2
  %v11169 = vsel %vm6463, %v11166, %v11168
  %v11170 = vrot.slane %v11106, 2
  %v11171 = vsel %vm6463, %v11168, %v11170
  %v11172 = vrot.slane %v11115, 2
  %v11173 = vsel %vm6463, %v11170, %v11172
  %v11174 = vrot.slane %v11116, 2
  %v11175 = vsel %vm6463, %v11172, %v11174
  %11176 = vrot.lane.b32.xlu0 %v11119, 64
  %v11177 = vpop.permute.xlu0 %11176
  %11178 = vrot.lane.b32.xlu0 %v11121, 64
  %v11179 = vpop.permute.xlu0 %11178
  %11180 = vrot.lane.b32.xlu0 %v11123, 64
  %v11181 = vpop.permute.xlu0 %11180
  %11182 = vrot.lane.b32.xlu0 %v11125, 64
  %v11183 = vpop.permute.xlu0 %11182
  %11184 = vrot.lane.b32.xlu0 %v11127, 64
  %v11185 = vpop.permute.xlu0 %11184
  %11186 = vrot.lane.b32.xlu0 %v11129, 64
  %v11187 = vpop.permute.xlu0 %11186
  %11188 = vrot.lane.b32.xlu0 %v11131, 64
  %v11189 = vpop.permute.xlu0 %11188
  %11190 = vrot.lane.b32.xlu0 %v11133, 64
  %v11191 = vpop.permute.xlu0 %11190
  %11192 = vrot.lane.b32.xlu0 %v11135, 64
  %v11193 = vpop.permute.xlu0 %11192
  %11194 = vrot.lane.b32.xlu0 %v11137, 64
  %v11195 = vpop.permute.xlu0 %11194
  %11196 = vrot.lane.b32.xlu0 %v11139, 64
  %v11197 = vpop.permute.xlu0 %11196
  %11198 = vrot.lane.b32.xlu0 %v11141, 64
  %v11199 = vpop.permute.xlu0 %11198
  %11200 = vrot.lane.b32.xlu0 %v11143, 64
  %v11201 = vpop.permute.xlu0 %11200
  %11202 = vrot.lane.b32.xlu0 %v11145, 64
  %v11203 = vpop.permute.xlu0 %11202
  %11204 = vrot.lane.b32.xlu0 %v11147, 64
  %v11205 = vpop.permute.xlu0 %11204
  %11206 = vrot.lane.b32.xlu0 %v11149, 64
  %v11207 = vpop.permute.xlu0 %11206
  %11208 = vrot.lane.b32.xlu0 %v11151, 64
  %v11209 = vpop.permute.xlu0 %11208
  %11210 = vrot.lane.b32.xlu0 %v11153, 64
  %v11211 = vpop.permute.xlu0 %11210
  %11212 = vrot.lane.b32.xlu0 %v11155, 64
  %v11213 = vpop.permute.xlu0 %11212
  %11214 = vrot.lane.b32.xlu0 %v11157, 64
  %v11215 = vpop.permute.xlu0 %11214
  %11216 = vrot.lane.b32.xlu0 %v11159, 64
  %v11217 = vpop.permute.xlu0 %11216
  %11218 = vrot.lane.b32.xlu0 %v11161, 64
  %v11219 = vpop.permute.xlu0 %11218
  %11220 = vrot.lane.b32.xlu0 %v11163, 64
  %v11221 = vpop.permute.xlu0 %11220
  %11222 = vrot.lane.b32.xlu0 %v11165, 64
  %v11223 = vpop.permute.xlu0 %11222
  %11224 = vrot.lane.b32.xlu0 %v11167, 64
  %v11225 = vpop.permute.xlu0 %11224
  %11226 = vrot.lane.b32.xlu0 %v11169, 64
  %v11227 = vpop.permute.xlu0 %11226
  %11228 = vrot.lane.b32.xlu0 %v11171, 64
  %v11229 = vpop.permute.xlu0 %11228
  %11230 = vrot.lane.b32.xlu0 %v11173, 64
  %v11231 = vpop.permute.xlu0 %11230
  %11232 = vrot.lane.b32.xlu0 %v11175, 64
  %v11233 = vpop.permute.xlu0 %11232
  %v11235 = vunpack.c.l.b16 %v10962
  %v11236 = vpack.c.b16 %v11023, %v11022
  %v11237 = vpack.c.b16 %v11025, %v11024
  %v11238 = vpack.c.b16 %v11027, %v11026
  %v11239 = vpack.c.b16 %v11029, %v11028
  %v11240 = vpack.c.b16 %v11031, %v11030
  %v11241 = vpack.c.b16 %v11033, %v11032
  %v11242 = vpack.c.b16 %v11035, %v11034
  %v11243 = vpack.c.b16 %v11037, %v11036
  %v11244 = vpack.c.b16 %v11039, %v11038
  %v11245 = vpack.c.b16 %v11041, %v11040
  %v11246 = vpack.c.b16 %v11043, %v11042
  %v11247 = vpack.c.b16 %v11045, %v11044
  %v11248 = vpack.c.b16 %v11047, %v11046
  %v11249 = vpack.c.b16 %v11049, %v11048
  %v11250 = vpack.c.b16 %v11051, %v11050
  %v11251 = vpack.c.b16 %v11053, %v11052
  %v11252 = vpack.c.b16 %v11055, %v11054
  %v11253 = vpack.c.b16 %v11057, %v11056
  %v11254 = vpack.c.b16 %v11059, %v11058
  %v11255 = vpack.c.b16 %v11061, %v11060
  %v11256 = vpack.c.b16 %v11063, %v11062
  %v11257 = vpack.c.b16 %v11065, %v11064
  %v11258 = vpack.c.b16 %v11067, %v11066
  %v11259 = vpack.c.b16 %v11069, %v11068
  %v11260 = vpack.c.b16 %v11071, %v11070
  %v11261 = vpack.c.b16 %v11073, %v11072
  %v11262 = vpack.c.b16 %v11075, %v11074
  %v11263 = vpack.c.b16 %v11077, %v11076
  %v11264 = vpack.c.b16 %v11235, %v11112
  %v11267 = vsel %vm6601, %v11079, %v11177
  %v11271 = vsel %vm6601, %v11080, %v11179
  %v11275 = vsel %vm6601, %v11081, %v11181
  %v11279 = vsel %vm6601, %v11082, %v11183
  %v11283 = vsel %vm6601, %v11083, %v11185
  %v11287 = vsel %vm6601, %v11084, %v11187
  %v11291 = vsel %vm6601, %v11085, %v11189
  %v11295 = vsel %vm6601, %v11086, %v11191
  %v11299 = vsel %vm6601, %v11087, %v11193
  %v11303 = vsel %vm6601, %v11088, %v11195
  %v11307 = vsel %vm6601, %v11089, %v11197
  %v11311 = vsel %vm6601, %v11090, %v11199
  %v11315 = vsel %vm6601, %v11091, %v11201
  %v11319 = vsel %vm6601, %v11092, %v11203
  %v11323 = vsel %vm6601, %v11093, %v11205
  %v11327 = vsel %vm6601, %v11094, %v11207
  %v11331 = vsel %vm6601, %v11095, %v11209
  %v11335 = vsel %vm6601, %v11096, %v11211
  %v11339 = vsel %vm6601, %v11097, %v11213
  %v11343 = vsel %vm6601, %v11098, %v11215
  %v11347 = vsel %vm6601, %v11099, %v11217
  %v11351 = vsel %vm6601, %v11100, %v11219
  %v11355 = vsel %vm6601, %v11101, %v11221
  %v11359 = vsel %vm6601, %v11102, %v11223
  %v11363 = vsel %vm6601, %v11103, %v11225
  %v11367 = vsel %vm6601, %v11104, %v11227
  %v11371 = vsel %vm6601, %v11105, %v11229
  %v11375 = vsel %vm6601, %v11106, %v11231
  %v11379 = vsel %vm6601, %v11107, %v11233
  %11404 = vrot.lane.b32.xlu0 %v11279, 64
  %v11405 = vpop.permute.xlu0 %11404
  %11406 = vrot.lane.b32.xlu0 %v11239, 64
  %v11407 = vpop.permute.xlu0 %11406
  %11408 = vrot.lane.b32.xlu0 %v11283, 64
  %v11409 = vpop.permute.xlu0 %11408
  %11410 = vrot.lane.b32.xlu0 %v11240, 64
  %v11411 = vpop.permute.xlu0 %11410
  %11412 = vrot.lane.b32.xlu0 %v11287, 64
  %v11413 = vpop.permute.xlu0 %11412
  %11414 = vrot.lane.b32.xlu0 %v11241, 64
  %v11415 = vpop.permute.xlu0 %11414
  %11416 = vrot.lane.b32.xlu0 %v11291, 64
  %v11417 = vpop.permute.xlu0 %11416
  %11418 = vrot.lane.b32.xlu0 %v11242, 64
  %v11419 = vpop.permute.xlu0 %11418
  %11420 = vrot.lane.b32.xlu0 %v11295, 64
  %v11421 = vpop.permute.xlu0 %11420
  %11422 = vrot.lane.b32.xlu0 %v11243, 64
  %v11423 = vpop.permute.xlu0 %11422
  %11424 = vrot.lane.b32.xlu0 %v11299, 64
  %v11425 = vpop.permute.xlu0 %11424
  %11426 = vrot.lane.b32.xlu0 %v11244, 64
  %v11427 = vpop.permute.xlu0 %11426
  %11428 = vrot.lane.b32.xlu0 %v11303, 64
  %v11429 = vpop.permute.xlu0 %11428
  %11430 = vrot.lane.b32.xlu0 %v11245, 64
  %v11431 = vpop.permute.xlu0 %11430
  %11432 = vrot.lane.b32.xlu0 %v11307, 64
  %v11433 = vpop.permute.xlu0 %11432
  %11434 = vrot.lane.b32.xlu0 %v11246, 64
  %v11435 = vpop.permute.xlu0 %11434
  %11436 = vrot.lane.b32.xlu0 %v11311, 64
  %v11437 = vpop.permute.xlu0 %11436
  %11438 = vrot.lane.b32.xlu0 %v11247, 64
  %v11439 = vpop.permute.xlu0 %11438
  %11440 = vrot.lane.b32.xlu0 %v11315, 64
  %v11441 = vpop.permute.xlu0 %11440
  %11442 = vrot.lane.b32.xlu0 %v11248, 64
  %v11443 = vpop.permute.xlu0 %11442
  %11444 = vrot.lane.b32.xlu0 %v11319, 64
  %v11445 = vpop.permute.xlu0 %11444
  %11446 = vrot.lane.b32.xlu0 %v11249, 64
  %v11447 = vpop.permute.xlu0 %11446
  %11448 = vrot.lane.b32.xlu0 %v11323, 64
  %v11449 = vpop.permute.xlu0 %11448
  %11450 = vrot.lane.b32.xlu0 %v11250, 64
  %v11451 = vpop.permute.xlu0 %11450
  %11452 = vrot.lane.b32.xlu0 %v11327, 64
  %v11453 = vpop.permute.xlu0 %11452
  %11454 = vrot.lane.b32.xlu0 %v11251, 64
  %v11455 = vpop.permute.xlu0 %11454
  %11456 = vrot.lane.b32.xlu0 %v11331, 64
  %v11457 = vpop.permute.xlu0 %11456
  %11458 = vrot.lane.b32.xlu0 %v11252, 64
  %v11459 = vpop.permute.xlu0 %11458
  %11460 = vrot.lane.b32.xlu0 %v11335, 64
  %v11461 = vpop.permute.xlu0 %11460
  %11462 = vrot.lane.b32.xlu0 %v11253, 64
  %v11463 = vpop.permute.xlu0 %11462
  %11464 = vrot.lane.b32.xlu0 %v11339, 64
  %v11465 = vpop.permute.xlu0 %11464
  %11466 = vrot.lane.b32.xlu0 %v11254, 64
  %v11467 = vpop.permute.xlu0 %11466
  %11468 = vrot.lane.b32.xlu0 %v11343, 64
  %v11469 = vpop.permute.xlu0 %11468
  %11470 = vrot.lane.b32.xlu0 %v11255, 64
  %v11471 = vpop.permute.xlu0 %11470
  %11472 = vrot.lane.b32.xlu0 %v11347, 64
  %v11473 = vpop.permute.xlu0 %11472
  %11474 = vrot.lane.b32.xlu0 %v11256, 64
  %v11475 = vpop.permute.xlu0 %11474
  %11476 = vrot.lane.b32.xlu0 %v11351, 64
  %v11477 = vpop.permute.xlu0 %11476
  %11478 = vrot.lane.b32.xlu0 %v11257, 64
  %v11479 = vpop.permute.xlu0 %11478
  %11480 = vrot.lane.b32.xlu0 %v11355, 64
  %v11481 = vpop.permute.xlu0 %11480
  %11482 = vrot.lane.b32.xlu0 %v11258, 64
  %v11483 = vpop.permute.xlu0 %11482
  %11484 = vrot.lane.b32.xlu0 %v11359, 64
  %v11485 = vpop.permute.xlu0 %11484
  %11486 = vrot.lane.b32.xlu0 %v11259, 64
  %v11487 = vpop.permute.xlu0 %11486
  %11488 = vrot.lane.b32.xlu0 %v11363, 64
  %v11489 = vpop.permute.xlu0 %11488
  %11490 = vrot.lane.b32.xlu0 %v11260, 64
  %v11491 = vpop.permute.xlu0 %11490
  %11492 = vrot.lane.b32.xlu0 %v11367, 64
  %v11493 = vpop.permute.xlu0 %11492
  %11494 = vrot.lane.b32.xlu0 %v11261, 64
  %v11495 = vpop.permute.xlu0 %11494
  %v11496 = vsel %vm7193, %v11405, %v11407
  %v11497 = vsel %vm7193, %v11409, %v11411
  %v11498 = vsel %vm7193, %v11413, %v11415
  %v11499 = vsel %vm7193, %v11417, %v11419
  %v11500 = vsel %vm7193, %v11421, %v11423
  %v11501 = vsel %vm7193, %v11425, %v11427
  %v11502 = vsel %vm7193, %v11429, %v11431
  %v11503 = vsel %vm7193, %v11433, %v11435
  %v11504 = vsel %vm7193, %v11437, %v11439
  %v11505 = vsel %vm7193, %v11441, %v11443
  %v11506 = vsel %vm7193, %v11445, %v11447
  %v11507 = vsel %vm7193, %v11449, %v11451
  %v11508 = vsel %vm7193, %v11453, %v11455
  %v11509 = vsel %vm7193, %v11457, %v11459
  %v11510 = vsel %vm7193, %v11461, %v11463
  %v11511 = vsel %vm7193, %v11465, %v11467
  %v11512 = vsel %vm7193, %v11469, %v11471
  %v11513 = vsel %vm7193, %v11473, %v11475
  %v11514 = vsel %vm7193, %v11477, %v11479
  %v11515 = vsel %vm7193, %v11481, %v11483
  %v11516 = vsel %vm7193, %v11485, %v11487
  %v11517 = vsel %vm7193, %v11489, %v11491
  %v11518 = vsel %vm7193, %v11493, %v11495
  %v11544 = vsel %vm6601, %v11236, %v11405
  %v11548 = vsel %vm6601, %v11237, %v11409
  %v11552 = vsel %vm6601, %v11238, %v11413
  %v11556 = vsel %vm6601, %v11239, %v11417
  %v11560 = vsel %vm6601, %v11240, %v11421
  %v11564 = vsel %vm6601, %v11241, %v11425
  %v11568 = vsel %vm6601, %v11242, %v11429
  %v11572 = vsel %vm6601, %v11243, %v11433
  %v11576 = vsel %vm6601, %v11244, %v11437
  %v11580 = vsel %vm6601, %v11245, %v11441
  %v11584 = vsel %vm6601, %v11246, %v11445
  %v11588 = vsel %vm6601, %v11247, %v11449
  %v11592 = vsel %vm6601, %v11248, %v11453
  %v11596 = vsel %vm6601, %v11249, %v11457
  %v11600 = vsel %vm6601, %v11250, %v11461
  %v11604 = vsel %vm6601, %v11251, %v11465
  %v11608 = vsel %vm6601, %v11252, %v11469
  %v11612 = vsel %vm6601, %v11253, %v11473
  %v11616 = vsel %vm6601, %v11254, %v11477
  %v11620 = vsel %vm6601, %v11255, %v11481
  %v11624 = vsel %vm6601, %v11256, %v11485
  %v11628 = vsel %vm6601, %v11257, %v11489
  %v11632 = vsel %vm6601, %v11258, %v11493
  %v11634 = vld [vmem:[%s5] sm:$0xf]
  %v11635 = vld [vmem:[%s5 + $0x4] sm:$0xf]
  %v11636 = vld [vmem:[%s5 + $0x8] sm:$0xf]
  %v11637 = vld [vmem:[%s5 + $0xc] sm:$0xf]
  %v11638 = vld [vmem:[%s5 + $0x10] sm:$0xf]
  %v11639 = vld [vmem:[%s5 + $0x14] sm:$0xf]
  %v11640 = vld [vmem:[%s5 + $0x18] sm:$0xf]
  %v11641 = vld [vmem:[%s5 + $0x1c] sm:$0xf]
  %v11642 = vld [vmem:[%s5 + $0x20] sm:$0xf]
  %v11643 = vld [vmem:[%s5 + $0x24] sm:$0xf]
  %v11644 = vld [vmem:[%s5 + $0x28] sm:$0xf]
  %v11645 = vld [vmem:[%s5 + $0x2c] sm:$0xf]
  %v11646 = vld [vmem:[%s5 + $0x30] sm:$0xf]
  %v11647 = vld [vmem:[%s5 + $0x34] sm:$0xf]
  %v11648 = vld [vmem:[%s5 + $0x38] sm:$0xf]
  %v11649 = vld [vmem:[%s5 + $0x3c] sm:$0xf]
  %v11650 = vld [vmem:[%s5 + $0x40] sm:$0xf]
  %v11651 = vld [vmem:[%s5 + $0x44] sm:$0xf]
  %v11652 = vld [vmem:[%s5 + $0x48] sm:$0xf]
  %v11653 = vld [vmem:[%s5 + $0x4c] sm:$0xf]
  %v11654 = vld [vmem:[%s5 + $0x50] sm:$0xf]
  %v11655 = vld [vmem:[%s5 + $0x54] sm:$0xf]
  %v11656 = vld [vmem:[%s5 + $0x58] sm:$0xf]
  %v11657 = vld [vmem:[%s5 + $0x5c] sm:$0xf]
  %v11658 = vld [vmem:[%s5 + $0x60] sm:$0xf]
  %v11659 = vld [vmem:[%s5 + $0x64] sm:$0xf]
  %v11660 = vld [vmem:[%s5 + $0x68] sm:$0xf]
  %v11661 = vld [vmem:[%s5 + $0x6c] sm:$0xf]
  %v11662 = vld [vmem:[%s5 + $0x70] sm:$0xf]
  %v11663 = vld [vmem:[%s5 + $0x74] sm:$0xf]
  %v11664 = vld [vmem:[%s5 + $0x78] sm:$0xf]
  %v11665 = vld [vmem:[%s5 + $0x7c] sm:$0xf]
  %v11666 = vld [vmem:[%s5 + $0x80] sm:$0xf]
  %v11667 = vld [vmem:[%s5 + $0x84] sm:$0xf]
  %v11668 = vld [vmem:[%s5 + $0x88] sm:$0xf]
  %v11669 = vld [vmem:[%s5 + $0x8c] sm:$0xf]
  %v11670 = vld [vmem:[%s5 + $0x90] sm:$0xf]
  %v11671 = vld [vmem:[%s5 + $0x94] sm:$0xf]
  %v11672 = vld [vmem:[%s5 + $0x98] sm:$0xf]
  %v11673 = vld [vmem:[%s5 + $0x9c] sm:$0xf]
  %v11674 = vld [vmem:[%s5 + $0xa0] sm:$0xf]
  %v11675 = vld [vmem:[%s5 + $0xa4] sm:$0xf]
  %v11676 = vld [vmem:[%s5 + $0xa8] sm:$0xf]
  %v11677 = vld [vmem:[%s5 + $0xac] sm:$0xf]
  %v11678 = vld [vmem:[%s5 + $0xb0] sm:$0xf]
  %v11679 = vld [vmem:[%s5 + $0xb4] sm:$0xf]
  %v11680 = vld [vmem:[%s5 + $0xb8] sm:$0xf]
  %v11681 = vld [vmem:[%s5 + $0xbc] sm:$0xf]
  %v11682 = vld [vmem:[%s5 + $0xc0] sm:$0xf]
  %v11683 = vld [vmem:[%s5 + $0xc4] sm:$0xf]
  %v11684 = vld [vmem:[%s5 + $0xc8] sm:$0xf]
  %v11685 = vld [vmem:[%s5 + $0xcc] sm:$0xf]
  %v11686 = vld [vmem:[%s5 + $0xd0] sm:$0xf]
  %v11687 = vld [vmem:[%s5 + $0xd4] sm:$0xf]
  %v11688 = vld [vmem:[%s5 + $0xd8] sm:$0xf]
  %v11689 = vld [vmem:[%s5 + $0xdc] sm:$0xf]
  %v11690 = vld [vmem:[%s5 + $0xe0] sm:$0xf]
  %v11691 = vld [vmem:[%s5 + $0xe4] sm:$0xf]
  %v11692 = vld [vmem:[%s5 + $0xe8] sm:$0xf]
  %v11693 = vld [vmem:[%s5 + $0xec] sm:$0xf]
  %v11694 = vld [vmem:[%s5 + $0xf0] sm:$0xf]
  %v11695 = vld [vmem:[%s5 + $0xf4] sm:$0xf]
  %v11696 = vld [vmem:[%s5 + $0xf8] sm:$0xf]
  %v11697 = vld [vmem:[%s5 + $0xfc] sm:$0xf]
  %v11698 = vld [vmem:[%s5 + $0x100] sm:$0xf]
  %v11699 = vld [vmem:[%s5 + $0x104] sm:$0xf]
  %v11700 = vld [vmem:[%s5 + $0x108] sm:$0xf]
  %v11701 = vld [vmem:[%s5 + $0x10c] sm:$0xf]
  %v11702 = vld [vmem:[%s5 + $0x110] sm:$0xf]
  %v11703 = vld [vmem:[%s5 + $0x114] sm:$0xf]
  %v11704 = vld [vmem:[%s5 + $0x118] sm:$0xf]
  %v11705 = vld [vmem:[%s5 + $0x11c] sm:$0xf]
  %v11706 = vld [vmem:[%s6] sm:$0x1]
  %v11708 = vlaneseq
  %v11709 = vshrl.u32 %v11708, 7
  %v11710 = vsub.s32 0, %v11709
  %v11711 = vrot.slane %v11706, %v11710
  %v11785 = vunpack.c.l.b16 %v11634
  %v11786 = vunpack.c.l.b16 %v11635
  %v11787 = vunpack.c.l.b16 %v11636
  %v11788 = vunpack.c.l.b16 %v11637
  %v11789 = vunpack.c.l.b16 %v11638
  %v11790 = vunpack.c.l.b16 %v11639
  %v11791 = vunpack.c.l.b16 %v11640
  %v11792 = vunpack.c.l.b16 %v11641
  %v11793 = vunpack.c.l.b16 %v11642
  %v11794 = vunpack.c.l.b16 %v11643
  %v11795 = vunpack.c.l.b16 %v11644
  %v11796 = vunpack.c.l.b16 %v11645
  %v11797 = vunpack.c.l.b16 %v11646
  %v11798 = vunpack.c.l.b16 %v11647
  %v11799 = vunpack.c.l.b16 %v11648
  %v11800 = vunpack.c.l.b16 %v11649
  %v11801 = vunpack.c.l.b16 %v11650
  %v11802 = vunpack.c.l.b16 %v11651
  %v11803 = vunpack.c.l.b16 %v11652
  %v11804 = vunpack.c.l.b16 %v11653
  %v11805 = vunpack.c.l.b16 %v11654
  %v11806 = vunpack.c.l.b16 %v11655
  %v11807 = vunpack.c.l.b16 %v11656
  %v11808 = vunpack.c.l.b16 %v11657
  %v11809 = vunpack.c.l.b16 %v11658
  %v11810 = vunpack.c.l.b16 %v11659
  %v11811 = vunpack.c.l.b16 %v11660
  %v11812 = vunpack.c.l.b16 %v11661
  %v11813 = vunpack.c.l.b16 %v11662
  %v11814 = vunpack.c.l.b16 %v11663
  %v11815 = vunpack.c.l.b16 %v11664
  %v11816 = vunpack.c.l.b16 %v11665
  %v11817 = vunpack.c.l.b16 %v11666
  %v11818 = vunpack.c.l.b16 %v11667
  %v11819 = vunpack.c.l.b16 %v11668
  %v11820 = vunpack.c.l.b16 %v11669
  %v11821 = vunpack.c.l.b16 %v11670
  %v11822 = vunpack.c.l.b16 %v11671
  %v11823 = vunpack.c.l.b16 %v11672
  %v11824 = vunpack.c.l.b16 %v11673
  %v11825 = vunpack.c.l.b16 %v11674
  %v11826 = vunpack.c.l.b16 %v11675
  %v11827 = vunpack.c.l.b16 %v11676
  %v11828 = vunpack.c.l.b16 %v11677
  %v11829 = vunpack.c.l.b16 %v11678
  %v11830 = vunpack.c.l.b16 %v11679
  %v11831 = vunpack.c.l.b16 %v11680
  %v11832 = vunpack.c.l.b16 %v11681
  %v11833 = vunpack.c.l.b16 %v11682
  %v11834 = vunpack.c.l.b16 %v11683
  %v11835 = vunpack.c.l.b16 %v11684
  %v11836 = vunpack.c.l.b16 %v11685
  %v11837 = vunpack.c.l.b16 %v11686
  %v11838 = vunpack.c.l.b16 %v11687
  %v11839 = vunpack.c.l.b16 %v11688
  %v11840 = vunpack.c.l.b16 %v11689
  %v11841 = vunpack.c.l.b16 %v11690
  %v11842 = vunpack.c.l.b16 %v11691
  %v11843 = vunpack.c.l.b16 %v11692
  %v11844 = vunpack.c.l.b16 %v11693
  %v11845 = vunpack.c.l.b16 %v11694
  %v11846 = vunpack.c.l.b16 %v11695
  %v11847 = vunpack.c.l.b16 %v11696
  %v11848 = vunpack.c.l.b16 %v11697
  %v11849 = vunpack.c.l.b16 %v11698
  %v11850 = vunpack.c.l.b16 %v11699
  %v11851 = vunpack.c.l.b16 %v11700
  %v11852 = vunpack.c.l.b16 %v11701
  %v11853 = vunpack.c.l.b16 %v11702
  %v11854 = vunpack.c.l.b16 %v11703
  %v11855 = vunpack.c.l.b16 %v11704
  %v11856 = vunpack.c.l.b16 %v11705
  %v11857 = vpack.c.b16 %v11786, %v11785
  %v11858 = vpack.c.b16 %v11788, %v11787
  %v11859 = vpack.c.b16 %v11790, %v11789
  %v11860 = vpack.c.b16 %v11792, %v11791
  %v11861 = vpack.c.b16 %v11794, %v11793
  %v11862 = vpack.c.b16 %v11796, %v11795
  %v11863 = vpack.c.b16 %v11798, %v11797
  %v11864 = vpack.c.b16 %v11800, %v11799
  %v11865 = vpack.c.b16 %v11802, %v11801
  %v11866 = vpack.c.b16 %v11804, %v11803
  %v11867 = vpack.c.b16 %v11806, %v11805
  %v11868 = vpack.c.b16 %v11808, %v11807
  %v11869 = vpack.c.b16 %v11810, %v11809
  %v11870 = vpack.c.b16 %v11812, %v11811
  %v11871 = vpack.c.b16 %v11814, %v11813
  %v11872 = vpack.c.b16 %v11816, %v11815
  %v11873 = vpack.c.b16 %v11818, %v11817
  %v11874 = vpack.c.b16 %v11820, %v11819
  %v11875 = vpack.c.b16 %v11822, %v11821
  %v11876 = vpack.c.b16 %v11824, %v11823
  %v11877 = vpack.c.b16 %v11826, %v11825
  %v11878 = vpack.c.b16 %v11828, %v11827
  %v11879 = vpack.c.b16 %v11830, %v11829
  %v11880 = vpack.c.b16 %v11832, %v11831
  %v11881 = vpack.c.b16 %v11834, %v11833
  %v11882 = vpack.c.b16 %v11836, %v11835
  %v11883 = vpack.c.b16 %v11838, %v11837
  %v11884 = vpack.c.b16 %v11840, %v11839
  %v11885 = vpack.c.b16 %v11842, %v11841
  %v11886 = vpack.c.b16 %v11844, %v11843
  %v11887 = vpack.c.b16 %v11846, %v11845
  %v11888 = vpack.c.b16 %v11848, %v11847
  %v11889 = vpack.c.b16 %v11850, %v11849
  %v11890 = vpack.c.b16 %v11852, %v11851
  %v11891 = vpack.c.b16 %v11854, %v11853
  %v11892 = vpack.c.b16 %v11856, %v11855
  %v11929 = vsel %vm6601, %v11242, 0
  %v11931 = vsel %vm6601, %v11243, 0
  %v11933 = vsel %vm6601, %v11244, 0
  %v11935 = vsel %vm6601, %v11245, 0
  %v11937 = vsel %vm6601, %v11246, 0
  %v11939 = vsel %vm6601, %v11247, 0
  %v11941 = vsel %vm6601, %v11248, 0
  %v11943 = vsel %vm6601, %v11249, 0
  %v11945 = vsel %vm6601, %v11250, 0
  %v11947 = vsel %vm6601, %v11251, 0
  %v11949 = vsel %vm6601, %v11252, 0
  %v11951 = vsel %vm6601, %v11253, 0
  %v11953 = vsel %vm6601, %v11254, 0
  %v11955 = vsel %vm6601, %v11255, 0
  %v11957 = vsel %vm6601, %v11256, 0
  %v11959 = vsel %vm6601, %v11257, 0
  %v11961 = vsel %vm6601, %v11258, 0
  %v11964 = vsel %vm6601, %v11259, 0
  %v11967 = vsel %vm6601, %v11260, 0
  %v11970 = vsel %vm6601, %v11261, 0
  %v11973 = vsel %vm6601, %v11262, 0
  %v11976 = vsel %vm6601, %v11263, 0
  %v11979 = vsel %vm6601, %v11264, 0
  %11981 = vmatprep.subr.bf16.mxu0 0
  %11982 = vmatpush1.bf16.msra.mxu0 %v11864
  %11983 = vmatprep.subr.bf16.mxu0 0
  %11984 = vmatpush1.bf16.msra.mxu0 %v11863
  %11985 = vmatprep.subr.bf16.mxu0 0
  %11986 = vmatpush1.bf16.msra.mxu0 %v11862
  %11987 = vmatprep.subr.bf16.mxu0 0
  %11988 = vmatpush1.bf16.msra.mxu0 %v11861
  %11989 = vmatprep.subr.bf16.mxu0 0
  %11990 = vmatpush1.bf16.msra.mxu0 %v11860
  %11991 = vmatprep.subr.bf16.mxu0 0
  %11992 = vmatpush1.bf16.msra.mxu0 %v11859
  %11993 = vmatprep.subr.bf16.mxu0 0
  %11994 = vmatpush1.bf16.msra.mxu0 %v11858
  %11995 = vmatprep.subr.bf16.mxu0 0
  %11996 = vmatpush1.bf16.msra.mxu0 %v11857
  %11997 = vmatprep.subr.bf16.mxu0 0
  %11998 = vmatpush2.bf16.msra.mxu0 %v11872
  %11999 = vmatprep.subr.bf16.mxu0 0
  %12000 = vmatpush2.bf16.msra.mxu0 %v11871
  %12001 = vmatprep.subr.bf16.mxu0 0
  %12002 = vmatpush2.bf16.msra.mxu0 %v11870
  %12003 = vmatprep.subr.bf16.mxu0 0
  %12004 = vmatpush2.bf16.msra.mxu0 %v11869
  %12005 = vmatprep.subr.bf16.mxu0 0
  %12006 = vmatpush2.bf16.msra.mxu0 %v11868
  %12007 = vmatprep.subr.bf16.mxu0 0
  %12008 = vmatpush2.bf16.msra.mxu0 %v11867
  %12009 = vmatprep.subr.bf16.mxu0 0
  %12010 = vmatpush2.bf16.msra.mxu0 %v11866
  %12011 = vmatprep.subr.bf16.mxu0 0
  %12012 = vmatpush2.bf16.msra.mxu0 %v11865
  %12013 = vmatprep.mubr.bf16.mxu0 %v11544
  %12014 = vmatmul.mubr.bf16.gmra.mxu0 %v11267
  %v12015 = vpop.f32.mrf.mxu0
  %v12016 = vadd.f32 %v11711, %v12015
  %v12017 = vpop.f32.mrf.mxu0
  %v12018 = vpop.f32.mrf.mxu0
  %v12019 = vadd.f32 %v11711, %v12018
  %v12020 = vpop.f32.mrf.mxu0
  %12021 = vmatprep.mubr.bf16.mxu0 %v11548
  %12022 = vmatmul.mubr.bf16.gmra.mxu0 %v11271
  %v12023 = vpop.f32.mrf.mxu0
  %v12024 = vadd.f32 %v11711, %v12023
  %v12025 = vpop.f32.mrf.mxu0
  %v12026 = vpop.f32.mrf.mxu0
  %v12027 = vadd.f32 %v11711, %v12026
  %v12028 = vpop.f32.mrf.mxu0
  %12029 = vmatprep.mubr.bf16.mxu0 %v11552
  %12030 = vmatmul.mubr.bf16.gmra.mxu0 %v11275
  %v12031 = vpop.f32.mrf.mxu0
  %v12032 = vadd.f32 %v11711, %v12031
  %v12033 = vpop.f32.mrf.mxu0
  %v12034 = vpop.f32.mrf.mxu0
  %v12035 = vpop.f32.mrf.mxu0
  %12036 = vmatprep.mubr.bf16.mxu0 %v11556
  %12037 = vmatmul.mubr.bf16.gmra.mxu0 %v11279
  %v12038 = vpop.f32.mrf.mxu0
  %v12039 = vadd.f32 %v11711, %v12038
  %v12040 = vpop.f32.mrf.mxu0
  %v12041 = vpop.f32.mrf.mxu0
  %v12042 = vadd.f32 %v11711, %v12041
  %v12043 = vpop.f32.mrf.mxu0
  %12044 = vmatprep.mubr.bf16.mxu0 %v11560
  %12045 = vmatmul.mubr.bf16.gmra.mxu0 %v11283
  %v12046 = vpop.f32.mrf.mxu0
  %v12047 = vadd.f32 %v11711, %v12046
  %v12048 = vpop.f32.mrf.mxu0
  %v12049 = vpop.f32.mrf.mxu0
  %v12050 = vadd.f32 %v11711, %v12049
  %v12051 = vpop.f32.mrf.mxu0
  %12052 = vmatprep.mubr.bf16.mxu0 %v11564
  %12053 = vmatmul.mubr.bf16.gmra.mxu0 %v11287
  %v12054 = vpop.f32.mrf.mxu0
  %v12055 = vadd.f32 %v11711, %v12054
  %v12056 = vpop.f32.mrf.mxu0
  %v12057 = vpop.f32.mrf.mxu0
  %v12058 = vpop.f32.mrf.mxu0
  %12059 = vmatprep.mubr.bf16.mxu0 %v11568
  %12060 = vmatmul.mubr.bf16.gmra.mxu0 %v11291
  %v12061 = vpop.f32.mrf.mxu0
  %v12062 = vadd.f32 %v11711, %v12061
  %v12063 = vpop.f32.mrf.mxu0
  %v12064 = vpop.f32.mrf.mxu0
  %v12065 = vadd.f32 %v11711, %v12064
  %v12066 = vpop.f32.mrf.mxu0
  %12067 = vmatprep.mubr.bf16.mxu0 %v11572
  %12068 = vmatmul.mubr.bf16.gmra.mxu0 %v11295
  %v12069 = vpop.f32.mrf.mxu0
  %v12070 = vadd.f32 %v11711, %v12069
  %v12071 = vpop.f32.mrf.mxu0
  %v12072 = vpop.f32.mrf.mxu0
  %v12073 = vadd.f32 %v11711, %v12072
  %v12074 = vpop.f32.mrf.mxu0
  %12075 = vmatprep.mubr.bf16.mxu0 %v11576
  %12076 = vmatmul.mubr.bf16.gmra.mxu0 %v11299
  %v12077 = vpop.f32.mrf.mxu0
  %v12078 = vadd.f32 %v11711, %v12077
  %v12079 = vpop.f32.mrf.mxu0
  %v12080 = vpop.f32.mrf.mxu0
  %v12081 = vpop.f32.mrf.mxu0
  %12082 = vmatprep.mubr.bf16.mxu0 %v11580
  %12083 = vmatmul.mubr.bf16.gmra.mxu0 %v11303
  %v12084 = vpop.f32.mrf.mxu0
  %v12085 = vadd.f32 %v11711, %v12084
  %v12086 = vpop.f32.mrf.mxu0
  %v12087 = vpop.f32.mrf.mxu0
  %v12088 = vadd.f32 %v11711, %v12087
  %v12089 = vpop.f32.mrf.mxu0
  %12090 = vmatprep.mubr.bf16.mxu0 %v11584
  %12091 = vmatmul.mubr.bf16.gmra.mxu0 %v11307
  %v12092 = vpop.f32.mrf.mxu0
  %v12093 = vadd.f32 %v11711, %v12092
  %v12094 = vpop.f32.mrf.mxu0
  %v12095 = vpop.f32.mrf.mxu0
  %v12096 = vadd.f32 %v11711, %v12095
  %v12097 = vpop.f32.mrf.mxu0
  %12098 = vmatprep.mubr.bf16.mxu0 %v11588
  %12099 = vmatmul.mubr.bf16.gmra.mxu0 %v11311
  %v12100 = vpop.f32.mrf.mxu0
  %v12101 = vadd.f32 %v11711, %v12100
  %v12102 = vpop.f32.mrf.mxu0
  %v12103 = vpop.f32.mrf.mxu0
  %v12104 = vpop.f32.mrf.mxu0
  %12105 = vmatprep.mubr.bf16.mxu0 %v11592
  %12106 = vmatmul.mubr.bf16.gmra.mxu0 %v11315
  %v12107 = vpop.f32.mrf.mxu0
  %v12108 = vadd.f32 %v11711, %v12107
  %v12109 = vpop.f32.mrf.mxu0
  %v12110 = vpop.f32.mrf.mxu0
  %v12111 = vadd.f32 %v11711, %v12110
  %v12112 = vpop.f32.mrf.mxu0
  %12113 = vmatprep.mubr.bf16.mxu0 %v11596
  %12114 = vmatmul.mubr.bf16.gmra.mxu0 %v11319
  %v12115 = vpop.f32.mrf.mxu0
  %v12116 = vadd.f32 %v11711, %v12115
  %v12117 = vpop.f32.mrf.mxu0
  %v12118 = vpop.f32.mrf.mxu0
  %v12119 = vadd.f32 %v11711, %v12118
  %v12120 = vpop.f32.mrf.mxu0
  %12121 = vmatprep.mubr.bf16.mxu0 %v11600
  %12122 = vmatmul.mubr.bf16.gmra.mxu0 %v11323
  %v12123 = vpop.f32.mrf.mxu0
  %v12124 = vadd.f32 %v11711, %v12123
  %v12125 = vpop.f32.mrf.mxu0
  %v12126 = vpop.f32.mrf.mxu0
  %v12127 = vpop.f32.mrf.mxu0
  %12128 = vmatprep.mubr.bf16.mxu0 %v11604
  %12129 = vmatmul.mubr.bf16.gmra.mxu0 %v11327
  %v12130 = vpop.f32.mrf.mxu0
  %v12131 = vadd.f32 %v11711, %v12130
  %v12132 = vpop.f32.mrf.mxu0
  %v12133 = vpop.f32.mrf.mxu0
  %v12134 = vadd.f32 %v11711, %v12133
  %v12135 = vpop.f32.mrf.mxu0
  %12136 = vmatprep.mubr.bf16.mxu0 %v11608
  %12137 = vmatmul.mubr.bf16.gmra.mxu0 %v11331
  %v12138 = vpop.f32.mrf.mxu0
  %v12139 = vadd.f32 %v11711, %v12138
  %v12140 = vpop.f32.mrf.mxu0
  %v12141 = vpop.f32.mrf.mxu0
  %v12142 = vadd.f32 %v11711, %v12141
  %v12143 = vpop.f32.mrf.mxu0
  %12144 = vmatprep.mubr.bf16.mxu0 %v11612
  %12145 = vmatmul.mubr.bf16.gmra.mxu0 %v11335
  %v12146 = vpop.f32.mrf.mxu0
  %v12147 = vadd.f32 %v11711, %v12146
  %v12148 = vpop.f32.mrf.mxu0
  %v12149 = vpop.f32.mrf.mxu0
  %v12150 = vpop.f32.mrf.mxu0
  %12151 = vmatprep.mubr.bf16.mxu0 %v11616
  %12152 = vmatmul.mubr.bf16.gmra.mxu0 %v11339
  %v12153 = vpop.f32.mrf.mxu0
  %v12154 = vadd.f32 %v11711, %v12153
  %v12155 = vpop.f32.mrf.mxu0
  %v12156 = vpop.f32.mrf.mxu0
  %v12157 = vadd.f32 %v11711, %v12156
  %v12158 = vpop.f32.mrf.mxu0
  %12159 = vmatprep.mubr.bf16.mxu0 %v11620
  %12160 = vmatmul.mubr.bf16.gmra.mxu0 %v11343
  %v12161 = vpop.f32.mrf.mxu0
  %v12162 = vadd.f32 %v11711, %v12161
  %v12163 = vpop.f32.mrf.mxu0
  %v12164 = vpop.f32.mrf.mxu0
  %v12165 = vadd.f32 %v11711, %v12164
  %v12166 = vpop.f32.mrf.mxu0
  %12167 = vmatprep.mubr.bf16.mxu0 %v11624
  %12168 = vmatmul.mubr.bf16.gmra.mxu0 %v11347
  %v12169 = vpop.f32.mrf.mxu0
  %v12170 = vadd.f32 %v11711, %v12169
  %v12171 = vpop.f32.mrf.mxu0
  %v12172 = vpop.f32.mrf.mxu0
  %v12173 = vpop.f32.mrf.mxu0
  %12174 = vmatprep.mubr.bf16.mxu0 %v11628
  %12175 = vmatmul.mubr.bf16.gmra.mxu0 %v11351
  %v12176 = vpop.f32.mrf.mxu0
  %v12177 = vadd.f32 %v11711, %v12176
  %v12178 = vpop.f32.mrf.mxu0
  %v12179 = vpop.f32.mrf.mxu0
  %v12180 = vadd.f32 %v11711, %v12179
  %v12181 = vpop.f32.mrf.mxu0
  %12182 = vmatprep.mubr.bf16.mxu0 %v11632
  %12183 = vmatmul.mubr.bf16.gmra.mxu0 %v11355
  %v12184 = vpop.f32.mrf.mxu0
  %v12185 = vadd.f32 %v11711, %v12184
  %v12186 = vpop.f32.mrf.mxu0
  %v12187 = vpop.f32.mrf.mxu0
  %v12188 = vadd.f32 %v11711, %v12187
  %v12189 = vpop.f32.mrf.mxu0
  %12190 = vdwg.mxu0
  %12191 = vmatprep.subr.bf16.mxu0 0
  %12192 = vmatpush1.bf16.msra.mxu0 %v11880
  %12193 = vmatprep.subr.bf16.mxu0 0
  %12194 = vmatpush1.bf16.msra.mxu0 %v11879
  %12195 = vmatprep.subr.bf16.mxu0 0
  %12196 = vmatpush1.bf16.msra.mxu0 %v11878
  %12197 = vmatprep.subr.bf16.mxu0 0
  %12198 = vmatpush1.bf16.msra.mxu0 %v11877
  %12199 = vmatprep.subr.bf16.mxu0 0
  %12200 = vmatpush1.bf16.msra.mxu0 %v11876
  %12201 = vmatprep.subr.bf16.mxu0 0
  %12202 = vmatpush1.bf16.msra.mxu0 %v11875
  %12203 = vmatprep.subr.bf16.mxu0 0
  %12204 = vmatpush1.bf16.msra.mxu0 %v11874
  %12205 = vmatprep.subr.bf16.mxu0 0
  %12206 = vmatpush1.bf16.msra.mxu0 %v11873
  %12207 = vmatprep.subr.bf16.mxu0 0
  %12208 = vmatpush2.bf16.msra.mxu0 %v11888
  %12209 = vmatprep.subr.bf16.mxu0 0
  %12210 = vmatpush2.bf16.msra.mxu0 %v11887
  %12211 = vmatprep.subr.bf16.mxu0 0
  %12212 = vmatpush2.bf16.msra.mxu0 %v11886
  %12213 = vmatprep.subr.bf16.mxu0 0
  %12214 = vmatpush2.bf16.msra.mxu0 %v11885
  %12215 = vmatprep.subr.bf16.mxu0 0
  %12216 = vmatpush2.bf16.msra.mxu0 %v11884
  %12217 = vmatprep.subr.bf16.mxu0 0
  %12218 = vmatpush2.bf16.msra.mxu0 %v11883
  %12219 = vmatprep.subr.bf16.mxu0 0
  %12220 = vmatpush2.bf16.msra.mxu0 %v11882
  %12221 = vmatprep.subr.bf16.mxu0 0
  %12222 = vmatpush2.bf16.msra.mxu0 %v11881
  %12223 = vmatprep.mubr.bf16.mxu0 %v11291
  %12224 = vmatmul.mubr.bf16.gmra.mxu0 %v11496
  %v12225 = vpop.f32.mrf.mxu0
  %v12226 = vadd.f32 %v12016, %v12225
  %v12227 = vpop.f32.mrf.mxu0
  %v12228 = vpop.f32.mrf.mxu0
  %v12229 = vadd.f32 %v12019, %v12228
  %v12230 = vpop.f32.mrf.mxu0
  %12231 = vmatprep.mubr.bf16.mxu0 %v11295
  %12232 = vmatmul.mubr.bf16.gmra.mxu0 %v11497
  %v12233 = vpop.f32.mrf.mxu0
  %v12234 = vadd.f32 %v12024, %v12233
  %v12235 = vpop.f32.mrf.mxu0
  %v12236 = vpop.f32.mrf.mxu0
  %v12237 = vadd.f32 %v12027, %v12236
  %v12238 = vpop.f32.mrf.mxu0
  %12239 = vmatprep.mubr.bf16.mxu0 %v11299
  %12240 = vmatmul.mubr.bf16.gmra.mxu0 %v11498
  %v12241 = vpop.f32.mrf.mxu0
  %v12242 = vadd.f32 %v12032, %v12241
  %v12243 = vpop.f32.mrf.mxu0
  %v12244 = vpop.f32.mrf.mxu0
  %v12245 = vpop.f32.mrf.mxu0
  %12246 = vmatprep.mubr.bf16.mxu0 %v11303
  %12247 = vmatmul.mubr.bf16.gmra.mxu0 %v11499
  %v12248 = vpop.f32.mrf.mxu0
  %v12249 = vadd.f32 %v12039, %v12248
  %v12250 = vpop.f32.mrf.mxu0
  %v12251 = vpop.f32.mrf.mxu0
  %v12252 = vadd.f32 %v12042, %v12251
  %v12253 = vpop.f32.mrf.mxu0
  %12254 = vmatprep.mubr.bf16.mxu0 %v11307
  %12255 = vmatmul.mubr.bf16.gmra.mxu0 %v11500
  %v12256 = vpop.f32.mrf.mxu0
  %v12257 = vadd.f32 %v12047, %v12256
  %v12258 = vpop.f32.mrf.mxu0
  %v12259 = vpop.f32.mrf.mxu0
  %v12260 = vadd.f32 %v12050, %v12259
  %v12261 = vpop.f32.mrf.mxu0
  %12262 = vmatprep.mubr.bf16.mxu0 %v11311
  %12263 = vmatmul.mubr.bf16.gmra.mxu0 %v11501
  %v12264 = vpop.f32.mrf.mxu0
  %v12265 = vadd.f32 %v12055, %v12264
  %v12266 = vpop.f32.mrf.mxu0
  %v12267 = vpop.f32.mrf.mxu0
  %v12268 = vpop.f32.mrf.mxu0
  %12269 = vmatprep.mubr.bf16.mxu0 %v11315
  %12270 = vmatmul.mubr.bf16.gmra.mxu0 %v11502
  %v12271 = vpop.f32.mrf.mxu0
  %v12272 = vadd.f32 %v12062, %v12271
  %v12273 = vpop.f32.mrf.mxu0
  %v12274 = vpop.f32.mrf.mxu0
  %v12275 = vadd.f32 %v12065, %v12274
  %v12276 = vpop.f32.mrf.mxu0
  %12277 = vmatprep.mubr.bf16.mxu0 %v11319
  %12278 = vmatmul.mubr.bf16.gmra.mxu0 %v11503
  %v12279 = vpop.f32.mrf.mxu0
  %v12280 = vadd.f32 %v12070, %v12279
  %v12281 = vpop.f32.mrf.mxu0
  %v12282 = vpop.f32.mrf.mxu0
  %v12283 = vadd.f32 %v12073, %v12282
  %v12284 = vpop.f32.mrf.mxu0
  %12285 = vmatprep.mubr.bf16.mxu0 %v11323
  %12286 = vmatmul.mubr.bf16.gmra.mxu0 %v11504
  %v12287 = vpop.f32.mrf.mxu0
  %v12288 = vadd.f32 %v12078, %v12287
  %v12289 = vpop.f32.mrf.mxu0
  %v12290 = vpop.f32.mrf.mxu0
  %v12291 = vpop.f32.mrf.mxu0
  %12292 = vmatprep.mubr.bf16.mxu0 %v11327
  %12293 = vmatmul.mubr.bf16.gmra.mxu0 %v11505
  %v12294 = vpop.f32.mrf.mxu0
  %v12295 = vadd.f32 %v12085, %v12294
  %v12296 = vpop.f32.mrf.mxu0
  %v12297 = vpop.f32.mrf.mxu0
  %v12298 = vadd.f32 %v12088, %v12297
  %v12299 = vpop.f32.mrf.mxu0
  %12300 = vmatprep.mubr.bf16.mxu0 %v11331
  %12301 = vmatmul.mubr.bf16.gmra.mxu0 %v11506
  %v12302 = vpop.f32.mrf.mxu0
  %v12303 = vadd.f32 %v12093, %v12302
  %v12304 = vpop.f32.mrf.mxu0
  %v12305 = vpop.f32.mrf.mxu0
  %v12306 = vadd.f32 %v12096, %v12305
  %v12307 = vpop.f32.mrf.mxu0
  %12308 = vmatprep.mubr.bf16.mxu0 %v11335
  %12309 = vmatmul.mubr.bf16.gmra.mxu0 %v11507
  %v12310 = vpop.f32.mrf.mxu0
  %v12311 = vadd.f32 %v12101, %v12310
  %v12312 = vpop.f32.mrf.mxu0
  %v12313 = vpop.f32.mrf.mxu0
  %v12314 = vpop.f32.mrf.mxu0
  %12315 = vmatprep.mubr.bf16.mxu0 %v11339
  %12316 = vmatmul.mubr.bf16.gmra.mxu0 %v11508
  %v12317 = vpop.f32.mrf.mxu0
  %v12318 = vadd.f32 %v12108, %v12317
  %v12319 = vpop.f32.mrf.mxu0
  %v12320 = vpop.f32.mrf.mxu0
  %v12321 = vadd.f32 %v12111, %v12320
  %v12322 = vpop.f32.mrf.mxu0
  %12323 = vmatprep.mubr.bf16.mxu0 %v11343
  %12324 = vmatmul.mubr.bf16.gmra.mxu0 %v11509
  %v12325 = vpop.f32.mrf.mxu0
  %v12326 = vadd.f32 %v12116, %v12325
  %v12327 = vpop.f32.mrf.mxu0
  %v12328 = vpop.f32.mrf.mxu0
  %v12329 = vadd.f32 %v12119, %v12328
  %v12330 = vpop.f32.mrf.mxu0
  %12331 = vmatprep.mubr.bf16.mxu0 %v11347
  %12332 = vmatmul.mubr.bf16.gmra.mxu0 %v11510
  %v12333 = vpop.f32.mrf.mxu0
  %v12334 = vadd.f32 %v12124, %v12333
  %v12335 = vpop.f32.mrf.mxu0
  %v12336 = vpop.f32.mrf.mxu0
  %v12337 = vpop.f32.mrf.mxu0
  %12338 = vmatprep.mubr.bf16.mxu0 %v11351
  %12339 = vmatmul.mubr.bf16.gmra.mxu0 %v11511
  %v12340 = vpop.f32.mrf.mxu0
  %v12341 = vadd.f32 %v12131, %v12340
  %v12342 = vpop.f32.mrf.mxu0
  %v12343 = vpop.f32.mrf.mxu0
  %v12344 = vadd.f32 %v12134, %v12343
  %v12345 = vpop.f32.mrf.mxu0
  %12346 = vmatprep.mubr.bf16.mxu0 %v11355
  %12347 = vmatmul.mubr.bf16.gmra.mxu0 %v11512
  %v12348 = vpop.f32.mrf.mxu0
  %v12349 = vadd.f32 %v12139, %v12348
  %v12350 = vpop.f32.mrf.mxu0
  %v12351 = vpop.f32.mrf.mxu0
  %v12352 = vadd.f32 %v12142, %v12351
  %v12353 = vpop.f32.mrf.mxu0
  %12354 = vmatprep.mubr.bf16.mxu0 %v11359
  %12355 = vmatmul.mubr.bf16.gmra.mxu0 %v11513
  %v12356 = vpop.f32.mrf.mxu0
  %v12357 = vadd.f32 %v12147, %v12356
  %v12358 = vpop.f32.mrf.mxu0
  %v12359 = vpop.f32.mrf.mxu0
  %v12360 = vpop.f32.mrf.mxu0
  %12361 = vmatprep.mubr.bf16.mxu0 %v11363
  %12362 = vmatmul.mubr.bf16.gmra.mxu0 %v11514
  %v12363 = vpop.f32.mrf.mxu0
  %v12364 = vadd.f32 %v12154, %v12363
  %v12365 = vpop.f32.mrf.mxu0
  %v12366 = vpop.f32.mrf.mxu0
  %v12367 = vadd.f32 %v12157, %v12366
  %v12368 = vpop.f32.mrf.mxu0
  %12369 = vmatprep.mubr.bf16.mxu0 %v11367
  %12370 = vmatmul.mubr.bf16.gmra.mxu0 %v11515
  %v12371 = vpop.f32.mrf.mxu0
  %v12372 = vadd.f32 %v12162, %v12371
  %v12373 = vpop.f32.mrf.mxu0
  %v12374 = vpop.f32.mrf.mxu0
  %v12375 = vadd.f32 %v12165, %v12374
  %v12376 = vpop.f32.mrf.mxu0
  %12377 = vmatprep.mubr.bf16.mxu0 %v11371
  %12378 = vmatmul.mubr.bf16.gmra.mxu0 %v11516
  %v12379 = vpop.f32.mrf.mxu0
  %v12380 = vadd.f32 %v12170, %v12379
  %v12381 = vpop.f32.mrf.mxu0
  %v12382 = vpop.f32.mrf.mxu0
  %v12383 = vpop.f32.mrf.mxu0
  %12384 = vmatprep.mubr.bf16.mxu0 %v11375
  %12385 = vmatmul.mubr.bf16.gmra.mxu0 %v11517
  %v12386 = vpop.f32.mrf.mxu0
  %v12387 = vadd.f32 %v12177, %v12386
  %v12388 = vpop.f32.mrf.mxu0
  %v12389 = vpop.f32.mrf.mxu0
  %v12390 = vadd.f32 %v12180, %v12389
  %v12391 = vpop.f32.mrf.mxu0
  %12392 = vmatprep.mubr.bf16.mxu0 %v11379
  %12393 = vmatmul.mubr.bf16.gmra.mxu0 %v11518
  %v12394 = vpop.f32.mrf.mxu0
  %v12395 = vadd.f32 %v12185, %v12394
  %v12396 = vpop.f32.mrf.mxu0
  %v12397 = vpop.f32.mrf.mxu0
  %v12398 = vadd.f32 %v12188, %v12397
  %v12399 = vpop.f32.mrf.mxu0
  %12400 = vdwg.mxu0
  %12401 = vmatprep.subr.bf16.mxu0 0
  %12402 = vmatpush1.bf16.msra.mxu0 0
  %12403 = vmatprep.subr.bf16.mxu0 0
  %12404 = vmatpush1.bf16.msra.mxu0 0
  %12405 = vmatprep.subr.bf16.mxu0 0
  %12406 = vmatpush1.bf16.msra.mxu0 0
  %12407 = vmatprep.subr.bf16.mxu0 0
  %12408 = vmatpush1.bf16.msra.mxu0 0
  %12409 = vmatprep.subr.bf16.mxu0 0
  %12410 = vmatpush1.bf16.msra.mxu0 %v11892
  %12411 = vmatprep.subr.bf16.mxu0 0
  %12412 = vmatpush1.bf16.msra.mxu0 %v11891
  %12413 = vmatprep.subr.bf16.mxu0 0
  %12414 = vmatpush1.bf16.msra.mxu0 %v11890
  %12415 = vmatprep.subr.bf16.mxu0 0
  %12416 = vmatpush1.bf16.msra.mxu0 %v11889
  %12417 = vmatprep.subr.bf16.mxu0 0
  %12418 = vmatpush2.bf16.msra.mxu0 0
  %12419 = vmatprep.subr.bf16.mxu0 0
  %12420 = vmatpush2.bf16.msra.mxu0 0
  %12421 = vmatprep.subr.bf16.mxu0 0
  %12422 = vmatpush2.bf16.msra.mxu0 0
  %12423 = vmatprep.subr.bf16.mxu0 0
  %12424 = vmatpush2.bf16.msra.mxu0 0
  %12425 = vmatprep.subr.bf16.mxu0 0
  %12426 = vmatpush2.bf16.msra.mxu0 0
  %12427 = vmatprep.subr.bf16.mxu0 0
  %12428 = vmatpush2.bf16.msra.mxu0 0
  %12429 = vmatprep.subr.bf16.mxu0 0
  %12430 = vmatpush2.bf16.msra.mxu0 0
  %12431 = vmatprep.subr.bf16.mxu0 0
  %12432 = vmatpush2.bf16.msra.mxu0 0
  %12433 = vmatprep.mubr.bf16.mxu0 0
  %12434 = vmatmul.mubr.bf16.gmra.mxu0 %v11929
  %v12435 = vpop.f32.mrf.mxu0
  %v12436 = vadd.f32 %v12226, %v12435
  %v12437 = vpop.f32.mrf.mxu0
  %v12438 = vpop.f32.mrf.mxu0
  %v12439 = vadd.f32 %v12229, %v12438
  %v12440 = vpop.f32.mrf.mxu0
  %12441 = vmatprep.mubr.bf16.mxu0 0
  %12442 = vmatmul.mubr.bf16.gmra.mxu0 %v11931
  %v12443 = vpop.f32.mrf.mxu0
  %v12444 = vadd.f32 %v12234, %v12443
  %v12445 = vpop.f32.mrf.mxu0
  %v12446 = vpop.f32.mrf.mxu0
  %v12447 = vadd.f32 %v12237, %v12446
  %v12448 = vpop.f32.mrf.mxu0
  %12449 = vmatprep.mubr.bf16.mxu0 0
  %12450 = vmatmul.mubr.bf16.gmra.mxu0 %v11933
  %v12451 = vpop.f32.mrf.mxu0
  %v12452 = vadd.f32 %v12242, %v12451
  %v12453 = vpop.f32.mrf.mxu0
  %v12454 = vpop.f32.mrf.mxu0
  %v12455 = vpop.f32.mrf.mxu0
  %12456 = vmatprep.mubr.bf16.mxu0 0
  %12457 = vmatmul.mubr.bf16.gmra.mxu0 %v11935
  %v12458 = vpop.f32.mrf.mxu0
  %v12459 = vadd.f32 %v12249, %v12458
  %v12460 = vpop.f32.mrf.mxu0
  %v12461 = vpop.f32.mrf.mxu0
  %v12462 = vadd.f32 %v12252, %v12461
  %v12463 = vpop.f32.mrf.mxu0
  %12464 = vmatprep.mubr.bf16.mxu0 0
  %12465 = vmatmul.mubr.bf16.gmra.mxu0 %v11937
  %v12466 = vpop.f32.mrf.mxu0
  %v12467 = vadd.f32 %v12257, %v12466
  %v12468 = vpop.f32.mrf.mxu0
  %v12469 = vpop.f32.mrf.mxu0
  %v12470 = vadd.f32 %v12260, %v12469
  %v12471 = vpop.f32.mrf.mxu0
  %12472 = vmatprep.mubr.bf16.mxu0 0
  %12473 = vmatmul.mubr.bf16.gmra.mxu0 %v11939
  %v12474 = vpop.f32.mrf.mxu0
  %v12475 = vadd.f32 %v12265, %v12474
  %v12476 = vpop.f32.mrf.mxu0
  %v12477 = vpop.f32.mrf.mxu0
  %v12478 = vpop.f32.mrf.mxu0
  %12479 = vmatprep.mubr.bf16.mxu0 0
  %12480 = vmatmul.mubr.bf16.gmra.mxu0 %v11941
  %v12481 = vpop.f32.mrf.mxu0
  %v12482 = vadd.f32 %v12272, %v12481
  %v12483 = vpop.f32.mrf.mxu0
  %v12484 = vpop.f32.mrf.mxu0
  %v12485 = vadd.f32 %v12275, %v12484
  %v12486 = vpop.f32.mrf.mxu0
  %12487 = vmatprep.mubr.bf16.mxu0 0
  %12488 = vmatmul.mubr.bf16.gmra.mxu0 %v11943
  %v12489 = vpop.f32.mrf.mxu0
  %v12490 = vadd.f32 %v12280, %v12489
  %v12491 = vpop.f32.mrf.mxu0
  %v12492 = vpop.f32.mrf.mxu0
  %v12493 = vadd.f32 %v12283, %v12492
  %v12494 = vpop.f32.mrf.mxu0
  %12495 = vmatprep.mubr.bf16.mxu0 0
  %12496 = vmatmul.mubr.bf16.gmra.mxu0 %v11945
  %v12497 = vpop.f32.mrf.mxu0
  %v12498 = vadd.f32 %v12288, %v12497
  %v12499 = vpop.f32.mrf.mxu0
  %v12500 = vpop.f32.mrf.mxu0
  %v12501 = vpop.f32.mrf.mxu0
  %12502 = vmatprep.mubr.bf16.mxu0 0
  %12503 = vmatmul.mubr.bf16.gmra.mxu0 %v11947
  %v12504 = vpop.f32.mrf.mxu0
  %v12505 = vadd.f32 %v12295, %v12504
  %v12506 = vpop.f32.mrf.mxu0
  %v12507 = vpop.f32.mrf.mxu0
  %v12508 = vadd.f32 %v12298, %v12507
  %v12509 = vpop.f32.mrf.mxu0
  %12510 = vmatprep.mubr.bf16.mxu0 0
  %12511 = vmatmul.mubr.bf16.gmra.mxu0 %v11949
  %v12512 = vpop.f32.mrf.mxu0
  %v12513 = vadd.f32 %v12303, %v12512
  %v12514 = vpop.f32.mrf.mxu0
  %v12515 = vpop.f32.mrf.mxu0
  %v12516 = vadd.f32 %v12306, %v12515
  %v12517 = vpop.f32.mrf.mxu0
  %12518 = vmatprep.mubr.bf16.mxu0 0
  %12519 = vmatmul.mubr.bf16.gmra.mxu0 %v11951
  %v12520 = vpop.f32.mrf.mxu0
  %v12521 = vadd.f32 %v12311, %v12520
  %v12522 = vpop.f32.mrf.mxu0
  %v12523 = vpop.f32.mrf.mxu0
  %v12524 = vpop.f32.mrf.mxu0
  %12525 = vmatprep.mubr.bf16.mxu0 0
  %12526 = vmatmul.mubr.bf16.gmra.mxu0 %v11953
  %v12527 = vpop.f32.mrf.mxu0
  %v12528 = vadd.f32 %v12318, %v12527
  %v12529 = vpop.f32.mrf.mxu0
  %v12530 = vpop.f32.mrf.mxu0
  %v12531 = vadd.f32 %v12321, %v12530
  %v12532 = vpop.f32.mrf.mxu0
  %12533 = vmatprep.mubr.bf16.mxu0 0
  %12534 = vmatmul.mubr.bf16.gmra.mxu0 %v11955
  %v12535 = vpop.f32.mrf.mxu0
  %v12536 = vadd.f32 %v12326, %v12535
  %v12537 = vpop.f32.mrf.mxu0
  %v12538 = vpop.f32.mrf.mxu0
  %v12539 = vadd.f32 %v12329, %v12538
  %v12540 = vpop.f32.mrf.mxu0
  %12541 = vmatprep.mubr.bf16.mxu0 0
  %12542 = vmatmul.mubr.bf16.gmra.mxu0 %v11957
  %v12543 = vpop.f32.mrf.mxu0
  %v12544 = vadd.f32 %v12334, %v12543
  %v12545 = vpop.f32.mrf.mxu0
  %v12546 = vpop.f32.mrf.mxu0
  %v12547 = vpop.f32.mrf.mxu0
  %12548 = vmatprep.mubr.bf16.mxu0 0
  %12549 = vmatmul.mubr.bf16.gmra.mxu0 %v11959
  %v12550 = vpop.f32.mrf.mxu0
  %v12551 = vadd.f32 %v12341, %v12550
  %v12552 = vpop.f32.mrf.mxu0
  %v12553 = vpop.f32.mrf.mxu0
  %v12554 = vadd.f32 %v12344, %v12553
  %v12555 = vpop.f32.mrf.mxu0
  %12556 = vmatprep.mubr.bf16.mxu0 0
  %12557 = vmatmul.mubr.bf16.gmra.mxu0 %v11961
  %v12558 = vpop.f32.mrf.mxu0
  %v12559 = vadd.f32 %v12349, %v12558
  %v12560 = vpop.f32.mrf.mxu0
  %v12561 = vpop.f32.mrf.mxu0
  %v12562 = vadd.f32 %v12352, %v12561
  %v12563 = vpop.f32.mrf.mxu0
  %12564 = vmatprep.mubr.bf16.mxu0 0
  %12565 = vmatmul.mubr.bf16.gmra.mxu0 %v11964
  %v12566 = vpop.f32.mrf.mxu0
  %v12567 = vadd.f32 %v12357, %v12566
  %v12568 = vpop.f32.mrf.mxu0
  %v12569 = vpop.f32.mrf.mxu0
  %v12570 = vpop.f32.mrf.mxu0
  %12571 = vmatprep.mubr.bf16.mxu0 0
  %12572 = vmatmul.mubr.bf16.gmra.mxu0 %v11967
  %v12573 = vpop.f32.mrf.mxu0
  %v12574 = vadd.f32 %v12364, %v12573
  %v12575 = vpop.f32.mrf.mxu0
  %v12576 = vpop.f32.mrf.mxu0
  %v12577 = vadd.f32 %v12367, %v12576
  %v12578 = vpop.f32.mrf.mxu0
  %12579 = vmatprep.mubr.bf16.mxu0 0
  %12580 = vmatmul.mubr.bf16.gmra.mxu0 %v11970
  %v12581 = vpop.f32.mrf.mxu0
  %v12582 = vadd.f32 %v12372, %v12581
  %v12583 = vpop.f32.mrf.mxu0
  %v12584 = vpop.f32.mrf.mxu0
  %v12585 = vadd.f32 %v12375, %v12584
  %v12586 = vpop.f32.mrf.mxu0
  %12587 = vmatprep.mubr.bf16.mxu0 0
  %12588 = vmatmul.mubr.bf16.gmra.mxu0 %v11973
  %v12589 = vpop.f32.mrf.mxu0
  %v12590 = vadd.f32 %v12380, %v12589
  %v12591 = vpop.f32.mrf.mxu0
  %v12592 = vpop.f32.mrf.mxu0
  %v12593 = vpop.f32.mrf.mxu0
  %12594 = vmatprep.mubr.bf16.mxu0 0
  %12595 = vmatmul.mubr.bf16.gmra.mxu0 %v11976
  %v12596 = vpop.f32.mrf.mxu0
  %v12597 = vadd.f32 %v12387, %v12596
  %v12598 = vpop.f32.mrf.mxu0
  %v12599 = vpop.f32.mrf.mxu0
  %v12600 = vadd.f32 %v12390, %v12599
  %v12601 = vpop.f32.mrf.mxu0
  %12602 = vmatprep.mubr.bf16.mxu0 0
  %12603 = vmatmul.mubr.bf16.gmra.mxu0 %v11979
  %v12604 = vpop.f32.mrf.mxu0
  %v12605 = vadd.f32 %v12395, %v12604
  %v12606 = vpop.f32.mrf.mxu0
  %v12607 = vpop.f32.mrf.mxu0
  %v12608 = vadd.f32 %v12398, %v12607
  %v12609 = vpop.f32.mrf.mxu0
  %12610 = vdwg.mxu0
  %vm12611 = vcmp.ge.f32.partialorder %v12436, 0.0
  %vm12612 = vcmp.ge.f32.partialorder %v12439, 0.0
  %vm12613 = vcmp.ge.f32.partialorder %v12444, 0.0
  %vm12614 = vcmp.ge.f32.partialorder %v12447, 0.0
  %vm12615 = vcmp.ge.f32.partialorder %v12452, 0.0
  %vm12616 = vcmp.ge.f32.partialorder %v12459, 0.0
  %vm12617 = vcmp.ge.f32.partialorder %v12462, 0.0
  %vm12618 = vcmp.ge.f32.partialorder %v12467, 0.0
  %vm12619 = vcmp.ge.f32.partialorder %v12470, 0.0
  %vm12620 = vcmp.ge.f32.partialorder %v12475, 0.0
  %vm12621 = vcmp.ge.f32.partialorder %v12482, 0.0
  %vm12622 = vcmp.ge.f32.partialorder %v12485, 0.0
  %vm12623 = vcmp.ge.f32.partialorder %v12490, 0.0
  %vm12624 = vcmp.ge.f32.partialorder %v12493, 0.0
  %vm12625 = vcmp.ge.f32.partialorder %v12498, 0.0
  %vm12626 = vcmp.ge.f32.partialorder %v12505, 0.0
  %vm12627 = vcmp.ge.f32.partialorder %v12508, 0.0
  %vm12628 = vcmp.ge.f32.partialorder %v12513, 0.0
  %vm12629 = vcmp.ge.f32.partialorder %v12516, 0.0
  %vm12630 = vcmp.ge.f32.partialorder %v12521, 0.0
  %vm12631 = vcmp.ge.f32.partialorder %v12528, 0.0
  %vm12632 = vcmp.ge.f32.partialorder %v12531, 0.0
  %vm12633 = vcmp.ge.f32.partialorder %v12536, 0.0
  %vm12634 = vcmp.ge.f32.partialorder %v12539, 0.0
  %vm12635 = vcmp.ge.f32.partialorder %v12544, 0.0
  %vm12636 = vcmp.ge.f32.partialorder %v12551, 0.0
  %vm12637 = vcmp.ge.f32.partialorder %v12554, 0.0
  %vm12638 = vcmp.ge.f32.partialorder %v12559, 0.0
  %vm12639 = vcmp.ge.f32.partialorder %v12562, 0.0
  %vm12640 = vcmp.ge.f32.partialorder %v12567, 0.0
  %vm12641 = vcmp.ge.f32.partialorder %v12574, 0.0
  %vm12642 = vcmp.ge.f32.partialorder %v12577, 0.0
  %vm12643 = vcmp.ge.f32.partialorder %v12582, 0.0
  %vm12644 = vcmp.ge.f32.partialorder %v12585, 0.0
  %vm12645 = vcmp.ge.f32.partialorder %v12590, 0.0
  %vm12646 = vcmp.ge.f32.partialorder %v12597, 0.0
  %vm12647 = vcmp.ge.f32.partialorder %v12600, 0.0
  %vm12648 = vcmp.ge.f32.partialorder %v12605, 0.0
  %vm12649 = vcmp.ge.f32.partialorder %v12608, 0.0
  %v12650 = vmul.f32 %v12436, 0.01
  %v12651 = vmul.f32 %v12439, 0.01
  %v12652 = vmul.f32 %v12444, 0.01
  %v12653 = vmul.f32 %v12447, 0.01
  %v12654 = vmul.f32 %v12452, 0.01
  %v12655 = vmul.f32 %v12459, 0.01
  %v12656 = vmul.f32 %v12462, 0.01
  %v12657 = vmul.f32 %v12467, 0.01
  %v12658 = vmul.f32 %v12470, 0.01
  %v12659 = vmul.f32 %v12475, 0.01
  %v12660 = vmul.f32 %v12482, 0.01
  %v12661 = vmul.f32 %v12485, 0.01
  %v12662 = vmul.f32 %v12490, 0.01
  %v12663 = vmul.f32 %v12493, 0.01
  %v12664 = vmul.f32 %v12498, 0.01
  %v12665 = vmul.f32 %v12505, 0.01
  %v12666 = vmul.f32 %v12508, 0.01
  %v12667 = vmul.f32 %v12513, 0.01
  %v12668 = vmul.f32 %v12516, 0.01
  %v12669 = vmul.f32 %v12521, 0.01
  %v12670 = vmul.f32 %v12528, 0.01
  %v12671 = vmul.f32 %v12531, 0.01
  %v12672 = vmul.f32 %v12536, 0.01
  %v12673 = vmul.f32 %v12539, 0.01
  %v12674 = vmul.f32 %v12544, 0.01
  %v12675 = vmul.f32 %v12551, 0.01
  %v12676 = vmul.f32 %v12554, 0.01
  %v12677 = vmul.f32 %v12559, 0.01
  %v12678 = vmul.f32 %v12562, 0.01
  %v12679 = vmul.f32 %v12567, 0.01
  %v12680 = vmul.f32 %v12574, 0.01
  %v12681 = vmul.f32 %v12577, 0.01
  %v12682 = vmul.f32 %v12582, 0.01
  %v12683 = vmul.f32 %v12585, 0.01
  %v12684 = vmul.f32 %v12590, 0.01
  %v12685 = vmul.f32 %v12597, 0.01
  %v12686 = vmul.f32 %v12600, 0.01
  %v12687 = vmul.f32 %v12605, 0.01
  %v12688 = vmul.f32 %v12608, 0.01
  %v12689 = vsel %vm12611, %v12436, %v12650
  %v12690 = vsel %vm12612, %v12439, %v12651
  %v12691 = vsel %vm12613, %v12444, %v12652
  %v12692 = vsel %vm12614, %v12447, %v12653
  %v12693 = vsel %vm12615, %v12452, %v12654
  %v12694 = vsel %vm12616, %v12459, %v12655
  %v12695 = vsel %vm12617, %v12462, %v12656
  %v12696 = vsel %vm12618, %v12467, %v12657
  %v12697 = vsel %vm12619, %v12470, %v12658
  %v12698 = vsel %vm12620, %v12475, %v12659
  %v12699 = vsel %vm12621, %v12482, %v12660
  %v12700 = vsel %vm12622, %v12485, %v12661
  %v12701 = vsel %vm12623, %v12490, %v12662
  %v12702 = vsel %vm12624, %v12493, %v12663
  %v12703 = vsel %vm12625, %v12498, %v12664
  %v12704 = vsel %vm12626, %v12505, %v12665
  %v12705 = vsel %vm12627, %v12508, %v12666
  %v12706 = vsel %vm12628, %v12513, %v12667
  %v12707 = vsel %vm12629, %v12516, %v12668
  %v12708 = vsel %vm12630, %v12521, %v12669
  %v12709 = vsel %vm12631, %v12528, %v12670
  %v12710 = vsel %vm12632, %v12531, %v12671
  %v12711 = vsel %vm12633, %v12536, %v12672
  %v12712 = vsel %vm12634, %v12539, %v12673
  %v12713 = vsel %vm12635, %v12544, %v12674
  %v12714 = vsel %vm12636, %v12551, %v12675
  %v12715 = vsel %vm12637, %v12554, %v12676
  %v12716 = vsel %vm12638, %v12559, %v12677
  %v12717 = vsel %vm12639, %v12562, %v12678
  %v12718 = vsel %vm12640, %v12567, %v12679
  %v12719 = vsel %vm12641, %v12574, %v12680
  %v12720 = vsel %vm12642, %v12577, %v12681
  %v12721 = vsel %vm12643, %v12582, %v12682
  %v12722 = vsel %vm12644, %v12585, %v12683
  %v12723 = vsel %vm12645, %v12590, %v12684
  %v12724 = vsel %vm12646, %v12597, %v12685
  %v12725 = vsel %vm12647, %v12600, %v12686
  %v12726 = vsel %vm12648, %v12605, %v12687
  %v12727 = vsel %vm12649, %v12608, %v12688
  %vm12767 = vcmask 1043456
  %v12768 = vrot.slane %v12689, 4
  %v12769 = vrot.slane %v12690, 4
  %v12770 = vsel %vm12767, %v12768, %v12769
  %v12771 = vrot.slane %v12691, 4
  %v12772 = vsel %vm12767, %v12769, %v12771
  %v12773 = vrot.slane %v12692, 4
  %v12774 = vsel %vm12767, %v12771, %v12773
  %v12775 = vrot.slane %v12693, 4
  %v12776 = vsel %vm12767, %v12773, %v12775
  %v12777 = vrot.slane %v12694, 4
  %v12778 = vrot.slane %v12695, 4
  %v12779 = vsel %vm12767, %v12777, %v12778
  %v12780 = vrot.slane %v12696, 4
  %v12781 = vsel %vm12767, %v12778, %v12780
  %v12782 = vrot.slane %v12697, 4
  %v12783 = vsel %vm12767, %v12780, %v12782
  %v12784 = vrot.slane %v12698, 4
  %v12785 = vsel %vm12767, %v12782, %v12784
  %v12786 = vrot.slane %v12699, 4
  %v12787 = vrot.slane %v12700, 4
  %v12788 = vsel %vm12767, %v12786, %v12787
  %v12789 = vrot.slane %v12701, 4
  %v12790 = vsel %vm12767, %v12787, %v12789
  %v12791 = vrot.slane %v12702, 4
  %v12792 = vsel %vm12767, %v12789, %v12791
  %v12793 = vrot.slane %v12703, 4
  %v12794 = vsel %vm12767, %v12791, %v12793
  %v12795 = vrot.slane %v12704, 4
  %v12796 = vrot.slane %v12705, 4
  %v12797 = vsel %vm12767, %v12795, %v12796
  %v12798 = vrot.slane %v12706, 4
  %v12799 = vsel %vm12767, %v12796, %v12798
  %v12800 = vrot.slane %v12707, 4
  %v12801 = vsel %vm12767, %v12798, %v12800
  %v12802 = vrot.slane %v12708, 4
  %v12803 = vsel %vm12767, %v12800, %v12802
  %v12804 = vrot.slane %v12709, 4
  %v12805 = vrot.slane %v12710, 4
  %v12806 = vsel %vm12767, %v12804, %v12805
  %v12807 = vrot.slane %v12711, 4
  %v12808 = vsel %vm12767, %v12805, %v12807
  %v12809 = vrot.slane %v12712, 4
  %v12810 = vsel %vm12767, %v12807, %v12809
  %v12811 = vrot.slane %v12713, 4
  %v12812 = vsel %vm12767, %v12809, %v12811
  %v12813 = vrot.slane %v12714, 4
  %v12814 = vrot.slane %v12715, 4
  %v12815 = vsel %vm12767, %v12813, %v12814
  %v12816 = vrot.slane %v12716, 4
  %v12817 = vsel %vm12767, %v12814, %v12816
  %v12818 = vrot.slane %v12717, 4
  %v12819 = vsel %vm12767, %v12816, %v12818
  %v12820 = vrot.slane %v12718, 4
  %v12821 = vsel %vm12767, %v12818, %v12820
  %v12822 = vrot.slane %v12719, 4
  %v12823 = vrot.slane %v12720, 4
  %v12824 = vsel %vm12767, %v12822, %v12823
  %v12825 = vrot.slane %v12721, 4
  %v12826 = vsel %vm12767, %v12823, %v12825
  %v12827 = vrot.slane %v12722, 4
  %v12828 = vsel %vm12767, %v12825, %v12827
  %v12829 = vrot.slane %v12723, 4
  %v12830 = vsel %vm12767, %v12827, %v12829
  %v12831 = vrot.slane %v12724, 4
  %v12832 = vrot.slane %v12725, 4
  %v12833 = vsel %vm12767, %v12831, %v12832
  %v12834 = vrot.slane %v12726, 4
  %v12835 = vsel %vm12767, %v12832, %v12834
  %v12836 = vrot.slane %v12727, 4
  %v12837 = vsel %vm12767, %v12834, %v12836
  %v12870 = vmax.f32 %v12689, %v12770
  %v12871 = vmax.f32 %v12690, %v12772
  %v12872 = vmax.f32 %v12691, %v12774
  %v12873 = vmax.f32 %v12692, %v12776
  %v12874 = vmax.f32 %v12694, %v12779
  %v12875 = vmax.f32 %v12695, %v12781
  %v12876 = vmax.f32 %v12696, %v12783
  %v12877 = vmax.f32 %v12697, %v12785
  %v12878 = vmax.f32 %v12699, %v12788
  %v12879 = vmax.f32 %v12700, %v12790
  %v12880 = vmax.f32 %v12701, %v12792
  %v12881 = vmax.f32 %v12702, %v12794
  %v12882 = vmax.f32 %v12704, %v12797
  %v12883 = vmax.f32 %v12705, %v12799
  %v12884 = vmax.f32 %v12706, %v12801
  %v12885 = vmax.f32 %v12707, %v12803
  %v12886 = vmax.f32 %v12709, %v12806
  %v12887 = vmax.f32 %v12710, %v12808
  %v12888 = vmax.f32 %v12711, %v12810
  %v12889 = vmax.f32 %v12712, %v12812
  %v12890 = vmax.f32 %v12714, %v12815
  %v12891 = vmax.f32 %v12715, %v12817
  %v12892 = vmax.f32 %v12716, %v12819
  %v12893 = vmax.f32 %v12717, %v12821
  %v12894 = vmax.f32 %v12719, %v12824
  %v12895 = vmax.f32 %v12720, %v12826
  %v12896 = vmax.f32 %v12721, %v12828
  %v12897 = vmax.f32 %v12722, %v12830
  %v12898 = vmax.f32 %v12724, %v12833
  %v12899 = vmax.f32 %v12725, %v12835
  %v12900 = vmax.f32 %v12726, %v12837
  %v12901 = vmax.f32 %v12727, %v12836
  %v12902 = vmax.f32 %v12870, %v12874
  %v12903 = vmax.f32 %v12871, %v12875
  %v12904 = vmax.f32 %v12872, %v12876
  %v12905 = vmax.f32 %v12873, %v12877
  %v12906 = vmax.f32 %v12878, %v12882
  %v12907 = vmax.f32 %v12879, %v12883
  %v12908 = vmax.f32 %v12880, %v12884
  %v12909 = vmax.f32 %v12881, %v12885
  %v12910 = vmax.f32 %v12886, %v12890
  %v12911 = vmax.f32 %v12887, %v12891
  %v12912 = vmax.f32 %v12888, %v12892
  %v12913 = vmax.f32 %v12889, %v12893
  %v12914 = vmax.f32 %v12894, %v12898
  %v12915 = vmax.f32 %v12895, %v12899
  %v12916 = vmax.f32 %v12896, %v12900
  %v12917 = vmax.f32 %v12897, %v12901
  %v12918 = vpack.c.bf16 %v12903, %v12902
  %v12919 = vpack.c.bf16 %v12905, %v12904
  %v12920 = vpack.c.bf16 %v12907, %v12906
  %v12921 = vpack.c.bf16 %v12909, %v12908
  %v12922 = vpack.c.bf16 %v12911, %v12910
  %v12923 = vpack.c.bf16 %v12913, %v12912
  %v12924 = vpack.c.bf16 %v12915, %v12914
  %v12925 = vpack.c.bf16 %v12917, %v12916
  %v12928 = vunpack.c.l.b16 %v12918
  %v12929 = vunpack.c.h.b16 %v12918
  %v12930 = vunpack.c.l.b16 %v12919
  %v12931 = vunpack.c.h.b16 %v12919
  %v12932 = vpack.c.b16 %v12928, %v12928
  %v12933 = vpack.c.b16 %v12929, %v12929
  %v12934 = vpack.c.b16 %v12930, %v12930
  %v12935 = vpack.c.b16 %v12931, %v12931
  %12940 = vst [vmem:[#allocation4] sm:$0xf] %v12932
  %12941 = vst [vmem:[#allocation4 + $0x4] sm:$0xf] %v12933
  %12942 = vst [vmem:[#allocation4 + $0x8] sm:$0xf] %v12934
  %vm12943 = vcmask 1040384
  %vm12944 = vsmask.f32 256
  %vm12945 = vmand %vm12943, %vm12944
  %v12946 = vld [vmem:[#allocation4 + $0xc] sm:$0x1]
  %v12947 = vsel %vm12945, %v12935, %v12946
  %12948 = vst [vmem:[#allocation4 + $0xc] sm:$0x1] %v12947
  %v12951 = vunpack.c.l.b16 %v12920
  %v12952 = vunpack.c.h.b16 %v12920
  %v12953 = vunpack.c.l.b16 %v12921
  %v12954 = vunpack.c.h.b16 %v12921
  %v12955 = vpack.c.b16 %v12951, %v12951
  %v12956 = vpack.c.b16 %v12952, %v12952
  %v12957 = vpack.c.b16 %v12953, %v12953
  %v12958 = vpack.c.b16 %v12954, %v12954
  %12963 = vst [vmem:[#allocation4 + $0x18] sm:$0xf] %v12955
  %12964 = vst [vmem:[#allocation4 + $0x1c] sm:$0xf] %v12956
  %12965 = vst [vmem:[#allocation4 + $0x20] sm:$0xf] %v12957
  %v12966 = vld [vmem:[#allocation4 + $0x24] sm:$0x1]
  %v12967 = vsel %vm12945, %v12958, %v12966
  %12968 = vst [vmem:[#allocation4 + $0x24] sm:$0x1] %v12967
  %v12971 = vunpack.c.l.b16 %v12922
  %v12972 = vunpack.c.h.b16 %v12922
  %v12973 = vunpack.c.l.b16 %v12923
  %v12974 = vunpack.c.h.b16 %v12923
  %v12975 = vpack.c.b16 %v12971, %v12971
  %v12976 = vpack.c.b16 %v12972, %v12972
  %v12977 = vpack.c.b16 %v12973, %v12973
  %v12978 = vpack.c.b16 %v12974, %v12974
  %12983 = vst [vmem:[#allocation4 + $0x30] sm:$0xf] %v12975
  %12984 = vst [vmem:[#allocation4 + $0x34] sm:$0xf] %v12976
  %12985 = vst [vmem:[#allocation4 + $0x38] sm:$0xf] %v12977
  %v12986 = vld [vmem:[#allocation4 + $0x3c] sm:$0x1]
  %v12987 = vsel %vm12945, %v12978, %v12986
  %12988 = vst [vmem:[#allocation4 + $0x3c] sm:$0x1] %v12987
  %v12991 = vunpack.c.l.b16 %v12924
  %v12992 = vunpack.c.h.b16 %v12924
  %v12993 = vunpack.c.l.b16 %v12925
  %v12994 = vunpack.c.h.b16 %v12925
  %v12995 = vpack.c.b16 %v12991, %v12991
  %v12996 = vpack.c.b16 %v12992, %v12992
  %v12997 = vpack.c.b16 %v12993, %v12993
  %v12998 = vpack.c.b16 %v12994, %v12994
  %13003 = vst [vmem:[#allocation4 + $0x48] sm:$0xf] %v12995
  %13004 = vst [vmem:[#allocation4 + $0x4c] sm:$0xf] %v12996
  %13005 = vst [vmem:[#allocation4 + $0x50] sm:$0xf] %v12997
  %v13006 = vld [vmem:[#allocation4 + $0x54] sm:$0x1]
  %v13007 = vsel %vm12945, %v12998, %v13006
  %13008 = vst [vmem:[#allocation4 + $0x54] sm:$0x1] %v13007
  %v13009 = vld [vmem:[#allocation4] sm:$0xf]
  %v13010 = vld [vmem:[#allocation4 + $0x4] sm:$0xf]
  %v13011 = vld [vmem:[#allocation4 + $0x8] sm:$0xf]
  %v13012 = vld [vmem:[#allocation4 + $0xc] sm:$0xf]
  %v13013 = vld [vmem:[#allocation4 + $0x10] sm:$0xf]
  %v13014 = vld [vmem:[#allocation4 + $0x14] sm:$0xf]
  %v13015 = vld [vmem:[#allocation4 + $0x18] sm:$0xf]
  %v13016 = vld [vmem:[#allocation4 + $0x1c] sm:$0xf]
  %v13017 = vld [vmem:[#allocation4 + $0x20] sm:$0xf]
  %v13018 = vld [vmem:[#allocation4 + $0x24] sm:$0xf]
  %v13019 = vld [vmem:[#allocation4 + $0x28] sm:$0xf]
  %v13020 = vld [vmem:[#allocation4 + $0x2c] sm:$0xf]
  %v13021 = vld [vmem:[#allocation4 + $0x30] sm:$0xf]
  %v13022 = vld [vmem:[#allocation4 + $0x34] sm:$0xf]
  %v13023 = vld [vmem:[#allocation4 + $0x38] sm:$0xf]
  %v13024 = vld [vmem:[#allocation4 + $0x3c] sm:$0xf]
  %v13025 = vld [vmem:[#allocation4 + $0x40] sm:$0xf]
  %v13026 = vld [vmem:[#allocation4 + $0x44] sm:$0xf]
  %v13027 = vld [vmem:[#allocation4 + $0x48] sm:$0xf]
  %v13028 = vld [vmem:[#allocation4 + $0x4c] sm:$0x1]
  %v13029 = vld [vmem:[#allocation4 + $0x4c] sm:$0xf]
  %v13030 = vld [vmem:[#allocation4 + $0x50] sm:$0x1]
  %v13031 = vld [vmem:[#allocation4 + $0x50] sm:$0xf]
  %v13032 = vld [vmem:[#allocation4 + $0x54] sm:$0x1]
  %v13053 = vunpack.c.l.b16 %v13009
  %v13054 = vunpack.c.l.b16 %v13010
  %v13055 = vunpack.c.l.b16 %v13011
  %v13056 = vunpack.c.l.b16 %v13012
  %v13057 = vunpack.c.l.b16 %v13013
  %v13058 = vunpack.c.l.b16 %v13014
  %v13059 = vunpack.c.l.b16 %v13015
  %v13060 = vunpack.c.l.b16 %v13016
  %v13061 = vunpack.c.l.b16 %v13017
  %v13062 = vunpack.c.l.b16 %v13018
  %v13063 = vunpack.c.l.b16 %v13019
  %v13064 = vunpack.c.l.b16 %v13020
  %v13065 = vunpack.c.l.b16 %v13021
  %v13066 = vunpack.c.l.b16 %v13022
  %v13067 = vunpack.c.l.b16 %v13023
  %v13068 = vunpack.c.l.b16 %v13024
  %v13069 = vunpack.c.l.b16 %v13025
  %v13070 = vunpack.c.l.b16 %v13026
  %v13071 = vunpack.c.l.b16 %v13027
  %v13072 = vunpack.c.l.b16 %v13028
  %v13073 = vpack.c.b16 %v13054, %v13053
  %v13074 = vpack.c.b16 %v13056, %v13055
  %v13075 = vpack.c.b16 %v13058, %v13057
  %v13076 = vpack.c.b16 %v13060, %v13059
  %v13077 = vpack.c.b16 %v13062, %v13061
  %v13078 = vpack.c.b16 %v13064, %v13063
  %v13079 = vpack.c.b16 %v13066, %v13065
  %v13080 = vpack.c.b16 %v13068, %v13067
  %v13081 = vpack.c.b16 %v13070, %v13069
  %v13082 = vpack.c.b16 %v13072, %v13071
  %v13095 = vunpack.c.l.b16 %v13029
  %v13096 = vunpack.c.l.b16 %v13030
  %v13097 = vpack.c.b16 %v13055, %v13054
  %v13098 = vpack.c.b16 %v13057, %v13056
  %v13099 = vpack.c.b16 %v13059, %v13058
  %v13100 = vpack.c.b16 %v13061, %v13060
  %v13101 = vpack.c.b16 %v13063, %v13062
  %v13102 = vpack.c.b16 %v13065, %v13064
  %v13103 = vpack.c.b16 %v13067, %v13066
  %v13104 = vpack.c.b16 %v13069, %v13068
  %v13105 = vpack.c.b16 %v13071, %v13070
  %v13106 = vpack.c.b16 %v13096, %v13095
  %v13119 = vunpack.c.l.b16 %v13031
  %v13120 = vunpack.c.l.b16 %v13032
  %v13121 = vpack.c.b16 %v13095, %v13071
  %v13122 = vpack.c.b16 %v13120, %v13119
  %v13125 = vld [vmem:[%s7] sm:$0xf]
  %v13126 = vld [vmem:[%s7 + $0x4] sm:$0xf]
  %v13127 = vld [vmem:[%s7 + $0x8] sm:$0xf]
  %v13128 = vld [vmem:[%s7 + $0xc] sm:$0xf]
  %v13129 = vld [vmem:[%s7 + $0x10] sm:$0xf]
  %v13130 = vld [vmem:[%s7 + $0x14] sm:$0xf]
  %v13131 = vld [vmem:[%s7 + $0x18] sm:$0xf]
  %v13132 = vld [vmem:[%s7 + $0x1c] sm:$0xf]
  %v13133 = vld [vmem:[%s7 + $0x20] sm:$0xf]
  %v13134 = vld [vmem:[%s7 + $0x24] sm:$0xf]
  %v13135 = vld [vmem:[%s7 + $0x28] sm:$0xf]
  %v13136 = vld [vmem:[%s7 + $0x2c] sm:$0xf]
  %v13137 = vld [vmem:[%s7 + $0x30] sm:$0xf]
  %v13138 = vld [vmem:[%s7 + $0x34] sm:$0xf]
  %v13139 = vld [vmem:[%s7 + $0x38] sm:$0xf]
  %v13140 = vld [vmem:[%s7 + $0x3c] sm:$0xf]
  %v13141 = vld [vmem:[%s7 + $0x40] sm:$0xf]
  %v13142 = vld [vmem:[%s7 + $0x44] sm:$0xf]
  %v13143 = vld [vmem:[%s7 + $0x48] sm:$0xf]
  %v13144 = vld [vmem:[%s7 + $0x4c] sm:$0xf]
  %v13145 = vld [vmem:[%s7 + $0x50] sm:$0xf]
  %v13146 = vld [vmem:[%s7 + $0x54] sm:$0xf]
  %v13147 = vld [vmem:[%s7 + $0x58] sm:$0xf]
  %v13148 = vld [vmem:[%s7 + $0x5c] sm:$0xf]
  %v13149 = vld [vmem:[%s7 + $0x60] sm:$0xf]
  %v13150 = vld [vmem:[%s7 + $0x64] sm:$0xf]
  %v13151 = vld [vmem:[%s7 + $0x68] sm:$0xf]
  %v13152 = vld [vmem:[%s7 + $0x6c] sm:$0xf]
  %v13153 = vld [vmem:[%s7 + $0x70] sm:$0xf]
  %v13154 = vld [vmem:[%s7 + $0x74] sm:$0xf]
  %v13155 = vld [vmem:[%s7 + $0x78] sm:$0xf]
  %v13156 = vld [vmem:[%s7 + $0x7c] sm:$0xf]
  %v13157 = vld [vmem:[%s7 + $0x80] sm:$0xf]
  %v13158 = vld [vmem:[%s7 + $0x84] sm:$0xf]
  %v13159 = vld [vmem:[%s7 + $0x88] sm:$0xf]
  %v13160 = vld [vmem:[%s7 + $0x8c] sm:$0xf]
  %v13161 = vld [vmem:[%s7 + $0x90] sm:$0xf]
  %v13162 = vld [vmem:[%s7 + $0x94] sm:$0xf]
  %v13163 = vld [vmem:[%s7 + $0x98] sm:$0xf]
  %v13164 = vld [vmem:[%s7 + $0x9c] sm:$0xf]
  %v13165 = vld [vmem:[%s7 + $0xa0] sm:$0xf]
  %v13166 = vld [vmem:[%s7 + $0xa4] sm:$0xf]
  %v13167 = vld [vmem:[%s7 + $0xa8] sm:$0xf]
  %v13168 = vld [vmem:[%s7 + $0xac] sm:$0xf]
  %v13169 = vld [vmem:[%s7 + $0xb0] sm:$0xf]
  %v13170 = vld [vmem:[%s7 + $0xb4] sm:$0xf]
  %v13171 = vld [vmem:[%s7 + $0xb8] sm:$0xf]
  %v13172 = vld [vmem:[%s7 + $0xbc] sm:$0xf]
  %v13173 = vld [vmem:[%s7 + $0xc0] sm:$0xf]
  %v13174 = vld [vmem:[%s7 + $0xc4] sm:$0xf]
  %v13175 = vld [vmem:[%s7 + $0xc8] sm:$0xf]
  %v13176 = vld [vmem:[%s7 + $0xcc] sm:$0xf]
  %v13177 = vld [vmem:[%s7 + $0xd0] sm:$0xf]
  %v13178 = vld [vmem:[%s7 + $0xd4] sm:$0xf]
  %v13179 = vld [vmem:[%s7 + $0xd8] sm:$0xf]
  %v13180 = vld [vmem:[%s7 + $0xdc] sm:$0xf]
  %v13181 = vld [vmem:[%s7 + $0xe0] sm:$0xf]
  %v13182 = vld [vmem:[%s7 + $0xe4] sm:$0xf]
  %v13183 = vld [vmem:[%s7 + $0xe8] sm:$0xf]
  %v13184 = vld [vmem:[%s7 + $0xec] sm:$0xf]
  %v13185 = vld [vmem:[%s7 + $0xf0] sm:$0xf]
  %v13186 = vld [vmem:[%s7 + $0xf4] sm:$0xf]
  %v13187 = vld [vmem:[%s7 + $0xf8] sm:$0xf]
  %v13188 = vld [vmem:[%s7 + $0xfc] sm:$0xf]
  %v13189 = vld [vmem:[%s7 + $0x100] sm:$0xf]
  %v13190 = vld [vmem:[%s7 + $0x104] sm:$0xf]
  %v13191 = vld [vmem:[%s7 + $0x108] sm:$0xf]
  %v13192 = vld [vmem:[%s7 + $0x10c] sm:$0xf]
  %v13193 = vld [vmem:[%s7 + $0x110] sm:$0xf]
  %v13194 = vld [vmem:[%s7 + $0x114] sm:$0xf]
  %v13195 = vld [vmem:[%s7 + $0x118] sm:$0xf]
  %v13196 = vld [vmem:[%s7 + $0x11c] sm:$0xf]
  %v13197 = vld [vmem:[%s7 + $0x120] sm:$0xf]
  %v13198 = vld [vmem:[%s7 + $0x124] sm:$0xf]
  %v13199 = vld [vmem:[%s7 + $0x128] sm:$0xf]
  %v13200 = vld [vmem:[%s7 + $0x12c] sm:$0xf]
  %v13201 = vld [vmem:[%s7 + $0x130] sm:$0xf]
  %v13202 = vld [vmem:[%s7 + $0x134] sm:$0xf]
  %v13203 = vld [vmem:[%s7 + $0x138] sm:$0xf]
  %v13204 = vld [vmem:[%s7 + $0x13c] sm:$0xf]
  %v13205 = vld [vmem:[%s7 + $0x140] sm:$0xf]
  %v13206 = vld [vmem:[%s7 + $0x144] sm:$0xf]
  %v13207 = vld [vmem:[%s7 + $0x148] sm:$0xf]
  %v13208 = vld [vmem:[%s7 + $0x14c] sm:$0xf]
  %v13209 = vld [vmem:[%s7 + $0x150] sm:$0xf]
  %v13210 = vld [vmem:[%s7 + $0x154] sm:$0xf]
  %v13211 = vld [vmem:[%s7 + $0x158] sm:$0xf]
  %v13212 = vld [vmem:[%s7 + $0x15c] sm:$0xf]
  %v13213 = vld [vmem:[%s7 + $0x160] sm:$0xf]
  %v13214 = vld [vmem:[%s7 + $0x164] sm:$0xf]
  %v13215 = vld [vmem:[%s7 + $0x168] sm:$0xf]
  %v13216 = vld [vmem:[%s7 + $0x16c] sm:$0xf]
  %v13217 = vld [vmem:[%s7 + $0x170] sm:$0xf]
  %v13218 = vld [vmem:[%s7 + $0x174] sm:$0xf]
  %v13219 = vld [vmem:[%s7 + $0x178] sm:$0xf]
  %v13220 = vld [vmem:[%s7 + $0x17c] sm:$0xf]
  %v13221 = vld [vmem:[%s7 + $0x180] sm:$0xf]
  %v13222 = vld [vmem:[%s7 + $0x184] sm:$0xf]
  %v13223 = vld [vmem:[%s7 + $0x188] sm:$0xf]
  %v13224 = vld [vmem:[%s7 + $0x18c] sm:$0xf]
  %v13225 = vld [vmem:[%s7 + $0x190] sm:$0xf]
  %v13226 = vld [vmem:[%s7 + $0x194] sm:$0xf]
  %v13227 = vld [vmem:[%s7 + $0x198] sm:$0xf]
  %v13228 = vld [vmem:[%s7 + $0x19c] sm:$0xf]
  %v13229 = vld [vmem:[%s7 + $0x1a0] sm:$0xf]
  %v13230 = vld [vmem:[%s7 + $0x1a4] sm:$0xf]
  %v13231 = vld [vmem:[%s7 + $0x1a8] sm:$0xf]
  %v13232 = vld [vmem:[%s7 + $0x1ac] sm:$0xf]
  %v13233 = vld [vmem:[%s7 + $0x1b0] sm:$0xf]
  %v13234 = vld [vmem:[%s7 + $0x1b4] sm:$0xf]
  %v13235 = vld [vmem:[%s7 + $0x1b8] sm:$0xf]
  %v13236 = vld [vmem:[%s7 + $0x1bc] sm:$0xf]
  %v13237 = vld [vmem:[%s7 + $0x1c0] sm:$0xf]
  %v13238 = vld [vmem:[%s7 + $0x1c4] sm:$0xf]
  %v13239 = vld [vmem:[%s7 + $0x1c8] sm:$0xf]
  %v13240 = vld [vmem:[%s7 + $0x1cc] sm:$0xf]
  %v13241 = vld [vmem:[%s7 + $0x1d0] sm:$0xf]
  %v13242 = vld [vmem:[%s7 + $0x1d4] sm:$0xf]
  %v13243 = vld [vmem:[%s7 + $0x1d8] sm:$0xf]
  %v13244 = vld [vmem:[%s7 + $0x1dc] sm:$0xf]
  %v13245 = vld [vmem:[%s7 + $0x1e0] sm:$0xf]
  %v13246 = vld [vmem:[%s7 + $0x1e4] sm:$0xf]
  %v13247 = vld [vmem:[%s7 + $0x1e8] sm:$0xf]
  %v13248 = vld [vmem:[%s7 + $0x1ec] sm:$0xf]
  %v13249 = vld [vmem:[%s7 + $0x1f0] sm:$0xf]
  %v13250 = vld [vmem:[%s7 + $0x1f4] sm:$0xf]
  %v13251 = vld [vmem:[%s7 + $0x1f8] sm:$0xf]
  %v13252 = vld [vmem:[%s7 + $0x1fc] sm:$0xf]
  %v13253 = vld [vmem:[%s7 + $0x200] sm:$0xf]
  %v13254 = vld [vmem:[%s7 + $0x204] sm:$0xf]
  %v13255 = vld [vmem:[%s7 + $0x208] sm:$0xf]
  %v13256 = vld [vmem:[%s7 + $0x20c] sm:$0xf]
  %v13257 = vld [vmem:[%s7 + $0x210] sm:$0xf]
  %v13258 = vld [vmem:[%s7 + $0x214] sm:$0xf]
  %v13259 = vld [vmem:[%s7 + $0x218] sm:$0xf]
  %v13260 = vld [vmem:[%s7 + $0x21c] sm:$0xf]
  %v13261 = vld [vmem:[%s7 + $0x220] sm:$0xf]
  %v13262 = vld [vmem:[%s7 + $0x224] sm:$0xf]
  %v13263 = vld [vmem:[%s7 + $0x228] sm:$0xf]
  %v13264 = vld [vmem:[%s7 + $0x22c] sm:$0xf]
  %v13265 = vld [vmem:[%s7 + $0x230] sm:$0xf]
  %v13266 = vld [vmem:[%s7 + $0x234] sm:$0xf]
  %v13267 = vld [vmem:[%s7 + $0x238] sm:$0xf]
  %v13268 = vld [vmem:[%s7 + $0x23c] sm:$0xf]
  %v13269 = vld [vmem:[%s8] sm:$0x1]
  %v13271 = vlaneseq
  %v13272 = vshrl.u32 %v13271, 7
  %v13273 = vsub.s32 0, %v13272
  %v13274 = vrot.slane %v13269, %v13273
  %v13420 = vunpack.c.l.b16 %v13125
  %v13421 = vunpack.c.l.b16 %v13126
  %v13422 = vunpack.c.l.b16 %v13127
  %v13423 = vunpack.c.l.b16 %v13128
  %v13424 = vunpack.c.l.b16 %v13129
  %v13425 = vunpack.c.l.b16 %v13130
  %v13426 = vunpack.c.l.b16 %v13131
  %v13427 = vunpack.c.l.b16 %v13132
  %v13428 = vunpack.c.l.b16 %v13133
  %v13429 = vunpack.c.l.b16 %v13134
  %v13430 = vunpack.c.l.b16 %v13135
  %v13431 = vunpack.c.l.b16 %v13136
  %v13432 = vunpack.c.l.b16 %v13137
  %v13433 = vunpack.c.l.b16 %v13138
  %v13434 = vunpack.c.l.b16 %v13139
  %v13435 = vunpack.c.l.b16 %v13140
  %v13436 = vunpack.c.l.b16 %v13141
  %v13437 = vunpack.c.l.b16 %v13142
  %v13438 = vunpack.c.l.b16 %v13143
  %v13439 = vunpack.c.l.b16 %v13144
  %v13440 = vunpack.c.l.b16 %v13145
  %v13441 = vunpack.c.l.b16 %v13146
  %v13442 = vunpack.c.l.b16 %v13147
  %v13443 = vunpack.c.l.b16 %v13148
  %v13444 = vunpack.c.l.b16 %v13149
  %v13445 = vunpack.c.l.b16 %v13150
  %v13446 = vunpack.c.l.b16 %v13151
  %v13447 = vunpack.c.l.b16 %v13152
  %v13448 = vunpack.c.l.b16 %v13153
  %v13449 = vunpack.c.l.b16 %v13154
  %v13450 = vunpack.c.l.b16 %v13155
  %v13451 = vunpack.c.l.b16 %v13156
  %v13452 = vunpack.c.l.b16 %v13157
  %v13453 = vunpack.c.l.b16 %v13158
  %v13454 = vunpack.c.l.b16 %v13159
  %v13455 = vunpack.c.l.b16 %v13160
  %v13456 = vunpack.c.l.b16 %v13161
  %v13457 = vunpack.c.l.b16 %v13162
  %v13458 = vunpack.c.l.b16 %v13163
  %v13459 = vunpack.c.l.b16 %v13164
  %v13460 = vunpack.c.l.b16 %v13165
  %v13461 = vunpack.c.l.b16 %v13166
  %v13462 = vunpack.c.l.b16 %v13167
  %v13463 = vunpack.c.l.b16 %v13168
  %v13464 = vunpack.c.l.b16 %v13169
  %v13465 = vunpack.c.l.b16 %v13170
  %v13466 = vunpack.c.l.b16 %v13171
  %v13467 = vunpack.c.l.b16 %v13172
  %v13468 = vunpack.c.l.b16 %v13173
  %v13469 = vunpack.c.l.b16 %v13174
  %v13470 = vunpack.c.l.b16 %v13175
  %v13471 = vunpack.c.l.b16 %v13176
  %v13472 = vunpack.c.l.b16 %v13177
  %v13473 = vunpack.c.l.b16 %v13178
  %v13474 = vunpack.c.l.b16 %v13179
  %v13475 = vunpack.c.l.b16 %v13180
  %v13476 = vunpack.c.l.b16 %v13181
  %v13477 = vunpack.c.l.b16 %v13182
  %v13478 = vunpack.c.l.b16 %v13183
  %v13479 = vunpack.c.l.b16 %v13184
  %v13480 = vunpack.c.l.b16 %v13185
  %v13481 = vunpack.c.l.b16 %v13186
  %v13482 = vunpack.c.l.b16 %v13187
  %v13483 = vunpack.c.l.b16 %v13188
  %v13484 = vunpack.c.l.b16 %v13189
  %v13485 = vunpack.c.l.b16 %v13190
  %v13486 = vunpack.c.l.b16 %v13191
  %v13487 = vunpack.c.l.b16 %v13192
  %v13488 = vunpack.c.l.b16 %v13193
  %v13489 = vunpack.c.l.b16 %v13194
  %v13490 = vunpack.c.l.b16 %v13195
  %v13491 = vunpack.c.l.b16 %v13196
  %v13492 = vunpack.c.l.b16 %v13197
  %v13493 = vunpack.c.l.b16 %v13198
  %v13494 = vunpack.c.l.b16 %v13199
  %v13495 = vunpack.c.l.b16 %v13200
  %v13496 = vunpack.c.l.b16 %v13201
  %v13497 = vunpack.c.l.b16 %v13202
  %v13498 = vunpack.c.l.b16 %v13203
  %v13499 = vunpack.c.l.b16 %v13204
  %v13500 = vunpack.c.l.b16 %v13205
  %v13501 = vunpack.c.l.b16 %v13206
  %v13502 = vunpack.c.l.b16 %v13207
  %v13503 = vunpack.c.l.b16 %v13208
  %v13504 = vunpack.c.l.b16 %v13209
  %v13505 = vunpack.c.l.b16 %v13210
  %v13506 = vunpack.c.l.b16 %v13211
  %v13507 = vunpack.c.l.b16 %v13212
  %v13508 = vunpack.c.l.b16 %v13213
  %v13509 = vunpack.c.l.b16 %v13214
  %v13510 = vunpack.c.l.b16 %v13215
  %v13511 = vunpack.c.l.b16 %v13216
  %v13512 = vunpack.c.l.b16 %v13217
  %v13513 = vunpack.c.l.b16 %v13218
  %v13514 = vunpack.c.l.b16 %v13219
  %v13515 = vunpack.c.l.b16 %v13220
  %v13516 = vunpack.c.l.b16 %v13221
  %v13517 = vunpack.c.l.b16 %v13222
  %v13518 = vunpack.c.l.b16 %v13223
  %v13519 = vunpack.c.l.b16 %v13224
  %v13520 = vunpack.c.l.b16 %v13225
  %v13521 = vunpack.c.l.b16 %v13226
  %v13522 = vunpack.c.l.b16 %v13227
  %v13523 = vunpack.c.l.b16 %v13228
  %v13524 = vunpack.c.l.b16 %v13229
  %v13525 = vunpack.c.l.b16 %v13230
  %v13526 = vunpack.c.l.b16 %v13231
  %v13527 = vunpack.c.l.b16 %v13232
  %v13528 = vunpack.c.l.b16 %v13233
  %v13529 = vunpack.c.l.b16 %v13234
  %v13530 = vunpack.c.l.b16 %v13235
  %v13531 = vunpack.c.l.b16 %v13236
  %v13532 = vunpack.c.l.b16 %v13237
  %v13533 = vunpack.c.l.b16 %v13238
  %v13534 = vunpack.c.l.b16 %v13239
  %v13535 = vunpack.c.l.b16 %v13240
  %v13536 = vunpack.c.l.b16 %v13241
  %v13537 = vunpack.c.l.b16 %v13242
  %v13538 = vunpack.c.l.b16 %v13243
  %v13539 = vunpack.c.l.b16 %v13244
  %v13540 = vunpack.c.l.b16 %v13245
  %v13541 = vunpack.c.l.b16 %v13246
  %v13542 = vunpack.c.l.b16 %v13247
  %v13543 = vunpack.c.l.b16 %v13248
  %v13544 = vunpack.c.l.b16 %v13249
  %v13545 = vunpack.c.l.b16 %v13250
  %v13546 = vunpack.c.l.b16 %v13251
  %v13547 = vunpack.c.l.b16 %v13252
  %v13548 = vunpack.c.l.b16 %v13253
  %v13549 = vunpack.c.l.b16 %v13254
  %v13550 = vunpack.c.l.b16 %v13255
  %v13551 = vunpack.c.l.b16 %v13256
  %v13552 = vunpack.c.l.b16 %v13257
  %v13553 = vunpack.c.l.b16 %v13258
  %v13554 = vunpack.c.l.b16 %v13259
  %v13555 = vunpack.c.l.b16 %v13260
  %v13556 = vunpack.c.l.b16 %v13261
  %v13557 = vunpack.c.l.b16 %v13262
  %v13558 = vunpack.c.l.b16 %v13263
  %v13559 = vunpack.c.l.b16 %v13264
  %v13560 = vunpack.c.l.b16 %v13265
  %v13561 = vunpack.c.l.b16 %v13266
  %v13562 = vunpack.c.l.b16 %v13267
  %v13563 = vunpack.c.l.b16 %v13268
  %v13564 = vpack.c.b16 %v13421, %v13420
  %v13565 = vpack.c.b16 %v13423, %v13422
  %v13566 = vpack.c.b16 %v13425, %v13424
  %v13567 = vpack.c.b16 %v13427, %v13426
  %v13568 = vpack.c.b16 %v13429, %v13428
  %v13569 = vpack.c.b16 %v13431, %v13430
  %v13570 = vpack.c.b16 %v13433, %v13432
  %v13571 = vpack.c.b16 %v13435, %v13434
  %v13572 = vpack.c.b16 %v13437, %v13436
  %v13573 = vpack.c.b16 %v13439, %v13438
  %v13574 = vpack.c.b16 %v13441, %v13440
  %v13575 = vpack.c.b16 %v13443, %v13442
  %v13576 = vpack.c.b16 %v13445, %v13444
  %v13577 = vpack.c.b16 %v13447, %v13446
  %v13578 = vpack.c.b16 %v13449, %v13448
  %v13579 = vpack.c.b16 %v13451, %v13450
  %v13580 = vpack.c.b16 %v13453, %v13452
  %v13581 = vpack.c.b16 %v13455, %v13454
  %v13582 = vpack.c.b16 %v13457, %v13456
  %v13583 = vpack.c.b16 %v13459, %v13458
  %v13584 = vpack.c.b16 %v13461, %v13460
  %v13585 = vpack.c.b16 %v13463, %v13462
  %v13586 = vpack.c.b16 %v13465, %v13464
  %v13587 = vpack.c.b16 %v13467, %v13466
  %v13588 = vpack.c.b16 %v13469, %v13468
  %v13589 = vpack.c.b16 %v13471, %v13470
  %v13590 = vpack.c.b16 %v13473, %v13472
  %v13591 = vpack.c.b16 %v13475, %v13474
  %v13592 = vpack.c.b16 %v13477, %v13476
  %v13593 = vpack.c.b16 %v13479, %v13478
  %v13594 = vpack.c.b16 %v13481, %v13480
  %v13595 = vpack.c.b16 %v13483, %v13482
  %v13596 = vpack.c.b16 %v13485, %v13484
  %v13597 = vpack.c.b16 %v13487, %v13486
  %v13598 = vpack.c.b16 %v13489, %v13488
  %v13599 = vpack.c.b16 %v13491, %v13490
  %v13600 = vpack.c.b16 %v13493, %v13492
  %v13601 = vpack.c.b16 %v13495, %v13494
  %v13602 = vpack.c.b16 %v13497, %v13496
  %v13603 = vpack.c.b16 %v13499, %v13498
  %v13604 = vpack.c.b16 %v13501, %v13500
  %v13605 = vpack.c.b16 %v13503, %v13502
  %v13606 = vpack.c.b16 %v13505, %v13504
  %v13607 = vpack.c.b16 %v13507, %v13506
  %v13608 = vpack.c.b16 %v13509, %v13508
  %v13609 = vpack.c.b16 %v13511, %v13510
  %v13610 = vpack.c.b16 %v13513, %v13512
  %v13611 = vpack.c.b16 %v13515, %v13514
  %v13612 = vpack.c.b16 %v13517, %v13516
  %v13613 = vpack.c.b16 %v13519, %v13518
  %v13614 = vpack.c.b16 %v13521, %v13520
  %v13615 = vpack.c.b16 %v13523, %v13522
  %v13616 = vpack.c.b16 %v13525, %v13524
  %v13617 = vpack.c.b16 %v13527, %v13526
  %v13618 = vpack.c.b16 %v13529, %v13528
  %v13619 = vpack.c.b16 %v13531, %v13530
  %v13620 = vpack.c.b16 %v13533, %v13532
  %v13621 = vpack.c.b16 %v13535, %v13534
  %v13622 = vpack.c.b16 %v13537, %v13536
  %v13623 = vpack.c.b16 %v13539, %v13538
  %v13624 = vpack.c.b16 %v13541, %v13540
  %v13625 = vpack.c.b16 %v13543, %v13542
  %v13626 = vpack.c.b16 %v13545, %v13544
  %v13627 = vpack.c.b16 %v13547, %v13546
  %v13628 = vpack.c.b16 %v13549, %v13548
  %v13629 = vpack.c.b16 %v13551, %v13550
  %v13630 = vpack.c.b16 %v13553, %v13552
  %v13631 = vpack.c.b16 %v13555, %v13554
  %v13632 = vpack.c.b16 %v13557, %v13556
  %v13633 = vpack.c.b16 %v13559, %v13558
  %v13634 = vpack.c.b16 %v13561, %v13560
  %v13635 = vpack.c.b16 %v13563, %v13562
  %13708 = vmatprep.subr.bf16.mxu0 0
  %13709 = vmatpush1.bf16.msra.mxu0 %v13571
  %13710 = vmatprep.subr.bf16.mxu0 0
  %13711 = vmatpush1.bf16.msra.mxu0 %v13570
  %13712 = vmatprep.subr.bf16.mxu0 0
  %13713 = vmatpush1.bf16.msra.mxu0 %v13569
  %13714 = vmatprep.subr.bf16.mxu0 0
  %13715 = vmatpush1.bf16.msra.mxu0 %v13568
  %13716 = vmatprep.subr.bf16.mxu0 0
  %13717 = vmatpush1.bf16.msra.mxu0 %v13567
  %13718 = vmatprep.subr.bf16.mxu0 0
  %13719 = vmatpush1.bf16.msra.mxu0 %v13566
  %13720 = vmatprep.subr.bf16.mxu0 0
  %13721 = vmatpush1.bf16.msra.mxu0 %v13565
  %13722 = vmatprep.subr.bf16.mxu0 0
  %13723 = vmatpush1.bf16.msra.mxu0 %v13564
  %13724 = vmatprep.subr.bf16.mxu0 0
  %13725 = vmatpush2.bf16.msra.mxu0 %v13579
  %13726 = vmatprep.subr.bf16.mxu0 0
  %13727 = vmatpush2.bf16.msra.mxu0 %v13578
  %13728 = vmatprep.subr.bf16.mxu0 0
  %13729 = vmatpush2.bf16.msra.mxu0 %v13577
  %13730 = vmatprep.subr.bf16.mxu0 0
  %13731 = vmatpush2.bf16.msra.mxu0 %v13576
  %13732 = vmatprep.subr.bf16.mxu0 0
  %13733 = vmatpush2.bf16.msra.mxu0 %v13575
  %13734 = vmatprep.subr.bf16.mxu0 0
  %13735 = vmatpush2.bf16.msra.mxu0 %v13574
  %13736 = vmatprep.subr.bf16.mxu0 0
  %13737 = vmatpush2.bf16.msra.mxu0 %v13573
  %13738 = vmatprep.subr.bf16.mxu0 0
  %13739 = vmatpush2.bf16.msra.mxu0 %v13572
  %13740 = vmatprep.mubr.bf16.mxu0 %v13097
  %13741 = vmatmul.mubr.bf16.gmra.mxu0 %v13073
  %v13742 = vpop.f32.mrf.mxu0
  %v13743 = vadd.f32 %v13274, %v13742
  %v13744 = vpop.f32.mrf.mxu0
  %v13745 = vpop.f32.mrf.mxu0
  %v13746 = vadd.f32 %v13274, %v13745
  %v13747 = vpop.f32.mrf.mxu0
  %13748 = vmatprep.mubr.bf16.mxu0 %v13098
  %13749 = vmatmul.mubr.bf16.gmra.mxu0 %v13074
  %v13750 = vpop.f32.mrf.mxu0
  %v13751 = vpop.f32.mrf.mxu0
  %v13752 = vpop.f32.mrf.mxu0
  %v13753 = vpop.f32.mrf.mxu0
  %13754 = vmatprep.mubr.bf16.mxu0 %v13099
  %13755 = vmatmul.mubr.bf16.gmra.mxu0 %v13075
  %v13756 = vpop.f32.mrf.mxu0
  %v13757 = vpop.f32.mrf.mxu0
  %v13758 = vpop.f32.mrf.mxu0
  %v13759 = vpop.f32.mrf.mxu0
  %13760 = vmatprep.mubr.bf16.mxu0 %v13100
  %13761 = vmatmul.mubr.bf16.gmra.mxu0 %v13076
  %v13762 = vpop.f32.mrf.mxu0
  %v13763 = vadd.f32 %v13274, %v13762
  %v13764 = vpop.f32.mrf.mxu0
  %v13765 = vpop.f32.mrf.mxu0
  %v13766 = vadd.f32 %v13274, %v13765
  %v13767 = vpop.f32.mrf.mxu0
  %13768 = vdwg.mxu0
  %13769 = vmatprep.subr.bf16.mxu0 0
  %13770 = vmatpush1.bf16.msra.mxu0 %v13587
  %13771 = vmatprep.subr.bf16.mxu0 0
  %13772 = vmatpush1.bf16.msra.mxu0 %v13586
  %13773 = vmatprep.subr.bf16.mxu0 0
  %13774 = vmatpush1.bf16.msra.mxu0 %v13585
  %13775 = vmatprep.subr.bf16.mxu0 0
  %13776 = vmatpush1.bf16.msra.mxu0 %v13584
  %13777 = vmatprep.subr.bf16.mxu0 0
  %13778 = vmatpush1.bf16.msra.mxu0 %v13583
  %13779 = vmatprep.subr.bf16.mxu0 0
  %13780 = vmatpush1.bf16.msra.mxu0 %v13582
  %13781 = vmatprep.subr.bf16.mxu0 0
  %13782 = vmatpush1.bf16.msra.mxu0 %v13581
  %13783 = vmatprep.subr.bf16.mxu0 0
  %13784 = vmatpush1.bf16.msra.mxu0 %v13580
  %13785 = vmatprep.subr.bf16.mxu0 0
  %13786 = vmatpush2.bf16.msra.mxu0 %v13595
  %13787 = vmatprep.subr.bf16.mxu0 0
  %13788 = vmatpush2.bf16.msra.mxu0 %v13594
  %13789 = vmatprep.subr.bf16.mxu0 0
  %13790 = vmatpush2.bf16.msra.mxu0 %v13593
  %13791 = vmatprep.subr.bf16.mxu0 0
  %13792 = vmatpush2.bf16.msra.mxu0 %v13592
  %13793 = vmatprep.subr.bf16.mxu0 0
  %13794 = vmatpush2.bf16.msra.mxu0 %v13591
  %13795 = vmatprep.subr.bf16.mxu0 0
  %13796 = vmatpush2.bf16.msra.mxu0 %v13590
  %13797 = vmatprep.subr.bf16.mxu0 0
  %13798 = vmatpush2.bf16.msra.mxu0 %v13589
  %13799 = vmatprep.subr.bf16.mxu0 0
  %13800 = vmatpush2.bf16.msra.mxu0 %v13588
  %13801 = vmatprep.mubr.bf16.mxu0 %v13076
  %13802 = vmatmul.mubr.bf16.gmra.mxu0 %v13074
  %v13803 = vpop.f32.mrf.mxu0
  %v13804 = vadd.f32 %v13743, %v13803
  %v13805 = vpop.f32.mrf.mxu0
  %v13806 = vpop.f32.mrf.mxu0
  %v13807 = vadd.f32 %v13746, %v13806
  %v13808 = vpop.f32.mrf.mxu0
  %13809 = vmatprep.mubr.bf16.mxu0 %v13077
  %13810 = vmatmul.mubr.bf16.gmra.mxu0 %v13075
  %v13811 = vpop.f32.mrf.mxu0
  %v13812 = vpop.f32.mrf.mxu0
  %v13813 = vpop.f32.mrf.mxu0
  %v13814 = vpop.f32.mrf.mxu0
  %13815 = vmatprep.mubr.bf16.mxu0 %v13078
  %13816 = vmatmul.mubr.bf16.gmra.mxu0 %v13076
  %v13817 = vpop.f32.mrf.mxu0
  %v13818 = vpop.f32.mrf.mxu0
  %v13819 = vpop.f32.mrf.mxu0
  %v13820 = vpop.f32.mrf.mxu0
  %13821 = vmatprep.mubr.bf16.mxu0 %v13079
  %13822 = vmatmul.mubr.bf16.gmra.mxu0 %v13077
  %v13823 = vpop.f32.mrf.mxu0
  %v13824 = vadd.f32 %v13763, %v13823
  %v13825 = vpop.f32.mrf.mxu0
  %v13826 = vpop.f32.mrf.mxu0
  %v13827 = vadd.f32 %v13766, %v13826
  %v13828 = vpop.f32.mrf.mxu0
  %13829 = vdwg.mxu0
  %13830 = vmatprep.subr.bf16.mxu0 0
  %13831 = vmatpush1.bf16.msra.mxu0 %v13603
  %13832 = vmatprep.subr.bf16.mxu0 0
  %13833 = vmatpush1.bf16.msra.mxu0 %v13602
  %13834 = vmatprep.subr.bf16.mxu0 0
  %13835 = vmatpush1.bf16.msra.mxu0 %v13601
  %13836 = vmatprep.subr.bf16.mxu0 0
  %13837 = vmatpush1.bf16.msra.mxu0 %v13600
  %13838 = vmatprep.subr.bf16.mxu0 0
  %13839 = vmatpush1.bf16.msra.mxu0 %v13599
  %13840 = vmatprep.subr.bf16.mxu0 0
  %13841 = vmatpush1.bf16.msra.mxu0 %v13598
  %13842 = vmatprep.subr.bf16.mxu0 0
  %13843 = vmatpush1.bf16.msra.mxu0 %v13597
  %13844 = vmatprep.subr.bf16.mxu0 0
  %13845 = vmatpush1.bf16.msra.mxu0 %v13596
  %13846 = vmatprep.subr.bf16.mxu0 0
  %13847 = vmatpush2.bf16.msra.mxu0 %v13611
  %13848 = vmatprep.subr.bf16.mxu0 0
  %13849 = vmatpush2.bf16.msra.mxu0 %v13610
  %13850 = vmatprep.subr.bf16.mxu0 0
  %13851 = vmatpush2.bf16.msra.mxu0 %v13609
  %13852 = vmatprep.subr.bf16.mxu0 0
  %13853 = vmatpush2.bf16.msra.mxu0 %v13608
  %13854 = vmatprep.subr.bf16.mxu0 0
  %13855 = vmatpush2.bf16.msra.mxu0 %v13607
  %13856 = vmatprep.subr.bf16.mxu0 0
  %13857 = vmatpush2.bf16.msra.mxu0 %v13606
  %13858 = vmatprep.subr.bf16.mxu0 0
  %13859 = vmatpush2.bf16.msra.mxu0 %v13605
  %13860 = vmatprep.subr.bf16.mxu0 0
  %13861 = vmatpush2.bf16.msra.mxu0 %v13604
  %13862 = vmatprep.mubr.bf16.mxu0 %v13077
  %13863 = vmatmul.mubr.bf16.gmra.mxu0 %v13100
  %v13864 = vpop.f32.mrf.mxu0
  %v13865 = vadd.f32 %v13804, %v13864
  %v13866 = vpop.f32.mrf.mxu0
  %v13867 = vpop.f32.mrf.mxu0
  %v13868 = vadd.f32 %v13807, %v13867
  %v13869 = vpop.f32.mrf.mxu0
  %13870 = vmatprep.mubr.bf16.mxu0 %v13078
  %13871 = vmatmul.mubr.bf16.gmra.mxu0 %v13101
  %v13872 = vpop.f32.mrf.mxu0
  %v13873 = vpop.f32.mrf.mxu0
  %v13874 = vpop.f32.mrf.mxu0
  %v13875 = vpop.f32.mrf.mxu0
  %13876 = vmatprep.mubr.bf16.mxu0 %v13079
  %13877 = vmatmul.mubr.bf16.gmra.mxu0 %v13102
  %v13878 = vpop.f32.mrf.mxu0
  %v13879 = vpop.f32.mrf.mxu0
  %v13880 = vpop.f32.mrf.mxu0
  %v13881 = vpop.f32.mrf.mxu0
  %13882 = vmatprep.mubr.bf16.mxu0 %v13080
  %13883 = vmatmul.mubr.bf16.gmra.mxu0 %v13103
  %v13884 = vpop.f32.mrf.mxu0
  %v13885 = vadd.f32 %v13824, %v13884
  %v13886 = vpop.f32.mrf.mxu0
  %v13887 = vpop.f32.mrf.mxu0
  %v13888 = vadd.f32 %v13827, %v13887
  %v13889 = vpop.f32.mrf.mxu0
  %13890 = vdwg.mxu0
  %13891 = vmatprep.subr.bf16.mxu0 0
  %13892 = vmatpush1.bf16.msra.mxu0 %v13619
  %13893 = vmatprep.subr.bf16.mxu0 0
  %13894 = vmatpush1.bf16.msra.mxu0 %v13618
  %13895 = vmatprep.subr.bf16.mxu0 0
  %13896 = vmatpush1.bf16.msra.mxu0 %v13617
  %13897 = vmatprep.subr.bf16.mxu0 0
  %13898 = vmatpush1.bf16.msra.mxu0 %v13616
  %13899 = vmatprep.subr.bf16.mxu0 0
  %13900 = vmatpush1.bf16.msra.mxu0 %v13615
  %13901 = vmatprep.subr.bf16.mxu0 0
  %13902 = vmatpush1.bf16.msra.mxu0 %v13614
  %13903 = vmatprep.subr.bf16.mxu0 0
  %13904 = vmatpush1.bf16.msra.mxu0 %v13613
  %13905 = vmatprep.subr.bf16.mxu0 0
  %13906 = vmatpush1.bf16.msra.mxu0 %v13612
  %13907 = vmatprep.subr.bf16.mxu0 0
  %13908 = vmatpush2.bf16.msra.mxu0 %v13627
  %13909 = vmatprep.subr.bf16.mxu0 0
  %13910 = vmatpush2.bf16.msra.mxu0 %v13626
  %13911 = vmatprep.subr.bf16.mxu0 0
  %13912 = vmatpush2.bf16.msra.mxu0 %v13625
  %13913 = vmatprep.subr.bf16.mxu0 0
  %13914 = vmatpush2.bf16.msra.mxu0 %v13624
  %13915 = vmatprep.subr.bf16.mxu0 0
  %13916 = vmatpush2.bf16.msra.mxu0 %v13623
  %13917 = vmatprep.subr.bf16.mxu0 0
  %13918 = vmatpush2.bf16.msra.mxu0 %v13622
  %13919 = vmatprep.subr.bf16.mxu0 0
  %13920 = vmatpush2.bf16.msra.mxu0 %v13621
  %13921 = vmatprep.subr.bf16.mxu0 0
  %13922 = vmatpush2.bf16.msra.mxu0 %v13620
  %13923 = vmatprep.mubr.bf16.mxu0 %v13103
  %13924 = vmatmul.mubr.bf16.gmra.mxu0 %v13079
  %v13925 = vpop.f32.mrf.mxu0
  %v13926 = vadd.f32 %v13865, %v13925
  %v13927 = vpop.f32.mrf.mxu0
  %v13928 = vpop.f32.mrf.mxu0
  %v13929 = vadd.f32 %v13868, %v13928
  %v13930 = vpop.f32.mrf.mxu0
  %13931 = vmatprep.mubr.bf16.mxu0 %v13104
  %13932 = vmatmul.mubr.bf16.gmra.mxu0 %v13080
  %v13933 = vpop.f32.mrf.mxu0
  %v13934 = vpop.f32.mrf.mxu0
  %v13935 = vpop.f32.mrf.mxu0
  %v13936 = vpop.f32.mrf.mxu0
  %13937 = vmatprep.mubr.bf16.mxu0 %v13105
  %13938 = vmatmul.mubr.bf16.gmra.mxu0 %v13081
  %v13939 = vpop.f32.mrf.mxu0
  %v13940 = vpop.f32.mrf.mxu0
  %v13941 = vpop.f32.mrf.mxu0
  %v13942 = vpop.f32.mrf.mxu0
  %13943 = vmatprep.mubr.bf16.mxu0 %v13106
  %13944 = vmatmul.mubr.bf16.gmra.mxu0 %v13082
  %v13945 = vpop.f32.mrf.mxu0
  %v13946 = vadd.f32 %v13885, %v13945
  %v13947 = vpop.f32.mrf.mxu0
  %v13948 = vpop.f32.mrf.mxu0
  %v13949 = vadd.f32 %v13888, %v13948
  %v13950 = vpop.f32.mrf.mxu0
  %13951 = vdwg.mxu0
  %13952 = vmatprep.subr.bf16.mxu0 0
  %13953 = vmatpush1.bf16.msra.mxu0 %v13635
  %13954 = vmatprep.subr.bf16.mxu0 0
  %13955 = vmatpush1.bf16.msra.mxu0 %v13634
  %13956 = vmatprep.subr.bf16.mxu0 0
  %13957 = vmatpush1.bf16.msra.mxu0 %v13633
  %13958 = vmatprep.subr.bf16.mxu0 0
  %13959 = vmatpush1.bf16.msra.mxu0 %v13632
  %13960 = vmatprep.subr.bf16.mxu0 0
  %13961 = vmatpush1.bf16.msra.mxu0 %v13631
  %13962 = vmatprep.subr.bf16.mxu0 0
  %13963 = vmatpush1.bf16.msra.mxu0 %v13630
  %13964 = vmatprep.subr.bf16.mxu0 0
  %13965 = vmatpush1.bf16.msra.mxu0 %v13629
  %13966 = vmatprep.subr.bf16.mxu0 0
  %13967 = vmatpush1.bf16.msra.mxu0 %v13628
  %13968 = vmatprep.subr.bf16.mxu0 0
  %13969 = vmatpush2.bf16.msra.mxu0 0
  %13970 = vmatprep.subr.bf16.mxu0 0
  %13971 = vmatpush2.bf16.msra.mxu0 0
  %13972 = vmatprep.subr.bf16.mxu0 0
  %13973 = vmatpush2.bf16.msra.mxu0 0
  %13974 = vmatprep.subr.bf16.mxu0 0
  %13975 = vmatpush2.bf16.msra.mxu0 0
  %13976 = vmatprep.subr.bf16.mxu0 0
  %13977 = vmatpush2.bf16.msra.mxu0 0
  %13978 = vmatprep.subr.bf16.mxu0 0
  %13979 = vmatpush2.bf16.msra.mxu0 0
  %13980 = vmatprep.subr.bf16.mxu0 0
  %13981 = vmatpush2.bf16.msra.mxu0 0
  %13982 = vmatprep.subr.bf16.mxu0 0
  %13983 = vmatpush2.bf16.msra.mxu0 0
  %13984 = vmatprep.mubr.bf16.mxu0 0
  %13985 = vmatmul.mubr.bf16.gmra.mxu0 %v13080
  %v13986 = vpop.f32.mrf.mxu0
  %v13987 = vadd.f32 %v13926, %v13986
  %v13988 = vpop.f32.mrf.mxu0
  %v13989 = vpop.f32.mrf.mxu0
  %v13990 = vadd.f32 %v13929, %v13989
  %v13991 = vpop.f32.mrf.mxu0
  %13992 = vmatprep.mubr.bf16.mxu0 0
  %13993 = vmatmul.mubr.bf16.gmra.mxu0 %v13081
  %v13994 = vpop.f32.mrf.mxu0
  %v13995 = vpop.f32.mrf.mxu0
  %v13996 = vpop.f32.mrf.mxu0
  %v13997 = vpop.f32.mrf.mxu0
  %13998 = vmatprep.mubr.bf16.mxu0 0
  %13999 = vmatmul.mubr.bf16.gmra.mxu0 %v13121
  %v14000 = vpop.f32.mrf.mxu0
  %v14001 = vpop.f32.mrf.mxu0
  %v14002 = vpop.f32.mrf.mxu0
  %v14003 = vpop.f32.mrf.mxu0
  %14004 = vmatprep.mubr.bf16.mxu0 0
  %14005 = vmatmul.mubr.bf16.gmra.mxu0 %v13122
  %v14006 = vpop.f32.mrf.mxu0
  %v14007 = vadd.f32 %v13946, %v14006
  %v14008 = vpop.f32.mrf.mxu0
  %v14009 = vpop.f32.mrf.mxu0
  %v14010 = vadd.f32 %v13949, %v14009
  %v14011 = vpop.f32.mrf.mxu0
  %14012 = vdwg.mxu0
  %vm14013 = vcmp.ge.f32.partialorder %v13987, 0.0
  %vm14014 = vcmp.ge.f32.partialorder %v13990, 0.0
  %vm14015 = vcmp.ge.f32.partialorder %v14007, 0.0
  %vm14016 = vcmp.ge.f32.partialorder %v14010, 0.0
  %v14017 = vmul.f32 %v13987, 0.01
  %v14018 = vmul.f32 %v13990, 0.01
  %v14019 = vmul.f32 %v14007, 0.01
  %v14020 = vmul.f32 %v14010, 0.01
  %v14021 = vsel %vm14013, %v13987, %v14017
  %v14022 = vsel %vm14014, %v13990, %v14018
  %v14023 = vsel %vm14015, %v14007, %v14019
  %v14024 = vsel %vm14016, %v14010, %v14020
  %v14025 = vadd.f32 %v14021, %v14022
  %v14026 = vadd.f32 %v14023, %v14024
  %v14027 = vadd.f32 %v14025, %v14026
  %v14028 = vmul.f32 %v14027, 0.25
  %v14029 = vld [vmem:[%s9] sm:$0xff]
  %v14030 = vld [vmem:[%s9 + $0x8] sm:$0xff]
  %v14031 = vld [vmem:[%s9 + $0x10] sm:$0xff]
  %v14032 = vld [vmem:[%s9 + $0x18] sm:$0xff]
  %v14033 = vld [vmem:[%s9 + $0x20] sm:$0xff]
  %v14034 = vld [vmem:[%s9 + $0x28] sm:$0xff]
  %v14035 = vld [vmem:[%s9 + $0x30] sm:$0xff]
  %v14036 = vld [vmem:[%s9 + $0x38] sm:$0xff]
  %v14037 = vld [vmem:[%s9 + $0x40] sm:$0xff]
  %v14038 = vld [vmem:[%s9 + $0x48] sm:$0xff]
  %v14039 = vld [vmem:[%s9 + $0x50] sm:$0xff]
  %v14040 = vld [vmem:[%s9 + $0x58] sm:$0xff]
  %v14041 = vld [vmem:[%s9 + $0x60] sm:$0xff]
  %v14042 = vld [vmem:[%s9 + $0x68] sm:$0xff]
  %v14043 = vld [vmem:[%s9 + $0x70] sm:$0xff]
  %v14044 = vld [vmem:[%s9 + $0x78] sm:$0xff]
  %v14045 = vld [vmem:[%s10] sm:$0x1]
  %14046 = vmatprep.subr.mxu0 0.0
  %14047 = vmatpush1.msra.mxu0 %v14044
  %14048 = vmatprep.subr.mxu0 0.0
  %14049 = vmatpush1.msra.mxu0 %v14043
  %14050 = vmatprep.subr.mxu0 0.0
  %14051 = vmatpush1.msra.mxu0 %v14042
  %14052 = vmatprep.subr.mxu0 0.0
  %14053 = vmatpush1.msra.mxu0 %v14041
  %14054 = vmatprep.subr.mxu0 0.0
  %14055 = vmatpush1.msra.mxu0 %v14040
  %14056 = vmatprep.subr.mxu0 0.0
  %14057 = vmatpush1.msra.mxu0 %v14039
  %14058 = vmatprep.subr.mxu0 0.0
  %14059 = vmatpush1.msra.mxu0 %v14038
  %14060 = vmatprep.subr.mxu0 0.0
  %14061 = vmatpush1.msra.mxu0 %v14037
  %14062 = vmatprep.subr.mxu0 0.0
  %14063 = vmatpush1.msra.mxu0 %v14036
  %14064 = vmatprep.subr.mxu0 0.0
  %14065 = vmatpush1.msra.mxu0 %v14035
  %14066 = vmatprep.subr.mxu0 0.0
  %14067 = vmatpush1.msra.mxu0 %v14034
  %14068 = vmatprep.subr.mxu0 0.0
  %14069 = vmatpush1.msra.mxu0 %v14033
  %14070 = vmatprep.subr.mxu0 0.0
  %14071 = vmatpush1.msra.mxu0 %v14032
  %14072 = vmatprep.subr.mxu0 0.0
  %14073 = vmatpush1.msra.mxu0 %v14031
  %14074 = vmatprep.subr.mxu0 0.0
  %14075 = vmatpush1.msra.mxu0 %v14030
  %14076 = vmatprep.subr.mxu0 0.0
  %14077 = vmatpush1.msra.mxu0 %v14029
  %14078 = vmatprep.subr.mxu0 0.0
  %14079 = vmatpush2.msra.mxu0 0.0
  %14080 = vmatprep.subr.mxu0 0.0
  %14081 = vmatpush2.msra.mxu0 0.0
  %14082 = vmatprep.subr.mxu0 0.0
  %14083 = vmatpush2.msra.mxu0 0.0
  %14084 = vmatprep.subr.mxu0 0.0
  %14085 = vmatpush2.msra.mxu0 0.0
  %14086 = vmatprep.subr.mxu0 0.0
  %14087 = vmatpush2.msra.mxu0 0.0
  %14088 = vmatprep.subr.mxu0 0.0
  %14089 = vmatpush2.msra.mxu0 0.0
  %14090 = vmatprep.subr.mxu0 0.0
  %14091 = vmatpush2.msra.mxu0 0.0
  %14092 = vmatprep.subr.mxu0 0.0
  %14093 = vmatpush2.msra.mxu0 0.0
  %14094 = vmatprep.subr.mxu0 0.0
  %14095 = vmatpush2.msra.mxu0 0.0
  %14096 = vmatprep.subr.mxu0 0.0
  %14097 = vmatpush2.msra.mxu0 0.0
  %14098 = vmatprep.subr.mxu0 0.0
  %14099 = vmatpush2.msra.mxu0 0.0
  %14100 = vmatprep.subr.mxu0 0.0
  %14101 = vmatpush2.msra.mxu0 0.0
  %14102 = vmatprep.subr.mxu0 0.0
  %14103 = vmatpush2.msra.mxu0 0.0
  %14104 = vmatprep.subr.mxu0 0.0
  %14105 = vmatpush2.msra.mxu0 0.0
  %14106 = vmatprep.subr.mxu0 0.0
  %14107 = vmatpush2.msra.mxu0 0.0
  %14108 = vmatprep.subr.mxu0 0.0
  %14109 = vmatpush2.msra.mxu0 0.0
  %14110 = vmatprep.mubr.f32.mxu0 0.0
  %14111 = vmatmul.mubr.f32.gmra.mxu0 %v14028
  %v14112 = vpop.f32.mrf.mxu0
  %v14113 = vadd.f32 %v14045, %v14112
  %v14114 = vpop.f32.mrf.mxu0
  %14115 = vdwg.mxu0
  %vm14116 = vcmp.ge.f32.partialorder %v14113, 0.0
  %v14117 = vmul.f32 %v14113, 0.01
  %v14118 = vsel %vm14116, %v14113, %v14117
  %v14119 = vld [vmem:[%s11] sm:$0xff]
  %v14120 = vld [vmem:[%s11 + $0x8] sm:$0xff]
  %v14121 = vld [vmem:[%s11 + $0x10] sm:$0xf]
  %v14122 = vld [vmem:[%s12] sm:$0x1]
  %vm14123 = vcmask 162816
  %v14125 = vsel %vm14123, %v14118, 0
  %v14128 = vsel %vm12767, %v14121, 0
  %14130 = vmatprep.subr.mxu0 0.0
  %14131 = vmatpush1.msra.mxu0 0.0
  %14132 = vmatprep.subr.mxu0 0.0
  %14133 = vmatpush1.msra.mxu0 0.0
  %14134 = vmatprep.subr.mxu0 0.0
  %14135 = vmatpush1.msra.mxu0 0.0
  %14136 = vmatprep.subr.mxu0 0.0
  %14137 = vmatpush1.msra.mxu0 0.0
  %14138 = vmatprep.subr.mxu0 0.0
  %14139 = vmatpush1.msra.mxu0 0.0
  %14140 = vmatprep.subr.mxu0 0.0
  %14141 = vmatpush1.msra.mxu0 0.0
  %14142 = vmatprep.subr.mxu0 0.0
  %14143 = vmatpush1.msra.mxu0 0.0
  %14144 = vmatprep.subr.mxu0 0.0
  %14145 = vmatpush1.msra.mxu0 0.0
  %14146 = vmatprep.subr.mxu0 0.0
  %14147 = vmatpush1.msra.mxu0 0.0
  %14148 = vmatprep.subr.mxu0 0.0
  %14149 = vmatpush1.msra.mxu0 0.0
  %14150 = vmatprep.subr.mxu0 0.0
  %14151 = vmatpush1.msra.mxu0 0.0
  %14152 = vmatprep.subr.mxu0 0.0
  %14153 = vmatpush1.msra.mxu0 0.0
  %14154 = vmatprep.subr.mxu0 0.0
  %14155 = vmatpush1.msra.mxu0 0.0
  %14156 = vmatprep.subr.mxu0 0.0
  %14157 = vmatpush1.msra.mxu0 %v14128
  %14158 = vmatprep.subr.mxu0 0.0
  %14159 = vmatpush1.msra.mxu0 %v14120
  %14160 = vmatprep.subr.mxu0 0.0
  %14161 = vmatpush1.msra.mxu0 %v14119
  %14162 = vmatprep.subr.mxu0 0.0
  %14163 = vmatpush2.msra.mxu0 0.0
  %14164 = vmatprep.subr.mxu0 0.0
  %14165 = vmatpush2.msra.mxu0 0.0
  %14166 = vmatprep.subr.mxu0 0.0
  %14167 = vmatpush2.msra.mxu0 0.0
  %14168 = vmatprep.subr.mxu0 0.0
  %14169 = vmatpush2.msra.mxu0 0.0
  %14170 = vmatprep.subr.mxu0 0.0
  %14171 = vmatpush2.msra.mxu0 0.0
  %14172 = vmatprep.subr.mxu0 0.0
  %14173 = vmatpush2.msra.mxu0 0.0
  %14174 = vmatprep.subr.mxu0 0.0
  %14175 = vmatpush2.msra.mxu0 0.0
  %14176 = vmatprep.subr.mxu0 0.0
  %14177 = vmatpush2.msra.mxu0 0.0
  %14178 = vmatprep.subr.mxu0 0.0
  %14179 = vmatpush2.msra.mxu0 0.0
  %14180 = vmatprep.subr.mxu0 0.0
  %14181 = vmatpush2.msra.mxu0 0.0
  %14182 = vmatprep.subr.mxu0 0.0
  %14183 = vmatpush2.msra.mxu0 0.0
  %14184 = vmatprep.subr.mxu0 0.0
  %14185 = vmatpush2.msra.mxu0 0.0
  %14186 = vmatprep.subr.mxu0 0.0
  %14187 = vmatpush2.msra.mxu0 0.0
  %14188 = vmatprep.subr.mxu0 0.0
  %14189 = vmatpush2.msra.mxu0 0.0
  %14190 = vmatprep.subr.mxu0 0.0
  %14191 = vmatpush2.msra.mxu0 0.0
  %14192 = vmatprep.subr.mxu0 0.0
  %14193 = vmatpush2.msra.mxu0 0.0
  %14194 = vmatprep.mubr.f32.mxu0 0.0
  %14195 = vmatmul.mubr.f32.gmra.mxu0 %v14125
  %v14196 = vpop.f32.mrf.mxu0
  %v14197 = vadd.f32 %v14122, %v14196
  %v14198 = vpop.f32.mrf.mxu0
  %14199 = vdwg.mxu0
  %vm14200 = vcmask 24576
  %14201 = vst.msk [vmem:[%s13] sm:$0x1] %vm14200, %v14197
  // Predicated region
  $region54: #{convnn_forward.1} parent=0 // pred_check
    _
  $region55: #{convnn_forward.1} parent=0 // pred_check_branch
    %14203 = sbr.rel (0) target = $region57
  $region56: #{convnn_forward.1} parent=0 // pred_region
    _
  $region57: #{convnn_forward.1} parent=0 // pred_fallthru
    _
  // Predicated region
  $region58: #{convnn_forward.1} parent=0 // pred_check
    _
  $region59: #{convnn_forward.1} parent=0 // pred_check_branch
    %14205 = sbr.rel (0) target = $region61
  $region60: #{convnn_forward.1} parent=0 // pred_region
    _
  $region61: #{convnn_forward.1} parent=0 // pred_fallthru
    _

</llo_original>
